<compile_context>
chip_gen: v7x
topology: tpu7x:2x2x1
jax: 0.10.0
libtpu: 0.0.40
codegen_flags: <defaults>
</compile_context>

<pallas_src>
import math

import numpy as np
import jax
import jax.numpy as jnp
from jax import lax
from jax.experimental import pallas as pl
from jax.experimental.pallas import tpu as pltpu


# --------------------------------------------------------------------------
# Fused ResDB body: expansion1-3 + compression1-3 + conv_tail + ESA head.
# --------------------------------------------------------------------------
def _make_body_kernel(nf, nd, f, H, W):
    hw = H * W

    def kernel(x_ref,
               a_e1, w_e1, b_e1, a_e2, w_e2, b_e2, a_e3, w_e3, b_e3,
               a_c1, w_c1, b_c1, a_c2, w_c2, b_c2, a_c3, w_c3, b_c3,
               a_t, w_t, b_t, w_es1, b_es1, w_esf, b_esf,
               res_ref, c1cf_ref,
               x_scr, cat_scr, d_scr, hs_scr):
        # Boundary masks: computed once per image, reused by all 3 stages.
        col = lax.broadcasted_iota(jnp.int32, (1, hw), 1)
        xcol = col % W
        mask_l = xcol != 0            # tap reads (y, x-1): invalid at x == 0
        mask_r = xcol != (W - 1)      # tap reads (y, x+1): invalid at x == W-1
        mask_t = col >= W             # tap reads (y-1, x): invalid at y == 0
        mask_b = col < (hw - W)       # tap reads (y+1, x): invalid at y == H-1

        def prelu(v, a):
            return jnp.where(v >= 0, v, v * a)

        def compress(r0, a_c, w_c, b_c):
            """3x3 'same' conv of PReLU(r0).  w_c is packed (3*nf, 3*nf) with
            row index kh*nf + o and column index kw*nf + c (see init)."""
            r = prelu(r0, a_c[...])
            # Horizontal taps, built once and reused across the 3 kh rows.
            h_l = jnp.where(mask_l, pltpu.roll(r, 1, 1), 0.0)        # in[., x-1]
            h_r = jnp.where(mask_r, pltpu.roll(r, hw - 1, 1), 0.0)   # in[., x+1]
            hs_scr[0:nf, :] = h_l
            hs_scr[nf:2 * nf, :] = r
            hs_scr[2 * nf:3 * nf, :] = h_r
            # Single K = 3*nf matmul -> the three per-kh partials, stacked.
            gg = jnp.dot(w_c[...], hs_scr[...],
                         preferred_element_type=jnp.float32)         # (3nf, hw)
            up = jnp.where(mask_t, pltpu.roll(gg[0:nf], W, 1), 0.0)
            dn = jnp.where(mask_b,
                           pltpu.roll(gg[2 * nf:3 * nf], hw - W, 1), 0.0)
            return up + gg[nf:2 * nf] + dn + b_c[...]

        def build_cat(a_ref, d_slots):
            """PReLU'd cat(x, d...) packed into sublane-aligned scratch rows."""
            cat_scr[0:nf, :] = prelu(x_scr[...], a_ref[0:nf])
            for j, slot in enumerate(d_slots):
                lo = nf + j * nd
                cat_scr[lo:lo + nd, :] = prelu(
                    d_scr[slot * nd:(slot + 1) * nd, :], a_ref[lo:lo + nd])
            return nf + len(d_slots) * nd

        def stage(a_e, w_e, b_e, d_in_slots, d_out_base, d_out_n,
                  a_c, w_c, b_c):
            rows = build_cat(a_e, d_in_slots)
            # One merged expansion dot (no split-K).
            acc = jnp.dot(w_e[...], cat_scr[0:rows, :],
                          preferred_element_type=jnp.float32) + b_e[...]
            # Distilled channel groups go straight to VMEM scratch slots.
            d_scr[d_out_base * nd:(d_out_base + d_out_n) * nd, :] = (
                acc[nf:nf + d_out_n * nd])
            # Residual: re-read x_scr so the early x value is not live across
            # the large expansion / 3x3 intermediates (vreg pressure).
            x_scr[...] = x_scr[...] + compress(acc[0:nf], a_c, w_c, b_c)

        # d_scr row slots: d11=0, d12=1, d13=2, d21=3, d22=4, d31=5.
        x_scr[...] = x_ref[0]
        stage(a_e1, w_e1, b_e1, [], 0, 3, a_c1, w_c1, b_c1)
        stage(a_e2, w_e2, b_e2, [0], 3, 2, a_c2, w_c2, b_c2)
        stage(a_e3, w_e3, b_e3, [1, 3], 5, 1, a_c3, w_c3, b_c3)

        # conv_tail: PReLU(cat(x, d13, d22, d31)) -> nf, plus ESA head.
        rows = build_cat(a_t, [2, 4, 5])
        rt = jnp.dot(w_t[...], cat_scr[0:rows, :],
                     preferred_element_type=jnp.float32) + b_t[...]
        res_ref[0] = rt
        c1 = jnp.dot(w_es1[...], rt,
                     preferred_element_type=jnp.float32) + b_es1[...]
        cf = jnp.dot(w_esf[...], c1,
                     preferred_element_type=jnp.float32) + b_esf[...]
        c1cf_ref[0, 0:f, :] = c1          # ESA conv1 output
        c1cf_ref[0, f:2 * f, :] = cf      # ESA conv_f output

    return kernel


def body_fused(x, p, *, H, W):
    n, nf, hw = x.shape
    nd = (p['w_e1'].shape[0] - nf) // 3
    f = p['w_es1'].shape[0]
    kern = _make_body_kernel(nf, nd, f, H, W)

    params = (p['a_e1'], p['w_e1'], p['b_e1'],
              p['a_e2'], p['w_e2'], p['b_e2'],
              p['a_e3'], p['w_e3'], p['b_e3'],
              p['a_c1'], p['w_c1'], p['b_c1'],
              p['a_c2'], p['w_c2'], p['b_c2'],
              p['a_c3'], p['w_c3'], p['b_c3'],
              p['a_t'], p['w_t'], p['b_t'],
              p['w_es1'], p['b_es1'], p['w_esf'], p['b_esf'])

    in_specs = [pl.BlockSpec((1, nf, hw), lambda i: (i, 0, 0))]
    in_specs += [pl.BlockSpec(w.shape, lambda i: (0, 0)) for w in params]
    out_specs = (pl.BlockSpec((1, nf, hw), lambda i: (i, 0, 0)),
                 pl.BlockSpec((1, 2 * f, hw), lambda i: (i, 0, 0)))
    out_shape = (jax.ShapeDtypeStruct((n, nf, hw), jnp.float32),
                 jax.ShapeDtypeStruct((n, 2 * f, hw), jnp.float32))

    return pl.pallas_call(
        kern,
        out_shape=out_shape,
        grid=(n,),
        in_specs=in_specs,
        out_specs=out_specs,
        scratch_shapes=[pltpu.VMEM((nf, hw), jnp.float32),           # x_scr
                        pltpu.VMEM((nf + 3 * nd, hw), jnp.float32),  # cat_scr
                        pltpu.VMEM((6 * nd, hw), jnp.float32),       # d_scr
                        pltpu.VMEM((3 * nf, hw), jnp.float32)],      # hs_scr
        compiler_params=pltpu.CompilerParams(
            dimension_semantics=("parallel",),
            vmem_limit_bytes=32 * 1024 * 1024),
    )(x, *params)


# --------------------------------------------------------------------------
# Fused gate: ESA conv4 (1x1 f->nf) of (c3 + cf) + sigmoid gate + residual.
# --------------------------------------------------------------------------
def _gate_kernel(res_ref, inp_ref, g_ref, w4_ref, b4_ref, out_ref):
    c4 = jnp.dot(w4_ref[...], g_ref[0],
                 preferred_element_type=jnp.float32) + b4_ref[...]
    out_ref[0] = res_ref[0] * jax.nn.sigmoid(c4) + inp_ref[0]


def gate_fused(res, inp, g, w4, b4):
    n, nf, hw = res.shape
    f = w4.shape[1]
    return pl.pallas_call(
        _gate_kernel,
        out_shape=jax.ShapeDtypeStruct((n, nf, hw), jnp.float32),
        grid=(n,),
        in_specs=[pl.BlockSpec((1, nf, hw), lambda i: (i, 0, 0)),
                  pl.BlockSpec((1, nf, hw), lambda i: (i, 0, 0)),
                  pl.BlockSpec((1, f, hw), lambda i: (i, 0, 0)),
                  pl.BlockSpec((nf, f), lambda i: (0, 0)),
                  pl.BlockSpec((nf, 1), lambda i: (0, 0))],
        out_specs=pl.BlockSpec((1, nf, hw), lambda i: (i, 0, 0)),
        compiler_params=pltpu.CompilerParams(dimension_semantics=("parallel",)),
    )(res, inp, g, w4, b4)


# --------------------------------------------------------------------------
# ESA interior in plain JAX/XLA (tiny tensors; per perf review not worth a
# pallas_call dispatch).
# --------------------------------------------------------------------------
def _conv2d_nchw(x, w, b, *, stride=1, padding=0):
    out = lax.conv_general_dilated(
        x, w, window_strides=(stride, stride),
        padding=[(padding, padding), (padding, padding)],
        dimension_numbers=('NCHW', 'OIHW', 'NCHW'))
    return out + b[None, :, None, None]


def _bilinear_matrix(out_size, in_size):
    # PyTorch F.interpolate(mode='bilinear', align_corners=False) weights.
    scale = in_size / out_size
    a = np.zeros((out_size, in_size), np.float32)
    for o in range(out_size):
        src = max((o + 0.5) * scale - 0.5, 0.0)
        i0 = min(int(math.floor(src)), in_size - 1)
        p = 1 if i0 < in_size - 1 else 0
        lam = src - i0
        a[o, i0] += 1.0 - lam
        a[o, i0 + p] += lam
    return jnp.asarray(a)


def esa_mid(p, c1_flat, H, W):
    n, f, hw = c1_flat.shape
    x = c1_flat.reshape(n, f, H, W)
    c1 = _conv2d_nchw(x, p['w_es2'], p['b_es2'], stride=2, padding=0)
    v_max = lax.reduce_window(c1, -jnp.inf, lax.max,
                              (1, 1, 7, 7), (1, 1, 3, 3), 'VALID')
    v_range = jax.nn.relu(_conv2d_nchw(v_max, p['w_esmax'], p['b_esmax'],
                                       padding=1))
    c3 = jax.nn.relu(_conv2d_nchw(v_range, p['w_es3'], p['b_es3'], padding=1))
    c3 = _conv2d_nchw(c3, p['w_es3_'], p['b_es3_'], padding=1)
    ah = _bilinear_matrix(H, c3.shape[2])
    aw = _bilinear_matrix(W, c3.shape[3])
    c3r = jnp.einsum('ah,bw,nchw->ncab', ah, aw, c3)
    return c3r.reshape(n, f, hw)


# --------------------------------------------------------------------------
# Parameters (PyTorch-style init, in the packed layouts the kernel expects).
# --------------------------------------------------------------------------
def init_params(key, n_feats, n_dist):
    nf, nd = n_feats, n_dist
    f = nf // 4
    keys = iter(jax.random.split(key, 48))

    def uni(shape, fan_in):
        s = 1.0 / math.sqrt(fan_in)
        return jax.random.uniform(next(keys), shape, jnp.float32, -s, s)

    def conv1x1(cin, cout):
        return uni((cout, cin), cin), uni((cout, 1), cin)

    def conv3x3_packed(cin, cout):
        # OIHW (cout,cin,3,3) -> (3*cout, 3*cin): [kh*cout+o, kw*cin+c].
        # NOTE: pretrained PyTorch weights must use exactly this permutation.
        w = uni((cout, cin, 3, 3), cin * 9)
        wp = jnp.transpose(w, (2, 0, 3, 1)).reshape(3 * cout, 3 * cin)
        return wp, uni((cout, 1), cin * 9)

    def conv3x3_oihw(cin, cout):            # for the XLA ESA interior
        return uni((cout, cin, 3, 3), cin * 9), uni((cout,), cin * 9)

    def prelu(c):
        return jnp.full((c, 1), 0.25, jnp.float32)

    p = {}
    p['a_e1'] = prelu(nf)
    p['w_e1'], p['b_e1'] = conv1x1(nf, nf + 3 * nd)
    p['a_e2'] = prelu(nf + nd)
    p['w_e2'], p['b_e2'] = conv1x1(nf + nd, nf + 2 * nd)
    p['a_e3'] = prelu(nf + 2 * nd)
    p['w_e3'], p['b_e3'] = conv1x1(nf + 2 * nd, nf + nd)
    for i in (1, 2, 3):
        p[f'a_c{i}'] = prelu(nf)
        p[f'w_c{i}'], p[f'b_c{i}'] = conv3x3_packed(nf, nf)
    p['a_t'] = prelu(nf + 3 * nd)
    p['w_t'], p['b_t'] = conv1x1(nf + 3 * nd, nf)
    # ESA
    p['w_es1'], p['b_es1'] = conv1x1(nf, f)         # conv1   (fused in body)
    p['w_esf'], p['b_esf'] = conv1x1(f, f)          # conv_f  (fused in body)
    p['w_es2'], p['b_es2'] = conv3x3_oihw(f, f)     # conv2 stride-2 (XLA)
    p['w_esmax'], p['b_esmax'] = conv3x3_oihw(f, f)
    p['w_es3'], p['b_es3'] = conv3x3_oihw(f, f)
    p['w_es3_'], p['b_es3_'] = conv3x3_oihw(f, f)
    p['w_es4'], p['b_es4'] = conv1x1(f, nf)         # conv4   (fused in gate)
    return p


# --------------------------------------------------------------------------
# Forward pass (matches ResDB.forward semantics).
# --------------------------------------------------------------------------
def resdb_forward(p, x_nchw):
    n, nf, H, W = x_nchw.shape
    hw = H * W
    f = p['w_es1'].shape[0]
    x = x_nchw.reshape(n, nf, hw)     # NCHW -> channel-first flattened (free)

    res, c1cf = body_fused(x, p, H=H, W=W)          # one fused pallas_call
    c1_flat = c1cf[:, :f]
    cf_flat = c1cf[:, f:]
    g = esa_mid(p, c1_flat, H, W) + cf_flat         # c3 (XLA interior) + cf
    out = gate_fused(res, x, g, p['w_es4'], p['b_es4'])
    return out.reshape(n, nf, H, W)


if __name__ == "__main__":
    n_feats, n_dist = 16, 8
    N, H, W = 2, 32, 32           # even batch -> both v7x TensorCores busy
    key = jax.random.PRNGKey(0)
    kx, kp = jax.random.split(key)
    x = jax.random.normal(kx, (N, n_feats, H, W), jnp.float32)   # NCHW input
    params = init_params(kp, n_feats, n_dist)
    fwd = jax.jit(resdb_forward)
    out = fwd(params, x)
    jax.block_until_ready(out)
    assert out.shape == (N, n_feats, H, W) and out.dtype == jnp.float32
    print("KERNEL_OK")
</pallas_src>

<mosaic_0001>
module attributes {stable_mosaic.version = 11 : i64} {
  func.func @kernel(%arg0: i32, %arg1: memref<1x16x1024xf32, #tpu.memory_space<vmem>>, %arg2: memref<16x1xf32, #tpu.memory_space<vmem>>, %arg3: memref<40x16xf32, #tpu.memory_space<vmem>>, %arg4: memref<40x1xf32, #tpu.memory_space<vmem>>, %arg5: memref<24x1xf32, #tpu.memory_space<vmem>>, %arg6: memref<32x24xf32, #tpu.memory_space<vmem>>, %arg7: memref<32x1xf32, #tpu.memory_space<vmem>>, %arg8: memref<32x1xf32, #tpu.memory_space<vmem>>, %arg9: memref<24x32xf32, #tpu.memory_space<vmem>>, %arg10: memref<24x1xf32, #tpu.memory_space<vmem>>, %arg11: memref<16x1xf32, #tpu.memory_space<vmem>>, %arg12: memref<48x48xf32, #tpu.memory_space<vmem>>, %arg13: memref<16x1xf32, #tpu.memory_space<vmem>>, %arg14: memref<16x1xf32, #tpu.memory_space<vmem>>, %arg15: memref<48x48xf32, #tpu.memory_space<vmem>>, %arg16: memref<16x1xf32, #tpu.memory_space<vmem>>, %arg17: memref<16x1xf32, #tpu.memory_space<vmem>>, %arg18: memref<48x48xf32, #tpu.memory_space<vmem>>, %arg19: memref<16x1xf32, #tpu.memory_space<vmem>>, %arg20: memref<40x1xf32, #tpu.memory_space<vmem>>, %arg21: memref<16x40xf32, #tpu.memory_space<vmem>>, %arg22: memref<16x1xf32, #tpu.memory_space<vmem>>, %arg23: memref<4x16xf32, #tpu.memory_space<vmem>>, %arg24: memref<4x1xf32, #tpu.memory_space<vmem>>, %arg25: memref<4x4xf32, #tpu.memory_space<vmem>>, %arg26: memref<4x1xf32, #tpu.memory_space<vmem>>, %arg27: memref<1x16x1024xf32, #tpu.memory_space<vmem>>, %arg28: memref<1x8x1024xf32, #tpu.memory_space<vmem>>, %arg29: memref<16x1024xf32, #tpu.memory_space<vmem>>, %arg30: memref<40x1024xf32, #tpu.memory_space<vmem>>, %arg31: memref<48x1024xf32, #tpu.memory_space<vmem>>, %arg32: memref<48x1024xf32, #tpu.memory_space<vmem>>) attributes {dimension_semantics = [#tpu.dimension_semantics<parallel>], iteration_bounds = array<i64: 2>, scalar_prefetch = 0 : i64, scratch_operands = 4 : i64, tpu.core_type = #tpu.core_type<tc>, window_params = [{transform_indices = @transform_0, window_bounds = array<i64: 1, 16, 1024>}, {pipeline_mode = #tpu.pipeline_mode<synchronous>, transform_indices = @transform_1, window_bounds = array<i64: 16, 1>}, {pipeline_mode = #tpu.pipeline_mode<synchronous>, transform_indices = @transform_2, window_bounds = array<i64: 40, 16>}, {pipeline_mode = #tpu.pipeline_mode<synchronous>, transform_indices = @transform_3, window_bounds = array<i64: 40, 1>}, {pipeline_mode = #tpu.pipeline_mode<synchronous>, transform_indices = @transform_4, window_bounds = array<i64: 24, 1>}, {pipeline_mode = #tpu.pipeline_mode<synchronous>, transform_indices = @transform_5, window_bounds = array<i64: 32, 24>}, {pipeline_mode = #tpu.pipeline_mode<synchronous>, transform_indices = @transform_6, window_bounds = array<i64: 32, 1>}, {pipeline_mode = #tpu.pipeline_mode<synchronous>, transform_indices = @transform_7, window_bounds = array<i64: 32, 1>}, {pipeline_mode = #tpu.pipeline_mode<synchronous>, transform_indices = @transform_8, window_bounds = array<i64: 24, 32>}, {pipeline_mode = #tpu.pipeline_mode<synchronous>, transform_indices = @transform_9, window_bounds = array<i64: 24, 1>}, {pipeline_mode = #tpu.pipeline_mode<synchronous>, transform_indices = @transform_10, window_bounds = array<i64: 16, 1>}, {pipeline_mode = #tpu.pipeline_mode<synchronous>, transform_indices = @transform_11, window_bounds = array<i64: 48, 48>}, {pipeline_mode = #tpu.pipeline_mode<synchronous>, transform_indices = @transform_12, window_bounds = array<i64: 16, 1>}, {pipeline_mode = #tpu.pipeline_mode<synchronous>, transform_indices = @transform_13, window_bounds = array<i64: 16, 1>}, {pipeline_mode = #tpu.pipeline_mode<synchronous>, transform_indices = @transform_14, window_bounds = array<i64: 48, 48>}, {pipeline_mode = #tpu.pipeline_mode<synchronous>, transform_indices = @transform_15, window_bounds = array<i64: 16, 1>}, {pipeline_mode = #tpu.pipeline_mode<synchronous>, transform_indices = @transform_16, window_bounds = array<i64: 16, 1>}, {pipeline_mode = #tpu.pipeline_mode<synchronous>, transform_indices = @transform_17, window_bounds = array<i64: 48, 48>}, {pipeline_mode = #tpu.pipeline_mode<synchronous>, transform_indices = @transform_18, window_bounds = array<i64: 16, 1>}, {pipeline_mode = #tpu.pipeline_mode<synchronous>, transform_indices = @transform_19, window_bounds = array<i64: 40, 1>}, {pipeline_mode = #tpu.pipeline_mode<synchronous>, transform_indices = @transform_20, window_bounds = array<i64: 16, 40>}, {pipeline_mode = #tpu.pipeline_mode<synchronous>, transform_indices = @transform_21, window_bounds = array<i64: 16, 1>}, {pipeline_mode = #tpu.pipeline_mode<synchronous>, transform_indices = @transform_22, window_bounds = array<i64: 4, 16>}, {pipeline_mode = #tpu.pipeline_mode<synchronous>, transform_indices = @transform_23, window_bounds = array<i64: 4, 1>}, {pipeline_mode = #tpu.pipeline_mode<synchronous>, transform_indices = @transform_24, window_bounds = array<i64: 4, 4>}, {pipeline_mode = #tpu.pipeline_mode<synchronous>, transform_indices = @transform_25, window_bounds = array<i64: 4, 1>}, {transform_indices = @transform_26, window_bounds = array<i64: 1, 16, 1024>}, {transform_indices = @transform_27, window_bounds = array<i64: 1, 8, 1024>}]} {
    %0 = tpu.iota {dimensions = array<i32: 1>} : vector<1x1024xi32>
    %c32_i32 = arith.constant 32 : i32
    %c0_i32 = arith.constant 0 : i32
    %1 = arith.cmpi eq, %c32_i32, %c0_i32 : i32
    %c1_i32 = arith.constant 1 : i32
    %2 = arith.select %1, %c1_i32, %c32_i32 : i32
    %3 = vector.broadcast %2 : i32 to vector<1x1024xi32>
    %4 = arith.remsi %0, %3 : vector<1x1024xi32>
    %c0_i32_0 = arith.constant 0 : i32
    %5 = vector.broadcast %c0_i32_0 : i32 to vector<1x1024xi32>
    %6 = arith.cmpi ne, %4, %5 : vector<1x1024xi32>
    %c0_i32_1 = arith.constant 0 : i32
    %7 = vector.broadcast %c0_i32_1 : i32 to vector<1x1024xi32>
    %8 = arith.cmpi slt, %4, %7 : vector<1x1024xi32>
    %c0_i32_2 = arith.constant 0 : i32
    %9 = arith.cmpi slt, %2, %c0_i32_2 : i32
    %10 = vector.broadcast %9 : i1 to vector<1x1024xi1>
    %11 = vector.broadcast %10 : vector<1x1024xi1> to vector<1x1024xi1>
    %12 = arith.xori %8, %11 : vector<1x1024xi1>
    %13 = arith.andi %12, %6 : vector<1x1024xi1>
    %14 = vector.broadcast %2 : i32 to vector<1x1024xi32>
    %15 = arith.addi %4, %14 : vector<1x1024xi32>
    %16 = arith.select %13, %15, %4 : vector<1x1024xi1>, vector<1x1024xi32>
    %c0_i32_3 = arith.constant 0 : i32
    %17 = vector.broadcast %c0_i32_3 : i32 to vector<1x1024xi32>
    %18 = arith.cmpi ne, %16, %17 : vector<1x1024xi32>
    %c31_i32 = arith.constant 31 : i32
    %19 = vector.broadcast %c31_i32 : i32 to vector<1x1024xi32>
    %20 = arith.cmpi ne, %16, %19 : vector<1x1024xi32>
    %c32_i32_4 = arith.constant 32 : i32
    %21 = vector.broadcast %c32_i32_4 : i32 to vector<1x1024xi32>
    %22 = arith.cmpi sge, %0, %21 : vector<1x1024xi32>
    %c992_i32 = arith.constant 992 : i32
    %23 = vector.broadcast %c992_i32 : i32 to vector<1x1024xi32>
    %24 = arith.cmpi slt, %0, %23 : vector<1x1024xi32>
    %c0 = arith.constant 0 : index
    %c0_5 = arith.constant 0 : index
    %c0_6 = arith.constant 0 : index
    %25 = vector.load %arg1[%c0, %c0_5, %c0_6] : memref<1x16x1024xf32, #tpu.memory_space<vmem>>, vector<1x16x1024xf32>
    %26 = vector.shape_cast %25 : vector<1x16x1024xf32> to vector<16x1024xf32>
    %c0_7 = arith.constant 0 : index
    %c0_8 = arith.constant 0 : index
    %27 = vector.load %arg29[%c0_7, %c0_8] : memref<16x1024xf32, #tpu.memory_space<vmem>>, vector<16x1024xf32>
    tpu.vector_store %arg29[%c0_7, %c0_8], %26 {strides = array<i32>} : memref<16x1024xf32, #tpu.memory_space<vmem>>, vector<16x1024xf32>,
    %c0_9 = arith.constant 0 : index
    %c0_10 = arith.constant 0 : index
    %28 = vector.load %arg29[%c0_9, %c0_10] : memref<16x1024xf32, #tpu.memory_space<vmem>>, vector<16x1024xf32>
    %c0_11 = arith.constant 0 : index
    %c0_12 = arith.constant 0 : index
    %29 = vector.load %arg2[%c0_11, %c0_12] : memref<16x1xf32, #tpu.memory_space<vmem>>, vector<16x1xf32>
    %cst = arith.constant 0.000000e+00 : f32
    %30 = vector.broadcast %cst : f32 to vector<16x1024xf32>
    %31 = arith.cmpf oge, %28, %30 : vector<16x1024xf32>
    %32 = vector.broadcast %29 : vector<16x1xf32> to vector<16x1024xf32>
    %33 = arith.mulf %28, %32 : vector<16x1024xf32>
    %34 = arith.select %31, %28, %33 : vector<16x1024xi1>, vector<16x1024xf32>
    %c0_13 = arith.constant 0 : index
    %c0_14 = arith.constant 0 : index
    %35 = vector.load %arg30[%c0_13, %c0_14] : memref<40x1024xf32, #tpu.memory_space<vmem>>, vector<16x1024xf32>
    tpu.vector_store %arg30[%c0_13, %c0_14], %34 {strides = array<i32>} : memref<40x1024xf32, #tpu.memory_space<vmem>>, vector<16x1024xf32>,
    %c0_15 = arith.constant 0 : index
    %c0_16 = arith.constant 0 : index
    %36 = vector.load %arg3[%c0_15, %c0_16] : memref<40x16xf32, #tpu.memory_space<vmem>>, vector<40x16xf32>
    %c0_17 = arith.constant 0 : index
    %c0_18 = arith.constant 0 : index
    %37 = vector.load %arg30[%c0_17, %c0_18] : memref<40x1024xf32, #tpu.memory_space<vmem>>, vector<16x1024xf32>
    %cst_19 = arith.constant dense<0.000000e+00> : vector<40x1024xf32>
    %38 = tpu.matmul %36, %37, %cst_19 {dimension_numbers = #tpu.dot_dimension_numbers<[1], [0], [0], [1], [0, 0, 1, 1], [], []>} : vector<40x16xf32>, vector<16x1024xf32>, vector<40x1024xf32> -> vector<40x1024xf32>
    %c0_20 = arith.constant 0 : index
    %c0_21 = arith.constant 0 : index
    %39 = vector.load %arg4[%c0_20, %c0_21] : memref<40x1xf32, #tpu.memory_space<vmem>>, vector<40x1xf32>
    %40 = vector.broadcast %39 : vector<40x1xf32> to vector<40x1024xf32>
    %41 = arith.addf %38, %40 : vector<40x1024xf32>
    %42 = vector.extract_strided_slice %41 {offsets = [16, 0], sizes = [24, 1024], strides = [1, 1]} : vector<40x1024xf32> to vector<24x1024xf32>
    %c0_22 = arith.constant 0 : index
    %c0_23 = arith.constant 0 : index
    %43 = vector.load %arg31[%c0_22, %c0_23] : memref<48x1024xf32, #tpu.memory_space<vmem>>, vector<24x1024xf32>
    tpu.vector_store %arg31[%c0_22, %c0_23], %42 {strides = array<i32>} : memref<48x1024xf32, #tpu.memory_space<vmem>>, vector<24x1024xf32>,
    %c0_24 = arith.constant 0 : index
    %c0_25 = arith.constant 0 : index
    %44 = vector.load %arg29[%c0_24, %c0_25] : memref<16x1024xf32, #tpu.memory_space<vmem>>, vector<16x1024xf32>
    %45 = vector.extract_strided_slice %41 {offsets = [0, 0], sizes = [16, 1024], strides = [1, 1]} : vector<40x1024xf32> to vector<16x1024xf32>
    %c0_26 = arith.constant 0 : index
    %c0_27 = arith.constant 0 : index
    %46 = vector.load %arg11[%c0_26, %c0_27] : memref<16x1xf32, #tpu.memory_space<vmem>>, vector<16x1xf32>
    %cst_28 = arith.constant 0.000000e+00 : f32
    %47 = vector.broadcast %cst_28 : f32 to vector<16x1024xf32>
    %48 = arith.cmpf oge, %45, %47 : vector<16x1024xf32>
    %49 = vector.broadcast %46 : vector<16x1xf32> to vector<16x1024xf32>
    %50 = arith.mulf %45, %49 : vector<16x1024xf32>
    %51 = arith.select %48, %45, %50 : vector<16x1024xi1>, vector<16x1024xf32>
    %c1_i32_29 = arith.constant 1 : i32
    %52 = tpu.dynamic_rotate %51 by %c1_i32_29 dim 1 : vector<16x1024xf32>, i32 -> vector<16x1024xf32>
    %cst_30 = arith.constant 0.000000e+00 : f32
    %53 = vector.shape_cast %18 : vector<1x1024xi1> to vector<1x1024xi1>
    %54 = vector.broadcast %53 : vector<1x1024xi1> to vector<16x1024xi1>
    %55 = vector.broadcast %cst_30 : f32 to vector<16x1024xf32>
    %56 = arith.select %54, %52, %55 : vector<16x1024xi1>, vector<16x1024xf32>
    %c1023_i32 = arith.constant 1023 : i32
    %57 = tpu.dynamic_rotate %51 by %c1023_i32 dim 1 : vector<16x1024xf32>, i32 -> vector<16x1024xf32>
    %cst_31 = arith.constant 0.000000e+00 : f32
    %58 = vector.shape_cast %20 : vector<1x1024xi1> to vector<1x1024xi1>
    %59 = vector.broadcast %58 : vector<1x1024xi1> to vector<16x1024xi1>
    %60 = vector.broadcast %cst_31 : f32 to vector<16x1024xf32>
    %61 = arith.select %59, %57, %60 : vector<16x1024xi1>, vector<16x1024xf32>
    %c0_32 = arith.constant 0 : index
    %c0_33 = arith.constant 0 : index
    %62 = vector.load %arg32[%c0_32, %c0_33] : memref<48x1024xf32, #tpu.memory_space<vmem>>, vector<16x1024xf32>
    tpu.vector_store %arg32[%c0_32, %c0_33], %56 {strides = array<i32>} : memref<48x1024xf32, #tpu.memory_space<vmem>>, vector<16x1024xf32>,
    %c16 = arith.constant 16 : index
    %c0_34 = arith.constant 0 : index
    %63 = vector.load %arg32[%c16, %c0_34] : memref<48x1024xf32, #tpu.memory_space<vmem>>, vector<16x1024xf32>
    tpu.vector_store %arg32[%c16, %c0_34], %51 {strides = array<i32>} : memref<48x1024xf32, #tpu.memory_space<vmem>>, vector<16x1024xf32>,
    %c32 = arith.constant 32 : index
    %c0_35 = arith.constant 0 : index
    %64 = vector.load %arg32[%c32, %c0_35] : memref<48x1024xf32, #tpu.memory_space<vmem>>, vector<16x1024xf32>
    tpu.vector_store %arg32[%c32, %c0_35], %61 {strides = array<i32>} : memref<48x1024xf32, #tpu.memory_space<vmem>>, vector<16x1024xf32>,
    %c0_36 = arith.constant 0 : index
    %c0_37 = arith.constant 0 : index
    %65 = vector.load %arg12[%c0_36, %c0_37] : memref<48x48xf32, #tpu.memory_space<vmem>>, vector<48x48xf32>
    %c0_38 = arith.constant 0 : index
    %c0_39 = arith.constant 0 : index
    %66 = vector.load %arg32[%c0_38, %c0_39] : memref<48x1024xf32, #tpu.memory_space<vmem>>, vector<48x1024xf32>
    %cst_40 = arith.constant dense<0.000000e+00> : vector<48x1024xf32>
    %67 = tpu.matmul %65, %66, %cst_40 {dimension_numbers = #tpu.dot_dimension_numbers<[1], [0], [0], [1], [0, 0, 1, 1], [], []>} : vector<48x48xf32>, vector<48x1024xf32>, vector<48x1024xf32> -> vector<48x1024xf32>
    %68 = vector.extract_strided_slice %67 {offsets = [0, 0], sizes = [16, 1024], strides = [1, 1]} : vector<48x1024xf32> to vector<16x1024xf32>
    %c32_i32_41 = arith.constant 32 : i32
    %69 = tpu.dynamic_rotate %68 by %c32_i32_41 dim 1 : vector<16x1024xf32>, i32 -> vector<16x1024xf32>
    %cst_42 = arith.constant 0.000000e+00 : f32
    %70 = vector.shape_cast %22 : vector<1x1024xi1> to vector<1x1024xi1>
    %71 = vector.broadcast %70 : vector<1x1024xi1> to vector<16x1024xi1>
    %72 = vector.broadcast %cst_42 : f32 to vector<16x1024xf32>
    %73 = arith.select %71, %69, %72 : vector<16x1024xi1>, vector<16x1024xf32>
    %74 = vector.extract_strided_slice %67 {offsets = [32, 0], sizes = [16, 1024], strides = [1, 1]} : vector<48x1024xf32> to vector<16x1024xf32>
    %c992_i32_43 = arith.constant 992 : i32
    %75 = tpu.dynamic_rotate %74 by %c992_i32_43 dim 1 : vector<16x1024xf32>, i32 -> vector<16x1024xf32>
    %cst_44 = arith.constant 0.000000e+00 : f32
    %76 = vector.shape_cast %24 : vector<1x1024xi1> to vector<1x1024xi1>
    %77 = vector.broadcast %76 : vector<1x1024xi1> to vector<16x1024xi1>
    %78 = vector.broadcast %cst_44 : f32 to vector<16x1024xf32>
    %79 = arith.select %77, %75, %78 : vector<16x1024xi1>, vector<16x1024xf32>
    %80 = vector.extract_strided_slice %67 {offsets = [16, 0], sizes = [16, 1024], strides = [1, 1]} : vector<48x1024xf32> to vector<16x1024xf32>
    %81 = arith.addf %73, %80 : vector<16x1024xf32>
    %82 = arith.addf %81, %79 : vector<16x1024xf32>
    %c0_45 = arith.constant 0 : index
    %c0_46 = arith.constant 0 : index
    %83 = vector.load %arg13[%c0_45, %c0_46] : memref<16x1xf32, #tpu.memory_space<vmem>>, vector<16x1xf32>
    %84 = vector.broadcast %83 : vector<16x1xf32> to vector<16x1024xf32>
    %85 = arith.addf %82, %84 : vector<16x1024xf32>
    %86 = arith.addf %44, %85 : vector<16x1024xf32>
    %c0_47 = arith.constant 0 : index
    %c0_48 = arith.constant 0 : index
    %87 = vector.load %arg29[%c0_47, %c0_48] : memref<16x1024xf32, #tpu.memory_space<vmem>>, vector<16x1024xf32>
    tpu.vector_store %arg29[%c0_47, %c0_48], %86 {strides = array<i32>} : memref<16x1024xf32, #tpu.memory_space<vmem>>, vector<16x1024xf32>,
    %c0_49 = arith.constant 0 : index
    %c0_50 = arith.constant 0 : index
    %88 = vector.load %arg29[%c0_49, %c0_50] : memref<16x1024xf32, #tpu.memory_space<vmem>>, vector<16x1024xf32>
    %c0_51 = arith.constant 0 : index
    %c0_52 = arith.constant 0 : index
    %89 = vector.load %arg5[%c0_51, %c0_52] : memref<24x1xf32, #tpu.memory_space<vmem>>, vector<16x1xf32>
    %cst_53 = arith.constant 0.000000e+00 : f32
    %90 = vector.broadcast %cst_53 : f32 to vector<16x1024xf32>
    %91 = arith.cmpf oge, %88, %90 : vector<16x1024xf32>
    %92 = vector.broadcast %89 : vector<16x1xf32> to vector<16x1024xf32>
    %93 = arith.mulf %88, %92 : vector<16x1024xf32>
    %94 = arith.select %91, %88, %93 : vector<16x1024xi1>, vector<16x1024xf32>
    %c0_54 = arith.constant 0 : index
    %c0_55 = arith.constant 0 : index
    %95 = vector.load %arg30[%c0_54, %c0_55] : memref<40x1024xf32, #tpu.memory_space<vmem>>, vector<16x1024xf32>
    tpu.vector_store %arg30[%c0_54, %c0_55], %94 {strides = array<i32>} : memref<40x1024xf32, #tpu.memory_space<vmem>>, vector<16x1024xf32>,
    %c0_56 = arith.constant 0 : index
    %c0_57 = arith.constant 0 : index
    %96 = vector.load %arg31[%c0_56, %c0_57] : memref<48x1024xf32, #tpu.memory_space<vmem>>, vector<8x1024xf32>
    %c16_58 = arith.constant 16 : index
    %c0_59 = arith.constant 0 : index
    %97 = vector.load %arg5[%c16_58, %c0_59] : memref<24x1xf32, #tpu.memory_space<vmem>>, vector<8x1xf32>
    %cst_60 = arith.constant 0.000000e+00 : f32
    %98 = vector.broadcast %cst_60 : f32 to vector<8x1024xf32>
    %99 = arith.cmpf oge, %96, %98 : vector<8x1024xf32>
    %100 = vector.broadcast %97 : vector<8x1xf32> to vector<8x1024xf32>
    %101 = arith.mulf %96, %100 : vector<8x1024xf32>
    %102 = arith.select %99, %96, %101 : vector<8x1024xi1>, vector<8x1024xf32>
    %c16_61 = arith.constant 16 : index
    %c0_62 = arith.constant 0 : index
    %103 = vector.load %arg30[%c16_61, %c0_62] : memref<40x1024xf32, #tpu.memory_space<vmem>>, vector<8x1024xf32>
    tpu.vector_store %arg30[%c16_61, %c0_62], %102 {strides = array<i32>} : memref<40x1024xf32, #tpu.memory_space<vmem>>, vector<8x1024xf32>,
    %c0_63 = arith.constant 0 : index
    %c0_64 = arith.constant 0 : index
    %104 = vector.load %arg6[%c0_63, %c0_64] : memref<32x24xf32, #tpu.memory_space<vmem>>, vector<32x24xf32>
    %c0_65 = arith.constant 0 : index
    %c0_66 = arith.constant 0 : index
    %105 = vector.load %arg30[%c0_65, %c0_66] : memref<40x1024xf32, #tpu.memory_space<vmem>>, vector<24x1024xf32>
    %cst_67 = arith.constant dense<0.000000e+00> : vector<32x1024xf32>
    %106 = tpu.matmul %104, %105, %cst_67 {dimension_numbers = #tpu.dot_dimension_numbers<[1], [0], [0], [1], [0, 0, 1, 1], [], []>} : vector<32x24xf32>, vector<24x1024xf32>, vector<32x1024xf32> -> vector<32x1024xf32>
    %c0_68 = arith.constant 0 : index
    %c0_69 = arith.constant 0 : index
    %107 = vector.load %arg7[%c0_68, %c0_69] : memref<32x1xf32, #tpu.memory_space<vmem>>, vector<32x1xf32>
    %108 = vector.broadcast %107 : vector<32x1xf32> to vector<32x1024xf32>
    %109 = arith.addf %106, %108 : vector<32x1024xf32>
    %110 = vector.extract_strided_slice %109 {offsets = [16, 0], sizes = [16, 1024], strides = [1, 1]} : vector<32x1024xf32> to vector<16x1024xf32>
    %c24 = arith.constant 24 : index
    %c0_70 = arith.constant 0 : index
    %111 = vector.load %arg31[%c24, %c0_70] : memref<48x1024xf32, #tpu.memory_space<vmem>>, vector<16x1024xf32>
    tpu.vector_store %arg31[%c24, %c0_70], %110 {strides = array<i32>} : memref<48x1024xf32, #tpu.memory_space<vmem>>, vector<16x1024xf32>,
    %c0_71 = arith.constant 0 : index
    %c0_72 = arith.constant 0 : index
    %112 = vector.load %arg29[%c0_71, %c0_72] : memref<16x1024xf32, #tpu.memory_space<vmem>>, vector<16x1024xf32>
    %113 = vector.extract_strided_slice %109 {offsets = [0, 0], sizes = [16, 1024], strides = [1, 1]} : vector<32x1024xf32> to vector<16x1024xf32>
    %c0_73 = arith.constant 0 : index
    %c0_74 = arith.constant 0 : index
    %114 = vector.load %arg14[%c0_73, %c0_74] : memref<16x1xf32, #tpu.memory_space<vmem>>, vector<16x1xf32>
    %cst_75 = arith.constant 0.000000e+00 : f32
    %115 = vector.broadcast %cst_75 : f32 to vector<16x1024xf32>
    %116 = arith.cmpf oge, %113, %115 : vector<16x1024xf32>
    %117 = vector.broadcast %114 : vector<16x1xf32> to vector<16x1024xf32>
    %118 = arith.mulf %113, %117 : vector<16x1024xf32>
    %119 = arith.select %116, %113, %118 : vector<16x1024xi1>, vector<16x1024xf32>
    %c1_i32_76 = arith.constant 1 : i32
    %120 = tpu.dynamic_rotate %119 by %c1_i32_76 dim 1 : vector<16x1024xf32>, i32 -> vector<16x1024xf32>
    %cst_77 = arith.constant 0.000000e+00 : f32
    %121 = vector.shape_cast %18 : vector<1x1024xi1> to vector<1x1024xi1>
    %122 = vector.broadcast %121 : vector<1x1024xi1> to vector<16x1024xi1>
    %123 = vector.broadcast %cst_77 : f32 to vector<16x1024xf32>
    %124 = arith.select %122, %120, %123 : vector<16x1024xi1>, vector<16x1024xf32>
    %c1023_i32_78 = arith.constant 1023 : i32
    %125 = tpu.dynamic_rotate %119 by %c1023_i32_78 dim 1 : vector<16x1024xf32>, i32 -> vector<16x1024xf32>
    %cst_79 = arith.constant 0.000000e+00 : f32
    %126 = vector.shape_cast %20 : vector<1x1024xi1> to vector<1x1024xi1>
    %127 = vector.broadcast %126 : vector<1x1024xi1> to vector<16x1024xi1>
    %128 = vector.broadcast %cst_79 : f32 to vector<16x1024xf32>
    %129 = arith.select %127, %125, %128 : vector<16x1024xi1>, vector<16x1024xf32>
    %c0_80 = arith.constant 0 : index
    %c0_81 = arith.constant 0 : index
    %130 = vector.load %arg32[%c0_80, %c0_81] : memref<48x1024xf32, #tpu.memory_space<vmem>>, vector<16x1024xf32>
    tpu.vector_store %arg32[%c0_80, %c0_81], %124 {strides = array<i32>} : memref<48x1024xf32, #tpu.memory_space<vmem>>, vector<16x1024xf32>,
    %c16_82 = arith.constant 16 : index
    %c0_83 = arith.constant 0 : index
    %131 = vector.load %arg32[%c16_82, %c0_83] : memref<48x1024xf32, #tpu.memory_space<vmem>>, vector<16x1024xf32>
    tpu.vector_store %arg32[%c16_82, %c0_83], %119 {strides = array<i32>} : memref<48x1024xf32, #tpu.memory_space<vmem>>, vector<16x1024xf32>,
    %c32_84 = arith.constant 32 : index
    %c0_85 = arith.constant 0 : index
    %132 = vector.load %arg32[%c32_84, %c0_85] : memref<48x1024xf32, #tpu.memory_space<vmem>>, vector<16x1024xf32>
    tpu.vector_store %arg32[%c32_84, %c0_85], %129 {strides = array<i32>} : memref<48x1024xf32, #tpu.memory_space<vmem>>, vector<16x1024xf32>,
    %c0_86 = arith.constant 0 : index
    %c0_87 = arith.constant 0 : index
    %133 = vector.load %arg15[%c0_86, %c0_87] : memref<48x48xf32, #tpu.memory_space<vmem>>, vector<48x48xf32>
    %c0_88 = arith.constant 0 : index
    %c0_89 = arith.constant 0 : index
    %134 = vector.load %arg32[%c0_88, %c0_89] : memref<48x1024xf32, #tpu.memory_space<vmem>>, vector<48x1024xf32>
    %cst_90 = arith.constant dense<0.000000e+00> : vector<48x1024xf32>
    %135 = tpu.matmul %133, %134, %cst_90 {dimension_numbers = #tpu.dot_dimension_numbers<[1], [0], [0], [1], [0, 0, 1, 1], [], []>} : vector<48x48xf32>, vector<48x1024xf32>, vector<48x1024xf32> -> vector<48x1024xf32>
    %136 = vector.extract_strided_slice %135 {offsets = [0, 0], sizes = [16, 1024], strides = [1, 1]} : vector<48x1024xf32> to vector<16x1024xf32>
    %c32_i32_91 = arith.constant 32 : i32
    %137 = tpu.dynamic_rotate %136 by %c32_i32_91 dim 1 : vector<16x1024xf32>, i32 -> vector<16x1024xf32>
    %cst_92 = arith.constant 0.000000e+00 : f32
    %138 = vector.shape_cast %22 : vector<1x1024xi1> to vector<1x1024xi1>
    %139 = vector.broadcast %138 : vector<1x1024xi1> to vector<16x1024xi1>
    %140 = vector.broadcast %cst_92 : f32 to vector<16x1024xf32>
    %141 = arith.select %139, %137, %140 : vector<16x1024xi1>, vector<16x1024xf32>
    %142 = vector.extract_strided_slice %135 {offsets = [32, 0], sizes = [16, 1024], strides = [1, 1]} : vector<48x1024xf32> to vector<16x1024xf32>
    %c992_i32_93 = arith.constant 992 : i32
    %143 = tpu.dynamic_rotate %142 by %c992_i32_93 dim 1 : vector<16x1024xf32>, i32 -> vector<16x1024xf32>
    %cst_94 = arith.constant 0.000000e+00 : f32
    %144 = vector.shape_cast %24 : vector<1x1024xi1> to vector<1x1024xi1>
    %145 = vector.broadcast %144 : vector<1x1024xi1> to vector<16x1024xi1>
    %146 = vector.broadcast %cst_94 : f32 to vector<16x1024xf32>
    %147 = arith.select %145, %143, %146 : vector<16x1024xi1>, vector<16x1024xf32>
    %148 = vector.extract_strided_slice %135 {offsets = [16, 0], sizes = [16, 1024], strides = [1, 1]} : vector<48x1024xf32> to vector<16x1024xf32>
    %149 = arith.addf %141, %148 : vector<16x1024xf32>
    %150 = arith.addf %149, %147 : vector<16x1024xf32>
    %c0_95 = arith.constant 0 : index
    %c0_96 = arith.constant 0 : index
    %151 = vector.load %arg16[%c0_95, %c0_96] : memref<16x1xf32, #tpu.memory_space<vmem>>, vector<16x1xf32>
    %152 = vector.broadcast %151 : vector<16x1xf32> to vector<16x1024xf32>
    %153 = arith.addf %150, %152 : vector<16x1024xf32>
    %154 = arith.addf %112, %153 : vector<16x1024xf32>
    %c0_97 = arith.constant 0 : index
    %c0_98 = arith.constant 0 : index
    %155 = vector.load %arg29[%c0_97, %c0_98] : memref<16x1024xf32, #tpu.memory_space<vmem>>, vector<16x1024xf32>
    tpu.vector_store %arg29[%c0_97, %c0_98], %154 {strides = array<i32>} : memref<16x1024xf32, #tpu.memory_space<vmem>>, vector<16x1024xf32>,
    %c0_99 = arith.constant 0 : index
    %c0_100 = arith.constant 0 : index
    %156 = vector.load %arg29[%c0_99, %c0_100] : memref<16x1024xf32, #tpu.memory_space<vmem>>, vector<16x1024xf32>
    %c0_101 = arith.constant 0 : index
    %c0_102 = arith.constant 0 : index
    %157 = vector.load %arg8[%c0_101, %c0_102] : memref<32x1xf32, #tpu.memory_space<vmem>>, vector<16x1xf32>
    %cst_103 = arith.constant 0.000000e+00 : f32
    %158 = vector.broadcast %cst_103 : f32 to vector<16x1024xf32>
    %159 = arith.cmpf oge, %156, %158 : vector<16x1024xf32>
    %160 = vector.broadcast %157 : vector<16x1xf32> to vector<16x1024xf32>
    %161 = arith.mulf %156, %160 : vector<16x1024xf32>
    %162 = arith.select %159, %156, %161 : vector<16x1024xi1>, vector<16x1024xf32>
    %c0_104 = arith.constant 0 : index
    %c0_105 = arith.constant 0 : index
    %163 = vector.load %arg30[%c0_104, %c0_105] : memref<40x1024xf32, #tpu.memory_space<vmem>>, vector<16x1024xf32>
    tpu.vector_store %arg30[%c0_104, %c0_105], %162 {strides = array<i32>} : memref<40x1024xf32, #tpu.memory_space<vmem>>, vector<16x1024xf32>,
    %c8 = arith.constant 8 : index
    %c0_106 = arith.constant 0 : index
    %164 = vector.load %arg31[%c8, %c0_106] : memref<48x1024xf32, #tpu.memory_space<vmem>>, vector<8x1024xf32>
    %c16_107 = arith.constant 16 : index
    %c0_108 = arith.constant 0 : index
    %165 = vector.load %arg8[%c16_107, %c0_108] : memref<32x1xf32, #tpu.memory_space<vmem>>, vector<8x1xf32>
    %cst_109 = arith.constant 0.000000e+00 : f32
    %166 = vector.broadcast %cst_109 : f32 to vector<8x1024xf32>
    %167 = arith.cmpf oge, %164, %166 : vector<8x1024xf32>
    %168 = vector.broadcast %165 : vector<8x1xf32> to vector<8x1024xf32>
    %169 = arith.mulf %164, %168 : vector<8x1024xf32>
    %170 = arith.select %167, %164, %169 : vector<8x1024xi1>, vector<8x1024xf32>
    %c16_110 = arith.constant 16 : index
    %c0_111 = arith.constant 0 : index
    %171 = vector.load %arg30[%c16_110, %c0_111] : memref<40x1024xf32, #tpu.memory_space<vmem>>, vector<8x1024xf32>
    tpu.vector_store %arg30[%c16_110, %c0_111], %170 {strides = array<i32>} : memref<40x1024xf32, #tpu.memory_space<vmem>>, vector<8x1024xf32>,
    %c24_112 = arith.constant 24 : index
    %c0_113 = arith.constant 0 : index
    %172 = vector.load %arg31[%c24_112, %c0_113] : memref<48x1024xf32, #tpu.memory_space<vmem>>, vector<8x1024xf32>
    %c24_114 = arith.constant 24 : index
    %c0_115 = arith.constant 0 : index
    %173 = vector.load %arg8[%c24_114, %c0_115] : memref<32x1xf32, #tpu.memory_space<vmem>>, vector<8x1xf32>
    %cst_116 = arith.constant 0.000000e+00 : f32
    %174 = vector.broadcast %cst_116 : f32 to vector<8x1024xf32>
    %175 = arith.cmpf oge, %172, %174 : vector<8x1024xf32>
    %176 = vector.broadcast %173 : vector<8x1xf32> to vector<8x1024xf32>
    %177 = arith.mulf %172, %176 : vector<8x1024xf32>
    %178 = arith.select %175, %172, %177 : vector<8x1024xi1>, vector<8x1024xf32>
    %c24_117 = arith.constant 24 : index
    %c0_118 = arith.constant 0 : index
    %179 = vector.load %arg30[%c24_117, %c0_118] : memref<40x1024xf32, #tpu.memory_space<vmem>>, vector<8x1024xf32>
    tpu.vector_store %arg30[%c24_117, %c0_118], %178 {strides = array<i32>} : memref<40x1024xf32, #tpu.memory_space<vmem>>, vector<8x1024xf32>,
    %c0_119 = arith.constant 0 : index
    %c0_120 = arith.constant 0 : index
    %180 = vector.load %arg9[%c0_119, %c0_120] : memref<24x32xf32, #tpu.memory_space<vmem>>, vector<24x32xf32>
    %c0_121 = arith.constant 0 : index
    %c0_122 = arith.constant 0 : index
    %181 = vector.load %arg30[%c0_121, %c0_122] : memref<40x1024xf32, #tpu.memory_space<vmem>>, vector<32x1024xf32>
    %cst_123 = arith.constant dense<0.000000e+00> : vector<24x1024xf32>
    %182 = tpu.matmul %180, %181, %cst_123 {dimension_numbers = #tpu.dot_dimension_numbers<[1], [0], [0], [1], [0, 0, 1, 1], [], []>} : vector<24x32xf32>, vector<32x1024xf32>, vector<24x1024xf32> -> vector<24x1024xf32>
    %c0_124 = arith.constant 0 : index
    %c0_125 = arith.constant 0 : index
    %183 = vector.load %arg10[%c0_124, %c0_125] : memref<24x1xf32, #tpu.memory_space<vmem>>, vector<24x1xf32>
    %184 = vector.broadcast %183 : vector<24x1xf32> to vector<24x1024xf32>
    %185 = arith.addf %182, %184 : vector<24x1024xf32>
    %186 = vector.extract_strided_slice %185 {offsets = [16, 0], sizes = [8, 1024], strides = [1, 1]} : vector<24x1024xf32> to vector<8x1024xf32>
    %c40 = arith.constant 40 : index
    %c0_126 = arith.constant 0 : index
    %187 = vector.load %arg31[%c40, %c0_126] : memref<48x1024xf32, #tpu.memory_space<vmem>>, vector<8x1024xf32>
    tpu.vector_store %arg31[%c40, %c0_126], %186 {strides = array<i32>} : memref<48x1024xf32, #tpu.memory_space<vmem>>, vector<8x1024xf32>,
    %c0_127 = arith.constant 0 : index
    %c0_128 = arith.constant 0 : index
    %188 = vector.load %arg29[%c0_127, %c0_128] : memref<16x1024xf32, #tpu.memory_space<vmem>>, vector<16x1024xf32>
    %189 = vector.extract_strided_slice %185 {offsets = [0, 0], sizes = [16, 1024], strides = [1, 1]} : vector<24x1024xf32> to vector<16x1024xf32>
    %c0_129 = arith.constant 0 : index
    %c0_130 = arith.constant 0 : index
    %190 = vector.load %arg17[%c0_129, %c0_130] : memref<16x1xf32, #tpu.memory_space<vmem>>, vector<16x1xf32>
    %cst_131 = arith.constant 0.000000e+00 : f32
    %191 = vector.broadcast %cst_131 : f32 to vector<16x1024xf32>
    %192 = arith.cmpf oge, %189, %191 : vector<16x1024xf32>
    %193 = vector.broadcast %190 : vector<16x1xf32> to vector<16x1024xf32>
    %194 = arith.mulf %189, %193 : vector<16x1024xf32>
    %195 = arith.select %192, %189, %194 : vector<16x1024xi1>, vector<16x1024xf32>
    %c1_i32_132 = arith.constant 1 : i32
    %196 = tpu.dynamic_rotate %195 by %c1_i32_132 dim 1 : vector<16x1024xf32>, i32 -> vector<16x1024xf32>
    %cst_133 = arith.constant 0.000000e+00 : f32
    %197 = vector.shape_cast %18 : vector<1x1024xi1> to vector<1x1024xi1>
    %198 = vector.broadcast %197 : vector<1x1024xi1> to vector<16x1024xi1>
    %199 = vector.broadcast %cst_133 : f32 to vector<16x1024xf32>
    %200 = arith.select %198, %196, %199 : vector<16x1024xi1>, vector<16x1024xf32>
    %c1023_i32_134 = arith.constant 1023 : i32
    %201 = tpu.dynamic_rotate %195 by %c1023_i32_134 dim 1 : vector<16x1024xf32>, i32 -> vector<16x1024xf32>
    %cst_135 = arith.constant 0.000000e+00 : f32
    %202 = vector.shape_cast %20 : vector<1x1024xi1> to vector<1x1024xi1>
    %203 = vector.broadcast %202 : vector<1x1024xi1> to vector<16x1024xi1>
    %204 = vector.broadcast %cst_135 : f32 to vector<16x1024xf32>
    %205 = arith.select %203, %201, %204 : vector<16x1024xi1>, vector<16x1024xf32>
    %c0_136 = arith.constant 0 : index
    %c0_137 = arith.constant 0 : index
    %206 = vector.load %arg32[%c0_136, %c0_137] : memref<48x1024xf32, #tpu.memory_space<vmem>>, vector<16x1024xf32>
    tpu.vector_store %arg32[%c0_136, %c0_137], %200 {strides = array<i32>} : memref<48x1024xf32, #tpu.memory_space<vmem>>, vector<16x1024xf32>,
    %c16_138 = arith.constant 16 : index
    %c0_139 = arith.constant 0 : index
    %207 = vector.load %arg32[%c16_138, %c0_139] : memref<48x1024xf32, #tpu.memory_space<vmem>>, vector<16x1024xf32>
    tpu.vector_store %arg32[%c16_138, %c0_139], %195 {strides = array<i32>} : memref<48x1024xf32, #tpu.memory_space<vmem>>, vector<16x1024xf32>,
    %c32_140 = arith.constant 32 : index
    %c0_141 = arith.constant 0 : index
    %208 = vector.load %arg32[%c32_140, %c0_141] : memref<48x1024xf32, #tpu.memory_space<vmem>>, vector<16x1024xf32>
    tpu.vector_store %arg32[%c32_140, %c0_141], %205 {strides = array<i32>} : memref<48x1024xf32, #tpu.memory_space<vmem>>, vector<16x1024xf32>,
    %c0_142 = arith.constant 0 : index
    %c0_143 = arith.constant 0 : index
    %209 = vector.load %arg18[%c0_142, %c0_143] : memref<48x48xf32, #tpu.memory_space<vmem>>, vector<48x48xf32>
    %c0_144 = arith.constant 0 : index
    %c0_145 = arith.constant 0 : index
    %210 = vector.load %arg32[%c0_144, %c0_145] : memref<48x1024xf32, #tpu.memory_space<vmem>>, vector<48x1024xf32>
    %cst_146 = arith.constant dense<0.000000e+00> : vector<48x1024xf32>
    %211 = tpu.matmul %209, %210, %cst_146 {dimension_numbers = #tpu.dot_dimension_numbers<[1], [0], [0], [1], [0, 0, 1, 1], [], []>} : vector<48x48xf32>, vector<48x1024xf32>, vector<48x1024xf32> -> vector<48x1024xf32>
    %212 = vector.extract_strided_slice %211 {offsets = [0, 0], sizes = [16, 1024], strides = [1, 1]} : vector<48x1024xf32> to vector<16x1024xf32>
    %c32_i32_147 = arith.constant 32 : i32
    %213 = tpu.dynamic_rotate %212 by %c32_i32_147 dim 1 : vector<16x1024xf32>, i32 -> vector<16x1024xf32>
    %cst_148 = arith.constant 0.000000e+00 : f32
    %214 = vector.shape_cast %22 : vector<1x1024xi1> to vector<1x1024xi1>
    %215 = vector.broadcast %214 : vector<1x1024xi1> to vector<16x1024xi1>
    %216 = vector.broadcast %cst_148 : f32 to vector<16x1024xf32>
    %217 = arith.select %215, %213, %216 : vector<16x1024xi1>, vector<16x1024xf32>
    %218 = vector.extract_strided_slice %211 {offsets = [32, 0], sizes = [16, 1024], strides = [1, 1]} : vector<48x1024xf32> to vector<16x1024xf32>
    %c992_i32_149 = arith.constant 992 : i32
    %219 = tpu.dynamic_rotate %218 by %c992_i32_149 dim 1 : vector<16x1024xf32>, i32 -> vector<16x1024xf32>
    %cst_150 = arith.constant 0.000000e+00 : f32
    %220 = vector.shape_cast %24 : vector<1x1024xi1> to vector<1x1024xi1>
    %221 = vector.broadcast %220 : vector<1x1024xi1> to vector<16x1024xi1>
    %222 = vector.broadcast %cst_150 : f32 to vector<16x1024xf32>
    %223 = arith.select %221, %219, %222 : vector<16x1024xi1>, vector<16x1024xf32>
    %224 = vector.extract_strided_slice %211 {offsets = [16, 0], sizes = [16, 1024], strides = [1, 1]} : vector<48x1024xf32> to vector<16x1024xf32>
    %225 = arith.addf %217, %224 : vector<16x1024xf32>
    %226 = arith.addf %225, %223 : vector<16x1024xf32>
    %c0_151 = arith.constant 0 : index
    %c0_152 = arith.constant 0 : index
    %227 = vector.load %arg19[%c0_151, %c0_152] : memref<16x1xf32, #tpu.memory_space<vmem>>, vector<16x1xf32>
    %228 = vector.broadcast %227 : vector<16x1xf32> to vector<16x1024xf32>
    %229 = arith.addf %226, %228 : vector<16x1024xf32>
    %230 = arith.addf %188, %229 : vector<16x1024xf32>
    %c0_153 = arith.constant 0 : index
    %c0_154 = arith.constant 0 : index
    %231 = vector.load %arg29[%c0_153, %c0_154] : memref<16x1024xf32, #tpu.memory_space<vmem>>, vector<16x1024xf32>
    tpu.vector_store %arg29[%c0_153, %c0_154], %230 {strides = array<i32>} : memref<16x1024xf32, #tpu.memory_space<vmem>>, vector<16x1024xf32>,
    %c0_155 = arith.constant 0 : index
    %c0_156 = arith.constant 0 : index
    %232 = vector.load %arg29[%c0_155, %c0_156] : memref<16x1024xf32, #tpu.memory_space<vmem>>, vector<16x1024xf32>
    %c0_157 = arith.constant 0 : index
    %c0_158 = arith.constant 0 : index
    %233 = vector.load %arg20[%c0_157, %c0_158] : memref<40x1xf32, #tpu.memory_space<vmem>>, vector<16x1xf32>
    %cst_159 = arith.constant 0.000000e+00 : f32
    %234 = vector.broadcast %cst_159 : f32 to vector<16x1024xf32>
    %235 = arith.cmpf oge, %232, %234 : vector<16x1024xf32>
    %236 = vector.broadcast %233 : vector<16x1xf32> to vector<16x1024xf32>
    %237 = arith.mulf %232, %236 : vector<16x1024xf32>
    %238 = arith.select %235, %232, %237 : vector<16x1024xi1>, vector<16x1024xf32>
    %c0_160 = arith.constant 0 : index
    %c0_161 = arith.constant 0 : index
    %239 = vector.load %arg30[%c0_160, %c0_161] : memref<40x1024xf32, #tpu.memory_space<vmem>>, vector<16x1024xf32>
    tpu.vector_store %arg30[%c0_160, %c0_161], %238 {strides = array<i32>} : memref<40x1024xf32, #tpu.memory_space<vmem>>, vector<16x1024xf32>,
    %c16_162 = arith.constant 16 : index
    %c0_163 = arith.constant 0 : index
    %240 = vector.load %arg31[%c16_162, %c0_163] : memref<48x1024xf32, #tpu.memory_space<vmem>>, vector<8x1024xf32>
    %c16_164 = arith.constant 16 : index
    %c0_165 = arith.constant 0 : index
    %241 = vector.load %arg20[%c16_164, %c0_165] : memref<40x1xf32, #tpu.memory_space<vmem>>, vector<8x1xf32>
    %cst_166 = arith.constant 0.000000e+00 : f32
    %242 = vector.broadcast %cst_166 : f32 to vector<8x1024xf32>
    %243 = arith.cmpf oge, %240, %242 : vector<8x1024xf32>
    %244 = vector.broadcast %241 : vector<8x1xf32> to vector<8x1024xf32>
    %245 = arith.mulf %240, %244 : vector<8x1024xf32>
    %246 = arith.select %243, %240, %245 : vector<8x1024xi1>, vector<8x1024xf32>
    %c16_167 = arith.constant 16 : index
    %c0_168 = arith.constant 0 : index
    %247 = vector.load %arg30[%c16_167, %c0_168] : memref<40x1024xf32, #tpu.memory_space<vmem>>, vector<8x1024xf32>
    tpu.vector_store %arg30[%c16_167, %c0_168], %246 {strides = array<i32>} : memref<40x1024xf32, #tpu.memory_space<vmem>>, vector<8x1024xf32>,
    %c32_169 = arith.constant 32 : index
    %c0_170 = arith.constant 0 : index
    %248 = vector.load %arg31[%c32_169, %c0_170] : memref<48x1024xf32, #tpu.memory_space<vmem>>, vector<8x1024xf32>
    %c24_171 = arith.constant 24 : index
    %c0_172 = arith.constant 0 : index
    %249 = vector.load %arg20[%c24_171, %c0_172] : memref<40x1xf32, #tpu.memory_space<vmem>>, vector<8x1xf32>
    %cst_173 = arith.constant 0.000000e+00 : f32
    %250 = vector.broadcast %cst_173 : f32 to vector<8x1024xf32>
    %251 = arith.cmpf oge, %248, %250 : vector<8x1024xf32>
    %252 = vector.broadcast %249 : vector<8x1xf32> to vector<8x1024xf32>
    %253 = arith.mulf %248, %252 : vector<8x1024xf32>
    %254 = arith.select %251, %248, %253 : vector<8x1024xi1>, vector<8x1024xf32>
    %c24_174 = arith.constant 24 : index
    %c0_175 = arith.constant 0 : index
    %255 = vector.load %arg30[%c24_174, %c0_175] : memref<40x1024xf32, #tpu.memory_space<vmem>>, vector<8x1024xf32>
    tpu.vector_store %arg30[%c24_174, %c0_175], %254 {strides = array<i32>} : memref<40x1024xf32, #tpu.memory_space<vmem>>, vector<8x1024xf32>,
    %c40_176 = arith.constant 40 : index
    %c0_177 = arith.constant 0 : index
    %256 = vector.load %arg31[%c40_176, %c0_177] : memref<48x1024xf32, #tpu.memory_space<vmem>>, vector<8x1024xf32>
    %c32_178 = arith.constant 32 : index
    %c0_179 = arith.constant 0 : index
    %257 = vector.load %arg20[%c32_178, %c0_179] : memref<40x1xf32, #tpu.memory_space<vmem>>, vector<8x1xf32>
    %cst_180 = arith.constant 0.000000e+00 : f32
    %258 = vector.broadcast %cst_180 : f32 to vector<8x1024xf32>
    %259 = arith.cmpf oge, %256, %258 : vector<8x1024xf32>
    %260 = vector.broadcast %257 : vector<8x1xf32> to vector<8x1024xf32>
    %261 = arith.mulf %256, %260 : vector<8x1024xf32>
    %262 = arith.select %259, %256, %261 : vector<8x1024xi1>, vector<8x1024xf32>
    %c32_181 = arith.constant 32 : index
    %c0_182 = arith.constant 0 : index
    %263 = vector.load %arg30[%c32_181, %c0_182] : memref<40x1024xf32, #tpu.memory_space<vmem>>, vector<8x1024xf32>
    tpu.vector_store %arg30[%c32_181, %c0_182], %262 {strides = array<i32>} : memref<40x1024xf32, #tpu.memory_space<vmem>>, vector<8x1024xf32>,
    %c0_183 = arith.constant 0 : index
    %c0_184 = arith.constant 0 : index
    %264 = vector.load %arg21[%c0_183, %c0_184] : memref<16x40xf32, #tpu.memory_space<vmem>>, vector<16x40xf32>
    %c0_185 = arith.constant 0 : index
    %c0_186 = arith.constant 0 : index
    %265 = vector.load %arg30[%c0_185, %c0_186] : memref<40x1024xf32, #tpu.memory_space<vmem>>, vector<40x1024xf32>
    %cst_187 = arith.constant dense<0.000000e+00> : vector<16x1024xf32>
    %266 = tpu.matmul %264, %265, %cst_187 {dimension_numbers = #tpu.dot_dimension_numbers<[1], [0], [0], [1], [0, 0, 1, 1], [], []>} : vector<16x40xf32>, vector<40x1024xf32>, vector<16x1024xf32> -> vector<16x1024xf32>
    %c0_188 = arith.constant 0 : index
    %c0_189 = arith.constant 0 : index
    %267 = vector.load %arg22[%c0_188, %c0_189] : memref<16x1xf32, #tpu.memory_space<vmem>>, vector<16x1xf32>
    %268 = vector.broadcast %267 : vector<16x1xf32> to vector<16x1024xf32>
    %269 = arith.addf %266, %268 : vector<16x1024xf32>
    %c0_190 = arith.constant 0 : index
    %c0_191 = arith.constant 0 : index
    %c0_192 = arith.constant 0 : index
    %270 = vector.load %arg27[%c0_190, %c0_191, %c0_192] : memref<1x16x1024xf32, #tpu.memory_space<vmem>>, vector<1x16x1024xf32>
    %271 = vector.shape_cast %270 : vector<1x16x1024xf32> to vector<16x1024xf32>
    %272 = vector.shape_cast %269 : vector<16x1024xf32> to vector<1x16x1024xf32>
    tpu.vector_store %arg27[%c0_190, %c0_191, %c0_192], %272 {strides = array<i32>} : memref<1x16x1024xf32, #tpu.memory_space<vmem>>, vector<1x16x1024xf32>,
    %c0_193 = arith.constant 0 : index
    %c0_194 = arith.constant 0 : index
    %273 = vector.load %arg23[%c0_193, %c0_194] : memref<4x16xf32, #tpu.memory_space<vmem>>, vector<4x16xf32>
    %cst_195 = arith.constant dense<0.000000e+00> : vector<4x1024xf32>
    %274 = tpu.matmul %273, %269, %cst_195 {dimension_numbers = #tpu.dot_dimension_numbers<[1], [0], [0], [1], [0, 0, 1, 1], [], []>} : vector<4x16xf32>, vector<16x1024xf32>, vector<4x1024xf32> -> vector<4x1024xf32>
    %c0_196 = arith.constant 0 : index
    %c0_197 = arith.constant 0 : index
    %275 = vector.load %arg24[%c0_196, %c0_197] : memref<4x1xf32, #tpu.memory_space<vmem>>, vector<4x1xf32>
    %276 = vector.broadcast %275 : vector<4x1xf32> to vector<4x1024xf32>
    %277 = arith.addf %274, %276 : vector<4x1024xf32>
    %c0_198 = arith.constant 0 : index
    %c0_199 = arith.constant 0 : index
    %278 = vector.load %arg25[%c0_198, %c0_199] : memref<4x4xf32, #tpu.memory_space<vmem>>, vector<4x4xf32>
    %cst_200 = arith.constant dense<0.000000e+00> : vector<4x1024xf32>
    %279 = tpu.matmul %278, %277, %cst_200 {dimension_numbers = #tpu.dot_dimension_numbers<[1], [0], [0], [1], [0, 0, 1, 1], [], []>} : vector<4x4xf32>, vector<4x1024xf32>, vector<4x1024xf32> -> vector<4x1024xf32>
    %c0_201 = arith.constant 0 : index
    %c0_202 = arith.constant 0 : index
    %280 = vector.load %arg26[%c0_201, %c0_202] : memref<4x1xf32, #tpu.memory_space<vmem>>, vector<4x1xf32>
    %281 = vector.broadcast %280 : vector<4x1xf32> to vector<4x1024xf32>
    %282 = arith.addf %279, %281 : vector<4x1024xf32>
    %c0_203 = arith.constant 0 : index
    %c0_204 = arith.constant 0 : index
    %c0_205 = arith.constant 0 : index
    %283 = vector.load %arg28[%c0_203, %c0_204, %c0_205] : memref<1x8x1024xf32, #tpu.memory_space<vmem>>, vector<1x4x1024xf32>
    %284 = vector.shape_cast %283 : vector<1x4x1024xf32> to vector<4x1024xf32>
    %285 = vector.shape_cast %277 : vector<4x1024xf32> to vector<1x4x1024xf32>
    tpu.vector_store %arg28[%c0_203, %c0_204, %c0_205], %285 {strides = array<i32>} : memref<1x8x1024xf32, #tpu.memory_space<vmem>>, vector<1x4x1024xf32>,
    %c0_206 = arith.constant 0 : index
    %c4 = arith.constant 4 : index
    %c0_207 = arith.constant 0 : index
    %286 = vector.load %arg28[%c0_206, %c4, %c0_207] : memref<1x8x1024xf32, #tpu.memory_space<vmem>>, vector<1x4x1024xf32>
    %287 = vector.shape_cast %286 : vector<1x4x1024xf32> to vector<4x1024xf32>
    %288 = vector.shape_cast %282 : vector<4x1024xf32> to vector<1x4x1024xf32>
    tpu.vector_store %arg28[%c0_206, %c4, %c0_207], %288 {strides = array<i32>} : memref<1x8x1024xf32, #tpu.memory_space<vmem>>, vector<1x4x1024xf32>,
    return
  }
  func.func @transform_0(%arg0: i32) -> (i32, i32, i32) {
    %c0_i32 = arith.constant 0 : i32
    %c0_i32_0 = arith.constant 0 : i32
    %c0_i32_1 = arith.constant 0 : i32
    return %arg0, %c0_i32, %c0_i32_0 : i32, i32, i32
  }
  func.func @transform_1(%arg0: i32) -> (i32, i32) {
    %c0_i32 = arith.constant 0 : i32
    %c0_i32_0 = arith.constant 0 : i32
    %c0_i32_1 = arith.constant 0 : i32
    return %c0_i32, %c0_i32_0 : i32, i32
  }
  func.func @transform_2(%arg0: i32) -> (i32, i32) {
    %c0_i32 = arith.constant 0 : i32
    %c0_i32_0 = arith.constant 0 : i32
    %c0_i32_1 = arith.constant 0 : i32
    return %c0_i32, %c0_i32_0 : i32, i32
  }
  func.func @transform_3(%arg0: i32) -> (i32, i32) {
    %c0_i32 = arith.constant 0 : i32
    %c0_i32_0 = arith.constant 0 : i32
    %c0_i32_1 = arith.constant 0 : i32
    return %c0_i32, %c0_i32_0 : i32, i32
  }
  func.func @transform_4(%arg0: i32) -> (i32, i32) {
    %c0_i32 = arith.constant 0 : i32
    %c0_i32_0 = arith.constant 0 : i32
    %c0_i32_1 = arith.constant 0 : i32
    return %c0_i32, %c0_i32_0 : i32, i32
  }
  func.func @transform_5(%arg0: i32) -> (i32, i32) {
    %c0_i32 = arith.constant 0 : i32
    %c0_i32_0 = arith.constant 0 : i32
    %c0_i32_1 = arith.constant 0 : i32
    return %c0_i32, %c0_i32_0 : i32, i32
  }
  func.func @transform_6(%arg0: i32) -> (i32, i32) {
    %c0_i32 = arith.constant 0 : i32
    %c0_i32_0 = arith.constant 0 : i32
    %c0_i32_1 = arith.constant 0 : i32
    return %c0_i32, %c0_i32_0 : i32, i32
  }
  func.func @transform_7(%arg0: i32) -> (i32, i32) {
    %c0_i32 = arith.constant 0 : i32
    %c0_i32_0 = arith.constant 0 : i32
    %c0_i32_1 = arith.constant 0 : i32
    return %c0_i32, %c0_i32_0 : i32, i32
  }
  func.func @transform_8(%arg0: i32) -> (i32, i32) {
    %c0_i32 = arith.constant 0 : i32
    %c0_i32_0 = arith.constant 0 : i32
    %c0_i32_1 = arith.constant 0 : i32
    return %c0_i32, %c0_i32_0 : i32, i32
  }
  func.func @transform_9(%arg0: i32) -> (i32, i32) {
    %c0_i32 = arith.constant 0 : i32
    %c0_i32_0 = arith.constant 0 : i32
    %c0_i32_1 = arith.constant 0 : i32
    return %c0_i32, %c0_i32_0 : i32, i32
  }
  func.func @transform_10(%arg0: i32) -> (i32, i32) {
    %c0_i32 = arith.constant 0 : i32
    %c0_i32_0 = arith.constant 0 : i32
    %c0_i32_1 = arith.constant 0 : i32
    return %c0_i32, %c0_i32_0 : i32, i32
  }
  func.func @transform_11(%arg0: i32) -> (i32, i32) {
    %c0_i32 = arith.constant 0 : i32
    %c0_i32_0 = arith.constant 0 : i32
    %c0_i32_1 = arith.constant 0 : i32
    return %c0_i32, %c0_i32_0 : i32, i32
  }
  func.func @transform_12(%arg0: i32) -> (i32, i32) {
    %c0_i32 = arith.constant 0 : i32
    %c0_i32_0 = arith.constant 0 : i32
    %c0_i32_1 = arith.constant 0 : i32
    return %c0_i32, %c0_i32_0 : i32, i32
  }
  func.func @transform_13(%arg0: i32) -> (i32, i32) {
    %c0_i32 = arith.constant 0 : i32
    %c0_i32_0 = arith.constant 0 : i32
    %c0_i32_1 = arith.constant 0 : i32
    return %c0_i32, %c0_i32_0 : i32, i32
  }
  func.func @transform_14(%arg0: i32) -> (i32, i32) {
    %c0_i32 = arith.constant 0 : i32
    %c0_i32_0 = arith.constant 0 : i32
    %c0_i32_1 = arith.constant 0 : i32
    return %c0_i32, %c0_i32_0 : i32, i32
  }
  func.func @transform_15(%arg0: i32) -> (i32, i32) {
    %c0_i32 = arith.constant 0 : i32
    %c0_i32_0 = arith.constant 0 : i32
    %c0_i32_1 = arith.constant 0 : i32
    return %c0_i32, %c0_i32_0 : i32, i32
  }
  func.func @transform_16(%arg0: i32) -> (i32, i32) {
    %c0_i32 = arith.constant 0 : i32
    %c0_i32_0 = arith.constant 0 : i32
    %c0_i32_1 = arith.constant 0 : i32
    return %c0_i32, %c0_i32_0 : i32, i32
  }
  func.func @transform_17(%arg0: i32) -> (i32, i32) {
    %c0_i32 = arith.constant 0 : i32
    %c0_i32_0 = arith.constant 0 : i32
    %c0_i32_1 = arith.constant 0 : i32
    return %c0_i32, %c0_i32_0 : i32, i32
  }
  func.func @transform_18(%arg0: i32) -> (i32, i32) {
    %c0_i32 = arith.constant 0 : i32
    %c0_i32_0 = arith.constant 0 : i32
    %c0_i32_1 = arith.constant 0 : i32
    return %c0_i32, %c0_i32_0 : i32, i32
  }
  func.func @transform_19(%arg0: i32) -> (i32, i32) {
    %c0_i32 = arith.constant 0 : i32
    %c0_i32_0 = arith.constant 0 : i32
    %c0_i32_1 = arith.constant 0 : i32
    return %c0_i32, %c0_i32_0 : i32, i32
  }
  func.func @transform_20(%arg0: i32) -> (i32, i32) {
    %c0_i32 = arith.constant 0 : i32
    %c0_i32_0 = arith.constant 0 : i32
    %c0_i32_1 = arith.constant 0 : i32
    return %c0_i32, %c0_i32_0 : i32, i32
  }
  func.func @transform_21(%arg0: i32) -> (i32, i32) {
    %c0_i32 = arith.constant 0 : i32
    %c0_i32_0 = arith.constant 0 : i32
    %c0_i32_1 = arith.constant 0 : i32
    return %c0_i32, %c0_i32_0 : i32, i32
  }
  func.func @transform_22(%arg0: i32) -> (i32, i32) {
    %c0_i32 = arith.constant 0 : i32
    %c0_i32_0 = arith.constant 0 : i32
    %c0_i32_1 = arith.constant 0 : i32
    return %c0_i32, %c0_i32_0 : i32, i32
  }
  func.func @transform_23(%arg0: i32) -> (i32, i32) {
    %c0_i32 = arith.constant 0 : i32
    %c0_i32_0 = arith.constant 0 : i32
    %c0_i32_1 = arith.constant 0 : i32
    return %c0_i32, %c0_i32_0 : i32, i32
  }
  func.func @transform_24(%arg0: i32) -> (i32, i32) {
    %c0_i32 = arith.constant 0 : i32
    %c0_i32_0 = arith.constant 0 : i32
    %c0_i32_1 = arith.constant 0 : i32
    return %c0_i32, %c0_i32_0 : i32, i32
  }
  func.func @transform_25(%arg0: i32) -> (i32, i32) {
    %c0_i32 = arith.constant 0 : i32
    %c0_i32_0 = arith.constant 0 : i32
    %c0_i32_1 = arith.constant 0 : i32
    return %c0_i32, %c0_i32_0 : i32, i32
  }
  func.func @transform_26(%arg0: i32) -> (i32, i32, i32) {
    %c0_i32 = arith.constant 0 : i32
    %c0_i32_0 = arith.constant 0 : i32
    %c0_i32_1 = arith.constant 0 : i32
    return %arg0, %c0_i32, %c0_i32_0 : i32, i32, i32
  }
  func.func @transform_27(%arg0: i32) -> (i32, i32, i32) {
    %c0_i32 = arith.constant 0 : i32
    %c0_i32_0 = arith.constant 0 : i32
    %c0_i32_1 = arith.constant 0 : i32
    return %arg0, %c0_i32, %c0_i32_0 : i32, i32, i32
  }
}

module attributes {stable_mosaic.version = 11 : i64} {
  func.func @_gate_kernel(%arg0: i32, %arg1: memref<1x16x1024xf32, #tpu.memory_space<vmem>>, %arg2: memref<1x16x1024xf32, #tpu.memory_space<vmem>>, %arg3: memref<1x4x1024xf32, #tpu.memory_space<vmem>>, %arg4: memref<16x4xf32, #tpu.memory_space<vmem>>, %arg5: memref<16x1xf32, #tpu.memory_space<vmem>>, %arg6: memref<1x16x1024xf32, #tpu.memory_space<vmem>>) attributes {dimension_semantics = [#tpu.dimension_semantics<parallel>], iteration_bounds = array<i64: 2>, scalar_prefetch = 0 : i64, scratch_operands = 0 : i64, tpu.core_type = #tpu.core_type<tc>, window_params = [{transform_indices = @transform_0, window_bounds = array<i64: 1, 16, 1024>}, {transform_indices = @transform_1, window_bounds = array<i64: 1, 16, 1024>}, {transform_indices = @transform_2, window_bounds = array<i64: 1, 4, 1024>}, {pipeline_mode = #tpu.pipeline_mode<synchronous>, transform_indices = @transform_3, window_bounds = array<i64: 16, 4>}, {pipeline_mode = #tpu.pipeline_mode<synchronous>, transform_indices = @transform_4, window_bounds = array<i64: 16, 1>}, {transform_indices = @transform_5, window_bounds = array<i64: 1, 16, 1024>}]} {
    %c0 = arith.constant 0 : index
    %c0_0 = arith.constant 0 : index
    %0 = vector.load %arg4[%c0, %c0_0] : memref<16x4xf32, #tpu.memory_space<vmem>>, vector<16x4xf32>
    %c0_1 = arith.constant 0 : index
    %c0_2 = arith.constant 0 : index
    %c0_3 = arith.constant 0 : index
    %1 = vector.load %arg3[%c0_1, %c0_2, %c0_3] : memref<1x4x1024xf32, #tpu.memory_space<vmem>>, vector<1x4x1024xf32>
    %2 = vector.shape_cast %1 : vector<1x4x1024xf32> to vector<4x1024xf32>
    %cst = arith.constant dense<0.000000e+00> : vector<16x1024xf32>
    %3 = tpu.matmul %0, %2, %cst {dimension_numbers = #tpu.dot_dimension_numbers<[1], [0], [0], [1], [0, 0, 1, 1], [], []>} : vector<16x4xf32>, vector<4x1024xf32>, vector<16x1024xf32> -> vector<16x1024xf32>
    %c0_4 = arith.constant 0 : index
    %c0_5 = arith.constant 0 : index
    %4 = vector.load %arg5[%c0_4, %c0_5] : memref<16x1xf32, #tpu.memory_space<vmem>>, vector<16x1xf32>
    %5 = vector.broadcast %4 : vector<16x1xf32> to vector<16x1024xf32>
    %6 = arith.addf %3, %5 : vector<16x1024xf32>
    %c0_6 = arith.constant 0 : index
    %c0_7 = arith.constant 0 : index
    %c0_8 = arith.constant 0 : index
    %7 = vector.load %arg1[%c0_6, %c0_7, %c0_8] : memref<1x16x1024xf32, #tpu.memory_space<vmem>>, vector<1x16x1024xf32>
    %8 = vector.shape_cast %7 : vector<1x16x1024xf32> to vector<16x1024xf32>
    %9 = arith.negf %6 : vector<16x1024xf32>
    %10 = math.exp %9 : vector<16x1024xf32>
    %cst_9 = arith.constant 1.000000e+00 : f32
    %11 = vector.broadcast %cst_9 : f32 to vector<16x1024xf32>
    %12 = arith.addf %11, %10 : vector<16x1024xf32>
    %13 = arith.divf %11, %12 : vector<16x1024xf32>
    %14 = arith.mulf %8, %13 : vector<16x1024xf32>
    %c0_10 = arith.constant 0 : index
    %c0_11 = arith.constant 0 : index
    %c0_12 = arith.constant 0 : index
    %15 = vector.load %arg2[%c0_10, %c0_11, %c0_12] : memref<1x16x1024xf32, #tpu.memory_space<vmem>>, vector<1x16x1024xf32>
    %16 = vector.shape_cast %15 : vector<1x16x1024xf32> to vector<16x1024xf32>
    %17 = arith.addf %14, %16 : vector<16x1024xf32>
    %c0_13 = arith.constant 0 : index
    %c0_14 = arith.constant 0 : index
    %c0_15 = arith.constant 0 : index
    %18 = vector.load %arg6[%c0_13, %c0_14, %c0_15] : memref<1x16x1024xf32, #tpu.memory_space<vmem>>, vector<1x16x1024xf32>
    %19 = vector.shape_cast %18 : vector<1x16x1024xf32> to vector<16x1024xf32>
    %20 = vector.shape_cast %17 : vector<16x1024xf32> to vector<1x16x1024xf32>
    tpu.vector_store %arg6[%c0_13, %c0_14, %c0_15], %20 {strides = array<i32>} : memref<1x16x1024xf32, #tpu.memory_space<vmem>>, vector<1x16x1024xf32>,
    return
  }
  func.func @transform_0(%arg0: i32) -> (i32, i32, i32) {
    %c0_i32 = arith.constant 0 : i32
    %c0_i32_0 = arith.constant 0 : i32
    %c0_i32_1 = arith.constant 0 : i32
    return %arg0, %c0_i32, %c0_i32_0 : i32, i32, i32
  }
  func.func @transform_1(%arg0: i32) -> (i32, i32, i32) {
    %c0_i32 = arith.constant 0 : i32
    %c0_i32_0 = arith.constant 0 : i32
    %c0_i32_1 = arith.constant 0 : i32
    return %arg0, %c0_i32, %c0_i32_0 : i32, i32, i32
  }
  func.func @transform_2(%arg0: i32) -> (i32, i32, i32) {
    %c0_i32 = arith.constant 0 : i32
    %c0_i32_0 = arith.constant 0 : i32
    %c0_i32_1 = arith.constant 0 : i32
    return %arg0, %c0_i32, %c0_i32_0 : i32, i32, i32
  }
  func.func @transform_3(%arg0: i32) -> (i32, i32) {
    %c0_i32 = arith.constant 0 : i32
    %c0_i32_0 = arith.constant 0 : i32
    %c0_i32_1 = arith.constant 0 : i32
    return %c0_i32, %c0_i32_0 : i32, i32
  }
  func.func @transform_4(%arg0: i32) -> (i32, i32) {
    %c0_i32 = arith.constant 0 : i32
    %c0_i32_0 = arith.constant 0 : i32
    %c0_i32_1 = arith.constant 0 : i32
    return %c0_i32, %c0_i32_0 : i32, i32
  }
  func.func @transform_5(%arg0: i32) -> (i32, i32, i32) {
    %c0_i32 = arith.constant 0 : i32
    %c0_i32_0 = arith.constant 0 : i32
    %c0_i32_1 = arith.constant 0 : i32
    return %arg0, %c0_i32, %c0_i32_0 : i32, i32, i32
  }
}

</mosaic_0001>

<llo_original>
// kernel: resdb_forward.3
$region0: #{resdb_forward.3}
  #allocation0 [shape = 'u32[]', space=smem, size = 0x4, offset = 0x4, fixed_abs, tag = 'smem constant byte address 0x4 - core index']
  #allocation1 [shape = 'u32[144,128]{1,0:T(1,128)}', space=vmem, size = 0x12000, scoped, tag = 'internal scratch']
  %s0 = inlined_call_operand.vmem [shape: f32[2,16,1024], index: 0, kind: input, shape index: {}]
  %s1 = inlined_call_operand.vmem [shape: f32[2,16,1024], index: 1, kind: input, shape index: {}]
  %s2 = inlined_call_operand.vmem [shape: f32[2,4,1024], index: 2, kind: input, shape index: {}]
  %s3 = inlined_call_operand.vmem [shape: f32[16,4], index: 3, kind: input, shape index: {}]
  %s4 = inlined_call_operand.vmem [shape: f32[16,1], index: 4, kind: input, shape index: {}]
  %s5 = inlined_call_operand.vmem [shape: f32[2,16,1024], index: 5, kind: output, shape index: {}]
  %s6 = sld [smem:[#allocation0]]
  $region53: #{resdb_forward.3} parent=0
    _
  %s8 = ssub.s32 1, %s6
  %s9 = scalar_select 0, %s8, %s6
  loop: start=0, step=1, limit=4
  $region2: #{resdb_forward.3} parent=0 // loop_pre_header
    _
  $region3: #{resdb_forward.3} parent=0 // loop_header
    %s11 = sphi 0, %s15
    %p12 = scmp.ge.s32.totalorder %s11, 4
    %s21 = sphi 0, %s23
    %s24 = sphi 0, %s21
    %s25 = sphi 0, %s24
    %s41 = sphi 0, %s25
    %s47 = sphi 0, %s49
    %s50 = sphi 0, %s47
    %s51 = sphi 0, %s50
    %s67 = sphi 0, %s51
    %s73 = sphi 0, %s75
    %s76 = sphi 0, %s73
    %s77 = sphi 0, %s76
    %s93 = sphi 0, %s77
    %s97 = sphi 0, %s97
    %s99 = sphi 0, %s97
    %s100 = sphi 0, %s99
    %s114 = sphi 0, %s100
    %s118 = sphi 0, %s118
    %s120 = sphi 0, %s118
    %s121 = sphi 0, %s120
    %s135 = sphi 0, %s121
    %s141 = sphi 0, %s143
    %s144 = sphi 0, %s141
    %s145 = sphi 0, %s144
    %s161 = sphi 0, %s145
  $region4: #{resdb_forward.3} parent=0 // loop_header_branch
    %14 = sbr.rel (%p12) target = $region8
  $region5: #{resdb_forward.3} parent=0 // loop_body
    %s16 = ssub.s32 %s11, 1
    %s17 = ssub.s32 %s11, 2
    %s18 = sadd.s32 %s11, 1
    %s19 = ssub.s32 %s11, %s18
    %p20 = scmp.eq.s32.totalorder %s19, 0
    %s22 = sadd.s32 %s21, 1
    %s23 = scalar_select %p20, %s21, %s22
    %p26 = pneg %p20
    %p27 = scmp.eq.s32.totalorder %s11, 1
    %p28 = por %p26, %p27
    %p29 = scmp.ne.s32.totalorder %s21, %s24
    %p30 = scmp.eq.s32.totalorder %s11, 0
    %p31 = por %p29, %p30
    %p32 = scmp.ne.s32.totalorder %s21, %s24
    %p33 = scmp.eq.s32.totalorder %s16, 1
    %p34 = por %p32, %p33
    %p35 = scmp.ne.s32.totalorder %s24, %s25
    %p36 = scmp.eq.s32.totalorder %s16, 0
    %p37 = por %p35, %p36
    %p38 = scmp.ne.s32.totalorder %s24, %s25
    %p39 = scmp.eq.s32.totalorder %s17, 1
    %p40 = por %p38, %p39
    %p42 = scmp.ne.s32.totalorder %s25, %s41
    %p43 = scmp.eq.s32.totalorder %s17, 0
    %p44 = por %p42, %p43
    %s45 = ssub.s32 %s11, %s18
    %p46 = scmp.eq.s32.totalorder %s45, 0
    %s48 = sadd.s32 %s47, 1
    %s49 = scalar_select %p46, %s47, %s48
    %p52 = pneg %p46
    %p53 = scmp.eq.s32.totalorder %s11, 1
    %p54 = por %p52, %p53
    %p55 = scmp.ne.s32.totalorder %s47, %s50
    %p56 = scmp.eq.s32.totalorder %s11, 0
    %p57 = por %p55, %p56
    %p58 = scmp.ne.s32.totalorder %s47, %s50
    %p59 = scmp.eq.s32.totalorder %s16, 1
    %p60 = por %p58, %p59
    %p61 = scmp.ne.s32.totalorder %s50, %s51
    %p62 = scmp.eq.s32.totalorder %s16, 0
    %p63 = por %p61, %p62
    %p64 = scmp.ne.s32.totalorder %s50, %s51
    %p65 = scmp.eq.s32.totalorder %s17, 1
    %p66 = por %p64, %p65
    %p68 = scmp.ne.s32.totalorder %s51, %s67
    %p69 = scmp.eq.s32.totalorder %s17, 0
    %p70 = por %p68, %p69
    %s71 = ssub.s32 %s11, %s18
    %p72 = scmp.eq.s32.totalorder %s71, 0
    %s74 = sadd.s32 %s73, 1
    %s75 = scalar_select %p72, %s73, %s74
    %p78 = pneg %p72
    %p79 = scmp.eq.s32.totalorder %s11, 1
    %p80 = por %p78, %p79
    %p81 = scmp.ne.s32.totalorder %s73, %s76
    %p82 = scmp.eq.s32.totalorder %s11, 0
    %p83 = por %p81, %p82
    %p84 = scmp.ne.s32.totalorder %s73, %s76
    %p85 = scmp.eq.s32.totalorder %s16, 1
    %p86 = por %p84, %p85
    %p87 = scmp.ne.s32.totalorder %s76, %s77
    %p88 = scmp.eq.s32.totalorder %s16, 0
    %p89 = por %p87, %p88
    %p90 = scmp.ne.s32.totalorder %s76, %s77
    %p91 = scmp.eq.s32.totalorder %s17, 1
    %p92 = por %p90, %p91
    %p94 = scmp.ne.s32.totalorder %s77, %s93
    %p95 = scmp.eq.s32.totalorder %s17, 0
    %p96 = por %p94, %p95
    %s98 = sadd.s32 %s97, 1
    %p101 = scmp.eq.s32.totalorder %s11, 1
    %p102 = scmp.ne.s32.totalorder %s97, %s99
    %p103 = scmp.eq.s32.totalorder %s11, 0
    %p104 = por %p102, %p103
    %p105 = scmp.ne.s32.totalorder %s97, %s99
    %p106 = scmp.eq.s32.totalorder %s16, 1
    %p107 = por %p105, %p106
    %p108 = scmp.ne.s32.totalorder %s99, %s100
    %p109 = scmp.eq.s32.totalorder %s16, 0
    %p110 = por %p108, %p109
    %p111 = scmp.ne.s32.totalorder %s99, %s100
    %p112 = scmp.eq.s32.totalorder %s17, 1
    %p113 = por %p111, %p112
    %p115 = scmp.ne.s32.totalorder %s100, %s114
    %p116 = scmp.eq.s32.totalorder %s17, 0
    %p117 = por %p115, %p116
    %s119 = sadd.s32 %s118, 1
    %p122 = scmp.eq.s32.totalorder %s11, 1
    %p123 = scmp.ne.s32.totalorder %s118, %s120
    %p124 = scmp.eq.s32.totalorder %s11, 0
    %p125 = por %p123, %p124
    %p126 = scmp.ne.s32.totalorder %s118, %s120
    %p127 = scmp.eq.s32.totalorder %s16, 1
    %p128 = por %p126, %p127
    %p129 = scmp.ne.s32.totalorder %s120, %s121
    %p130 = scmp.eq.s32.totalorder %s16, 0
    %p131 = por %p129, %p130
    %p132 = scmp.ne.s32.totalorder %s120, %s121
    %p133 = scmp.eq.s32.totalorder %s17, 1
    %p134 = por %p132, %p133
    %p136 = scmp.ne.s32.totalorder %s121, %s135
    %p137 = scmp.eq.s32.totalorder %s17, 0
    %p138 = por %p136, %p137
    %s139 = ssub.s32 %s11, %s18
    %p140 = scmp.eq.s32.totalorder %s139, 0
    %s142 = sadd.s32 %s141, 1
    %s143 = scalar_select %p140, %s141, %s142
    %p146 = pneg %p140
    %p147 = scmp.eq.s32.totalorder %s11, 1
    %p148 = por %p146, %p147
    %p149 = scmp.ne.s32.totalorder %s141, %s144
    %p150 = scmp.eq.s32.totalorder %s11, 0
    %p151 = por %p149, %p150
    %p152 = scmp.ne.s32.totalorder %s141, %s144
    %p153 = scmp.eq.s32.totalorder %s16, 1
    %p154 = por %p152, %p153
    %p155 = scmp.ne.s32.totalorder %s144, %s145
    %p156 = scmp.eq.s32.totalorder %s16, 0
    %p157 = por %p155, %p156
    %p158 = scmp.ne.s32.totalorder %s144, %s145
    %p159 = scmp.eq.s32.totalorder %s17, 1
    %p160 = por %p158, %p159
    %p162 = scmp.ne.s32.totalorder %s145, %s161
    %p163 = scmp.eq.s32.totalorder %s17, 0
    %p164 = por %p162, %p163
    %p165 = scmp.le.s32.totalorder 1, %s11
    %p166 = scmp.lt.s32.totalorder %s11, 3
    %p167 = pnand %p165, %p166
    %p168 = pneg %p167
    // Predicated region
    $region9: #{resdb_forward.3} parent=5 // pred_check
      _
    $region10: #{resdb_forward.3} parent=5 // pred_check_branch
      %170 = sbr.rel (%p167) target = $region12
    $region11: #{resdb_forward.3} parent=5 // pred_region
      %s171 = ssub.s32 %s11, 1
      // Predicated region
      $region13: #{resdb_forward.3} parent=11 // pred_check
        %p172 = pneg %p110
      $region14: #{resdb_forward.3} parent=11 // pred_check_branch
        %174 = sbr.rel (%p172) target = $region16
      $region15: #{resdb_forward.3} parent=11 // pred_region
        _
      $region16: #{resdb_forward.3} parent=11 // pred_fallthru
        _
      // Predicated region
      $region17: #{resdb_forward.3} parent=11 // pred_check
        %p175 = pneg %p131
      $region18: #{resdb_forward.3} parent=11 // pred_check_branch
        %177 = sbr.rel (%p175) target = $region20
      $region19: #{resdb_forward.3} parent=11 // pred_region
        _
      $region20: #{resdb_forward.3} parent=11 // pred_fallthru
        _
    $region12: #{resdb_forward.3} parent=5 // pred_fallthru
      _
    %p178 = scmp.lt.s32.totalorder %s11, 2
    // Predicated region
    $region21: #{resdb_forward.3} parent=5 // pred_check
      %p179 = pneg %p178
    $region22: #{resdb_forward.3} parent=5 // pred_check_branch
      %181 = sbr.rel (%p179) target = $region24
    $region23: #{resdb_forward.3} parent=5 // pred_region
      // Predicated region
      $region25: #{resdb_forward.3} parent=23 // pred_check
        %p182 = pneg %p31
      $region26: #{resdb_forward.3} parent=23 // pred_check_branch
        %184 = sbr.rel (%p182) target = $region28
      $region27: #{resdb_forward.3} parent=23 // pred_region
        %p185 = scmp.lt.s32.totalorder %s11, 1
        %s186 = scalar_select %p185, %s11, 1
        %s187 = smul.addr %s186, 16
        %s188 = smul.addr %s187, 8
        %s189 = scalar_lea.vmem %s0, %s188
      $region28: #{resdb_forward.3} parent=23 // pred_fallthru
        _
      // Predicated region
      $region29: #{resdb_forward.3} parent=23 // pred_check
        %p190 = pneg %p57
      $region30: #{resdb_forward.3} parent=23 // pred_check_branch
        %192 = sbr.rel (%p190) target = $region32
      $region31: #{resdb_forward.3} parent=23 // pred_region
        %p193 = scmp.lt.s32.totalorder %s11, 1
        %s194 = scalar_select %p193, %s11, 1
        %s195 = smul.addr %s194, 16
        %s196 = smul.addr %s195, 8
        %s197 = scalar_lea.vmem %s1, %s196
      $region32: #{resdb_forward.3} parent=23 // pred_fallthru
        _
      // Predicated region
      $region33: #{resdb_forward.3} parent=23 // pred_check
        %p198 = pneg %p83
      $region34: #{resdb_forward.3} parent=23 // pred_check_branch
        %200 = sbr.rel (%p198) target = $region36
      $region35: #{resdb_forward.3} parent=23 // pred_region
        %p201 = scmp.lt.s32.totalorder %s11, 1
        %s202 = scalar_select %p201, %s11, 1
        %s203 = smul.addr %s202, 8
        %s204 = smul.addr %s203, 4
        %s205 = scalar_lea.vmem %s2, %s204
      $region36: #{resdb_forward.3} parent=23 // pred_fallthru
        _
    $region24: #{resdb_forward.3} parent=5 // pred_fallthru
      _
    %p206 = scmp.le.s32.totalorder 1, %s11
    %p207 = scmp.lt.s32.totalorder %s11, 3
    %p208 = pnand %p206, %p207
    %p209 = pneg %p208
    // Predicated region
    $region37: #{resdb_forward.3} parent=5 // pred_check
      _
    $region38: #{resdb_forward.3} parent=5 // pred_check_branch
      %211 = sbr.rel (%p208) target = $region40
    $region39: #{resdb_forward.3} parent=5 // pred_region
      %s212 = ssub.s32 %s11, 1
      %p213 = scmp.lt.s32.totalorder %s16, 1
      %s214 = scalar_select %p213, %s16, 1
      %s215 = smul.addr %s214, 16
      %s216 = smul.addr %s215, 8
      %s217 = scalar_lea.vmem %s0, %s216
      %p218 = pneg %p37
      %p219 = pneg %p34
      %p220 = scmp.lt.s32.totalorder %s16, 1
      %s221 = scalar_select %p220, %s16, 1
      %s222 = smul.addr %s221, 16
      %s223 = smul.addr %s222, 8
      %s224 = scalar_lea.vmem %s1, %s223
      %p225 = pneg %p63
      %p226 = pneg %p60
      %p227 = scmp.lt.s32.totalorder %s16, 1
      %s228 = scalar_select %p227, %s16, 1
      %s229 = smul.addr %s228, 8
      %s230 = smul.addr %s229, 4
      %s231 = scalar_lea.vmem %s2, %s230
      %p232 = pneg %p89
      %p233 = pneg %p86
      %p234 = pneg %p110
      %p235 = pneg %p107
      %p236 = pneg %p131
      %p237 = pneg %p128
      %p238 = pneg %p157
      %p239 = pneg %p154
      %p240 = scmp.lt.s32.totalorder %s16, 1
      %s241 = scalar_select %p240, %s16, 1
      %s242 = smul.addr %s241, 16
      %s243 = smul.addr %s242, 8
      %s244 = scalar_lea.vmem %s5, %s243
      %p245 = scmp.lt.s32.totalorder %s16, 1
      %s246 = scalar_select %p245, %s16, 1
      %s247 = smul.addr %s246, 16
      %s248 = smul.addr %s247, 8
      %s249 = scalar_lea.vmem %s0, %s248
      %p250 = scmp.lt.s32.totalorder %s16, 1
      %s251 = scalar_select %p250, %s16, 1
      %s252 = smul.addr %s251, 16
      %s253 = smul.addr %s252, 8
      %s254 = scalar_lea.vmem %s1, %s253
      %p255 = scmp.lt.s32.totalorder %s16, 1
      %s256 = scalar_select %p255, %s16, 1
      %s257 = smul.addr %s256, 8
      %s258 = smul.addr %s257, 4
      %s259 = scalar_lea.vmem %s2, %s258
      %p260 = scmp.lt.s32.totalorder %s16, 1
      %s261 = scalar_select %p260, %s16, 1
      %s262 = smul.addr %s261, 16
      %s263 = smul.addr %s262, 8
      %s264 = scalar_lea.vmem %s5, %s263
      %v265 = vld [vmem:[%s3] sm:$0xff]
      %v266 = vld [vmem:[%s3 + $0x8] sm:$0xff]
      %v267 = vld [vmem:[%s259] sm:$0xff]
      %v268 = vld [vmem:[%s259 + $0x8] sm:$0xff]
      %v269 = vld [vmem:[%s259 + $0x10] sm:$0xff]
      %v270 = vld [vmem:[%s259 + $0x18] sm:$0xff]
      %v271 = vld [vmem:[%s4] sm:$0xff]
      %v272 = vld [vmem:[%s4 + $0x8] sm:$0xff]
      %274 = vset.pattern.permute.xlu0 0
      %275 = vperm.xlu0 %274, %v271
      %v276 = vpop.permute.xlu0 %275
      %279 = vset.pattern.permute.xlu0 0
      %280 = vperm.xlu0 %279, %v272
      %v281 = vpop.permute.xlu0 %280
      %v287 = vcombine.high %v267, %v267
      %v288 = vcombine.high %v268, %v268
      %v289 = vcombine.high %v269, %v269
      %v290 = vcombine.high %v270, %v270
      %vm291 = vcmask 31744
      %v293 = vsel %vm291, %v265, 0
      %v296 = vsel %vm291, %v266, 0
      %vm298 = vcmask 1043456
      %v299 = vsel %vm298, %v267, 0
      %v301 = vsel %vm298, %v287, 0
      %v303 = vsel %vm298, %v268, 0
      %v305 = vsel %vm298, %v288, 0
      %v307 = vsel %vm298, %v269, 0
      %v309 = vsel %vm298, %v289, 0
      %v311 = vsel %vm298, %v270, 0
      %v313 = vsel %vm298, %v290, 0
      %315 = vmatprep.subr.mxu0 %v301
      %316 = vmatpush1.msra.mxu0 %v299
      %317 = vmatprep.subr.mxu0 0.0
      %318 = vmatpush1.msra.mxu0 0.0
      %319 = vmatprep.subr.mxu0 0.0
      %320 = vmatpush1.msra.mxu0 0.0
      %321 = vmatprep.subr.mxu0 0.0
      %322 = vmatpush1.msra.mxu0 0.0
      %323 = vmatprep.subr.mxu0 0.0
      %324 = vmatpush1.msra.mxu0 0.0
      %325 = vmatprep.subr.mxu0 0.0
      %326 = vmatpush1.msra.mxu0 0.0
      %327 = vmatprep.subr.mxu0 0.0
      %328 = vmatpush1.msra.mxu0 0.0
      %329 = vmatprep.subr.mxu0 0.0
      %330 = vmatpush1.msra.mxu0 0.0
      %331 = vmatprep.subr.mxu0 0.0
      %332 = vmatpush1.msra.mxu0 0.0
      %333 = vmatprep.subr.mxu0 0.0
      %334 = vmatpush1.msra.mxu0 0.0
      %335 = vmatprep.subr.mxu0 0.0
      %336 = vmatpush1.msra.mxu0 0.0
      %337 = vmatprep.subr.mxu0 0.0
      %338 = vmatpush1.msra.mxu0 0.0
      %339 = vmatprep.subr.mxu0 0.0
      %340 = vmatpush1.msra.mxu0 0.0
      %341 = vmatprep.subr.mxu0 0.0
      %342 = vmatpush1.msra.mxu0 0.0
      %343 = vmatprep.subr.mxu0 0.0
      %344 = vmatpush1.msra.mxu0 0.0
      %345 = vmatprep.subr.mxu0 0.0
      %346 = vmatpush1.msra.mxu0 0.0
      %347 = vmatprep.subr.mxu0 0.0
      %348 = vmatpush1.msra.mxu0 0.0
      %349 = vmatprep.subr.mxu0 0.0
      %350 = vmatpush1.msra.mxu0 0.0
      %351 = vmatprep.subr.mxu0 0.0
      %352 = vmatpush1.msra.mxu0 0.0
      %353 = vmatprep.subr.mxu0 0.0
      %354 = vmatpush1.msra.mxu0 0.0
      %355 = vmatprep.subr.mxu0 0.0
      %356 = vmatpush1.msra.mxu0 0.0
      %357 = vmatprep.subr.mxu0 0.0
      %358 = vmatpush1.msra.mxu0 0.0
      %359 = vmatprep.subr.mxu0 0.0
      %360 = vmatpush1.msra.mxu0 0.0
      %361 = vmatprep.subr.mxu0 0.0
      %362 = vmatpush1.msra.mxu0 0.0
      %363 = vmatprep.subr.mxu0 0.0
      %364 = vmatpush1.msra.mxu0 0.0
      %365 = vmatprep.subr.mxu0 0.0
      %366 = vmatpush1.msra.mxu0 0.0
      %367 = vmatprep.subr.mxu0 0.0
      %368 = vmatpush1.msra.mxu0 0.0
      %369 = vmatprep.subr.mxu0 0.0
      %370 = vmatpush1.msra.mxu0 0.0
      %371 = vmatprep.subr.mxu0 0.0
      %372 = vmatpush1.msra.mxu0 0.0
      %373 = vmatprep.subr.mxu0 0.0
      %374 = vmatpush1.msra.mxu0 0.0
      %375 = vmatprep.subr.mxu0 0.0
      %376 = vmatpush1.msra.mxu0 0.0
      %377 = vmatprep.subr.mxu0 0.0
      %378 = vmatpush1.msra.mxu0 0.0
      %379 = vmatprep.mubr.f32.mxu0 0.0
      %380 = vmatmul.mubr.f32.gmra.mrb[0].mxu0 %v293
      %v381 = vpop.f32.mrb[0].mxu0
      %v382 = vadd.f32 %v276, %v381
      %v383 = vpop.f32.mrb[0].mxu0
      %v384 = vadd.f32 %v276, %v383
      %385 = vmatprep.mubr.f32.mxu0 0.0
      %386 = vmatmul.mubr.f32.gmra.mrb[0].mxu0 %v296
      %v387 = vpop.f32.mrb[0].mxu0
      %v388 = vadd.f32 %v281, %v387
      %v389 = vpop.f32.mrb[0].mxu0
      %v390 = vadd.f32 %v281, %v389
      %391 = vdwg.mxu0
      %392 = vmatprep.subr.mxu0 %v305
      %393 = vmatpush1.msra.mxu0 %v303
      %394 = vmatprep.subr.mxu0 0.0
      %395 = vmatpush1.msra.mxu0 0.0
      %396 = vmatprep.subr.mxu0 0.0
      %397 = vmatpush1.msra.mxu0 0.0
      %398 = vmatprep.subr.mxu0 0.0
      %399 = vmatpush1.msra.mxu0 0.0
      %400 = vmatprep.subr.mxu0 0.0
      %401 = vmatpush1.msra.mxu0 0.0
      %402 = vmatprep.subr.mxu0 0.0
      %403 = vmatpush1.msra.mxu0 0.0
      %404 = vmatprep.subr.mxu0 0.0
      %405 = vmatpush1.msra.mxu0 0.0
      %406 = vmatprep.subr.mxu0 0.0
      %407 = vmatpush1.msra.mxu0 0.0
      %408 = vmatprep.subr.mxu0 0.0
      %409 = vmatpush1.msra.mxu0 0.0
      %410 = vmatprep.subr.mxu0 0.0
      %411 = vmatpush1.msra.mxu0 0.0
      %412 = vmatprep.subr.mxu0 0.0
      %413 = vmatpush1.msra.mxu0 0.0
      %414 = vmatprep.subr.mxu0 0.0
      %415 = vmatpush1.msra.mxu0 0.0
      %416 = vmatprep.subr.mxu0 0.0
      %417 = vmatpush1.msra.mxu0 0.0
      %418 = vmatprep.subr.mxu0 0.0
      %419 = vmatpush1.msra.mxu0 0.0
      %420 = vmatprep.subr.mxu0 0.0
      %421 = vmatpush1.msra.mxu0 0.0
      %422 = vmatprep.subr.mxu0 0.0
      %423 = vmatpush1.msra.mxu0 0.0
      %424 = vmatprep.subr.mxu0 0.0
      %425 = vmatpush1.msra.mxu0 0.0
      %426 = vmatprep.subr.mxu0 0.0
      %427 = vmatpush1.msra.mxu0 0.0
      %428 = vmatprep.subr.mxu0 0.0
      %429 = vmatpush1.msra.mxu0 0.0
      %430 = vmatprep.subr.mxu0 0.0
      %431 = vmatpush1.msra.mxu0 0.0
      %432 = vmatprep.subr.mxu0 0.0
      %433 = vmatpush1.msra.mxu0 0.0
      %434 = vmatprep.subr.mxu0 0.0
      %435 = vmatpush1.msra.mxu0 0.0
      %436 = vmatprep.subr.mxu0 0.0
      %437 = vmatpush1.msra.mxu0 0.0
      %438 = vmatprep.subr.mxu0 0.0
      %439 = vmatpush1.msra.mxu0 0.0
      %440 = vmatprep.subr.mxu0 0.0
      %441 = vmatpush1.msra.mxu0 0.0
      %442 = vmatprep.subr.mxu0 0.0
      %443 = vmatpush1.msra.mxu0 0.0
      %444 = vmatprep.subr.mxu0 0.0
      %445 = vmatpush1.msra.mxu0 0.0
      %446 = vmatprep.subr.mxu0 0.0
      %447 = vmatpush1.msra.mxu0 0.0
      %448 = vmatprep.subr.mxu0 0.0
      %449 = vmatpush1.msra.mxu0 0.0
      %450 = vmatprep.subr.mxu0 0.0
      %451 = vmatpush1.msra.mxu0 0.0
      %452 = vmatprep.subr.mxu0 0.0
      %453 = vmatpush1.msra.mxu0 0.0
      %454 = vmatprep.subr.mxu0 0.0
      %455 = vmatpush1.msra.mxu0 0.0
      %456 = vmatprep.mubr.f32.mxu0 0.0
      %457 = vmatmul.mubr.f32.gmra.mrb[0].mxu0 %v293
      %v458 = vpop.f32.mrb[0].mxu0
      %v459 = vadd.f32 %v276, %v458
      %v460 = vpop.f32.mrb[0].mxu0
      %v461 = vadd.f32 %v276, %v460
      %462 = vmatprep.mubr.f32.mxu0 0.0
      %463 = vmatmul.mubr.f32.gmra.mrb[0].mxu0 %v296
      %v464 = vpop.f32.mrb[0].mxu0
      %v465 = vadd.f32 %v281, %v464
      %v466 = vpop.f32.mrb[0].mxu0
      %v467 = vadd.f32 %v281, %v466
      %468 = vdwg.mxu0
      %469 = vmatprep.subr.mxu0 %v309
      %470 = vmatpush1.msra.mxu0 %v307
      %471 = vmatprep.subr.mxu0 0.0
      %472 = vmatpush1.msra.mxu0 0.0
      %473 = vmatprep.subr.mxu0 0.0
      %474 = vmatpush1.msra.mxu0 0.0
      %475 = vmatprep.subr.mxu0 0.0
      %476 = vmatpush1.msra.mxu0 0.0
      %477 = vmatprep.subr.mxu0 0.0
      %478 = vmatpush1.msra.mxu0 0.0
      %479 = vmatprep.subr.mxu0 0.0
      %480 = vmatpush1.msra.mxu0 0.0
      %481 = vmatprep.subr.mxu0 0.0
      %482 = vmatpush1.msra.mxu0 0.0
      %483 = vmatprep.subr.mxu0 0.0
      %484 = vmatpush1.msra.mxu0 0.0
      %485 = vmatprep.subr.mxu0 0.0
      %486 = vmatpush1.msra.mxu0 0.0
      %487 = vmatprep.subr.mxu0 0.0
      %488 = vmatpush1.msra.mxu0 0.0
      %489 = vmatprep.subr.mxu0 0.0
      %490 = vmatpush1.msra.mxu0 0.0
      %491 = vmatprep.subr.mxu0 0.0
      %492 = vmatpush1.msra.mxu0 0.0
      %493 = vmatprep.subr.mxu0 0.0
      %494 = vmatpush1.msra.mxu0 0.0
      %495 = vmatprep.subr.mxu0 0.0
      %496 = vmatpush1.msra.mxu0 0.0
      %497 = vmatprep.subr.mxu0 0.0
      %498 = vmatpush1.msra.mxu0 0.0
      %499 = vmatprep.subr.mxu0 0.0
      %500 = vmatpush1.msra.mxu0 0.0
      %501 = vmatprep.subr.mxu0 0.0
      %502 = vmatpush1.msra.mxu0 0.0
      %503 = vmatprep.subr.mxu0 0.0
      %504 = vmatpush1.msra.mxu0 0.0
      %505 = vmatprep.subr.mxu0 0.0
      %506 = vmatpush1.msra.mxu0 0.0
      %507 = vmatprep.subr.mxu0 0.0
      %508 = vmatpush1.msra.mxu0 0.0
      %509 = vmatprep.subr.mxu0 0.0
      %510 = vmatpush1.msra.mxu0 0.0
      %511 = vmatprep.subr.mxu0 0.0
      %512 = vmatpush1.msra.mxu0 0.0
      %513 = vmatprep.subr.mxu0 0.0
      %514 = vmatpush1.msra.mxu0 0.0
      %515 = vmatprep.subr.mxu0 0.0
      %516 = vmatpush1.msra.mxu0 0.0
      %517 = vmatprep.subr.mxu0 0.0
      %518 = vmatpush1.msra.mxu0 0.0
      %519 = vmatprep.subr.mxu0 0.0
      %520 = vmatpush1.msra.mxu0 0.0
      %521 = vmatprep.subr.mxu0 0.0
      %522 = vmatpush1.msra.mxu0 0.0
      %523 = vmatprep.subr.mxu0 0.0
      %524 = vmatpush1.msra.mxu0 0.0
      %525 = vmatprep.subr.mxu0 0.0
      %526 = vmatpush1.msra.mxu0 0.0
      %527 = vmatprep.subr.mxu0 0.0
      %528 = vmatpush1.msra.mxu0 0.0
      %529 = vmatprep.subr.mxu0 0.0
      %530 = vmatpush1.msra.mxu0 0.0
      %531 = vmatprep.subr.mxu0 0.0
      %532 = vmatpush1.msra.mxu0 0.0
      %533 = vmatprep.mubr.f32.mxu0 0.0
      %534 = vmatmul.mubr.f32.gmra.mrb[0].mxu0 %v293
      %v535 = vpop.f32.mrb[0].mxu0
      %v536 = vadd.f32 %v276, %v535
      %v537 = vpop.f32.mrb[0].mxu0
      %v538 = vadd.f32 %v276, %v537
      %539 = vmatprep.mubr.f32.mxu0 0.0
      %540 = vmatmul.mubr.f32.gmra.mrb[0].mxu0 %v296
      %v541 = vpop.f32.mrb[0].mxu0
      %v542 = vadd.f32 %v281, %v541
      %v543 = vpop.f32.mrb[0].mxu0
      %v544 = vadd.f32 %v281, %v543
      %545 = vdwg.mxu0
      %546 = vmatprep.subr.mxu0 %v313
      %547 = vmatpush1.msra.mxu0 %v311
      %548 = vmatprep.subr.mxu0 0.0
      %549 = vmatpush1.msra.mxu0 0.0
      %550 = vmatprep.subr.mxu0 0.0
      %551 = vmatpush1.msra.mxu0 0.0
      %552 = vmatprep.subr.mxu0 0.0
      %553 = vmatpush1.msra.mxu0 0.0
      %554 = vmatprep.subr.mxu0 0.0
      %555 = vmatpush1.msra.mxu0 0.0
      %556 = vmatprep.subr.mxu0 0.0
      %557 = vmatpush1.msra.mxu0 0.0
      %558 = vmatprep.subr.mxu0 0.0
      %559 = vmatpush1.msra.mxu0 0.0
      %560 = vmatprep.subr.mxu0 0.0
      %561 = vmatpush1.msra.mxu0 0.0
      %562 = vmatprep.subr.mxu0 0.0
      %563 = vmatpush1.msra.mxu0 0.0
      %564 = vmatprep.subr.mxu0 0.0
      %565 = vmatpush1.msra.mxu0 0.0
      %566 = vmatprep.subr.mxu0 0.0
      %567 = vmatpush1.msra.mxu0 0.0
      %568 = vmatprep.subr.mxu0 0.0
      %569 = vmatpush1.msra.mxu0 0.0
      %570 = vmatprep.subr.mxu0 0.0
      %571 = vmatpush1.msra.mxu0 0.0
      %572 = vmatprep.subr.mxu0 0.0
      %573 = vmatpush1.msra.mxu0 0.0
      %574 = vmatprep.subr.mxu0 0.0
      %575 = vmatpush1.msra.mxu0 0.0
      %576 = vmatprep.subr.mxu0 0.0
      %577 = vmatpush1.msra.mxu0 0.0
      %578 = vmatprep.subr.mxu0 0.0
      %579 = vmatpush1.msra.mxu0 0.0
      %580 = vmatprep.subr.mxu0 0.0
      %581 = vmatpush1.msra.mxu0 0.0
      %582 = vmatprep.subr.mxu0 0.0
      %583 = vmatpush1.msra.mxu0 0.0
      %584 = vmatprep.subr.mxu0 0.0
      %585 = vmatpush1.msra.mxu0 0.0
      %586 = vmatprep.subr.mxu0 0.0
      %587 = vmatpush1.msra.mxu0 0.0
      %588 = vmatprep.subr.mxu0 0.0
      %589 = vmatpush1.msra.mxu0 0.0
      %590 = vmatprep.subr.mxu0 0.0
      %591 = vmatpush1.msra.mxu0 0.0
      %592 = vmatprep.subr.mxu0 0.0
      %593 = vmatpush1.msra.mxu0 0.0
      %594 = vmatprep.subr.mxu0 0.0
      %595 = vmatpush1.msra.mxu0 0.0
      %596 = vmatprep.subr.mxu0 0.0
      %597 = vmatpush1.msra.mxu0 0.0
      %598 = vmatprep.subr.mxu0 0.0
      %599 = vmatpush1.msra.mxu0 0.0
      %600 = vmatprep.subr.mxu0 0.0
      %601 = vmatpush1.msra.mxu0 0.0
      %602 = vmatprep.subr.mxu0 0.0
      %603 = vmatpush1.msra.mxu0 0.0
      %604 = vmatprep.subr.mxu0 0.0
      %605 = vmatpush1.msra.mxu0 0.0
      %606 = vmatprep.subr.mxu0 0.0
      %607 = vmatpush1.msra.mxu0 0.0
      %608 = vmatprep.subr.mxu0 0.0
      %609 = vmatpush1.msra.mxu0 0.0
      %610 = vmatprep.mubr.f32.mxu0 0.0
      %611 = vmatmul.mubr.f32.gmra.mrb[0].mxu0 %v293
      %v612 = vpop.f32.mrb[0].mxu0
      %v613 = vadd.f32 %v276, %v612
      %v614 = vpop.f32.mrb[0].mxu0
      %v615 = vadd.f32 %v276, %v614
      %616 = vmatprep.mubr.f32.mxu0 0.0
      %617 = vmatmul.mubr.f32.gmra.mrb[0].mxu0 %v296
      %v618 = vpop.f32.mrb[0].mxu0
      %v619 = vadd.f32 %v281, %v618
      %v620 = vpop.f32.mrb[0].mxu0
      %v621 = vadd.f32 %v281, %v620
      %622 = vdwg.mxu0
      %v623 = vld [vmem:[%s249] sm:$0xff]
      %v624 = vld [vmem:[%s249 + $0x8] sm:$0xff]
      %v625 = vld [vmem:[%s249 + $0x10] sm:$0xff]
      %v626 = vld [vmem:[%s249 + $0x18] sm:$0xff]
      %v627 = vld [vmem:[%s249 + $0x20] sm:$0xff]
      %v628 = vld [vmem:[%s249 + $0x28] sm:$0xff]
      %v629 = vld [vmem:[%s249 + $0x30] sm:$0xff]
      %v630 = vld [vmem:[%s249 + $0x38] sm:$0xff]
      %v631 = vld [vmem:[%s249 + $0x40] sm:$0xff]
      %v632 = vld [vmem:[%s249 + $0x48] sm:$0xff]
      %v633 = vld [vmem:[%s249 + $0x50] sm:$0xff]
      %v634 = vld [vmem:[%s249 + $0x58] sm:$0xff]
      %v635 = vld [vmem:[%s249 + $0x60] sm:$0xff]
      %v636 = vld [vmem:[%s249 + $0x68] sm:$0xff]
      %v637 = vld [vmem:[%s249 + $0x70] sm:$0xff]
      %v638 = vld [vmem:[%s249 + $0x78] sm:$0xff]
      %v639 = vxor.u32 %v382, 2147483648
      %v640 = vxor.u32 %v384, 2147483648
      %v641 = vxor.u32 %v459, 2147483648
      %v642 = vxor.u32 %v461, 2147483648
      %v643 = vxor.u32 %v536, 2147483648
      %v644 = vxor.u32 %v538, 2147483648
      %v645 = vxor.u32 %v613, 2147483648
      %v646 = vxor.u32 %v615, 2147483648
      %v647 = vxor.u32 %v388, 2147483648
      %v648 = vxor.u32 %v390, 2147483648
      %v649 = vxor.u32 %v465, 2147483648
      %v650 = vxor.u32 %v467, 2147483648
      %v651 = vxor.u32 %v542, 2147483648
      %v652 = vxor.u32 %v544, 2147483648
      %v653 = vxor.u32 %v619, 2147483648
      %v654 = vxor.u32 %v621, 2147483648
      %v655 = vmul.f32 %v639, 1.442695
      %v656 = vpow.pop %v655
      %v657 = vmul.f32 %v640, 1.442695
      %v658 = vpow.pop %v657
      %v659 = vmul.f32 %v641, 1.442695
      %v660 = vpow.pop %v659
      %v661 = vmul.f32 %v642, 1.442695
      %v662 = vpow.pop %v661
      %v663 = vmul.f32 %v643, 1.442695
      %v664 = vpow.pop %v663
      %v665 = vmul.f32 %v644, 1.442695
      %v666 = vpow.pop %v665
      %v667 = vmul.f32 %v645, 1.442695
      %v668 = vpow.pop %v667
      %v669 = vmul.f32 %v646, 1.442695
      %v670 = vpow.pop %v669
      %v671 = vmul.f32 %v647, 1.442695
      %v672 = vpow.pop %v671
      %v673 = vmul.f32 %v648, 1.442695
      %v674 = vpow.pop %v673
      %v675 = vmul.f32 %v649, 1.442695
      %v676 = vpow.pop %v675
      %v677 = vmul.f32 %v650, 1.442695
      %v678 = vpow.pop %v677
      %v679 = vmul.f32 %v651, 1.442695
      %v680 = vpow.pop %v679
      %v681 = vmul.f32 %v652, 1.442695
      %v682 = vpow.pop %v681
      %v683 = vmul.f32 %v653, 1.442695
      %v684 = vpow.pop %v683
      %v685 = vmul.f32 %v654, 1.442695
      %v686 = vpow.pop %v685
      %v687 = vadd.f32 %v656, 1.0
      %v688 = vadd.f32 %v658, 1.0
      %v689 = vadd.f32 %v660, 1.0
      %v690 = vadd.f32 %v662, 1.0
      %v691 = vadd.f32 %v664, 1.0
      %v692 = vadd.f32 %v666, 1.0
      %v693 = vadd.f32 %v668, 1.0
      %v694 = vadd.f32 %v670, 1.0
      %v695 = vadd.f32 %v672, 1.0
      %v696 = vadd.f32 %v674, 1.0
      %v697 = vadd.f32 %v676, 1.0
      %v698 = vadd.f32 %v678, 1.0
      %v699 = vadd.f32 %v680, 1.0
      %v700 = vadd.f32 %v682, 1.0
      %v701 = vadd.f32 %v684, 1.0
      %v702 = vadd.f32 %v686, 1.0
      %v703 = vrcp.pop %v687
      %v704 = vmul.f32 1.0, %v703
      %v705 = vrcp.pop %v688
      %v706 = vmul.f32 1.0, %v705
      %v707 = vrcp.pop %v689
      %v708 = vmul.f32 1.0, %v707
      %v709 = vrcp.pop %v690
      %v710 = vmul.f32 1.0, %v709
      %v711 = vrcp.pop %v691
      %v712 = vmul.f32 1.0, %v711
      %v713 = vrcp.pop %v692
      %v714 = vmul.f32 1.0, %v713
      %v715 = vrcp.pop %v693
      %v716 = vmul.f32 1.0, %v715
      %v717 = vrcp.pop %v694
      %v718 = vmul.f32 1.0, %v717
      %v719 = vrcp.pop %v695
      %v720 = vmul.f32 1.0, %v719
      %v721 = vrcp.pop %v696
      %v722 = vmul.f32 1.0, %v721
      %v723 = vrcp.pop %v697
      %v724 = vmul.f32 1.0, %v723
      %v725 = vrcp.pop %v698
      %v726 = vmul.f32 1.0, %v725
      %v727 = vrcp.pop %v699
      %v728 = vmul.f32 1.0, %v727
      %v729 = vrcp.pop %v700
      %v730 = vmul.f32 1.0, %v729
      %v731 = vrcp.pop %v701
      %v732 = vmul.f32 1.0, %v731
      %v733 = vrcp.pop %v702
      %v734 = vmul.f32 1.0, %v733
      %v735 = vmul.f32 %v623, %v704
      %v736 = vmul.f32 %v624, %v706
      %v737 = vmul.f32 %v625, %v708
      %v738 = vmul.f32 %v626, %v710
      %v739 = vmul.f32 %v627, %v712
      %v740 = vmul.f32 %v628, %v714
      %v741 = vmul.f32 %v629, %v716
      %v742 = vmul.f32 %v630, %v718
      %v743 = vmul.f32 %v631, %v720
      %v744 = vmul.f32 %v632, %v722
      %v745 = vmul.f32 %v633, %v724
      %v746 = vmul.f32 %v634, %v726
      %v747 = vmul.f32 %v635, %v728
      %v748 = vmul.f32 %v636, %v730
      %v749 = vmul.f32 %v637, %v732
      %v750 = vmul.f32 %v638, %v734
      %v751 = vld [vmem:[%s254] sm:$0xff]
      %v752 = vld [vmem:[%s254 + $0x8] sm:$0xff]
      %v753 = vld [vmem:[%s254 + $0x10] sm:$0xff]
      %v754 = vld [vmem:[%s254 + $0x18] sm:$0xff]
      %v755 = vld [vmem:[%s254 + $0x20] sm:$0xff]
      %v756 = vld [vmem:[%s254 + $0x28] sm:$0xff]
      %v757 = vld [vmem:[%s254 + $0x30] sm:$0xff]
      %v758 = vld [vmem:[%s254 + $0x38] sm:$0xff]
      %v759 = vld [vmem:[%s254 + $0x40] sm:$0xff]
      %v760 = vld [vmem:[%s254 + $0x48] sm:$0xff]
      %v761 = vld [vmem:[%s254 + $0x50] sm:$0xff]
      %v762 = vld [vmem:[%s254 + $0x58] sm:$0xff]
      %v763 = vld [vmem:[%s254 + $0x60] sm:$0xff]
      %v764 = vld [vmem:[%s254 + $0x68] sm:$0xff]
      %v765 = vld [vmem:[%s254 + $0x70] sm:$0xff]
      %v766 = vld [vmem:[%s254 + $0x78] sm:$0xff]
      %v767 = vadd.f32 %v735, %v751
      %v768 = vadd.f32 %v736, %v752
      %v769 = vadd.f32 %v737, %v753
      %v770 = vadd.f32 %v738, %v754
      %v771 = vadd.f32 %v739, %v755
      %v772 = vadd.f32 %v740, %v756
      %v773 = vadd.f32 %v741, %v757
      %v774 = vadd.f32 %v742, %v758
      %v775 = vadd.f32 %v743, %v759
      %v776 = vadd.f32 %v744, %v760
      %v777 = vadd.f32 %v745, %v761
      %v778 = vadd.f32 %v746, %v762
      %v779 = vadd.f32 %v747, %v763
      %v780 = vadd.f32 %v748, %v764
      %v781 = vadd.f32 %v749, %v765
      %v782 = vadd.f32 %v750, %v766
      %783 = vst [vmem:[%s264] sm:$0xff] %v767
      %784 = vst [vmem:[%s264 + $0x8] sm:$0xff] %v768
      %785 = vst [vmem:[%s264 + $0x10] sm:$0xff] %v769
      %786 = vst [vmem:[%s264 + $0x18] sm:$0xff] %v770
      %787 = vst [vmem:[%s264 + $0x20] sm:$0xff] %v771
      %788 = vst [vmem:[%s264 + $0x28] sm:$0xff] %v772
      %789 = vst [vmem:[%s264 + $0x30] sm:$0xff] %v773
      %790 = vst [vmem:[%s264 + $0x38] sm:$0xff] %v774
      %791 = vst [vmem:[%s264 + $0x40] sm:$0xff] %v775
      %792 = vst [vmem:[%s264 + $0x48] sm:$0xff] %v776
      %793 = vst [vmem:[%s264 + $0x50] sm:$0xff] %v777
      %794 = vst [vmem:[%s264 + $0x58] sm:$0xff] %v778
      %795 = vst [vmem:[%s264 + $0x60] sm:$0xff] %v779
      %796 = vst [vmem:[%s264 + $0x68] sm:$0xff] %v780
      %797 = vst [vmem:[%s264 + $0x70] sm:$0xff] %v781
      %798 = vst [vmem:[%s264 + $0x78] sm:$0xff] %v782
      %p799 = scmp.lt.s32.totalorder %s16, 1
      %s800 = scalar_select %p799, %s16, 1
      %s801 = smul.addr %s800, 16
      %s802 = smul.addr %s801, 8
      %s803 = scalar_lea.vmem %s5, %s802
      // Predicated region
      $region41: #{resdb_forward.3} parent=39 // pred_check
        %p804 = pneg %p154
      $region42: #{resdb_forward.3} parent=39 // pred_check_branch
        %806 = sbr.rel (%p804) target = $region44
      $region43: #{resdb_forward.3} parent=39 // pred_region
        _
      $region44: #{resdb_forward.3} parent=39 // pred_fallthru
        _
    $region40: #{resdb_forward.3} parent=5 // pred_fallthru
      _
    %p807 = scmp.le.s32.totalorder 2, %s11
    // Predicated region
    $region45: #{resdb_forward.3} parent=5 // pred_check
      %p808 = pneg %p807
    $region46: #{resdb_forward.3} parent=5 // pred_check_branch
      %810 = sbr.rel (%p808) target = $region48
    $region47: #{resdb_forward.3} parent=5 // pred_region
      %s811 = ssub.s32 %s11, 2
      // Predicated region
      $region49: #{resdb_forward.3} parent=47 // pred_check
        %p812 = pneg %p160
      $region50: #{resdb_forward.3} parent=47 // pred_check_branch
        %814 = sbr.rel (%p812) target = $region52
      $region51: #{resdb_forward.3} parent=47 // pred_region
        %p815 = scmp.lt.s32.totalorder %s17, 1
        %s816 = scalar_select %p815, %s17, 1
        %s817 = smul.addr %s816, 16
        %s818 = smul.addr %s817, 8
        %s819 = scalar_lea.vmem %s5, %s818
      $region52: #{resdb_forward.3} parent=47 // pred_fallthru
        _
    $region48: #{resdb_forward.3} parent=5 // pred_fallthru
      _
  $region6: #{resdb_forward.3} parent=0 // loop_footer
    %s15 = sadd.s32 1, %s11
  $region7: #{resdb_forward.3} parent=0 // loop_footer_branch
    %10 = sbr.rel target = $region3
  $region8: #{resdb_forward.3} parent=0 // loop_exit
    _

// kernel: resdb_forward.2
$region0: #{resdb_forward.2}
  #allocation0 [shape = 'u32[]', space=smem, size = 0x4, offset = 0x4, fixed_abs, tag = 'smem constant byte address 0x4 - core index']
  #allocation1 [shape = 'u32[144,128]{1,0:T(1,128)}', space=vmem, size = 0x12000, scoped, tag = 'internal scratch']
  #allocation2 [shape = 'f32[16,1024]{1,0:T(8,128)}', space=vmem, size = 0x10000, scoped, tag = 'scratch operand']
  #allocation3 [shape = 'f32[40,1024]{1,0:T(8,128)}', space=vmem, size = 0x28000, scoped, tag = 'scratch operand']
  #allocation4 [shape = 'f32[48,1024]{1,0:T(8,128)}', space=vmem, size = 0x30000, scoped, tag = 'scratch operand']
  #allocation5 [shape = 'f32[48,1024]{1,0:T(8,128)}', space=vmem, size = 0x30000, scoped, tag = 'scratch operand']
  %s0 = inlined_call_operand.vmem [shape: f32[2,16,1024], index: 0, kind: input, shape index: {}]
  %s1 = inlined_call_operand.vmem [shape: f32[16,1], index: 1, kind: input, shape index: {}]
  %s2 = inlined_call_operand.vmem [shape: f32[40,16], index: 2, kind: input, shape index: {}]
  %s3 = inlined_call_operand.vmem [shape: f32[40,1], index: 3, kind: input, shape index: {}]
  %s4 = inlined_call_operand.vmem [shape: f32[24,1], index: 4, kind: input, shape index: {}]
  %s5 = inlined_call_operand.vmem [shape: f32[32,24], index: 5, kind: input, shape index: {}]
  %s6 = inlined_call_operand.vmem [shape: f32[32,1], index: 6, kind: input, shape index: {}]
  %s7 = inlined_call_operand.vmem [shape: f32[32,1], index: 7, kind: input, shape index: {}]
  %s8 = inlined_call_operand.vmem [shape: f32[24,32], index: 8, kind: input, shape index: {}]
  %s9 = inlined_call_operand.vmem [shape: f32[24,1], index: 9, kind: input, shape index: {}]
  %s10 = inlined_call_operand.vmem [shape: f32[16,1], index: 10, kind: input, shape index: {}]
  %s11 = inlined_call_operand.vmem [shape: f32[48,48], index: 11, kind: input, shape index: {}]
  %s12 = inlined_call_operand.vmem [shape: f32[16,1], index: 12, kind: input, shape index: {}]
  %s13 = inlined_call_operand.vmem [shape: f32[16,1], index: 13, kind: input, shape index: {}]
  %s14 = inlined_call_operand.vmem [shape: f32[48,48], index: 14, kind: input, shape index: {}]
  %s15 = inlined_call_operand.vmem [shape: f32[16,1], index: 15, kind: input, shape index: {}]
  %s16 = inlined_call_operand.vmem [shape: f32[16,1], index: 16, kind: input, shape index: {}]
  %s17 = inlined_call_operand.vmem [shape: f32[48,48], index: 17, kind: input, shape index: {}]
  %s18 = inlined_call_operand.vmem [shape: f32[16,1], index: 18, kind: input, shape index: {}]
  %s19 = inlined_call_operand.vmem [shape: f32[40,1], index: 19, kind: input, shape index: {}]
  %s20 = inlined_call_operand.vmem [shape: f32[16,40], index: 20, kind: input, shape index: {}]
  %s21 = inlined_call_operand.vmem [shape: f32[16,1], index: 21, kind: input, shape index: {}]
  %s22 = inlined_call_operand.vmem [shape: f32[4,16], index: 22, kind: input, shape index: {}]
  %s23 = inlined_call_operand.vmem [shape: f32[4,1], index: 23, kind: input, shape index: {}]
  %s24 = inlined_call_operand.vmem [shape: f32[4,4], index: 24, kind: input, shape index: {}]
  %s25 = inlined_call_operand.vmem [shape: f32[4,1], index: 25, kind: input, shape index: {}]
  %s26 = inlined_call_operand.vmem [shape: f32[2,16,1024], index: 26, kind: output, shape index: {0}]
  %s27 = inlined_call_operand.vmem [shape: f32[2,8,1024], index: 27, kind: output, shape index: {1}]
  %28 = xla_tuple %s26, %s27
  %s29 = sld [smem:[#allocation0]]
  $region145: #{resdb_forward.2} parent=0
    _
  %s31 = ssub.s32 1, %s29
  %s32 = scalar_select 0, %s31, %s29
  loop: start=0, step=1, limit=4
  $region2: #{resdb_forward.2} parent=0 // loop_pre_header
    _
  $region3: #{resdb_forward.2} parent=0 // loop_header
    %s34 = sphi 0, %s38
    %p35 = scmp.ge.s32.totalorder %s34, 4
    %s44 = sphi 0, %s46
    %s47 = sphi 0, %s44
    %s48 = sphi 0, %s47
    %s64 = sphi 0, %s48
    %s68 = sphi 0, %s68
    %s70 = sphi 0, %s68
    %s71 = sphi 0, %s70
    %s85 = sphi 0, %s71
    %s89 = sphi 0, %s89
    %s91 = sphi 0, %s89
    %s92 = sphi 0, %s91
    %s106 = sphi 0, %s92
    %s110 = sphi 0, %s110
    %s112 = sphi 0, %s110
    %s113 = sphi 0, %s112
    %s127 = sphi 0, %s113
    %s131 = sphi 0, %s131
    %s133 = sphi 0, %s131
    %s134 = sphi 0, %s133
    %s148 = sphi 0, %s134
    %s152 = sphi 0, %s152
    %s154 = sphi 0, %s152
    %s155 = sphi 0, %s154
    %s169 = sphi 0, %s155
    %s173 = sphi 0, %s173
    %s175 = sphi 0, %s173
    %s176 = sphi 0, %s175
    %s190 = sphi 0, %s176
    %s194 = sphi 0, %s194
    %s196 = sphi 0, %s194
    %s197 = sphi 0, %s196
    %s211 = sphi 0, %s197
    %s215 = sphi 0, %s215
    %s217 = sphi 0, %s215
    %s218 = sphi 0, %s217
    %s232 = sphi 0, %s218
    %s236 = sphi 0, %s236
    %s238 = sphi 0, %s236
    %s239 = sphi 0, %s238
    %s253 = sphi 0, %s239
    %s257 = sphi 0, %s257
    %s259 = sphi 0, %s257
    %s260 = sphi 0, %s259
    %s274 = sphi 0, %s260
    %s278 = sphi 0, %s278
    %s280 = sphi 0, %s278
    %s281 = sphi 0, %s280
    %s295 = sphi 0, %s281
    %s299 = sphi 0, %s299
    %s301 = sphi 0, %s299
    %s302 = sphi 0, %s301
    %s316 = sphi 0, %s302
    %s320 = sphi 0, %s320
    %s322 = sphi 0, %s320
    %s323 = sphi 0, %s322
    %s337 = sphi 0, %s323
    %s341 = sphi 0, %s341
    %s343 = sphi 0, %s341
    %s344 = sphi 0, %s343
    %s358 = sphi 0, %s344
    %s362 = sphi 0, %s362
    %s364 = sphi 0, %s362
    %s365 = sphi 0, %s364
    %s379 = sphi 0, %s365
    %s383 = sphi 0, %s383
    %s385 = sphi 0, %s383
    %s386 = sphi 0, %s385
    %s400 = sphi 0, %s386
    %s404 = sphi 0, %s404
    %s406 = sphi 0, %s404
    %s407 = sphi 0, %s406
    %s421 = sphi 0, %s407
    %s425 = sphi 0, %s425
    %s427 = sphi 0, %s425
    %s428 = sphi 0, %s427
    %s442 = sphi 0, %s428
    %s446 = sphi 0, %s446
    %s448 = sphi 0, %s446
    %s449 = sphi 0, %s448
    %s463 = sphi 0, %s449
    %s467 = sphi 0, %s467
    %s469 = sphi 0, %s467
    %s470 = sphi 0, %s469
    %s484 = sphi 0, %s470
    %s488 = sphi 0, %s488
    %s490 = sphi 0, %s488
    %s491 = sphi 0, %s490
    %s505 = sphi 0, %s491
    %s509 = sphi 0, %s509
    %s511 = sphi 0, %s509
    %s512 = sphi 0, %s511
    %s526 = sphi 0, %s512
    %s530 = sphi 0, %s530
    %s532 = sphi 0, %s530
    %s533 = sphi 0, %s532
    %s547 = sphi 0, %s533
    %s551 = sphi 0, %s551
    %s553 = sphi 0, %s551
    %s554 = sphi 0, %s553
    %s568 = sphi 0, %s554
    %s572 = sphi 0, %s572
    %s574 = sphi 0, %s572
    %s575 = sphi 0, %s574
    %s589 = sphi 0, %s575
    %s595 = sphi 0, %s597
    %s598 = sphi 0, %s595
    %s599 = sphi 0, %s598
    %s615 = sphi 0, %s599
    %s621 = sphi 0, %s623
    %s624 = sphi 0, %s621
    %s625 = sphi 0, %s624
    %s641 = sphi 0, %s625
  $region4: #{resdb_forward.2} parent=0 // loop_header_branch
    %37 = sbr.rel (%p35) target = $region8
  $region5: #{resdb_forward.2} parent=0 // loop_body
    %s39 = ssub.s32 %s34, 1
    %s40 = ssub.s32 %s34, 2
    %s41 = sadd.s32 %s34, 1
    %s42 = ssub.s32 %s34, %s41
    %p43 = scmp.eq.s32.totalorder %s42, 0
    %s45 = sadd.s32 %s44, 1
    %s46 = scalar_select %p43, %s44, %s45
    %p49 = pneg %p43
    %p50 = scmp.eq.s32.totalorder %s34, 1
    %p51 = por %p49, %p50
    %p52 = scmp.ne.s32.totalorder %s44, %s47
    %p53 = scmp.eq.s32.totalorder %s34, 0
    %p54 = por %p52, %p53
    %p55 = scmp.ne.s32.totalorder %s44, %s47
    %p56 = scmp.eq.s32.totalorder %s39, 1
    %p57 = por %p55, %p56
    %p58 = scmp.ne.s32.totalorder %s47, %s48
    %p59 = scmp.eq.s32.totalorder %s39, 0
    %p60 = por %p58, %p59
    %p61 = scmp.ne.s32.totalorder %s47, %s48
    %p62 = scmp.eq.s32.totalorder %s40, 1
    %p63 = por %p61, %p62
    %p65 = scmp.ne.s32.totalorder %s48, %s64
    %p66 = scmp.eq.s32.totalorder %s40, 0
    %p67 = por %p65, %p66
    %s69 = sadd.s32 %s68, 1
    %p72 = scmp.eq.s32.totalorder %s34, 1
    %p73 = scmp.ne.s32.totalorder %s68, %s70
    %p74 = scmp.eq.s32.totalorder %s34, 0
    %p75 = por %p73, %p74
    %p76 = scmp.ne.s32.totalorder %s68, %s70
    %p77 = scmp.eq.s32.totalorder %s39, 1
    %p78 = por %p76, %p77
    %p79 = scmp.ne.s32.totalorder %s70, %s71
    %p80 = scmp.eq.s32.totalorder %s39, 0
    %p81 = por %p79, %p80
    %p82 = scmp.ne.s32.totalorder %s70, %s71
    %p83 = scmp.eq.s32.totalorder %s40, 1
    %p84 = por %p82, %p83
    %p86 = scmp.ne.s32.totalorder %s71, %s85
    %p87 = scmp.eq.s32.totalorder %s40, 0
    %p88 = por %p86, %p87
    %s90 = sadd.s32 %s89, 1
    %p93 = scmp.eq.s32.totalorder %s34, 1
    %p94 = scmp.ne.s32.totalorder %s89, %s91
    %p95 = scmp.eq.s32.totalorder %s34, 0
    %p96 = por %p94, %p95
    %p97 = scmp.ne.s32.totalorder %s89, %s91
    %p98 = scmp.eq.s32.totalorder %s39, 1
    %p99 = por %p97, %p98
    %p100 = scmp.ne.s32.totalorder %s91, %s92
    %p101 = scmp.eq.s32.totalorder %s39, 0
    %p102 = por %p100, %p101
    %p103 = scmp.ne.s32.totalorder %s91, %s92
    %p104 = scmp.eq.s32.totalorder %s40, 1
    %p105 = por %p103, %p104
    %p107 = scmp.ne.s32.totalorder %s92, %s106
    %p108 = scmp.eq.s32.totalorder %s40, 0
    %p109 = por %p107, %p108
    %s111 = sadd.s32 %s110, 1
    %p114 = scmp.eq.s32.totalorder %s34, 1
    %p115 = scmp.ne.s32.totalorder %s110, %s112
    %p116 = scmp.eq.s32.totalorder %s34, 0
    %p117 = por %p115, %p116
    %p118 = scmp.ne.s32.totalorder %s110, %s112
    %p119 = scmp.eq.s32.totalorder %s39, 1
    %p120 = por %p118, %p119
    %p121 = scmp.ne.s32.totalorder %s112, %s113
    %p122 = scmp.eq.s32.totalorder %s39, 0
    %p123 = por %p121, %p122
    %p124 = scmp.ne.s32.totalorder %s112, %s113
    %p125 = scmp.eq.s32.totalorder %s40, 1
    %p126 = por %p124, %p125
    %p128 = scmp.ne.s32.totalorder %s113, %s127
    %p129 = scmp.eq.s32.totalorder %s40, 0
    %p130 = por %p128, %p129
    %s132 = sadd.s32 %s131, 1
    %p135 = scmp.eq.s32.totalorder %s34, 1
    %p136 = scmp.ne.s32.totalorder %s131, %s133
    %p137 = scmp.eq.s32.totalorder %s34, 0
    %p138 = por %p136, %p137
    %p139 = scmp.ne.s32.totalorder %s131, %s133
    %p140 = scmp.eq.s32.totalorder %s39, 1
    %p141 = por %p139, %p140
    %p142 = scmp.ne.s32.totalorder %s133, %s134
    %p143 = scmp.eq.s32.totalorder %s39, 0
    %p144 = por %p142, %p143
    %p145 = scmp.ne.s32.totalorder %s133, %s134
    %p146 = scmp.eq.s32.totalorder %s40, 1
    %p147 = por %p145, %p146
    %p149 = scmp.ne.s32.totalorder %s134, %s148
    %p150 = scmp.eq.s32.totalorder %s40, 0
    %p151 = por %p149, %p150
    %s153 = sadd.s32 %s152, 1
    %p156 = scmp.eq.s32.totalorder %s34, 1
    %p157 = scmp.ne.s32.totalorder %s152, %s154
    %p158 = scmp.eq.s32.totalorder %s34, 0
    %p159 = por %p157, %p158
    %p160 = scmp.ne.s32.totalorder %s152, %s154
    %p161 = scmp.eq.s32.totalorder %s39, 1
    %p162 = por %p160, %p161
    %p163 = scmp.ne.s32.totalorder %s154, %s155
    %p164 = scmp.eq.s32.totalorder %s39, 0
    %p165 = por %p163, %p164
    %p166 = scmp.ne.s32.totalorder %s154, %s155
    %p167 = scmp.eq.s32.totalorder %s40, 1
    %p168 = por %p166, %p167
    %p170 = scmp.ne.s32.totalorder %s155, %s169
    %p171 = scmp.eq.s32.totalorder %s40, 0
    %p172 = por %p170, %p171
    %s174 = sadd.s32 %s173, 1
    %p177 = scmp.eq.s32.totalorder %s34, 1
    %p178 = scmp.ne.s32.totalorder %s173, %s175
    %p179 = scmp.eq.s32.totalorder %s34, 0
    %p180 = por %p178, %p179
    %p181 = scmp.ne.s32.totalorder %s173, %s175
    %p182 = scmp.eq.s32.totalorder %s39, 1
    %p183 = por %p181, %p182
    %p184 = scmp.ne.s32.totalorder %s175, %s176
    %p185 = scmp.eq.s32.totalorder %s39, 0
    %p186 = por %p184, %p185
    %p187 = scmp.ne.s32.totalorder %s175, %s176
    %p188 = scmp.eq.s32.totalorder %s40, 1
    %p189 = por %p187, %p188
    %p191 = scmp.ne.s32.totalorder %s176, %s190
    %p192 = scmp.eq.s32.totalorder %s40, 0
    %p193 = por %p191, %p192
    %s195 = sadd.s32 %s194, 1
    %p198 = scmp.eq.s32.totalorder %s34, 1
    %p199 = scmp.ne.s32.totalorder %s194, %s196
    %p200 = scmp.eq.s32.totalorder %s34, 0
    %p201 = por %p199, %p200
    %p202 = scmp.ne.s32.totalorder %s194, %s196
    %p203 = scmp.eq.s32.totalorder %s39, 1
    %p204 = por %p202, %p203
    %p205 = scmp.ne.s32.totalorder %s196, %s197
    %p206 = scmp.eq.s32.totalorder %s39, 0
    %p207 = por %p205, %p206
    %p208 = scmp.ne.s32.totalorder %s196, %s197
    %p209 = scmp.eq.s32.totalorder %s40, 1
    %p210 = por %p208, %p209
    %p212 = scmp.ne.s32.totalorder %s197, %s211
    %p213 = scmp.eq.s32.totalorder %s40, 0
    %p214 = por %p212, %p213
    %s216 = sadd.s32 %s215, 1
    %p219 = scmp.eq.s32.totalorder %s34, 1
    %p220 = scmp.ne.s32.totalorder %s215, %s217
    %p221 = scmp.eq.s32.totalorder %s34, 0
    %p222 = por %p220, %p221
    %p223 = scmp.ne.s32.totalorder %s215, %s217
    %p224 = scmp.eq.s32.totalorder %s39, 1
    %p225 = por %p223, %p224
    %p226 = scmp.ne.s32.totalorder %s217, %s218
    %p227 = scmp.eq.s32.totalorder %s39, 0
    %p228 = por %p226, %p227
    %p229 = scmp.ne.s32.totalorder %s217, %s218
    %p230 = scmp.eq.s32.totalorder %s40, 1
    %p231 = por %p229, %p230
    %p233 = scmp.ne.s32.totalorder %s218, %s232
    %p234 = scmp.eq.s32.totalorder %s40, 0
    %p235 = por %p233, %p234
    %s237 = sadd.s32 %s236, 1
    %p240 = scmp.eq.s32.totalorder %s34, 1
    %p241 = scmp.ne.s32.totalorder %s236, %s238
    %p242 = scmp.eq.s32.totalorder %s34, 0
    %p243 = por %p241, %p242
    %p244 = scmp.ne.s32.totalorder %s236, %s238
    %p245 = scmp.eq.s32.totalorder %s39, 1
    %p246 = por %p244, %p245
    %p247 = scmp.ne.s32.totalorder %s238, %s239
    %p248 = scmp.eq.s32.totalorder %s39, 0
    %p249 = por %p247, %p248
    %p250 = scmp.ne.s32.totalorder %s238, %s239
    %p251 = scmp.eq.s32.totalorder %s40, 1
    %p252 = por %p250, %p251
    %p254 = scmp.ne.s32.totalorder %s239, %s253
    %p255 = scmp.eq.s32.totalorder %s40, 0
    %p256 = por %p254, %p255
    %s258 = sadd.s32 %s257, 1
    %p261 = scmp.eq.s32.totalorder %s34, 1
    %p262 = scmp.ne.s32.totalorder %s257, %s259
    %p263 = scmp.eq.s32.totalorder %s34, 0
    %p264 = por %p262, %p263
    %p265 = scmp.ne.s32.totalorder %s257, %s259
    %p266 = scmp.eq.s32.totalorder %s39, 1
    %p267 = por %p265, %p266
    %p268 = scmp.ne.s32.totalorder %s259, %s260
    %p269 = scmp.eq.s32.totalorder %s39, 0
    %p270 = por %p268, %p269
    %p271 = scmp.ne.s32.totalorder %s259, %s260
    %p272 = scmp.eq.s32.totalorder %s40, 1
    %p273 = por %p271, %p272
    %p275 = scmp.ne.s32.totalorder %s260, %s274
    %p276 = scmp.eq.s32.totalorder %s40, 0
    %p277 = por %p275, %p276
    %s279 = sadd.s32 %s278, 1
    %p282 = scmp.eq.s32.totalorder %s34, 1
    %p283 = scmp.ne.s32.totalorder %s278, %s280
    %p284 = scmp.eq.s32.totalorder %s34, 0
    %p285 = por %p283, %p284
    %p286 = scmp.ne.s32.totalorder %s278, %s280
    %p287 = scmp.eq.s32.totalorder %s39, 1
    %p288 = por %p286, %p287
    %p289 = scmp.ne.s32.totalorder %s280, %s281
    %p290 = scmp.eq.s32.totalorder %s39, 0
    %p291 = por %p289, %p290
    %p292 = scmp.ne.s32.totalorder %s280, %s281
    %p293 = scmp.eq.s32.totalorder %s40, 1
    %p294 = por %p292, %p293
    %p296 = scmp.ne.s32.totalorder %s281, %s295
    %p297 = scmp.eq.s32.totalorder %s40, 0
    %p298 = por %p296, %p297
    %s300 = sadd.s32 %s299, 1
    %p303 = scmp.eq.s32.totalorder %s34, 1
    %p304 = scmp.ne.s32.totalorder %s299, %s301
    %p305 = scmp.eq.s32.totalorder %s34, 0
    %p306 = por %p304, %p305
    %p307 = scmp.ne.s32.totalorder %s299, %s301
    %p308 = scmp.eq.s32.totalorder %s39, 1
    %p309 = por %p307, %p308
    %p310 = scmp.ne.s32.totalorder %s301, %s302
    %p311 = scmp.eq.s32.totalorder %s39, 0
    %p312 = por %p310, %p311
    %p313 = scmp.ne.s32.totalorder %s301, %s302
    %p314 = scmp.eq.s32.totalorder %s40, 1
    %p315 = por %p313, %p314
    %p317 = scmp.ne.s32.totalorder %s302, %s316
    %p318 = scmp.eq.s32.totalorder %s40, 0
    %p319 = por %p317, %p318
    %s321 = sadd.s32 %s320, 1
    %p324 = scmp.eq.s32.totalorder %s34, 1
    %p325 = scmp.ne.s32.totalorder %s320, %s322
    %p326 = scmp.eq.s32.totalorder %s34, 0
    %p327 = por %p325, %p326
    %p328 = scmp.ne.s32.totalorder %s320, %s322
    %p329 = scmp.eq.s32.totalorder %s39, 1
    %p330 = por %p328, %p329
    %p331 = scmp.ne.s32.totalorder %s322, %s323
    %p332 = scmp.eq.s32.totalorder %s39, 0
    %p333 = por %p331, %p332
    %p334 = scmp.ne.s32.totalorder %s322, %s323
    %p335 = scmp.eq.s32.totalorder %s40, 1
    %p336 = por %p334, %p335
    %p338 = scmp.ne.s32.totalorder %s323, %s337
    %p339 = scmp.eq.s32.totalorder %s40, 0
    %p340 = por %p338, %p339
    %s342 = sadd.s32 %s341, 1
    %p345 = scmp.eq.s32.totalorder %s34, 1
    %p346 = scmp.ne.s32.totalorder %s341, %s343
    %p347 = scmp.eq.s32.totalorder %s34, 0
    %p348 = por %p346, %p347
    %p349 = scmp.ne.s32.totalorder %s341, %s343
    %p350 = scmp.eq.s32.totalorder %s39, 1
    %p351 = por %p349, %p350
    %p352 = scmp.ne.s32.totalorder %s343, %s344
    %p353 = scmp.eq.s32.totalorder %s39, 0
    %p354 = por %p352, %p353
    %p355 = scmp.ne.s32.totalorder %s343, %s344
    %p356 = scmp.eq.s32.totalorder %s40, 1
    %p357 = por %p355, %p356
    %p359 = scmp.ne.s32.totalorder %s344, %s358
    %p360 = scmp.eq.s32.totalorder %s40, 0
    %p361 = por %p359, %p360
    %s363 = sadd.s32 %s362, 1
    %p366 = scmp.eq.s32.totalorder %s34, 1
    %p367 = scmp.ne.s32.totalorder %s362, %s364
    %p368 = scmp.eq.s32.totalorder %s34, 0
    %p369 = por %p367, %p368
    %p370 = scmp.ne.s32.totalorder %s362, %s364
    %p371 = scmp.eq.s32.totalorder %s39, 1
    %p372 = por %p370, %p371
    %p373 = scmp.ne.s32.totalorder %s364, %s365
    %p374 = scmp.eq.s32.totalorder %s39, 0
    %p375 = por %p373, %p374
    %p376 = scmp.ne.s32.totalorder %s364, %s365
    %p377 = scmp.eq.s32.totalorder %s40, 1
    %p378 = por %p376, %p377
    %p380 = scmp.ne.s32.totalorder %s365, %s379
    %p381 = scmp.eq.s32.totalorder %s40, 0
    %p382 = por %p380, %p381
    %s384 = sadd.s32 %s383, 1
    %p387 = scmp.eq.s32.totalorder %s34, 1
    %p388 = scmp.ne.s32.totalorder %s383, %s385
    %p389 = scmp.eq.s32.totalorder %s34, 0
    %p390 = por %p388, %p389
    %p391 = scmp.ne.s32.totalorder %s383, %s385
    %p392 = scmp.eq.s32.totalorder %s39, 1
    %p393 = por %p391, %p392
    %p394 = scmp.ne.s32.totalorder %s385, %s386
    %p395 = scmp.eq.s32.totalorder %s39, 0
    %p396 = por %p394, %p395
    %p397 = scmp.ne.s32.totalorder %s385, %s386
    %p398 = scmp.eq.s32.totalorder %s40, 1
    %p399 = por %p397, %p398
    %p401 = scmp.ne.s32.totalorder %s386, %s400
    %p402 = scmp.eq.s32.totalorder %s40, 0
    %p403 = por %p401, %p402
    %s405 = sadd.s32 %s404, 1
    %p408 = scmp.eq.s32.totalorder %s34, 1
    %p409 = scmp.ne.s32.totalorder %s404, %s406
    %p410 = scmp.eq.s32.totalorder %s34, 0
    %p411 = por %p409, %p410
    %p412 = scmp.ne.s32.totalorder %s404, %s406
    %p413 = scmp.eq.s32.totalorder %s39, 1
    %p414 = por %p412, %p413
    %p415 = scmp.ne.s32.totalorder %s406, %s407
    %p416 = scmp.eq.s32.totalorder %s39, 0
    %p417 = por %p415, %p416
    %p418 = scmp.ne.s32.totalorder %s406, %s407
    %p419 = scmp.eq.s32.totalorder %s40, 1
    %p420 = por %p418, %p419
    %p422 = scmp.ne.s32.totalorder %s407, %s421
    %p423 = scmp.eq.s32.totalorder %s40, 0
    %p424 = por %p422, %p423
    %s426 = sadd.s32 %s425, 1
    %p429 = scmp.eq.s32.totalorder %s34, 1
    %p430 = scmp.ne.s32.totalorder %s425, %s427
    %p431 = scmp.eq.s32.totalorder %s34, 0
    %p432 = por %p430, %p431
    %p433 = scmp.ne.s32.totalorder %s425, %s427
    %p434 = scmp.eq.s32.totalorder %s39, 1
    %p435 = por %p433, %p434
    %p436 = scmp.ne.s32.totalorder %s427, %s428
    %p437 = scmp.eq.s32.totalorder %s39, 0
    %p438 = por %p436, %p437
    %p439 = scmp.ne.s32.totalorder %s427, %s428
    %p440 = scmp.eq.s32.totalorder %s40, 1
    %p441 = por %p439, %p440
    %p443 = scmp.ne.s32.totalorder %s428, %s442
    %p444 = scmp.eq.s32.totalorder %s40, 0
    %p445 = por %p443, %p444
    %s447 = sadd.s32 %s446, 1
    %p450 = scmp.eq.s32.totalorder %s34, 1
    %p451 = scmp.ne.s32.totalorder %s446, %s448
    %p452 = scmp.eq.s32.totalorder %s34, 0
    %p453 = por %p451, %p452
    %p454 = scmp.ne.s32.totalorder %s446, %s448
    %p455 = scmp.eq.s32.totalorder %s39, 1
    %p456 = por %p454, %p455
    %p457 = scmp.ne.s32.totalorder %s448, %s449
    %p458 = scmp.eq.s32.totalorder %s39, 0
    %p459 = por %p457, %p458
    %p460 = scmp.ne.s32.totalorder %s448, %s449
    %p461 = scmp.eq.s32.totalorder %s40, 1
    %p462 = por %p460, %p461
    %p464 = scmp.ne.s32.totalorder %s449, %s463
    %p465 = scmp.eq.s32.totalorder %s40, 0
    %p466 = por %p464, %p465
    %s468 = sadd.s32 %s467, 1
    %p471 = scmp.eq.s32.totalorder %s34, 1
    %p472 = scmp.ne.s32.totalorder %s467, %s469
    %p473 = scmp.eq.s32.totalorder %s34, 0
    %p474 = por %p472, %p473
    %p475 = scmp.ne.s32.totalorder %s467, %s469
    %p476 = scmp.eq.s32.totalorder %s39, 1
    %p477 = por %p475, %p476
    %p478 = scmp.ne.s32.totalorder %s469, %s470
    %p479 = scmp.eq.s32.totalorder %s39, 0
    %p480 = por %p478, %p479
    %p481 = scmp.ne.s32.totalorder %s469, %s470
    %p482 = scmp.eq.s32.totalorder %s40, 1
    %p483 = por %p481, %p482
    %p485 = scmp.ne.s32.totalorder %s470, %s484
    %p486 = scmp.eq.s32.totalorder %s40, 0
    %p487 = por %p485, %p486
    %s489 = sadd.s32 %s488, 1
    %p492 = scmp.eq.s32.totalorder %s34, 1
    %p493 = scmp.ne.s32.totalorder %s488, %s490
    %p494 = scmp.eq.s32.totalorder %s34, 0
    %p495 = por %p493, %p494
    %p496 = scmp.ne.s32.totalorder %s488, %s490
    %p497 = scmp.eq.s32.totalorder %s39, 1
    %p498 = por %p496, %p497
    %p499 = scmp.ne.s32.totalorder %s490, %s491
    %p500 = scmp.eq.s32.totalorder %s39, 0
    %p501 = por %p499, %p500
    %p502 = scmp.ne.s32.totalorder %s490, %s491
    %p503 = scmp.eq.s32.totalorder %s40, 1
    %p504 = por %p502, %p503
    %p506 = scmp.ne.s32.totalorder %s491, %s505
    %p507 = scmp.eq.s32.totalorder %s40, 0
    %p508 = por %p506, %p507
    %s510 = sadd.s32 %s509, 1
    %p513 = scmp.eq.s32.totalorder %s34, 1
    %p514 = scmp.ne.s32.totalorder %s509, %s511
    %p515 = scmp.eq.s32.totalorder %s34, 0
    %p516 = por %p514, %p515
    %p517 = scmp.ne.s32.totalorder %s509, %s511
    %p518 = scmp.eq.s32.totalorder %s39, 1
    %p519 = por %p517, %p518
    %p520 = scmp.ne.s32.totalorder %s511, %s512
    %p521 = scmp.eq.s32.totalorder %s39, 0
    %p522 = por %p520, %p521
    %p523 = scmp.ne.s32.totalorder %s511, %s512
    %p524 = scmp.eq.s32.totalorder %s40, 1
    %p525 = por %p523, %p524
    %p527 = scmp.ne.s32.totalorder %s512, %s526
    %p528 = scmp.eq.s32.totalorder %s40, 0
    %p529 = por %p527, %p528
    %s531 = sadd.s32 %s530, 1
    %p534 = scmp.eq.s32.totalorder %s34, 1
    %p535 = scmp.ne.s32.totalorder %s530, %s532
    %p536 = scmp.eq.s32.totalorder %s34, 0
    %p537 = por %p535, %p536
    %p538 = scmp.ne.s32.totalorder %s530, %s532
    %p539 = scmp.eq.s32.totalorder %s39, 1
    %p540 = por %p538, %p539
    %p541 = scmp.ne.s32.totalorder %s532, %s533
    %p542 = scmp.eq.s32.totalorder %s39, 0
    %p543 = por %p541, %p542
    %p544 = scmp.ne.s32.totalorder %s532, %s533
    %p545 = scmp.eq.s32.totalorder %s40, 1
    %p546 = por %p544, %p545
    %p548 = scmp.ne.s32.totalorder %s533, %s547
    %p549 = scmp.eq.s32.totalorder %s40, 0
    %p550 = por %p548, %p549
    %s552 = sadd.s32 %s551, 1
    %p555 = scmp.eq.s32.totalorder %s34, 1
    %p556 = scmp.ne.s32.totalorder %s551, %s553
    %p557 = scmp.eq.s32.totalorder %s34, 0
    %p558 = por %p556, %p557
    %p559 = scmp.ne.s32.totalorder %s551, %s553
    %p560 = scmp.eq.s32.totalorder %s39, 1
    %p561 = por %p559, %p560
    %p562 = scmp.ne.s32.totalorder %s553, %s554
    %p563 = scmp.eq.s32.totalorder %s39, 0
    %p564 = por %p562, %p563
    %p565 = scmp.ne.s32.totalorder %s553, %s554
    %p566 = scmp.eq.s32.totalorder %s40, 1
    %p567 = por %p565, %p566
    %p569 = scmp.ne.s32.totalorder %s554, %s568
    %p570 = scmp.eq.s32.totalorder %s40, 0
    %p571 = por %p569, %p570
    %s573 = sadd.s32 %s572, 1
    %p576 = scmp.eq.s32.totalorder %s34, 1
    %p577 = scmp.ne.s32.totalorder %s572, %s574
    %p578 = scmp.eq.s32.totalorder %s34, 0
    %p579 = por %p577, %p578
    %p580 = scmp.ne.s32.totalorder %s572, %s574
    %p581 = scmp.eq.s32.totalorder %s39, 1
    %p582 = por %p580, %p581
    %p583 = scmp.ne.s32.totalorder %s574, %s575
    %p584 = scmp.eq.s32.totalorder %s39, 0
    %p585 = por %p583, %p584
    %p586 = scmp.ne.s32.totalorder %s574, %s575
    %p587 = scmp.eq.s32.totalorder %s40, 1
    %p588 = por %p586, %p587
    %p590 = scmp.ne.s32.totalorder %s575, %s589
    %p591 = scmp.eq.s32.totalorder %s40, 0
    %p592 = por %p590, %p591
    %s593 = ssub.s32 %s34, %s41
    %p594 = scmp.eq.s32.totalorder %s593, 0
    %s596 = sadd.s32 %s595, 1
    %s597 = scalar_select %p594, %s595, %s596
    %p600 = pneg %p594
    %p601 = scmp.eq.s32.totalorder %s34, 1
    %p602 = por %p600, %p601
    %p603 = scmp.ne.s32.totalorder %s595, %s598
    %p604 = scmp.eq.s32.totalorder %s34, 0
    %p605 = por %p603, %p604
    %p606 = scmp.ne.s32.totalorder %s595, %s598
    %p607 = scmp.eq.s32.totalorder %s39, 1
    %p608 = por %p606, %p607
    %p609 = scmp.ne.s32.totalorder %s598, %s599
    %p610 = scmp.eq.s32.totalorder %s39, 0
    %p611 = por %p609, %p610
    %p612 = scmp.ne.s32.totalorder %s598, %s599
    %p613 = scmp.eq.s32.totalorder %s40, 1
    %p614 = por %p612, %p613
    %p616 = scmp.ne.s32.totalorder %s599, %s615
    %p617 = scmp.eq.s32.totalorder %s40, 0
    %p618 = por %p616, %p617
    %s619 = ssub.s32 %s34, %s41
    %p620 = scmp.eq.s32.totalorder %s619, 0
    %s622 = sadd.s32 %s621, 1
    %s623 = scalar_select %p620, %s621, %s622
    %p626 = pneg %p620
    %p627 = scmp.eq.s32.totalorder %s34, 1
    %p628 = por %p626, %p627
    %p629 = scmp.ne.s32.totalorder %s621, %s624
    %p630 = scmp.eq.s32.totalorder %s34, 0
    %p631 = por %p629, %p630
    %p632 = scmp.ne.s32.totalorder %s621, %s624
    %p633 = scmp.eq.s32.totalorder %s39, 1
    %p634 = por %p632, %p633
    %p635 = scmp.ne.s32.totalorder %s624, %s625
    %p636 = scmp.eq.s32.totalorder %s39, 0
    %p637 = por %p635, %p636
    %p638 = scmp.ne.s32.totalorder %s624, %s625
    %p639 = scmp.eq.s32.totalorder %s40, 1
    %p640 = por %p638, %p639
    %p642 = scmp.ne.s32.totalorder %s625, %s641
    %p643 = scmp.eq.s32.totalorder %s40, 0
    %p644 = por %p642, %p643
    %p645 = scmp.le.s32.totalorder 1, %s34
    %p646 = scmp.lt.s32.totalorder %s34, 3
    %p647 = pnand %p645, %p646
    %p648 = pneg %p647
    // Predicated region
    $region9: #{resdb_forward.2} parent=5 // pred_check
      _
    $region10: #{resdb_forward.2} parent=5 // pred_check_branch
      %650 = sbr.rel (%p647) target = $region12
    $region11: #{resdb_forward.2} parent=5 // pred_region
      %s651 = ssub.s32 %s34, 1
      // Predicated region
      $region13: #{resdb_forward.2} parent=11 // pred_check
        %p652 = pneg %p81
      $region14: #{resdb_forward.2} parent=11 // pred_check_branch
        %654 = sbr.rel (%p652) target = $region16
      $region15: #{resdb_forward.2} parent=11 // pred_region
        _
      $region16: #{resdb_forward.2} parent=11 // pred_fallthru
        _
      // Predicated region
      $region17: #{resdb_forward.2} parent=11 // pred_check
        %p655 = pneg %p102
      $region18: #{resdb_forward.2} parent=11 // pred_check_branch
        %657 = sbr.rel (%p655) target = $region20
      $region19: #{resdb_forward.2} parent=11 // pred_region
        _
      $region20: #{resdb_forward.2} parent=11 // pred_fallthru
        _
      // Predicated region
      $region21: #{resdb_forward.2} parent=11 // pred_check
        %p658 = pneg %p123
      $region22: #{resdb_forward.2} parent=11 // pred_check_branch
        %660 = sbr.rel (%p658) target = $region24
      $region23: #{resdb_forward.2} parent=11 // pred_region
        _
      $region24: #{resdb_forward.2} parent=11 // pred_fallthru
        _
      // Predicated region
      $region25: #{resdb_forward.2} parent=11 // pred_check
        %p661 = pneg %p144
      $region26: #{resdb_forward.2} parent=11 // pred_check_branch
        %663 = sbr.rel (%p661) target = $region28
      $region27: #{resdb_forward.2} parent=11 // pred_region
        _
      $region28: #{resdb_forward.2} parent=11 // pred_fallthru
        _
      // Predicated region
      $region29: #{resdb_forward.2} parent=11 // pred_check
        %p664 = pneg %p165
      $region30: #{resdb_forward.2} parent=11 // pred_check_branch
        %666 = sbr.rel (%p664) target = $region32
      $region31: #{resdb_forward.2} parent=11 // pred_region
        _
      $region32: #{resdb_forward.2} parent=11 // pred_fallthru
        _
      // Predicated region
      $region33: #{resdb_forward.2} parent=11 // pred_check
        %p667 = pneg %p186
      $region34: #{resdb_forward.2} parent=11 // pred_check_branch
        %669 = sbr.rel (%p667) target = $region36
      $region35: #{resdb_forward.2} parent=11 // pred_region
        _
      $region36: #{resdb_forward.2} parent=11 // pred_fallthru
        _
      // Predicated region
      $region37: #{resdb_forward.2} parent=11 // pred_check
        %p670 = pneg %p207
      $region38: #{resdb_forward.2} parent=11 // pred_check_branch
        %672 = sbr.rel (%p670) target = $region40
      $region39: #{resdb_forward.2} parent=11 // pred_region
        _
      $region40: #{resdb_forward.2} parent=11 // pred_fallthru
        _
      // Predicated region
      $region41: #{resdb_forward.2} parent=11 // pred_check
        %p673 = pneg %p228
      $region42: #{resdb_forward.2} parent=11 // pred_check_branch
        %675 = sbr.rel (%p673) target = $region44
      $region43: #{resdb_forward.2} parent=11 // pred_region
        _
      $region44: #{resdb_forward.2} parent=11 // pred_fallthru
        _
      // Predicated region
      $region45: #{resdb_forward.2} parent=11 // pred_check
        %p676 = pneg %p249
      $region46: #{resdb_forward.2} parent=11 // pred_check_branch
        %678 = sbr.rel (%p676) target = $region48
      $region47: #{resdb_forward.2} parent=11 // pred_region
        _
      $region48: #{resdb_forward.2} parent=11 // pred_fallthru
        _
      // Predicated region
      $region49: #{resdb_forward.2} parent=11 // pred_check
        %p679 = pneg %p270
      $region50: #{resdb_forward.2} parent=11 // pred_check_branch
        %681 = sbr.rel (%p679) target = $region52
      $region51: #{resdb_forward.2} parent=11 // pred_region
        _
      $region52: #{resdb_forward.2} parent=11 // pred_fallthru
        _
      // Predicated region
      $region53: #{resdb_forward.2} parent=11 // pred_check
        %p682 = pneg %p291
      $region54: #{resdb_forward.2} parent=11 // pred_check_branch
        %684 = sbr.rel (%p682) target = $region56
      $region55: #{resdb_forward.2} parent=11 // pred_region
        _
      $region56: #{resdb_forward.2} parent=11 // pred_fallthru
        _
      // Predicated region
      $region57: #{resdb_forward.2} parent=11 // pred_check
        %p685 = pneg %p312
      $region58: #{resdb_forward.2} parent=11 // pred_check_branch
        %687 = sbr.rel (%p685) target = $region60
      $region59: #{resdb_forward.2} parent=11 // pred_region
        _
      $region60: #{resdb_forward.2} parent=11 // pred_fallthru
        _
      // Predicated region
      $region61: #{resdb_forward.2} parent=11 // pred_check
        %p688 = pneg %p333
      $region62: #{resdb_forward.2} parent=11 // pred_check_branch
        %690 = sbr.rel (%p688) target = $region64
      $region63: #{resdb_forward.2} parent=11 // pred_region
        _
      $region64: #{resdb_forward.2} parent=11 // pred_fallthru
        _
      // Predicated region
      $region65: #{resdb_forward.2} parent=11 // pred_check
        %p691 = pneg %p354
      $region66: #{resdb_forward.2} parent=11 // pred_check_branch
        %693 = sbr.rel (%p691) target = $region68
      $region67: #{resdb_forward.2} parent=11 // pred_region
        _
      $region68: #{resdb_forward.2} parent=11 // pred_fallthru
        _
      // Predicated region
      $region69: #{resdb_forward.2} parent=11 // pred_check
        %p694 = pneg %p375
      $region70: #{resdb_forward.2} parent=11 // pred_check_branch
        %696 = sbr.rel (%p694) target = $region72
      $region71: #{resdb_forward.2} parent=11 // pred_region
        _
      $region72: #{resdb_forward.2} parent=11 // pred_fallthru
        _
      // Predicated region
      $region73: #{resdb_forward.2} parent=11 // pred_check
        %p697 = pneg %p396
      $region74: #{resdb_forward.2} parent=11 // pred_check_branch
        %699 = sbr.rel (%p697) target = $region76
      $region75: #{resdb_forward.2} parent=11 // pred_region
        _
      $region76: #{resdb_forward.2} parent=11 // pred_fallthru
        _
      // Predicated region
      $region77: #{resdb_forward.2} parent=11 // pred_check
        %p700 = pneg %p417
      $region78: #{resdb_forward.2} parent=11 // pred_check_branch
        %702 = sbr.rel (%p700) target = $region80
      $region79: #{resdb_forward.2} parent=11 // pred_region
        _
      $region80: #{resdb_forward.2} parent=11 // pred_fallthru
        _
      // Predicated region
      $region81: #{resdb_forward.2} parent=11 // pred_check
        %p703 = pneg %p438
      $region82: #{resdb_forward.2} parent=11 // pred_check_branch
        %705 = sbr.rel (%p703) target = $region84
      $region83: #{resdb_forward.2} parent=11 // pred_region
        _
      $region84: #{resdb_forward.2} parent=11 // pred_fallthru
        _
      // Predicated region
      $region85: #{resdb_forward.2} parent=11 // pred_check
        %p706 = pneg %p459
      $region86: #{resdb_forward.2} parent=11 // pred_check_branch
        %708 = sbr.rel (%p706) target = $region88
      $region87: #{resdb_forward.2} parent=11 // pred_region
        _
      $region88: #{resdb_forward.2} parent=11 // pred_fallthru
        _
      // Predicated region
      $region89: #{resdb_forward.2} parent=11 // pred_check
        %p709 = pneg %p480
      $region90: #{resdb_forward.2} parent=11 // pred_check_branch
        %711 = sbr.rel (%p709) target = $region92
      $region91: #{resdb_forward.2} parent=11 // pred_region
        _
      $region92: #{resdb_forward.2} parent=11 // pred_fallthru
        _
      // Predicated region
      $region93: #{resdb_forward.2} parent=11 // pred_check
        %p712 = pneg %p501
      $region94: #{resdb_forward.2} parent=11 // pred_check_branch
        %714 = sbr.rel (%p712) target = $region96
      $region95: #{resdb_forward.2} parent=11 // pred_region
        _
      $region96: #{resdb_forward.2} parent=11 // pred_fallthru
        _
      // Predicated region
      $region97: #{resdb_forward.2} parent=11 // pred_check
        %p715 = pneg %p522
      $region98: #{resdb_forward.2} parent=11 // pred_check_branch
        %717 = sbr.rel (%p715) target = $region100
      $region99: #{resdb_forward.2} parent=11 // pred_region
        _
      $region100: #{resdb_forward.2} parent=11 // pred_fallthru
        _
      // Predicated region
      $region101: #{resdb_forward.2} parent=11 // pred_check
        %p718 = pneg %p543
      $region102: #{resdb_forward.2} parent=11 // pred_check_branch
        %720 = sbr.rel (%p718) target = $region104
      $region103: #{resdb_forward.2} parent=11 // pred_region
        _
      $region104: #{resdb_forward.2} parent=11 // pred_fallthru
        _
      // Predicated region
      $region105: #{resdb_forward.2} parent=11 // pred_check
        %p721 = pneg %p564
      $region106: #{resdb_forward.2} parent=11 // pred_check_branch
        %723 = sbr.rel (%p721) target = $region108
      $region107: #{resdb_forward.2} parent=11 // pred_region
        _
      $region108: #{resdb_forward.2} parent=11 // pred_fallthru
        _
      // Predicated region
      $region109: #{resdb_forward.2} parent=11 // pred_check
        %p724 = pneg %p585
      $region110: #{resdb_forward.2} parent=11 // pred_check_branch
        %726 = sbr.rel (%p724) target = $region112
      $region111: #{resdb_forward.2} parent=11 // pred_region
        _
      $region112: #{resdb_forward.2} parent=11 // pred_fallthru
        _
    $region12: #{resdb_forward.2} parent=5 // pred_fallthru
      _
    %p727 = scmp.lt.s32.totalorder %s34, 2
    // Predicated region
    $region113: #{resdb_forward.2} parent=5 // pred_check
      %p728 = pneg %p727
    $region114: #{resdb_forward.2} parent=5 // pred_check_branch
      %730 = sbr.rel (%p728) target = $region116
    $region115: #{resdb_forward.2} parent=5 // pred_region
      // Predicated region
      $region117: #{resdb_forward.2} parent=115 // pred_check
        %p731 = pneg %p54
      $region118: #{resdb_forward.2} parent=115 // pred_check_branch
        %733 = sbr.rel (%p731) target = $region120
      $region119: #{resdb_forward.2} parent=115 // pred_region
        %p734 = scmp.lt.s32.totalorder %s34, 1
        %s735 = scalar_select %p734, %s34, 1
        %s736 = smul.addr %s735, 16
        %s737 = smul.addr %s736, 8
        %s738 = scalar_lea.vmem %s0, %s737
      $region120: #{resdb_forward.2} parent=115 // pred_fallthru
        _
    $region116: #{resdb_forward.2} parent=5 // pred_fallthru
      _
    %p739 = scmp.le.s32.totalorder 1, %s34
    %p740 = scmp.lt.s32.totalorder %s34, 3
    %p741 = pnand %p739, %p740
    %p742 = pneg %p741
    // Predicated region
    $region121: #{resdb_forward.2} parent=5 // pred_check
      _
    $region122: #{resdb_forward.2} parent=5 // pred_check_branch
      %744 = sbr.rel (%p741) target = $region124
    $region123: #{resdb_forward.2} parent=5 // pred_region
      %s745 = ssub.s32 %s34, 1
      %p746 = scmp.lt.s32.totalorder %s39, 1
      %s747 = scalar_select %p746, %s39, 1
      %s748 = smul.addr %s747, 16
      %s749 = smul.addr %s748, 8
      %s750 = scalar_lea.vmem %s0, %s749
      %p751 = pneg %p60
      %p752 = pneg %p57
      %p753 = pneg %p81
      %p754 = pneg %p78
      %p755 = pneg %p102
      %p756 = pneg %p99
      %p757 = pneg %p123
      %p758 = pneg %p120
      %p759 = pneg %p144
      %p760 = pneg %p141
      %p761 = pneg %p165
      %p762 = pneg %p162
      %p763 = pneg %p186
      %p764 = pneg %p183
      %p765 = pneg %p207
      %p766 = pneg %p204
      %p767 = pneg %p228
      %p768 = pneg %p225
      %p769 = pneg %p249
      %p770 = pneg %p246
      %p771 = pneg %p270
      %p772 = pneg %p267
      %p773 = pneg %p291
      %p774 = pneg %p288
      %p775 = pneg %p312
      %p776 = pneg %p309
      %p777 = pneg %p333
      %p778 = pneg %p330
      %p779 = pneg %p354
      %p780 = pneg %p351
      %p781 = pneg %p375
      %p782 = pneg %p372
      %p783 = pneg %p396
      %p784 = pneg %p393
      %p785 = pneg %p417
      %p786 = pneg %p414
      %p787 = pneg %p438
      %p788 = pneg %p435
      %p789 = pneg %p459
      %p790 = pneg %p456
      %p791 = pneg %p480
      %p792 = pneg %p477
      %p793 = pneg %p501
      %p794 = pneg %p498
      %p795 = pneg %p522
      %p796 = pneg %p519
      %p797 = pneg %p543
      %p798 = pneg %p540
      %p799 = pneg %p564
      %p800 = pneg %p561
      %p801 = pneg %p585
      %p802 = pneg %p582
      %p803 = pneg %p611
      %p804 = pneg %p608
      %p805 = scmp.lt.s32.totalorder %s39, 1
      %s806 = scalar_select %p805, %s39, 1
      %s807 = smul.addr %s806, 16
      %s808 = smul.addr %s807, 8
      %s809 = scalar_lea.vmem %s26, %s808
      %p810 = pneg %p637
      %p811 = pneg %p634
      %p812 = scmp.lt.s32.totalorder %s39, 1
      %s813 = scalar_select %p812, %s39, 1
      %s814 = smul.addr %s813, 8
      %s815 = smul.addr %s814, 8
      %s816 = scalar_lea.vmem %s27, %s815
      %p817 = scmp.lt.s32.totalorder %s39, 1
      %s818 = scalar_select %p817, %s39, 1
      %s819 = smul.addr %s818, 16
      %s820 = smul.addr %s819, 8
      %s821 = scalar_lea.vmem %s0, %s820
      %p822 = scmp.lt.s32.totalorder %s39, 1
      %s823 = scalar_select %p822, %s39, 1
      %s824 = smul.addr %s823, 16
      %s825 = smul.addr %s824, 8
      %s826 = scalar_lea.vmem %s26, %s825
      %p827 = scmp.lt.s32.totalorder %s39, 1
      %s828 = scalar_select %p827, %s39, 1
      %s829 = smul.addr %s828, 8
      %s830 = smul.addr %s829, 8
      %s831 = scalar_lea.vmem %s27, %s830
      %v832 = vlaneseq
      %v833 = vand.u32 %v832, 127
      %v834 = vadd.s32 %v833, 128
      %v835 = vadd.s32 %v833, 256
      %v836 = vadd.s32 %v833, 384
      %v837 = vadd.s32 %v833, 512
      %v838 = vadd.s32 %v833, 640
      %v839 = vadd.s32 %v833, 768
      %v840 = vadd.s32 %v833, 896
      %vm841 = vcmp.lt.s32.totalorder %v833, 0
      %v842 = vsub.s32 0, %v833
      %v843 = vsel %vm841, %v842, %v833
      %v844 = vshrl.u32 %v843, 5
      %v845 = vand.u32 %v843, 31
      %v846 = vsub.s32 0, %v845
      %v847 = vsel %vm841, %v846, %v845
      %vm848 = vcmp.lt.s32.totalorder %v834, 0
      %v849 = vsub.s32 0, %v834
      %v850 = vsel %vm848, %v849, %v834
      %v851 = vshrl.u32 %v850, 5
      %v852 = vand.u32 %v850, 31
      %v853 = vsub.s32 0, %v852
      %v854 = vsel %vm848, %v853, %v852
      %vm855 = vcmp.lt.s32.totalorder %v835, 0
      %v856 = vsub.s32 0, %v835
      %v857 = vsel %vm855, %v856, %v835
      %v858 = vshrl.u32 %v857, 5
      %v859 = vand.u32 %v857, 31
      %v860 = vsub.s32 0, %v859
      %v861 = vsel %vm855, %v860, %v859
      %vm862 = vcmp.lt.s32.totalorder %v836, 0
      %v863 = vsub.s32 0, %v836
      %v864 = vsel %vm862, %v863, %v836
      %v865 = vshrl.u32 %v864, 5
      %v866 = vand.u32 %v864, 31
      %v867 = vsub.s32 0, %v866
      %v868 = vsel %vm862, %v867, %v866
      %vm869 = vcmp.lt.s32.totalorder %v837, 0
      %v870 = vsub.s32 0, %v837
      %v871 = vsel %vm869, %v870, %v837
      %v872 = vshrl.u32 %v871, 5
      %v873 = vand.u32 %v871, 31
      %v874 = vsub.s32 0, %v873
      %v875 = vsel %vm869, %v874, %v873
      %vm876 = vcmp.lt.s32.totalorder %v838, 0
      %v877 = vsub.s32 0, %v838
      %v878 = vsel %vm876, %v877, %v838
      %v879 = vshrl.u32 %v878, 5
      %v880 = vand.u32 %v878, 31
      %v881 = vsub.s32 0, %v880
      %v882 = vsel %vm876, %v881, %v880
      %vm883 = vcmp.lt.s32.totalorder %v839, 0
      %v884 = vsub.s32 0, %v839
      %v885 = vsel %vm883, %v884, %v839
      %v886 = vshrl.u32 %v885, 5
      %v887 = vand.u32 %v885, 31
      %v888 = vsub.s32 0, %v887
      %v889 = vsel %vm883, %v888, %v887
      %vm890 = vcmp.lt.s32.totalorder %v840, 0
      %v891 = vsub.s32 0, %v840
      %v892 = vsel %vm890, %v891, %v840
      %v893 = vshrl.u32 %v892, 5
      %v894 = vand.u32 %v892, 31
      %v895 = vsub.s32 0, %v894
      %v896 = vsel %vm890, %v895, %v894
      %vm897 = vcmp.ne.s32.totalorder %v847, 0
      %vm898 = vcmp.ne.s32.totalorder %v854, 0
      %vm899 = vcmp.ne.s32.totalorder %v861, 0
      %vm900 = vcmp.ne.s32.totalorder %v868, 0
      %vm901 = vcmp.ne.s32.totalorder %v875, 0
      %vm902 = vcmp.ne.s32.totalorder %v882, 0
      %vm903 = vcmp.ne.s32.totalorder %v889, 0
      %vm904 = vcmp.ne.s32.totalorder %v896, 0
      %vm905 = vcmp.lt.s32.totalorder %v847, 0
      %vm906 = vcmp.lt.s32.totalorder %v854, 0
      %vm907 = vcmp.lt.s32.totalorder %v861, 0
      %vm908 = vcmp.lt.s32.totalorder %v868, 0
      %vm909 = vcmp.lt.s32.totalorder %v875, 0
      %vm910 = vcmp.lt.s32.totalorder %v882, 0
      %vm911 = vcmp.lt.s32.totalorder %v889, 0
      %vm912 = vcmp.lt.s32.totalorder %v896, 0
      %vm913 = vmand %vm905, %vm897
      %vm914 = vmand %vm906, %vm898
      %vm915 = vmand %vm907, %vm899
      %vm916 = vmand %vm908, %vm900
      %vm917 = vmand %vm909, %vm901
      %vm918 = vmand %vm910, %vm902
      %vm919 = vmand %vm911, %vm903
      %vm920 = vmand %vm912, %vm904
      %v921 = vadd.s32 %v847, 32
      %v922 = vadd.s32 %v854, 32
      %v923 = vadd.s32 %v861, 32
      %v924 = vadd.s32 %v868, 32
      %v925 = vadd.s32 %v875, 32
      %v926 = vadd.s32 %v882, 32
      %v927 = vadd.s32 %v889, 32
      %v928 = vadd.s32 %v896, 32
      %v929 = vsel %vm913, %v921, %v847
      %v930 = vsel %vm914, %v922, %v854
      %v931 = vsel %vm915, %v923, %v861
      %v932 = vsel %vm916, %v924, %v868
      %v933 = vsel %vm917, %v925, %v875
      %v934 = vsel %vm918, %v926, %v882
      %v935 = vsel %vm919, %v927, %v889
      %v936 = vsel %vm920, %v928, %v896
      %vm937 = vcmp.ne.s32.totalorder %v929, 0
      %vm938 = vcmp.ne.s32.totalorder %v930, 0
      %vm939 = vcmp.ne.s32.totalorder %v931, 0
      %vm940 = vcmp.ne.s32.totalorder %v932, 0
      %vm941 = vcmp.ne.s32.totalorder %v933, 0
      %vm942 = vcmp.ne.s32.totalorder %v934, 0
      %vm943 = vcmp.ne.s32.totalorder %v935, 0
      %vm944 = vcmp.ne.s32.totalorder %v936, 0
      %vm945 = vcmp.ne.s32.totalorder %v929, 31
      %vm946 = vcmp.ne.s32.totalorder %v930, 31
      %vm947 = vcmp.ne.s32.totalorder %v931, 31
      %vm948 = vcmp.ne.s32.totalorder %v932, 31
      %vm949 = vcmp.ne.s32.totalorder %v933, 31
      %vm950 = vcmp.ne.s32.totalorder %v934, 31
      %vm951 = vcmp.ne.s32.totalorder %v935, 31
      %vm952 = vcmp.ne.s32.totalorder %v936, 31
      %vm953 = vcmp.ge.s32.totalorder %v833, 32
      %vm954 = vcmp.ge.s32.totalorder %v834, 32
      %vm955 = vcmp.ge.s32.totalorder %v835, 32
      %vm956 = vcmp.ge.s32.totalorder %v836, 32
      %vm957 = vcmp.ge.s32.totalorder %v837, 32
      %vm958 = vcmp.ge.s32.totalorder %v838, 32
      %vm959 = vcmp.ge.s32.totalorder %v839, 32
      %vm960 = vcmp.ge.s32.totalorder %v840, 32
      %vm961 = vcmp.lt.s32.totalorder %v833, 992
      %vm962 = vcmp.lt.s32.totalorder %v834, 992
      %vm963 = vcmp.lt.s32.totalorder %v835, 992
      %vm964 = vcmp.lt.s32.totalorder %v836, 992
      %vm965 = vcmp.lt.s32.totalorder %v837, 992
      %vm966 = vcmp.lt.s32.totalorder %v838, 992
      %vm967 = vcmp.lt.s32.totalorder %v839, 992
      %vm968 = vcmp.lt.s32.totalorder %v840, 992
      %v969 = vld [vmem:[%s821] sm:$0xff]
      %v970 = vld [vmem:[%s821 + $0x8] sm:$0xff]
      %v971 = vld [vmem:[%s821 + $0x10] sm:$0xff]
      %v972 = vld [vmem:[%s821 + $0x18] sm:$0xff]
      %v973 = vld [vmem:[%s821 + $0x20] sm:$0xff]
      %v974 = vld [vmem:[%s821 + $0x28] sm:$0xff]
      %v975 = vld [vmem:[%s821 + $0x30] sm:$0xff]
      %v976 = vld [vmem:[%s821 + $0x38] sm:$0xff]
      %v977 = vld [vmem:[%s821 + $0x40] sm:$0xff]
      %v978 = vld [vmem:[%s821 + $0x48] sm:$0xff]
      %v979 = vld [vmem:[%s821 + $0x50] sm:$0xff]
      %v980 = vld [vmem:[%s821 + $0x58] sm:$0xff]
      %v981 = vld [vmem:[%s821 + $0x60] sm:$0xff]
      %v982 = vld [vmem:[%s821 + $0x68] sm:$0xff]
      %v983 = vld [vmem:[%s821 + $0x70] sm:$0xff]
      %v984 = vld [vmem:[%s821 + $0x78] sm:$0xff]
      %985 = vst [vmem:[#allocation2] sm:$0xff] %v969
      %986 = vst [vmem:[#allocation2 + $0x8] sm:$0xff] %v970
      %987 = vst [vmem:[#allocation2 + $0x10] sm:$0xff] %v971
      %988 = vst [vmem:[#allocation2 + $0x18] sm:$0xff] %v972
      %989 = vst [vmem:[#allocation2 + $0x20] sm:$0xff] %v973
      %990 = vst [vmem:[#allocation2 + $0x28] sm:$0xff] %v974
      %991 = vst [vmem:[#allocation2 + $0x30] sm:$0xff] %v975
      %992 = vst [vmem:[#allocation2 + $0x38] sm:$0xff] %v976
      %993 = vst [vmem:[#allocation2 + $0x40] sm:$0xff] %v977
      %994 = vst [vmem:[#allocation2 + $0x48] sm:$0xff] %v978
      %995 = vst [vmem:[#allocation2 + $0x50] sm:$0xff] %v979
      %996 = vst [vmem:[#allocation2 + $0x58] sm:$0xff] %v980
      %997 = vst [vmem:[#allocation2 + $0x60] sm:$0xff] %v981
      %998 = vst [vmem:[#allocation2 + $0x68] sm:$0xff] %v982
      %999 = vst [vmem:[#allocation2 + $0x70] sm:$0xff] %v983
      %1000 = vst [vmem:[#allocation2 + $0x78] sm:$0xff] %v984
      %v1001 = vld [vmem:[#allocation2] sm:$0xff]
      %v1002 = vld [vmem:[#allocation2 + $0x8] sm:$0xff]
      %v1003 = vld [vmem:[#allocation2 + $0x10] sm:$0xff]
      %v1004 = vld [vmem:[#allocation2 + $0x18] sm:$0xff]
      %v1005 = vld [vmem:[#allocation2 + $0x20] sm:$0xff]
      %v1006 = vld [vmem:[#allocation2 + $0x28] sm:$0xff]
      %v1007 = vld [vmem:[#allocation2 + $0x30] sm:$0xff]
      %v1008 = vld [vmem:[#allocation2 + $0x38] sm:$0xff]
      %v1009 = vld [vmem:[#allocation2 + $0x40] sm:$0xff]
      %v1010 = vld [vmem:[#allocation2 + $0x48] sm:$0xff]
      %v1011 = vld [vmem:[#allocation2 + $0x50] sm:$0xff]
      %v1012 = vld [vmem:[#allocation2 + $0x58] sm:$0xff]
      %v1013 = vld [vmem:[#allocation2 + $0x60] sm:$0xff]
      %v1014 = vld [vmem:[#allocation2 + $0x68] sm:$0xff]
      %v1015 = vld [vmem:[#allocation2 + $0x70] sm:$0xff]
      %v1016 = vld [vmem:[#allocation2 + $0x78] sm:$0xff]
      %v1017 = vld [vmem:[%s1] sm:$0xff]
      %v1018 = vld [vmem:[%s1 + $0x8] sm:$0xff]
      %vm1019 = vcmp.ge.f32.partialorder %v1001, 0.0
      %vm1020 = vcmp.ge.f32.partialorder %v1002, 0.0
      %vm1021 = vcmp.ge.f32.partialorder %v1003, 0.0
      %vm1022 = vcmp.ge.f32.partialorder %v1004, 0.0
      %vm1023 = vcmp.ge.f32.partialorder %v1005, 0.0
      %vm1024 = vcmp.ge.f32.partialorder %v1006, 0.0
      %vm1025 = vcmp.ge.f32.partialorder %v1007, 0.0
      %vm1026 = vcmp.ge.f32.partialorder %v1008, 0.0
      %vm1027 = vcmp.ge.f32.partialorder %v1009, 0.0
      %vm1028 = vcmp.ge.f32.partialorder %v1010, 0.0
      %vm1029 = vcmp.ge.f32.partialorder %v1011, 0.0
      %vm1030 = vcmp.ge.f32.partialorder %v1012, 0.0
      %vm1031 = vcmp.ge.f32.partialorder %v1013, 0.0
      %vm1032 = vcmp.ge.f32.partialorder %v1014, 0.0
      %vm1033 = vcmp.ge.f32.partialorder %v1015, 0.0
      %vm1034 = vcmp.ge.f32.partialorder %v1016, 0.0
      %1036 = vset.pattern.permute.xlu0 0
      %1037 = vperm.xlu0 %1036, %v1017
      %v1038 = vpop.permute.xlu0 %1037
      %1041 = vset.pattern.permute.xlu0 0
      %1042 = vperm.xlu0 %1041, %v1018
      %v1043 = vpop.permute.xlu0 %1042
      %v1045 = vmul.f32 %v1001, %v1038
      %v1046 = vmul.f32 %v1002, %v1038
      %v1047 = vmul.f32 %v1003, %v1038
      %v1048 = vmul.f32 %v1004, %v1038
      %v1049 = vmul.f32 %v1005, %v1038
      %v1050 = vmul.f32 %v1006, %v1038
      %v1051 = vmul.f32 %v1007, %v1038
      %v1052 = vmul.f32 %v1008, %v1038
      %v1053 = vmul.f32 %v1009, %v1043
      %v1054 = vmul.f32 %v1010, %v1043
      %v1055 = vmul.f32 %v1011, %v1043
      %v1056 = vmul.f32 %v1012, %v1043
      %v1057 = vmul.f32 %v1013, %v1043
      %v1058 = vmul.f32 %v1014, %v1043
      %v1059 = vmul.f32 %v1015, %v1043
      %v1060 = vmul.f32 %v1016, %v1043
      %v1061 = vsel %vm1019, %v1001, %v1045
      %v1062 = vsel %vm1020, %v1002, %v1046
      %v1063 = vsel %vm1021, %v1003, %v1047
      %v1064 = vsel %vm1022, %v1004, %v1048
      %v1065 = vsel %vm1023, %v1005, %v1049
      %v1066 = vsel %vm1024, %v1006, %v1050
      %v1067 = vsel %vm1025, %v1007, %v1051
      %v1068 = vsel %vm1026, %v1008, %v1052
      %v1069 = vsel %vm1027, %v1009, %v1053
      %v1070 = vsel %vm1028, %v1010, %v1054
      %v1071 = vsel %vm1029, %v1011, %v1055
      %v1072 = vsel %vm1030, %v1012, %v1056
      %v1073 = vsel %vm1031, %v1013, %v1057
      %v1074 = vsel %vm1032, %v1014, %v1058
      %v1075 = vsel %vm1033, %v1015, %v1059
      %v1076 = vsel %vm1034, %v1016, %v1060
      %1077 = vst [vmem:[#allocation3] sm:$0xff] %v1061
      %1078 = vst [vmem:[#allocation3 + $0x8] sm:$0xff] %v1062
      %1079 = vst [vmem:[#allocation3 + $0x10] sm:$0xff] %v1063
      %1080 = vst [vmem:[#allocation3 + $0x18] sm:$0xff] %v1064
      %1081 = vst [vmem:[#allocation3 + $0x20] sm:$0xff] %v1065
      %1082 = vst [vmem:[#allocation3 + $0x28] sm:$0xff] %v1066
      %1083 = vst [vmem:[#allocation3 + $0x30] sm:$0xff] %v1067
      %1084 = vst [vmem:[#allocation3 + $0x38] sm:$0xff] %v1068
      %1085 = vst [vmem:[#allocation3 + $0x40] sm:$0xff] %v1069
      %1086 = vst [vmem:[#allocation3 + $0x48] sm:$0xff] %v1070
      %1087 = vst [vmem:[#allocation3 + $0x50] sm:$0xff] %v1071
      %1088 = vst [vmem:[#allocation3 + $0x58] sm:$0xff] %v1072
      %1089 = vst [vmem:[#allocation3 + $0x60] sm:$0xff] %v1073
      %1090 = vst [vmem:[#allocation3 + $0x68] sm:$0xff] %v1074
      %1091 = vst [vmem:[#allocation3 + $0x70] sm:$0xff] %v1075
      %1092 = vst [vmem:[#allocation3 + $0x78] sm:$0xff] %v1076
      %v1093 = vld [vmem:[%s2] sm:$0xff]
      %v1094 = vld [vmem:[%s2 + $0x8] sm:$0xff]
      %v1095 = vld [vmem:[%s2 + $0x10] sm:$0xff]
      %v1096 = vld [vmem:[%s2 + $0x18] sm:$0xff]
      %v1097 = vld [vmem:[%s2 + $0x20] sm:$0xff]
      %v1098 = vld [vmem:[#allocation3] sm:$0xff]
      %v1099 = vld [vmem:[#allocation3 + $0x8] sm:$0xff]
      %v1100 = vld [vmem:[#allocation3 + $0x10] sm:$0xff]
      %v1101 = vld [vmem:[#allocation3 + $0x18] sm:$0xff]
      %v1102 = vld [vmem:[#allocation3 + $0x20] sm:$0xff]
      %v1103 = vld [vmem:[#allocation3 + $0x28] sm:$0xff]
      %v1104 = vld [vmem:[#allocation3 + $0x30] sm:$0xff]
      %v1105 = vld [vmem:[#allocation3 + $0x38] sm:$0xff]
      %v1106 = vld [vmem:[#allocation3 + $0x40] sm:$0xff]
      %v1107 = vld [vmem:[#allocation3 + $0x48] sm:$0xff]
      %v1108 = vld [vmem:[#allocation3 + $0x50] sm:$0xff]
      %v1109 = vld [vmem:[#allocation3 + $0x58] sm:$0xff]
      %v1110 = vld [vmem:[#allocation3 + $0x60] sm:$0xff]
      %v1111 = vld [vmem:[#allocation3 + $0x68] sm:$0xff]
      %v1112 = vld [vmem:[#allocation3 + $0x70] sm:$0xff]
      %v1113 = vld [vmem:[#allocation3 + $0x78] sm:$0xff]
      %v1114 = vld [vmem:[%s3] sm:$0xff]
      %v1115 = vld [vmem:[%s3 + $0x8] sm:$0xff]
      %v1116 = vld [vmem:[%s3 + $0x10] sm:$0xff]
      %v1117 = vld [vmem:[%s3 + $0x18] sm:$0xff]
      %v1118 = vld [vmem:[%s3 + $0x20] sm:$0xff]
      %1120 = vset.pattern.permute.xlu0 0
      %1121 = vperm.xlu0 %1120, %v1114
      %v1122 = vpop.permute.xlu0 %1121
      %1125 = vset.pattern.permute.xlu0 0
      %1126 = vperm.xlu0 %1125, %v1115
      %v1127 = vpop.permute.xlu0 %1126
      %1130 = vset.pattern.permute.xlu0 0
      %1131 = vperm.xlu0 %1130, %v1116
      %v1132 = vpop.permute.xlu0 %1131
      %1135 = vset.pattern.permute.xlu0 0
      %1136 = vperm.xlu0 %1135, %v1117
      %v1137 = vpop.permute.xlu0 %1136
      %1140 = vset.pattern.permute.xlu0 0
      %1141 = vperm.xlu0 %1140, %v1118
      %v1142 = vpop.permute.xlu0 %1141
      %vm1144 = vcmask 130048
      %v1146 = vsel %vm1144, %v1093, 0
      %v1149 = vsel %vm1144, %v1094, 0
      %v1152 = vsel %vm1144, %v1095, 0
      %v1155 = vsel %vm1144, %v1096, 0
      %v1158 = vsel %vm1144, %v1097, 0
      %1160 = vmatprep.subr.mxu0 %v1099
      %1161 = vmatpush1.msra.mxu0 %v1098
      %1162 = vmatprep.subr.mxu0 %v1107
      %1163 = vmatpush1.msra.mxu0 %v1106
      %1164 = vmatprep.subr.mxu0 0.0
      %1165 = vmatpush1.msra.mxu0 0.0
      %1166 = vmatprep.subr.mxu0 0.0
      %1167 = vmatpush1.msra.mxu0 0.0
      %1168 = vmatprep.subr.mxu0 0.0
      %1169 = vmatpush1.msra.mxu0 0.0
      %1170 = vmatprep.subr.mxu0 0.0
      %1171 = vmatpush1.msra.mxu0 0.0
      %1172 = vmatprep.subr.mxu0 0.0
      %1173 = vmatpush1.msra.mxu0 0.0
      %1174 = vmatprep.subr.mxu0 0.0
      %1175 = vmatpush1.msra.mxu0 0.0
      %1176 = vmatprep.subr.mxu0 0.0
      %1177 = vmatpush1.msra.mxu0 0.0
      %1178 = vmatprep.subr.mxu0 0.0
      %1179 = vmatpush1.msra.mxu0 0.0
      %1180 = vmatprep.subr.mxu0 0.0
      %1181 = vmatpush1.msra.mxu0 0.0
      %1182 = vmatprep.subr.mxu0 0.0
      %1183 = vmatpush1.msra.mxu0 0.0
      %1184 = vmatprep.subr.mxu0 0.0
      %1185 = vmatpush1.msra.mxu0 0.0
      %1186 = vmatprep.subr.mxu0 0.0
      %1187 = vmatpush1.msra.mxu0 0.0
      %1188 = vmatprep.subr.mxu0 0.0
      %1189 = vmatpush1.msra.mxu0 0.0
      %1190 = vmatprep.subr.mxu0 0.0
      %1191 = vmatpush1.msra.mxu0 0.0
      %1192 = vmatprep.subr.mxu0 0.0
      %1193 = vmatpush1.msra.mxu0 0.0
      %1194 = vmatprep.subr.mxu0 0.0
      %1195 = vmatpush1.msra.mxu0 0.0
      %1196 = vmatprep.subr.mxu0 0.0
      %1197 = vmatpush1.msra.mxu0 0.0
      %1198 = vmatprep.subr.mxu0 0.0
      %1199 = vmatpush1.msra.mxu0 0.0
      %1200 = vmatprep.subr.mxu0 0.0
      %1201 = vmatpush1.msra.mxu0 0.0
      %1202 = vmatprep.subr.mxu0 0.0
      %1203 = vmatpush1.msra.mxu0 0.0
      %1204 = vmatprep.subr.mxu0 0.0
      %1205 = vmatpush1.msra.mxu0 0.0
      %1206 = vmatprep.subr.mxu0 0.0
      %1207 = vmatpush1.msra.mxu0 0.0
      %1208 = vmatprep.subr.mxu0 0.0
      %1209 = vmatpush1.msra.mxu0 0.0
      %1210 = vmatprep.subr.mxu0 0.0
      %1211 = vmatpush1.msra.mxu0 0.0
      %1212 = vmatprep.subr.mxu0 0.0
      %1213 = vmatpush1.msra.mxu0 0.0
      %1214 = vmatprep.subr.mxu0 0.0
      %1215 = vmatpush1.msra.mxu0 0.0
      %1216 = vmatprep.subr.mxu0 0.0
      %1217 = vmatpush1.msra.mxu0 0.0
      %1218 = vmatprep.subr.mxu0 0.0
      %1219 = vmatpush1.msra.mxu0 0.0
      %1220 = vmatprep.subr.mxu0 0.0
      %1221 = vmatpush1.msra.mxu0 0.0
      %1222 = vmatprep.subr.mxu0 0.0
      %1223 = vmatpush1.msra.mxu0 0.0
      %1224 = vmatprep.mubr.f32.mxu0 0.0
      %1225 = vmatmul.mubr.f32.gmra.mrb[0].mxu0 %v1146
      %v1226 = vpop.f32.mrb[0].mxu0
      %v1227 = vadd.f32 %v1122, %v1226
      %v1228 = vpop.f32.mrb[0].mxu0
      %v1229 = vadd.f32 %v1122, %v1228
      %1230 = vmatprep.mubr.f32.mxu0 0.0
      %1231 = vmatmul.mubr.f32.gmra.mrb[0].mxu0 %v1149
      %v1232 = vpop.f32.mrb[0].mxu0
      %v1233 = vadd.f32 %v1127, %v1232
      %v1234 = vpop.f32.mrb[0].mxu0
      %v1235 = vadd.f32 %v1127, %v1234
      %1236 = vmatprep.mubr.f32.mxu0 0.0
      %1237 = vmatmul.mubr.f32.gmra.mrb[0].mxu0 %v1152
      %v1238 = vpop.f32.mrb[0].mxu0
      %v1239 = vadd.f32 %v1132, %v1238
      %v1240 = vpop.f32.mrb[0].mxu0
      %v1241 = vadd.f32 %v1132, %v1240
      %1242 = vmatprep.mubr.f32.mxu0 0.0
      %1243 = vmatmul.mubr.f32.gmra.mrb[0].mxu0 %v1155
      %v1244 = vpop.f32.mrb[0].mxu0
      %v1245 = vadd.f32 %v1137, %v1244
      %v1246 = vpop.f32.mrb[0].mxu0
      %v1247 = vadd.f32 %v1137, %v1246
      %1248 = vmatprep.mubr.f32.mxu0 0.0
      %1249 = vmatmul.mubr.f32.gmra.mrb[0].mxu0 %v1158
      %v1250 = vpop.f32.mrb[0].mxu0
      %v1251 = vadd.f32 %v1142, %v1250
      %v1252 = vpop.f32.mrb[0].mxu0
      %v1253 = vadd.f32 %v1142, %v1252
      %1254 = vdwg.mxu0
      %1255 = vmatprep.subr.mxu0 %v1101
      %1256 = vmatpush1.msra.mxu0 %v1100
      %1257 = vmatprep.subr.mxu0 %v1109
      %1258 = vmatpush1.msra.mxu0 %v1108
      %1259 = vmatprep.subr.mxu0 0.0
      %1260 = vmatpush1.msra.mxu0 0.0
      %1261 = vmatprep.subr.mxu0 0.0
      %1262 = vmatpush1.msra.mxu0 0.0
      %1263 = vmatprep.subr.mxu0 0.0
      %1264 = vmatpush1.msra.mxu0 0.0
      %1265 = vmatprep.subr.mxu0 0.0
      %1266 = vmatpush1.msra.mxu0 0.0
      %1267 = vmatprep.subr.mxu0 0.0
      %1268 = vmatpush1.msra.mxu0 0.0
      %1269 = vmatprep.subr.mxu0 0.0
      %1270 = vmatpush1.msra.mxu0 0.0
      %1271 = vmatprep.subr.mxu0 0.0
      %1272 = vmatpush1.msra.mxu0 0.0
      %1273 = vmatprep.subr.mxu0 0.0
      %1274 = vmatpush1.msra.mxu0 0.0
      %1275 = vmatprep.subr.mxu0 0.0
      %1276 = vmatpush1.msra.mxu0 0.0
      %1277 = vmatprep.subr.mxu0 0.0
      %1278 = vmatpush1.msra.mxu0 0.0
      %1279 = vmatprep.subr.mxu0 0.0
      %1280 = vmatpush1.msra.mxu0 0.0
      %1281 = vmatprep.subr.mxu0 0.0
      %1282 = vmatpush1.msra.mxu0 0.0
      %1283 = vmatprep.subr.mxu0 0.0
      %1284 = vmatpush1.msra.mxu0 0.0
      %1285 = vmatprep.subr.mxu0 0.0
      %1286 = vmatpush1.msra.mxu0 0.0
      %1287 = vmatprep.subr.mxu0 0.0
      %1288 = vmatpush1.msra.mxu0 0.0
      %1289 = vmatprep.subr.mxu0 0.0
      %1290 = vmatpush1.msra.mxu0 0.0
      %1291 = vmatprep.subr.mxu0 0.0
      %1292 = vmatpush1.msra.mxu0 0.0
      %1293 = vmatprep.subr.mxu0 0.0
      %1294 = vmatpush1.msra.mxu0 0.0
      %1295 = vmatprep.subr.mxu0 0.0
      %1296 = vmatpush1.msra.mxu0 0.0
      %1297 = vmatprep.subr.mxu0 0.0
      %1298 = vmatpush1.msra.mxu0 0.0
      %1299 = vmatprep.subr.mxu0 0.0
      %1300 = vmatpush1.msra.mxu0 0.0
      %1301 = vmatprep.subr.mxu0 0.0
      %1302 = vmatpush1.msra.mxu0 0.0
      %1303 = vmatprep.subr.mxu0 0.0
      %1304 = vmatpush1.msra.mxu0 0.0
      %1305 = vmatprep.subr.mxu0 0.0
      %1306 = vmatpush1.msra.mxu0 0.0
      %1307 = vmatprep.subr.mxu0 0.0
      %1308 = vmatpush1.msra.mxu0 0.0
      %1309 = vmatprep.subr.mxu0 0.0
      %1310 = vmatpush1.msra.mxu0 0.0
      %1311 = vmatprep.subr.mxu0 0.0
      %1312 = vmatpush1.msra.mxu0 0.0
      %1313 = vmatprep.subr.mxu0 0.0
      %1314 = vmatpush1.msra.mxu0 0.0
      %1315 = vmatprep.subr.mxu0 0.0
      %1316 = vmatpush1.msra.mxu0 0.0
      %1317 = vmatprep.subr.mxu0 0.0
      %1318 = vmatpush1.msra.mxu0 0.0
      %1319 = vmatprep.mubr.f32.mxu0 0.0
      %1320 = vmatmul.mubr.f32.gmra.mrb[0].mxu0 %v1146
      %v1321 = vpop.f32.mrb[0].mxu0
      %v1322 = vadd.f32 %v1122, %v1321
      %v1323 = vpop.f32.mrb[0].mxu0
      %v1324 = vadd.f32 %v1122, %v1323
      %1325 = vmatprep.mubr.f32.mxu0 0.0
      %1326 = vmatmul.mubr.f32.gmra.mrb[0].mxu0 %v1149
      %v1327 = vpop.f32.mrb[0].mxu0
      %v1328 = vadd.f32 %v1127, %v1327
      %v1329 = vpop.f32.mrb[0].mxu0
      %v1330 = vadd.f32 %v1127, %v1329
      %1331 = vmatprep.mubr.f32.mxu0 0.0
      %1332 = vmatmul.mubr.f32.gmra.mrb[0].mxu0 %v1152
      %v1333 = vpop.f32.mrb[0].mxu0
      %v1334 = vadd.f32 %v1132, %v1333
      %v1335 = vpop.f32.mrb[0].mxu0
      %v1336 = vadd.f32 %v1132, %v1335
      %1337 = vmatprep.mubr.f32.mxu0 0.0
      %1338 = vmatmul.mubr.f32.gmra.mrb[0].mxu0 %v1155
      %v1339 = vpop.f32.mrb[0].mxu0
      %v1340 = vadd.f32 %v1137, %v1339
      %v1341 = vpop.f32.mrb[0].mxu0
      %v1342 = vadd.f32 %v1137, %v1341
      %1343 = vmatprep.mubr.f32.mxu0 0.0
      %1344 = vmatmul.mubr.f32.gmra.mrb[0].mxu0 %v1158
      %v1345 = vpop.f32.mrb[0].mxu0
      %v1346 = vadd.f32 %v1142, %v1345
      %v1347 = vpop.f32.mrb[0].mxu0
      %v1348 = vadd.f32 %v1142, %v1347
      %1349 = vdwg.mxu0
      %1350 = vmatprep.subr.mxu0 %v1103
      %1351 = vmatpush1.msra.mxu0 %v1102
      %1352 = vmatprep.subr.mxu0 %v1111
      %1353 = vmatpush1.msra.mxu0 %v1110
      %1354 = vmatprep.subr.mxu0 0.0
      %1355 = vmatpush1.msra.mxu0 0.0
      %1356 = vmatprep.subr.mxu0 0.0
      %1357 = vmatpush1.msra.mxu0 0.0
      %1358 = vmatprep.subr.mxu0 0.0
      %1359 = vmatpush1.msra.mxu0 0.0
      %1360 = vmatprep.subr.mxu0 0.0
      %1361 = vmatpush1.msra.mxu0 0.0
      %1362 = vmatprep.subr.mxu0 0.0
      %1363 = vmatpush1.msra.mxu0 0.0
      %1364 = vmatprep.subr.mxu0 0.0
      %1365 = vmatpush1.msra.mxu0 0.0
      %1366 = vmatprep.subr.mxu0 0.0
      %1367 = vmatpush1.msra.mxu0 0.0
      %1368 = vmatprep.subr.mxu0 0.0
      %1369 = vmatpush1.msra.mxu0 0.0
      %1370 = vmatprep.subr.mxu0 0.0
      %1371 = vmatpush1.msra.mxu0 0.0
      %1372 = vmatprep.subr.mxu0 0.0
      %1373 = vmatpush1.msra.mxu0 0.0
      %1374 = vmatprep.subr.mxu0 0.0
      %1375 = vmatpush1.msra.mxu0 0.0
      %1376 = vmatprep.subr.mxu0 0.0
      %1377 = vmatpush1.msra.mxu0 0.0
      %1378 = vmatprep.subr.mxu0 0.0
      %1379 = vmatpush1.msra.mxu0 0.0
      %1380 = vmatprep.subr.mxu0 0.0
      %1381 = vmatpush1.msra.mxu0 0.0
      %1382 = vmatprep.subr.mxu0 0.0
      %1383 = vmatpush1.msra.mxu0 0.0
      %1384 = vmatprep.subr.mxu0 0.0
      %1385 = vmatpush1.msra.mxu0 0.0
      %1386 = vmatprep.subr.mxu0 0.0
      %1387 = vmatpush1.msra.mxu0 0.0
      %1388 = vmatprep.subr.mxu0 0.0
      %1389 = vmatpush1.msra.mxu0 0.0
      %1390 = vmatprep.subr.mxu0 0.0
      %1391 = vmatpush1.msra.mxu0 0.0
      %1392 = vmatprep.subr.mxu0 0.0
      %1393 = vmatpush1.msra.mxu0 0.0
      %1394 = vmatprep.subr.mxu0 0.0
      %1395 = vmatpush1.msra.mxu0 0.0
      %1396 = vmatprep.subr.mxu0 0.0
      %1397 = vmatpush1.msra.mxu0 0.0
      %1398 = vmatprep.subr.mxu0 0.0
      %1399 = vmatpush1.msra.mxu0 0.0
      %1400 = vmatprep.subr.mxu0 0.0
      %1401 = vmatpush1.msra.mxu0 0.0
      %1402 = vmatprep.subr.mxu0 0.0
      %1403 = vmatpush1.msra.mxu0 0.0
      %1404 = vmatprep.subr.mxu0 0.0
      %1405 = vmatpush1.msra.mxu0 0.0
      %1406 = vmatprep.subr.mxu0 0.0
      %1407 = vmatpush1.msra.mxu0 0.0
      %1408 = vmatprep.subr.mxu0 0.0
      %1409 = vmatpush1.msra.mxu0 0.0
      %1410 = vmatprep.subr.mxu0 0.0
      %1411 = vmatpush1.msra.mxu0 0.0
      %1412 = vmatprep.subr.mxu0 0.0
      %1413 = vmatpush1.msra.mxu0 0.0
      %1414 = vmatprep.mubr.f32.mxu0 0.0
      %1415 = vmatmul.mubr.f32.gmra.mrb[0].mxu0 %v1146
      %v1416 = vpop.f32.mrb[0].mxu0
      %v1417 = vadd.f32 %v1122, %v1416
      %v1418 = vpop.f32.mrb[0].mxu0
      %v1419 = vadd.f32 %v1122, %v1418
      %1420 = vmatprep.mubr.f32.mxu0 0.0
      %1421 = vmatmul.mubr.f32.gmra.mrb[0].mxu0 %v1149
      %v1422 = vpop.f32.mrb[0].mxu0
      %v1423 = vadd.f32 %v1127, %v1422
      %v1424 = vpop.f32.mrb[0].mxu0
      %v1425 = vadd.f32 %v1127, %v1424
      %1426 = vmatprep.mubr.f32.mxu0 0.0
      %1427 = vmatmul.mubr.f32.gmra.mrb[0].mxu0 %v1152
      %v1428 = vpop.f32.mrb[0].mxu0
      %v1429 = vadd.f32 %v1132, %v1428
      %v1430 = vpop.f32.mrb[0].mxu0
      %v1431 = vadd.f32 %v1132, %v1430
      %1432 = vmatprep.mubr.f32.mxu0 0.0
      %1433 = vmatmul.mubr.f32.gmra.mrb[0].mxu0 %v1155
      %v1434 = vpop.f32.mrb[0].mxu0
      %v1435 = vadd.f32 %v1137, %v1434
      %v1436 = vpop.f32.mrb[0].mxu0
      %v1437 = vadd.f32 %v1137, %v1436
      %1438 = vmatprep.mubr.f32.mxu0 0.0
      %1439 = vmatmul.mubr.f32.gmra.mrb[0].mxu0 %v1158
      %v1440 = vpop.f32.mrb[0].mxu0
      %v1441 = vadd.f32 %v1142, %v1440
      %v1442 = vpop.f32.mrb[0].mxu0
      %v1443 = vadd.f32 %v1142, %v1442
      %1444 = vdwg.mxu0
      %1445 = vmatprep.subr.mxu0 %v1105
      %1446 = vmatpush1.msra.mxu0 %v1104
      %1447 = vmatprep.subr.mxu0 %v1113
      %1448 = vmatpush1.msra.mxu0 %v1112
      %1449 = vmatprep.subr.mxu0 0.0
      %1450 = vmatpush1.msra.mxu0 0.0
      %1451 = vmatprep.subr.mxu0 0.0
      %1452 = vmatpush1.msra.mxu0 0.0
      %1453 = vmatprep.subr.mxu0 0.0
      %1454 = vmatpush1.msra.mxu0 0.0
      %1455 = vmatprep.subr.mxu0 0.0
      %1456 = vmatpush1.msra.mxu0 0.0
      %1457 = vmatprep.subr.mxu0 0.0
      %1458 = vmatpush1.msra.mxu0 0.0
      %1459 = vmatprep.subr.mxu0 0.0
      %1460 = vmatpush1.msra.mxu0 0.0
      %1461 = vmatprep.subr.mxu0 0.0
      %1462 = vmatpush1.msra.mxu0 0.0
      %1463 = vmatprep.subr.mxu0 0.0
      %1464 = vmatpush1.msra.mxu0 0.0
      %1465 = vmatprep.subr.mxu0 0.0
      %1466 = vmatpush1.msra.mxu0 0.0
      %1467 = vmatprep.subr.mxu0 0.0
      %1468 = vmatpush1.msra.mxu0 0.0
      %1469 = vmatprep.subr.mxu0 0.0
      %1470 = vmatpush1.msra.mxu0 0.0
      %1471 = vmatprep.subr.mxu0 0.0
      %1472 = vmatpush1.msra.mxu0 0.0
      %1473 = vmatprep.subr.mxu0 0.0
      %1474 = vmatpush1.msra.mxu0 0.0
      %1475 = vmatprep.subr.mxu0 0.0
      %1476 = vmatpush1.msra.mxu0 0.0
      %1477 = vmatprep.subr.mxu0 0.0
      %1478 = vmatpush1.msra.mxu0 0.0
      %1479 = vmatprep.subr.mxu0 0.0
      %1480 = vmatpush1.msra.mxu0 0.0
      %1481 = vmatprep.subr.mxu0 0.0
      %1482 = vmatpush1.msra.mxu0 0.0
      %1483 = vmatprep.subr.mxu0 0.0
      %1484 = vmatpush1.msra.mxu0 0.0
      %1485 = vmatprep.subr.mxu0 0.0
      %1486 = vmatpush1.msra.mxu0 0.0
      %1487 = vmatprep.subr.mxu0 0.0
      %1488 = vmatpush1.msra.mxu0 0.0
      %1489 = vmatprep.subr.mxu0 0.0
      %1490 = vmatpush1.msra.mxu0 0.0
      %1491 = vmatprep.subr.mxu0 0.0
      %1492 = vmatpush1.msra.mxu0 0.0
      %1493 = vmatprep.subr.mxu0 0.0
      %1494 = vmatpush1.msra.mxu0 0.0
      %1495 = vmatprep.subr.mxu0 0.0
      %1496 = vmatpush1.msra.mxu0 0.0
      %1497 = vmatprep.subr.mxu0 0.0
      %1498 = vmatpush1.msra.mxu0 0.0
      %1499 = vmatprep.subr.mxu0 0.0
      %1500 = vmatpush1.msra.mxu0 0.0
      %1501 = vmatprep.subr.mxu0 0.0
      %1502 = vmatpush1.msra.mxu0 0.0
      %1503 = vmatprep.subr.mxu0 0.0
      %1504 = vmatpush1.msra.mxu0 0.0
      %1505 = vmatprep.subr.mxu0 0.0
      %1506 = vmatpush1.msra.mxu0 0.0
      %1507 = vmatprep.subr.mxu0 0.0
      %1508 = vmatpush1.msra.mxu0 0.0
      %1509 = vmatprep.mubr.f32.mxu0 0.0
      %1510 = vmatmul.mubr.f32.gmra.mrb[0].mxu0 %v1146
      %v1511 = vpop.f32.mrb[0].mxu0
      %v1512 = vadd.f32 %v1122, %v1511
      %v1513 = vpop.f32.mrb[0].mxu0
      %v1514 = vadd.f32 %v1122, %v1513
      %1515 = vmatprep.mubr.f32.mxu0 0.0
      %1516 = vmatmul.mubr.f32.gmra.mrb[0].mxu0 %v1149
      %v1517 = vpop.f32.mrb[0].mxu0
      %v1518 = vadd.f32 %v1127, %v1517
      %v1519 = vpop.f32.mrb[0].mxu0
      %v1520 = vadd.f32 %v1127, %v1519
      %1521 = vmatprep.mubr.f32.mxu0 0.0
      %1522 = vmatmul.mubr.f32.gmra.mrb[0].mxu0 %v1152
      %v1523 = vpop.f32.mrb[0].mxu0
      %v1524 = vadd.f32 %v1132, %v1523
      %v1525 = vpop.f32.mrb[0].mxu0
      %v1526 = vadd.f32 %v1132, %v1525
      %1527 = vmatprep.mubr.f32.mxu0 0.0
      %1528 = vmatmul.mubr.f32.gmra.mrb[0].mxu0 %v1155
      %v1529 = vpop.f32.mrb[0].mxu0
      %v1530 = vadd.f32 %v1137, %v1529
      %v1531 = vpop.f32.mrb[0].mxu0
      %v1532 = vadd.f32 %v1137, %v1531
      %1533 = vmatprep.mubr.f32.mxu0 0.0
      %1534 = vmatmul.mubr.f32.gmra.mrb[0].mxu0 %v1158
      %v1535 = vpop.f32.mrb[0].mxu0
      %v1536 = vadd.f32 %v1142, %v1535
      %v1537 = vpop.f32.mrb[0].mxu0
      %v1538 = vadd.f32 %v1142, %v1537
      %1539 = vdwg.mxu0
      %1540 = vst [vmem:[#allocation4] sm:$0xff] %v1239
      %1541 = vst [vmem:[#allocation4 + $0x8] sm:$0xff] %v1241
      %1542 = vst [vmem:[#allocation4 + $0x10] sm:$0xff] %v1334
      %1543 = vst [vmem:[#allocation4 + $0x18] sm:$0xff] %v1336
      %1544 = vst [vmem:[#allocation4 + $0x20] sm:$0xff] %v1429
      %1545 = vst [vmem:[#allocation4 + $0x28] sm:$0xff] %v1431
      %1546 = vst [vmem:[#allocation4 + $0x30] sm:$0xff] %v1524
      %1547 = vst [vmem:[#allocation4 + $0x38] sm:$0xff] %v1526
      %1548 = vst [vmem:[#allocation4 + $0x40] sm:$0xff] %v1245
      %1549 = vst [vmem:[#allocation4 + $0x48] sm:$0xff] %v1247
      %1550 = vst [vmem:[#allocation4 + $0x50] sm:$0xff] %v1340
      %1551 = vst [vmem:[#allocation4 + $0x58] sm:$0xff] %v1342
      %1552 = vst [vmem:[#allocation4 + $0x60] sm:$0xff] %v1435
      %1553 = vst [vmem:[#allocation4 + $0x68] sm:$0xff] %v1437
      %1554 = vst [vmem:[#allocation4 + $0x70] sm:$0xff] %v1530
      %1555 = vst [vmem:[#allocation4 + $0x78] sm:$0xff] %v1532
      %1556 = vst [vmem:[#allocation4 + $0x80] sm:$0xff] %v1251
      %1557 = vst [vmem:[#allocation4 + $0x88] sm:$0xff] %v1253
      %1558 = vst [vmem:[#allocation4 + $0x90] sm:$0xff] %v1346
      %1559 = vst [vmem:[#allocation4 + $0x98] sm:$0xff] %v1348
      %1560 = vst [vmem:[#allocation4 + $0xa0] sm:$0xff] %v1441
      %1561 = vst [vmem:[#allocation4 + $0xa8] sm:$0xff] %v1443
      %1562 = vst [vmem:[#allocation4 + $0xb0] sm:$0xff] %v1536
      %1563 = vst [vmem:[#allocation4 + $0xb8] sm:$0xff] %v1538
      %v1564 = vld [vmem:[#allocation2] sm:$0xff]
      %v1565 = vld [vmem:[#allocation2 + $0x8] sm:$0xff]
      %v1566 = vld [vmem:[#allocation2 + $0x10] sm:$0xff]
      %v1567 = vld [vmem:[#allocation2 + $0x18] sm:$0xff]
      %v1568 = vld [vmem:[#allocation2 + $0x20] sm:$0xff]
      %v1569 = vld [vmem:[#allocation2 + $0x28] sm:$0xff]
      %v1570 = vld [vmem:[#allocation2 + $0x30] sm:$0xff]
      %v1571 = vld [vmem:[#allocation2 + $0x38] sm:$0xff]
      %v1572 = vld [vmem:[#allocation2 + $0x40] sm:$0xff]
      %v1573 = vld [vmem:[#allocation2 + $0x48] sm:$0xff]
      %v1574 = vld [vmem:[#allocation2 + $0x50] sm:$0xff]
      %v1575 = vld [vmem:[#allocation2 + $0x58] sm:$0xff]
      %v1576 = vld [vmem:[#allocation2 + $0x60] sm:$0xff]
      %v1577 = vld [vmem:[#allocation2 + $0x68] sm:$0xff]
      %v1578 = vld [vmem:[#allocation2 + $0x70] sm:$0xff]
      %v1579 = vld [vmem:[#allocation2 + $0x78] sm:$0xff]
      %v1580 = vld [vmem:[%s10] sm:$0xff]
      %v1581 = vld [vmem:[%s10 + $0x8] sm:$0xff]
      %vm1582 = vcmp.ge.f32.partialorder %v1227, 0.0
      %vm1583 = vcmp.ge.f32.partialorder %v1229, 0.0
      %vm1584 = vcmp.ge.f32.partialorder %v1322, 0.0
      %vm1585 = vcmp.ge.f32.partialorder %v1324, 0.0
      %vm1586 = vcmp.ge.f32.partialorder %v1417, 0.0
      %vm1587 = vcmp.ge.f32.partialorder %v1419, 0.0
      %vm1588 = vcmp.ge.f32.partialorder %v1512, 0.0
      %vm1589 = vcmp.ge.f32.partialorder %v1514, 0.0
      %vm1590 = vcmp.ge.f32.partialorder %v1233, 0.0
      %vm1591 = vcmp.ge.f32.partialorder %v1235, 0.0
      %vm1592 = vcmp.ge.f32.partialorder %v1328, 0.0
      %vm1593 = vcmp.ge.f32.partialorder %v1330, 0.0
      %vm1594 = vcmp.ge.f32.partialorder %v1423, 0.0
      %vm1595 = vcmp.ge.f32.partialorder %v1425, 0.0
      %vm1596 = vcmp.ge.f32.partialorder %v1518, 0.0
      %vm1597 = vcmp.ge.f32.partialorder %v1520, 0.0
      %1599 = vset.pattern.permute.xlu0 0
      %1600 = vperm.xlu0 %1599, %v1580
      %v1601 = vpop.permute.xlu0 %1600
      %1604 = vset.pattern.permute.xlu0 0
      %1605 = vperm.xlu0 %1604, %v1581
      %v1606 = vpop.permute.xlu0 %1605
      %v1608 = vmul.f32 %v1227, %v1601
      %v1609 = vmul.f32 %v1229, %v1601
      %v1610 = vmul.f32 %v1322, %v1601
      %v1611 = vmul.f32 %v1324, %v1601
      %v1612 = vmul.f32 %v1417, %v1601
      %v1613 = vmul.f32 %v1419, %v1601
      %v1614 = vmul.f32 %v1512, %v1601
      %v1615 = vmul.f32 %v1514, %v1601
      %v1616 = vmul.f32 %v1233, %v1606
      %v1617 = vmul.f32 %v1235, %v1606
      %v1618 = vmul.f32 %v1328, %v1606
      %v1619 = vmul.f32 %v1330, %v1606
      %v1620 = vmul.f32 %v1423, %v1606
      %v1621 = vmul.f32 %v1425, %v1606
      %v1622 = vmul.f32 %v1518, %v1606
      %v1623 = vmul.f32 %v1520, %v1606
      %v1624 = vsel %vm1582, %v1227, %v1608
      %v1625 = vsel %vm1583, %v1229, %v1609
      %v1626 = vsel %vm1584, %v1322, %v1610
      %v1627 = vsel %vm1585, %v1324, %v1611
      %v1628 = vsel %vm1586, %v1417, %v1612
      %v1629 = vsel %vm1587, %v1419, %v1613
      %v1630 = vsel %vm1588, %v1512, %v1614
      %v1631 = vsel %vm1589, %v1514, %v1615
      %v1632 = vsel %vm1590, %v1233, %v1616
      %v1633 = vsel %vm1591, %v1235, %v1617
      %v1634 = vsel %vm1592, %v1328, %v1618
      %v1635 = vsel %vm1593, %v1330, %v1619
      %v1636 = vsel %vm1594, %v1423, %v1620
      %v1637 = vsel %vm1595, %v1425, %v1621
      %v1638 = vsel %vm1596, %v1518, %v1622
      %v1639 = vsel %vm1597, %v1520, %v1623
      %1640 = vrot.lane.b32.xlu0 %v1624, 1
      %v1641 = vpop.permute.xlu0 %1640
      %1642 = vrot.lane.b32.xlu0 %v1632, 1
      %v1643 = vpop.permute.xlu0 %1642
      %1644 = vrot.lane.b32.xlu0 %v1625, 1
      %v1645 = vpop.permute.xlu0 %1644
      %1646 = vrot.lane.b32.xlu0 %v1633, 1
      %v1647 = vpop.permute.xlu0 %1646
      %1648 = vrot.lane.b32.xlu0 %v1626, 1
      %v1649 = vpop.permute.xlu0 %1648
      %1650 = vrot.lane.b32.xlu0 %v1634, 1
      %v1651 = vpop.permute.xlu0 %1650
      %1652 = vrot.lane.b32.xlu0 %v1627, 1
      %v1653 = vpop.permute.xlu0 %1652
      %1654 = vrot.lane.b32.xlu0 %v1635, 1
      %v1655 = vpop.permute.xlu0 %1654
      %1656 = vrot.lane.b32.xlu0 %v1628, 1
      %v1657 = vpop.permute.xlu0 %1656
      %1658 = vrot.lane.b32.xlu0 %v1636, 1
      %v1659 = vpop.permute.xlu0 %1658
      %1660 = vrot.lane.b32.xlu0 %v1629, 1
      %v1661 = vpop.permute.xlu0 %1660
      %1662 = vrot.lane.b32.xlu0 %v1637, 1
      %v1663 = vpop.permute.xlu0 %1662
      %1664 = vrot.lane.b32.xlu0 %v1630, 1
      %v1665 = vpop.permute.xlu0 %1664
      %1666 = vrot.lane.b32.xlu0 %v1638, 1
      %v1667 = vpop.permute.xlu0 %1666
      %1668 = vrot.lane.b32.xlu0 %v1631, 1
      %v1669 = vpop.permute.xlu0 %1668
      %1670 = vrot.lane.b32.xlu0 %v1639, 1
      %v1671 = vpop.permute.xlu0 %1670
      %vm1672 = vcmp.lt.s32.totalorder %v833, 1
      %v1673 = vsel %vm1672, %v1665, %v1669
      %v1674 = vsel %vm1672, %v1667, %v1671
      %v1675 = vsel %vm1672, %v1661, %v1665
      %v1676 = vsel %vm1672, %v1663, %v1667
      %v1677 = vsel %vm1672, %v1657, %v1661
      %v1678 = vsel %vm1672, %v1659, %v1663
      %v1679 = vsel %vm1672, %v1653, %v1657
      %v1680 = vsel %vm1672, %v1655, %v1659
      %v1681 = vsel %vm1672, %v1649, %v1653
      %v1682 = vsel %vm1672, %v1651, %v1655
      %v1683 = vsel %vm1672, %v1645, %v1649
      %v1684 = vsel %vm1672, %v1647, %v1651
      %v1685 = vsel %vm1672, %v1641, %v1645
      %v1686 = vsel %vm1672, %v1643, %v1647
      %v1687 = vsel %vm1672, %v1669, %v1641
      %v1688 = vsel %vm1672, %v1671, %v1643
      %v1689 = vsel %vm937, 1, 0
      %v1690 = vsel %vm938, 1, 0
      %v1691 = vsel %vm939, 1, 0
      %v1692 = vsel %vm940, 1, 0
      %v1693 = vsel %vm941, 1, 0
      %v1694 = vsel %vm942, 1, 0
      %v1695 = vsel %vm943, 1, 0
      %v1696 = vsel %vm944, 1, 0
      %vm1697 = vcmp.eq.s32.totalorder %v1689, 1
      %vm1698 = vcmp.eq.s32.totalorder %v1690, 1
      %vm1699 = vcmp.eq.s32.totalorder %v1691, 1
      %vm1700 = vcmp.eq.s32.totalorder %v1692, 1
      %vm1701 = vcmp.eq.s32.totalorder %v1693, 1
      %vm1702 = vcmp.eq.s32.totalorder %v1694, 1
      %vm1703 = vcmp.eq.s32.totalorder %v1695, 1
      %vm1704 = vcmp.eq.s32.totalorder %v1696, 1
      %v1705 = vsel %vm1697, %v1687, 0.0
      %v1706 = vsel %vm1698, %v1685, 0.0
      %v1707 = vsel %vm1699, %v1683, 0.0
      %v1708 = vsel %vm1700, %v1681, 0.0
      %v1709 = vsel %vm1701, %v1679, 0.0
      %v1710 = vsel %vm1702, %v1677, 0.0
      %v1711 = vsel %vm1703, %v1675, 0.0
      %v1712 = vsel %vm1704, %v1673, 0.0
      %v1713 = vsel %vm1697, %v1688, 0.0
      %v1714 = vsel %vm1698, %v1686, 0.0
      %v1715 = vsel %vm1699, %v1684, 0.0
      %v1716 = vsel %vm1700, %v1682, 0.0
      %v1717 = vsel %vm1701, %v1680, 0.0
      %v1718 = vsel %vm1702, %v1678, 0.0
      %v1719 = vsel %vm1703, %v1676, 0.0
      %v1720 = vsel %vm1704, %v1674, 0.0
      %1721 = vrot.lane.b32.xlu0 %v1624, 127
      %v1722 = vpop.permute.xlu0 %1721
      %1723 = vrot.lane.b32.xlu0 %v1632, 127
      %v1724 = vpop.permute.xlu0 %1723
      %1725 = vrot.lane.b32.xlu0 %v1625, 127
      %v1726 = vpop.permute.xlu0 %1725
      %1727 = vrot.lane.b32.xlu0 %v1633, 127
      %v1728 = vpop.permute.xlu0 %1727
      %1729 = vrot.lane.b32.xlu0 %v1626, 127
      %v1730 = vpop.permute.xlu0 %1729
      %1731 = vrot.lane.b32.xlu0 %v1634, 127
      %v1732 = vpop.permute.xlu0 %1731
      %1733 = vrot.lane.b32.xlu0 %v1627, 127
      %v1734 = vpop.permute.xlu0 %1733
      %1735 = vrot.lane.b32.xlu0 %v1635, 127
      %v1736 = vpop.permute.xlu0 %1735
      %1737 = vrot.lane.b32.xlu0 %v1628, 127
      %v1738 = vpop.permute.xlu0 %1737
      %1739 = vrot.lane.b32.xlu0 %v1636, 127
      %v1740 = vpop.permute.xlu0 %1739
      %1741 = vrot.lane.b32.xlu0 %v1629, 127
      %v1742 = vpop.permute.xlu0 %1741
      %1743 = vrot.lane.b32.xlu0 %v1637, 127
      %v1744 = vpop.permute.xlu0 %1743
      %1745 = vrot.lane.b32.xlu0 %v1630, 127
      %v1746 = vpop.permute.xlu0 %1745
      %1747 = vrot.lane.b32.xlu0 %v1638, 127
      %v1748 = vpop.permute.xlu0 %1747
      %1749 = vrot.lane.b32.xlu0 %v1631, 127
      %v1750 = vpop.permute.xlu0 %1749
      %1751 = vrot.lane.b32.xlu0 %v1639, 127
      %v1752 = vpop.permute.xlu0 %1751
      %vm1753 = vcmp.lt.s32.totalorder %v833, 127
      %v1754 = vsel %vm1753, %v1746, %v1750
      %v1755 = vsel %vm1753, %v1748, %v1752
      %v1756 = vsel %vm1753, %v1742, %v1746
      %v1757 = vsel %vm1753, %v1744, %v1748
      %v1758 = vsel %vm1753, %v1738, %v1742
      %v1759 = vsel %vm1753, %v1740, %v1744
      %v1760 = vsel %vm1753, %v1734, %v1738
      %v1761 = vsel %vm1753, %v1736, %v1740
      %v1762 = vsel %vm1753, %v1730, %v1734
      %v1763 = vsel %vm1753, %v1732, %v1736
      %v1764 = vsel %vm1753, %v1726, %v1730
      %v1765 = vsel %vm1753, %v1728, %v1732
      %v1766 = vsel %vm1753, %v1722, %v1726
      %v1767 = vsel %vm1753, %v1724, %v1728
      %v1768 = vsel %vm1753, %v1750, %v1722
      %v1769 = vsel %vm1753, %v1752, %v1724
      %v1770 = vsel %vm945, 1, 0
      %v1771 = vsel %vm946, 1, 0
      %v1772 = vsel %vm947, 1, 0
      %v1773 = vsel %vm948, 1, 0
      %v1774 = vsel %vm949, 1, 0
      %v1775 = vsel %vm950, 1, 0
      %v1776 = vsel %vm951, 1, 0
      %v1777 = vsel %vm952, 1, 0
      %vm1778 = vcmp.eq.s32.totalorder %v1770, 1
      %vm1779 = vcmp.eq.s32.totalorder %v1771, 1
      %vm1780 = vcmp.eq.s32.totalorder %v1772, 1
      %vm1781 = vcmp.eq.s32.totalorder %v1773, 1
      %vm1782 = vcmp.eq.s32.totalorder %v1774, 1
      %vm1783 = vcmp.eq.s32.totalorder %v1775, 1
      %vm1784 = vcmp.eq.s32.totalorder %v1776, 1
      %vm1785 = vcmp.eq.s32.totalorder %v1777, 1
      %v1786 = vsel %vm1778, %v1766, 0.0
      %v1787 = vsel %vm1779, %v1764, 0.0
      %v1788 = vsel %vm1780, %v1762, 0.0
      %v1789 = vsel %vm1781, %v1760, 0.0
      %v1790 = vsel %vm1782, %v1758, 0.0
      %v1791 = vsel %vm1783, %v1756, 0.0
      %v1792 = vsel %vm1784, %v1754, 0.0
      %v1793 = vsel %vm1785, %v1768, 0.0
      %v1794 = vsel %vm1778, %v1767, 0.0
      %v1795 = vsel %vm1779, %v1765, 0.0
      %v1796 = vsel %vm1780, %v1763, 0.0
      %v1797 = vsel %vm1781, %v1761, 0.0
      %v1798 = vsel %vm1782, %v1759, 0.0
      %v1799 = vsel %vm1783, %v1757, 0.0
      %v1800 = vsel %vm1784, %v1755, 0.0
      %v1801 = vsel %vm1785, %v1769, 0.0
      %1802 = vst [vmem:[#allocation5] sm:$0xff] %v1705
      %1803 = vst [vmem:[#allocation5 + $0x8] sm:$0xff] %v1706
      %1804 = vst [vmem:[#allocation5 + $0x10] sm:$0xff] %v1707
      %1805 = vst [vmem:[#allocation5 + $0x18] sm:$0xff] %v1708
      %1806 = vst [vmem:[#allocation5 + $0x20] sm:$0xff] %v1709
      %1807 = vst [vmem:[#allocation5 + $0x28] sm:$0xff] %v1710
      %1808 = vst [vmem:[#allocation5 + $0x30] sm:$0xff] %v1711
      %1809 = vst [vmem:[#allocation5 + $0x38] sm:$0xff] %v1712
      %1810 = vst [vmem:[#allocation5 + $0x40] sm:$0xff] %v1713
      %1811 = vst [vmem:[#allocation5 + $0x48] sm:$0xff] %v1714
      %1812 = vst [vmem:[#allocation5 + $0x50] sm:$0xff] %v1715
      %1813 = vst [vmem:[#allocation5 + $0x58] sm:$0xff] %v1716
      %1814 = vst [vmem:[#allocation5 + $0x60] sm:$0xff] %v1717
      %1815 = vst [vmem:[#allocation5 + $0x68] sm:$0xff] %v1718
      %1816 = vst [vmem:[#allocation5 + $0x70] sm:$0xff] %v1719
      %1817 = vst [vmem:[#allocation5 + $0x78] sm:$0xff] %v1720
      %1818 = vst [vmem:[#allocation5 + $0x80] sm:$0xff] %v1624
      %1819 = vst [vmem:[#allocation5 + $0x88] sm:$0xff] %v1625
      %1820 = vst [vmem:[#allocation5 + $0x90] sm:$0xff] %v1626
      %1821 = vst [vmem:[#allocation5 + $0x98] sm:$0xff] %v1627
      %1822 = vst [vmem:[#allocation5 + $0xa0] sm:$0xff] %v1628
      %1823 = vst [vmem:[#allocation5 + $0xa8] sm:$0xff] %v1629
      %1824 = vst [vmem:[#allocation5 + $0xb0] sm:$0xff] %v1630
      %1825 = vst [vmem:[#allocation5 + $0xb8] sm:$0xff] %v1631
      %1826 = vst [vmem:[#allocation5 + $0xc0] sm:$0xff] %v1632
      %1827 = vst [vmem:[#allocation5 + $0xc8] sm:$0xff] %v1633
      %1828 = vst [vmem:[#allocation5 + $0xd0] sm:$0xff] %v1634
      %1829 = vst [vmem:[#allocation5 + $0xd8] sm:$0xff] %v1635
      %1830 = vst [vmem:[#allocation5 + $0xe0] sm:$0xff] %v1636
      %1831 = vst [vmem:[#allocation5 + $0xe8] sm:$0xff] %v1637
      %1832 = vst [vmem:[#allocation5 + $0xf0] sm:$0xff] %v1638
      %1833 = vst [vmem:[#allocation5 + $0xf8] sm:$0xff] %v1639
      %1834 = vst [vmem:[#allocation5 + $0x100] sm:$0xff] %v1786
      %1835 = vst [vmem:[#allocation5 + $0x108] sm:$0xff] %v1787
      %1836 = vst [vmem:[#allocation5 + $0x110] sm:$0xff] %v1788
      %1837 = vst [vmem:[#allocation5 + $0x118] sm:$0xff] %v1789
      %1838 = vst [vmem:[#allocation5 + $0x120] sm:$0xff] %v1790
      %1839 = vst [vmem:[#allocation5 + $0x128] sm:$0xff] %v1791
      %1840 = vst [vmem:[#allocation5 + $0x130] sm:$0xff] %v1792
      %1841 = vst [vmem:[#allocation5 + $0x138] sm:$0xff] %v1793
      %1842 = vst [vmem:[#allocation5 + $0x140] sm:$0xff] %v1794
      %1843 = vst [vmem:[#allocation5 + $0x148] sm:$0xff] %v1795
      %1844 = vst [vmem:[#allocation5 + $0x150] sm:$0xff] %v1796
      %1845 = vst [vmem:[#allocation5 + $0x158] sm:$0xff] %v1797
      %1846 = vst [vmem:[#allocation5 + $0x160] sm:$0xff] %v1798
      %1847 = vst [vmem:[#allocation5 + $0x168] sm:$0xff] %v1799
      %1848 = vst [vmem:[#allocation5 + $0x170] sm:$0xff] %v1800
      %1849 = vst [vmem:[#allocation5 + $0x178] sm:$0xff] %v1801
      %v1850 = vld [vmem:[%s11] sm:$0xff]
      %v1851 = vld [vmem:[%s11 + $0x8] sm:$0xff]
      %v1852 = vld [vmem:[%s11 + $0x10] sm:$0xff]
      %v1853 = vld [vmem:[%s11 + $0x18] sm:$0xff]
      %v1854 = vld [vmem:[%s11 + $0x20] sm:$0xff]
      %v1855 = vld [vmem:[%s11 + $0x28] sm:$0xff]
      %v1856 = vld [vmem:[#allocation5] sm:$0xff]
      %v1857 = vld [vmem:[#allocation5 + $0x8] sm:$0xff]
      %v1858 = vld [vmem:[#allocation5 + $0x10] sm:$0xff]
      %v1859 = vld [vmem:[#allocation5 + $0x18] sm:$0xff]
      %v1860 = vld [vmem:[#allocation5 + $0x20] sm:$0xff]
      %v1861 = vld [vmem:[#allocation5 + $0x28] sm:$0xff]
      %v1862 = vld [vmem:[#allocation5 + $0x30] sm:$0xff]
      %v1863 = vld [vmem:[#allocation5 + $0x38] sm:$0xff]
      %v1864 = vld [vmem:[#allocation5 + $0x40] sm:$0xff]
      %v1865 = vld [vmem:[#allocation5 + $0x48] sm:$0xff]
      %v1866 = vld [vmem:[#allocation5 + $0x50] sm:$0xff]
      %v1867 = vld [vmem:[#allocation5 + $0x58] sm:$0xff]
      %v1868 = vld [vmem:[#allocation5 + $0x60] sm:$0xff]
      %v1869 = vld [vmem:[#allocation5 + $0x68] sm:$0xff]
      %v1870 = vld [vmem:[#allocation5 + $0x70] sm:$0xff]
      %v1871 = vld [vmem:[#allocation5 + $0x78] sm:$0xff]
      %v1872 = vld [vmem:[#allocation5 + $0x80] sm:$0xff]
      %v1873 = vld [vmem:[#allocation5 + $0x88] sm:$0xff]
      %v1874 = vld [vmem:[#allocation5 + $0x90] sm:$0xff]
      %v1875 = vld [vmem:[#allocation5 + $0x98] sm:$0xff]
      %v1876 = vld [vmem:[#allocation5 + $0xa0] sm:$0xff]
      %v1877 = vld [vmem:[#allocation5 + $0xa8] sm:$0xff]
      %v1878 = vld [vmem:[#allocation5 + $0xb0] sm:$0xff]
      %v1879 = vld [vmem:[#allocation5 + $0xb8] sm:$0xff]
      %v1880 = vld [vmem:[#allocation5 + $0xc0] sm:$0xff]
      %v1881 = vld [vmem:[#allocation5 + $0xc8] sm:$0xff]
      %v1882 = vld [vmem:[#allocation5 + $0xd0] sm:$0xff]
      %v1883 = vld [vmem:[#allocation5 + $0xd8] sm:$0xff]
      %v1884 = vld [vmem:[#allocation5 + $0xe0] sm:$0xff]
      %v1885 = vld [vmem:[#allocation5 + $0xe8] sm:$0xff]
      %v1886 = vld [vmem:[#allocation5 + $0xf0] sm:$0xff]
      %v1887 = vld [vmem:[#allocation5 + $0xf8] sm:$0xff]
      %v1888 = vld [vmem:[#allocation5 + $0x100] sm:$0xff]
      %v1889 = vld [vmem:[#allocation5 + $0x108] sm:$0xff]
      %v1890 = vld [vmem:[#allocation5 + $0x110] sm:$0xff]
      %v1891 = vld [vmem:[#allocation5 + $0x118] sm:$0xff]
      %v1892 = vld [vmem:[#allocation5 + $0x120] sm:$0xff]
      %v1893 = vld [vmem:[#allocation5 + $0x128] sm:$0xff]
      %v1894 = vld [vmem:[#allocation5 + $0x130] sm:$0xff]
      %v1895 = vld [vmem:[#allocation5 + $0x138] sm:$0xff]
      %v1896 = vld [vmem:[#allocation5 + $0x140] sm:$0xff]
      %v1897 = vld [vmem:[#allocation5 + $0x148] sm:$0xff]
      %v1898 = vld [vmem:[#allocation5 + $0x150] sm:$0xff]
      %v1899 = vld [vmem:[#allocation5 + $0x158] sm:$0xff]
      %v1900 = vld [vmem:[#allocation5 + $0x160] sm:$0xff]
      %v1901 = vld [vmem:[#allocation5 + $0x168] sm:$0xff]
      %v1902 = vld [vmem:[#allocation5 + $0x170] sm:$0xff]
      %v1903 = vld [vmem:[#allocation5 + $0x178] sm:$0xff]
      %vm1904 = vcmask 392192
      %v1906 = vsel %vm1904, %v1850, 0
      %v1909 = vsel %vm1904, %v1851, 0
      %v1912 = vsel %vm1904, %v1852, 0
      %v1915 = vsel %vm1904, %v1853, 0
      %v1918 = vsel %vm1904, %v1854, 0
      %v1921 = vsel %vm1904, %v1855, 0
      %1923 = vmatprep.subr.mxu0 %v1857
      %1924 = vmatpush1.msra.mxu0 %v1856
      %1925 = vmatprep.subr.mxu0 %v1865
      %1926 = vmatpush1.msra.mxu0 %v1864
      %1927 = vmatprep.subr.mxu0 %v1873
      %1928 = vmatpush1.msra.mxu0 %v1872
      %1929 = vmatprep.subr.mxu0 %v1881
      %1930 = vmatpush1.msra.mxu0 %v1880
      %1931 = vmatprep.subr.mxu0 %v1889
      %1932 = vmatpush1.msra.mxu0 %v1888
      %1933 = vmatprep.subr.mxu0 %v1897
      %1934 = vmatpush1.msra.mxu0 %v1896
      %1935 = vmatprep.subr.mxu0 0.0
      %1936 = vmatpush1.msra.mxu0 0.0
      %1937 = vmatprep.subr.mxu0 0.0
      %1938 = vmatpush1.msra.mxu0 0.0
      %1939 = vmatprep.subr.mxu0 0.0
      %1940 = vmatpush1.msra.mxu0 0.0
      %1941 = vmatprep.subr.mxu0 0.0
      %1942 = vmatpush1.msra.mxu0 0.0
      %1943 = vmatprep.subr.mxu0 0.0
      %1944 = vmatpush1.msra.mxu0 0.0
      %1945 = vmatprep.subr.mxu0 0.0
      %1946 = vmatpush1.msra.mxu0 0.0
      %1947 = vmatprep.subr.mxu0 0.0
      %1948 = vmatpush1.msra.mxu0 0.0
      %1949 = vmatprep.subr.mxu0 0.0
      %1950 = vmatpush1.msra.mxu0 0.0
      %1951 = vmatprep.subr.mxu0 0.0
      %1952 = vmatpush1.msra.mxu0 0.0
      %1953 = vmatprep.subr.mxu0 0.0
      %1954 = vmatpush1.msra.mxu0 0.0
      %1955 = vmatprep.subr.mxu0 0.0
      %1956 = vmatpush1.msra.mxu0 0.0
      %1957 = vmatprep.subr.mxu0 0.0
      %1958 = vmatpush1.msra.mxu0 0.0
      %1959 = vmatprep.subr.mxu0 0.0
      %1960 = vmatpush1.msra.mxu0 0.0
      %1961 = vmatprep.subr.mxu0 0.0
      %1962 = vmatpush1.msra.mxu0 0.0
      %1963 = vmatprep.subr.mxu0 0.0
      %1964 = vmatpush1.msra.mxu0 0.0
      %1965 = vmatprep.subr.mxu0 0.0
      %1966 = vmatpush1.msra.mxu0 0.0
      %1967 = vmatprep.subr.mxu0 0.0
      %1968 = vmatpush1.msra.mxu0 0.0
      %1969 = vmatprep.subr.mxu0 0.0
      %1970 = vmatpush1.msra.mxu0 0.0
      %1971 = vmatprep.subr.mxu0 0.0
      %1972 = vmatpush1.msra.mxu0 0.0
      %1973 = vmatprep.subr.mxu0 0.0
      %1974 = vmatpush1.msra.mxu0 0.0
      %1975 = vmatprep.subr.mxu0 0.0
      %1976 = vmatpush1.msra.mxu0 0.0
      %1977 = vmatprep.subr.mxu0 0.0
      %1978 = vmatpush1.msra.mxu0 0.0
      %1979 = vmatprep.subr.mxu0 0.0
      %1980 = vmatpush1.msra.mxu0 0.0
      %1981 = vmatprep.subr.mxu0 0.0
      %1982 = vmatpush1.msra.mxu0 0.0
      %1983 = vmatprep.subr.mxu0 0.0
      %1984 = vmatpush1.msra.mxu0 0.0
      %1985 = vmatprep.subr.mxu0 0.0
      %1986 = vmatpush1.msra.mxu0 0.0
      %1987 = vmatprep.mubr.f32.mxu0 0.0
      %1988 = vmatmul.mubr.f32.gmra.mrb[0].mxu0 %v1906
      %v1989 = vpop.f32.mrb[0].mxu0
      %v1990 = vadd.f32 0.0, %v1989
      %v1991 = vpop.f32.mrb[0].mxu0
      %v1992 = vadd.f32 0.0, %v1991
      %1993 = vmatprep.mubr.f32.mxu0 0.0
      %1994 = vmatmul.mubr.f32.gmra.mrb[0].mxu0 %v1909
      %v1995 = vpop.f32.mrb[0].mxu0
      %v1996 = vadd.f32 0.0, %v1995
      %v1997 = vpop.f32.mrb[0].mxu0
      %v1998 = vadd.f32 0.0, %v1997
      %1999 = vmatprep.mubr.f32.mxu0 0.0
      %2000 = vmatmul.mubr.f32.gmra.mrb[0].mxu0 %v1912
      %v2001 = vpop.f32.mrb[0].mxu0
      %v2002 = vadd.f32 0.0, %v2001
      %v2003 = vpop.f32.mrb[0].mxu0
      %v2004 = vadd.f32 0.0, %v2003
      %2005 = vmatprep.mubr.f32.mxu0 0.0
      %2006 = vmatmul.mubr.f32.gmra.mrb[0].mxu0 %v1915
      %v2007 = vpop.f32.mrb[0].mxu0
      %v2008 = vadd.f32 0.0, %v2007
      %v2009 = vpop.f32.mrb[0].mxu0
      %v2010 = vadd.f32 0.0, %v2009
      %2011 = vmatprep.mubr.f32.mxu0 0.0
      %2012 = vmatmul.mubr.f32.gmra.mrb[0].mxu0 %v1918
      %v2013 = vpop.f32.mrb[0].mxu0
      %v2014 = vadd.f32 0.0, %v2013
      %v2015 = vpop.f32.mrb[0].mxu0
      %v2016 = vadd.f32 0.0, %v2015
      %2017 = vmatprep.mubr.f32.mxu0 0.0
      %2018 = vmatmul.mubr.f32.gmra.mrb[0].mxu0 %v1921
      %v2019 = vpop.f32.mrb[0].mxu0
      %v2020 = vadd.f32 0.0, %v2019
      %v2021 = vpop.f32.mrb[0].mxu0
      %v2022 = vadd.f32 0.0, %v2021
      %2023 = vdwg.mxu0
      %2024 = vmatprep.subr.mxu0 %v1859
      %2025 = vmatpush1.msra.mxu0 %v1858
      %2026 = vmatprep.subr.mxu0 %v1867
      %2027 = vmatpush1.msra.mxu0 %v1866
      %2028 = vmatprep.subr.mxu0 %v1875
      %2029 = vmatpush1.msra.mxu0 %v1874
      %2030 = vmatprep.subr.mxu0 %v1883
      %2031 = vmatpush1.msra.mxu0 %v1882
      %2032 = vmatprep.subr.mxu0 %v1891
      %2033 = vmatpush1.msra.mxu0 %v1890
      %2034 = vmatprep.subr.mxu0 %v1899
      %2035 = vmatpush1.msra.mxu0 %v1898
      %2036 = vmatprep.subr.mxu0 0.0
      %2037 = vmatpush1.msra.mxu0 0.0
      %2038 = vmatprep.subr.mxu0 0.0
      %2039 = vmatpush1.msra.mxu0 0.0
      %2040 = vmatprep.subr.mxu0 0.0
      %2041 = vmatpush1.msra.mxu0 0.0
      %2042 = vmatprep.subr.mxu0 0.0
      %2043 = vmatpush1.msra.mxu0 0.0
      %2044 = vmatprep.subr.mxu0 0.0
      %2045 = vmatpush1.msra.mxu0 0.0
      %2046 = vmatprep.subr.mxu0 0.0
      %2047 = vmatpush1.msra.mxu0 0.0
      %2048 = vmatprep.subr.mxu0 0.0
      %2049 = vmatpush1.msra.mxu0 0.0
      %2050 = vmatprep.subr.mxu0 0.0
      %2051 = vmatpush1.msra.mxu0 0.0
      %2052 = vmatprep.subr.mxu0 0.0
      %2053 = vmatpush1.msra.mxu0 0.0
      %2054 = vmatprep.subr.mxu0 0.0
      %2055 = vmatpush1.msra.mxu0 0.0
      %2056 = vmatprep.subr.mxu0 0.0
      %2057 = vmatpush1.msra.mxu0 0.0
      %2058 = vmatprep.subr.mxu0 0.0
      %2059 = vmatpush1.msra.mxu0 0.0
      %2060 = vmatprep.subr.mxu0 0.0
      %2061 = vmatpush1.msra.mxu0 0.0
      %2062 = vmatprep.subr.mxu0 0.0
      %2063 = vmatpush1.msra.mxu0 0.0
      %2064 = vmatprep.subr.mxu0 0.0
      %2065 = vmatpush1.msra.mxu0 0.0
      %2066 = vmatprep.subr.mxu0 0.0
      %2067 = vmatpush1.msra.mxu0 0.0
      %2068 = vmatprep.subr.mxu0 0.0
      %2069 = vmatpush1.msra.mxu0 0.0
      %2070 = vmatprep.subr.mxu0 0.0
      %2071 = vmatpush1.msra.mxu0 0.0
      %2072 = vmatprep.subr.mxu0 0.0
      %2073 = vmatpush1.msra.mxu0 0.0
      %2074 = vmatprep.subr.mxu0 0.0
      %2075 = vmatpush1.msra.mxu0 0.0
      %2076 = vmatprep.subr.mxu0 0.0
      %2077 = vmatpush1.msra.mxu0 0.0
      %2078 = vmatprep.subr.mxu0 0.0
      %2079 = vmatpush1.msra.mxu0 0.0
      %2080 = vmatprep.subr.mxu0 0.0
      %2081 = vmatpush1.msra.mxu0 0.0
      %2082 = vmatprep.subr.mxu0 0.0
      %2083 = vmatpush1.msra.mxu0 0.0
      %2084 = vmatprep.subr.mxu0 0.0
      %2085 = vmatpush1.msra.mxu0 0.0
      %2086 = vmatprep.subr.mxu0 0.0
      %2087 = vmatpush1.msra.mxu0 0.0
      %2088 = vmatprep.mubr.f32.mxu0 0.0
      %2089 = vmatmul.mubr.f32.gmra.mrb[0].mxu0 %v1906
      %v2090 = vpop.f32.mrb[0].mxu0
      %v2091 = vadd.f32 0.0, %v2090
      %v2092 = vpop.f32.mrb[0].mxu0
      %v2093 = vadd.f32 0.0, %v2092
      %2094 = vmatprep.mubr.f32.mxu0 0.0
      %2095 = vmatmul.mubr.f32.gmra.mrb[0].mxu0 %v1909
      %v2096 = vpop.f32.mrb[0].mxu0
      %v2097 = vadd.f32 0.0, %v2096
      %v2098 = vpop.f32.mrb[0].mxu0
      %v2099 = vadd.f32 0.0, %v2098
      %2100 = vmatprep.mubr.f32.mxu0 0.0
      %2101 = vmatmul.mubr.f32.gmra.mrb[0].mxu0 %v1912
      %v2102 = vpop.f32.mrb[0].mxu0
      %v2103 = vadd.f32 0.0, %v2102
      %v2104 = vpop.f32.mrb[0].mxu0
      %v2105 = vadd.f32 0.0, %v2104
      %2106 = vmatprep.mubr.f32.mxu0 0.0
      %2107 = vmatmul.mubr.f32.gmra.mrb[0].mxu0 %v1915
      %v2108 = vpop.f32.mrb[0].mxu0
      %v2109 = vadd.f32 0.0, %v2108
      %v2110 = vpop.f32.mrb[0].mxu0
      %v2111 = vadd.f32 0.0, %v2110
      %2112 = vmatprep.mubr.f32.mxu0 0.0
      %2113 = vmatmul.mubr.f32.gmra.mrb[0].mxu0 %v1918
      %v2114 = vpop.f32.mrb[0].mxu0
      %v2115 = vadd.f32 0.0, %v2114
      %v2116 = vpop.f32.mrb[0].mxu0
      %v2117 = vadd.f32 0.0, %v2116
      %2118 = vmatprep.mubr.f32.mxu0 0.0
      %2119 = vmatmul.mubr.f32.gmra.mrb[0].mxu0 %v1921
      %v2120 = vpop.f32.mrb[0].mxu0
      %v2121 = vadd.f32 0.0, %v2120
      %v2122 = vpop.f32.mrb[0].mxu0
      %v2123 = vadd.f32 0.0, %v2122
      %2124 = vdwg.mxu0
      %2125 = vmatprep.subr.mxu0 %v1861
      %2126 = vmatpush1.msra.mxu0 %v1860
      %2127 = vmatprep.subr.mxu0 %v1869
      %2128 = vmatpush1.msra.mxu0 %v1868
      %2129 = vmatprep.subr.mxu0 %v1877
      %2130 = vmatpush1.msra.mxu0 %v1876
      %2131 = vmatprep.subr.mxu0 %v1885
      %2132 = vmatpush1.msra.mxu0 %v1884
      %2133 = vmatprep.subr.mxu0 %v1893
      %2134 = vmatpush1.msra.mxu0 %v1892
      %2135 = vmatprep.subr.mxu0 %v1901
      %2136 = vmatpush1.msra.mxu0 %v1900
      %2137 = vmatprep.subr.mxu0 0.0
      %2138 = vmatpush1.msra.mxu0 0.0
      %2139 = vmatprep.subr.mxu0 0.0
      %2140 = vmatpush1.msra.mxu0 0.0
      %2141 = vmatprep.subr.mxu0 0.0
      %2142 = vmatpush1.msra.mxu0 0.0
      %2143 = vmatprep.subr.mxu0 0.0
      %2144 = vmatpush1.msra.mxu0 0.0
      %2145 = vmatprep.subr.mxu0 0.0
      %2146 = vmatpush1.msra.mxu0 0.0
      %2147 = vmatprep.subr.mxu0 0.0
      %2148 = vmatpush1.msra.mxu0 0.0
      %2149 = vmatprep.subr.mxu0 0.0
      %2150 = vmatpush1.msra.mxu0 0.0
      %2151 = vmatprep.subr.mxu0 0.0
      %2152 = vmatpush1.msra.mxu0 0.0
      %2153 = vmatprep.subr.mxu0 0.0
      %2154 = vmatpush1.msra.mxu0 0.0
      %2155 = vmatprep.subr.mxu0 0.0
      %2156 = vmatpush1.msra.mxu0 0.0
      %2157 = vmatprep.subr.mxu0 0.0
      %2158 = vmatpush1.msra.mxu0 0.0
      %2159 = vmatprep.subr.mxu0 0.0
      %2160 = vmatpush1.msra.mxu0 0.0
      %2161 = vmatprep.subr.mxu0 0.0
      %2162 = vmatpush1.msra.mxu0 0.0
      %2163 = vmatprep.subr.mxu0 0.0
      %2164 = vmatpush1.msra.mxu0 0.0
      %2165 = vmatprep.subr.mxu0 0.0
      %2166 = vmatpush1.msra.mxu0 0.0
      %2167 = vmatprep.subr.mxu0 0.0
      %2168 = vmatpush1.msra.mxu0 0.0
      %2169 = vmatprep.subr.mxu0 0.0
      %2170 = vmatpush1.msra.mxu0 0.0
      %2171 = vmatprep.subr.mxu0 0.0
      %2172 = vmatpush1.msra.mxu0 0.0
      %2173 = vmatprep.subr.mxu0 0.0
      %2174 = vmatpush1.msra.mxu0 0.0
      %2175 = vmatprep.subr.mxu0 0.0
      %2176 = vmatpush1.msra.mxu0 0.0
      %2177 = vmatprep.subr.mxu0 0.0
      %2178 = vmatpush1.msra.mxu0 0.0
      %2179 = vmatprep.subr.mxu0 0.0
      %2180 = vmatpush1.msra.mxu0 0.0
      %2181 = vmatprep.subr.mxu0 0.0
      %2182 = vmatpush1.msra.mxu0 0.0
      %2183 = vmatprep.subr.mxu0 0.0
      %2184 = vmatpush1.msra.mxu0 0.0
      %2185 = vmatprep.subr.mxu0 0.0
      %2186 = vmatpush1.msra.mxu0 0.0
      %2187 = vmatprep.subr.mxu0 0.0
      %2188 = vmatpush1.msra.mxu0 0.0
      %2189 = vmatprep.mubr.f32.mxu0 0.0
      %2190 = vmatmul.mubr.f32.gmra.mrb[0].mxu0 %v1906
      %v2191 = vpop.f32.mrb[0].mxu0
      %v2192 = vadd.f32 0.0, %v2191
      %v2193 = vpop.f32.mrb[0].mxu0
      %v2194 = vadd.f32 0.0, %v2193
      %2195 = vmatprep.mubr.f32.mxu0 0.0
      %2196 = vmatmul.mubr.f32.gmra.mrb[0].mxu0 %v1909
      %v2197 = vpop.f32.mrb[0].mxu0
      %v2198 = vadd.f32 0.0, %v2197
      %v2199 = vpop.f32.mrb[0].mxu0
      %v2200 = vadd.f32 0.0, %v2199
      %2201 = vmatprep.mubr.f32.mxu0 0.0
      %2202 = vmatmul.mubr.f32.gmra.mrb[0].mxu0 %v1912
      %v2203 = vpop.f32.mrb[0].mxu0
      %v2204 = vadd.f32 0.0, %v2203
      %v2205 = vpop.f32.mrb[0].mxu0
      %v2206 = vadd.f32 0.0, %v2205
      %2207 = vmatprep.mubr.f32.mxu0 0.0
      %2208 = vmatmul.mubr.f32.gmra.mrb[0].mxu0 %v1915
      %v2209 = vpop.f32.mrb[0].mxu0
      %v2210 = vadd.f32 0.0, %v2209
      %v2211 = vpop.f32.mrb[0].mxu0
      %v2212 = vadd.f32 0.0, %v2211
      %2213 = vmatprep.mubr.f32.mxu0 0.0
      %2214 = vmatmul.mubr.f32.gmra.mrb[0].mxu0 %v1918
      %v2215 = vpop.f32.mrb[0].mxu0
      %v2216 = vadd.f32 0.0, %v2215
      %v2217 = vpop.f32.mrb[0].mxu0
      %v2218 = vadd.f32 0.0, %v2217
      %2219 = vmatprep.mubr.f32.mxu0 0.0
      %2220 = vmatmul.mubr.f32.gmra.mrb[0].mxu0 %v1921
      %v2221 = vpop.f32.mrb[0].mxu0
      %v2222 = vadd.f32 0.0, %v2221
      %v2223 = vpop.f32.mrb[0].mxu0
      %v2224 = vadd.f32 0.0, %v2223
      %2225 = vdwg.mxu0
      %2226 = vmatprep.subr.mxu0 %v1863
      %2227 = vmatpush1.msra.mxu0 %v1862
      %2228 = vmatprep.subr.mxu0 %v1871
      %2229 = vmatpush1.msra.mxu0 %v1870
      %2230 = vmatprep.subr.mxu0 %v1879
      %2231 = vmatpush1.msra.mxu0 %v1878
      %2232 = vmatprep.subr.mxu0 %v1887
      %2233 = vmatpush1.msra.mxu0 %v1886
      %2234 = vmatprep.subr.mxu0 %v1895
      %2235 = vmatpush1.msra.mxu0 %v1894
      %2236 = vmatprep.subr.mxu0 %v1903
      %2237 = vmatpush1.msra.mxu0 %v1902
      %2238 = vmatprep.subr.mxu0 0.0
      %2239 = vmatpush1.msra.mxu0 0.0
      %2240 = vmatprep.subr.mxu0 0.0
      %2241 = vmatpush1.msra.mxu0 0.0
      %2242 = vmatprep.subr.mxu0 0.0
      %2243 = vmatpush1.msra.mxu0 0.0
      %2244 = vmatprep.subr.mxu0 0.0
      %2245 = vmatpush1.msra.mxu0 0.0
      %2246 = vmatprep.subr.mxu0 0.0
      %2247 = vmatpush1.msra.mxu0 0.0
      %2248 = vmatprep.subr.mxu0 0.0
      %2249 = vmatpush1.msra.mxu0 0.0
      %2250 = vmatprep.subr.mxu0 0.0
      %2251 = vmatpush1.msra.mxu0 0.0
      %2252 = vmatprep.subr.mxu0 0.0
      %2253 = vmatpush1.msra.mxu0 0.0
      %2254 = vmatprep.subr.mxu0 0.0
      %2255 = vmatpush1.msra.mxu0 0.0
      %2256 = vmatprep.subr.mxu0 0.0
      %2257 = vmatpush1.msra.mxu0 0.0
      %2258 = vmatprep.subr.mxu0 0.0
      %2259 = vmatpush1.msra.mxu0 0.0
      %2260 = vmatprep.subr.mxu0 0.0
      %2261 = vmatpush1.msra.mxu0 0.0
      %2262 = vmatprep.subr.mxu0 0.0
      %2263 = vmatpush1.msra.mxu0 0.0
      %2264 = vmatprep.subr.mxu0 0.0
      %2265 = vmatpush1.msra.mxu0 0.0
      %2266 = vmatprep.subr.mxu0 0.0
      %2267 = vmatpush1.msra.mxu0 0.0
      %2268 = vmatprep.subr.mxu0 0.0
      %2269 = vmatpush1.msra.mxu0 0.0
      %2270 = vmatprep.subr.mxu0 0.0
      %2271 = vmatpush1.msra.mxu0 0.0
      %2272 = vmatprep.subr.mxu0 0.0
      %2273 = vmatpush1.msra.mxu0 0.0
      %2274 = vmatprep.subr.mxu0 0.0
      %2275 = vmatpush1.msra.mxu0 0.0
      %2276 = vmatprep.subr.mxu0 0.0
      %2277 = vmatpush1.msra.mxu0 0.0
      %2278 = vmatprep.subr.mxu0 0.0
      %2279 = vmatpush1.msra.mxu0 0.0
      %2280 = vmatprep.subr.mxu0 0.0
      %2281 = vmatpush1.msra.mxu0 0.0
      %2282 = vmatprep.subr.mxu0 0.0
      %2283 = vmatpush1.msra.mxu0 0.0
      %2284 = vmatprep.subr.mxu0 0.0
      %2285 = vmatpush1.msra.mxu0 0.0
      %2286 = vmatprep.subr.mxu0 0.0
      %2287 = vmatpush1.msra.mxu0 0.0
      %2288 = vmatprep.subr.mxu0 0.0
      %2289 = vmatpush1.msra.mxu0 0.0
      %2290 = vmatprep.mubr.f32.mxu0 0.0
      %2291 = vmatmul.mubr.f32.gmra.mrb[0].mxu0 %v1906
      %v2292 = vpop.f32.mrb[0].mxu0
      %v2293 = vadd.f32 0.0, %v2292
      %v2294 = vpop.f32.mrb[0].mxu0
      %v2295 = vadd.f32 0.0, %v2294
      %2296 = vmatprep.mubr.f32.mxu0 0.0
      %2297 = vmatmul.mubr.f32.gmra.mrb[0].mxu0 %v1909
      %v2298 = vpop.f32.mrb[0].mxu0
      %v2299 = vadd.f32 0.0, %v2298
      %v2300 = vpop.f32.mrb[0].mxu0
      %v2301 = vadd.f32 0.0, %v2300
      %2302 = vmatprep.mubr.f32.mxu0 0.0
      %2303 = vmatmul.mubr.f32.gmra.mrb[0].mxu0 %v1912
      %v2304 = vpop.f32.mrb[0].mxu0
      %v2305 = vadd.f32 0.0, %v2304
      %v2306 = vpop.f32.mrb[0].mxu0
      %v2307 = vadd.f32 0.0, %v2306
      %2308 = vmatprep.mubr.f32.mxu0 0.0
      %2309 = vmatmul.mubr.f32.gmra.mrb[0].mxu0 %v1915
      %v2310 = vpop.f32.mrb[0].mxu0
      %v2311 = vadd.f32 0.0, %v2310
      %v2312 = vpop.f32.mrb[0].mxu0
      %v2313 = vadd.f32 0.0, %v2312
      %2314 = vmatprep.mubr.f32.mxu0 0.0
      %2315 = vmatmul.mubr.f32.gmra.mrb[0].mxu0 %v1918
      %v2316 = vpop.f32.mrb[0].mxu0
      %v2317 = vadd.f32 0.0, %v2316
      %v2318 = vpop.f32.mrb[0].mxu0
      %v2319 = vadd.f32 0.0, %v2318
      %2320 = vmatprep.mubr.f32.mxu0 0.0
      %2321 = vmatmul.mubr.f32.gmra.mrb[0].mxu0 %v1921
      %v2322 = vpop.f32.mrb[0].mxu0
      %v2323 = vadd.f32 0.0, %v2322
      %v2324 = vpop.f32.mrb[0].mxu0
      %v2325 = vadd.f32 0.0, %v2324
      %2326 = vdwg.mxu0
      %2327 = vrot.lane.b32.xlu0 %v1990, 32
      %v2328 = vpop.permute.xlu0 %2327
      %2329 = vrot.lane.b32.xlu0 %v1996, 32
      %v2330 = vpop.permute.xlu0 %2329
      %2331 = vrot.lane.b32.xlu0 %v1992, 32
      %v2332 = vpop.permute.xlu0 %2331
      %2333 = vrot.lane.b32.xlu0 %v1998, 32
      %v2334 = vpop.permute.xlu0 %2333
      %2335 = vrot.lane.b32.xlu0 %v2091, 32
      %v2336 = vpop.permute.xlu0 %2335
      %2337 = vrot.lane.b32.xlu0 %v2097, 32
      %v2338 = vpop.permute.xlu0 %2337
      %2339 = vrot.lane.b32.xlu0 %v2093, 32
      %v2340 = vpop.permute.xlu0 %2339
      %2341 = vrot.lane.b32.xlu0 %v2099, 32
      %v2342 = vpop.permute.xlu0 %2341
      %2343 = vrot.lane.b32.xlu0 %v2192, 32
      %v2344 = vpop.permute.xlu0 %2343
      %2345 = vrot.lane.b32.xlu0 %v2198, 32
      %v2346 = vpop.permute.xlu0 %2345
      %2347 = vrot.lane.b32.xlu0 %v2194, 32
      %v2348 = vpop.permute.xlu0 %2347
      %2349 = vrot.lane.b32.xlu0 %v2200, 32
      %v2350 = vpop.permute.xlu0 %2349
      %2351 = vrot.lane.b32.xlu0 %v2293, 32
      %v2352 = vpop.permute.xlu0 %2351
      %2353 = vrot.lane.b32.xlu0 %v2299, 32
      %v2354 = vpop.permute.xlu0 %2353
      %2355 = vrot.lane.b32.xlu0 %v2295, 32
      %v2356 = vpop.permute.xlu0 %2355
      %2357 = vrot.lane.b32.xlu0 %v2301, 32
      %v2358 = vpop.permute.xlu0 %2357
      %vm2359 = vcmp.lt.s32.totalorder %v833, 32
      %v2360 = vsel %vm2359, %v2352, %v2356
      %v2361 = vsel %vm2359, %v2354, %v2358
      %v2362 = vsel %vm2359, %v2348, %v2352
      %v2363 = vsel %vm2359, %v2350, %v2354
      %v2364 = vsel %vm2359, %v2344, %v2348
      %v2365 = vsel %vm2359, %v2346, %v2350
      %v2366 = vsel %vm2359, %v2340, %v2344
      %v2367 = vsel %vm2359, %v2342, %v2346
      %v2368 = vsel %vm2359, %v2336, %v2340
      %v2369 = vsel %vm2359, %v2338, %v2342
      %v2370 = vsel %vm2359, %v2332, %v2336
      %v2371 = vsel %vm2359, %v2334, %v2338
      %v2372 = vsel %vm2359, %v2328, %v2332
      %v2373 = vsel %vm2359, %v2330, %v2334
      %v2374 = vsel %vm2359, %v2356, %v2328
      %v2375 = vsel %vm2359, %v2358, %v2330
      %v2376 = vsel %vm953, 1, 0
      %v2377 = vsel %vm954, 1, 0
      %v2378 = vsel %vm955, 1, 0
      %v2379 = vsel %vm956, 1, 0
      %v2380 = vsel %vm957, 1, 0
      %v2381 = vsel %vm958, 1, 0
      %v2382 = vsel %vm959, 1, 0
      %v2383 = vsel %vm960, 1, 0
      %vm2384 = vcmp.eq.s32.totalorder %v2376, 1
      %vm2385 = vcmp.eq.s32.totalorder %v2377, 1
      %vm2386 = vcmp.eq.s32.totalorder %v2378, 1
      %vm2387 = vcmp.eq.s32.totalorder %v2379, 1
      %vm2388 = vcmp.eq.s32.totalorder %v2380, 1
      %vm2389 = vcmp.eq.s32.totalorder %v2381, 1
      %vm2390 = vcmp.eq.s32.totalorder %v2382, 1
      %vm2391 = vcmp.eq.s32.totalorder %v2383, 1
      %v2392 = vsel %vm2384, %v2374, 0.0
      %v2393 = vsel %vm2385, %v2372, 0.0
      %v2394 = vsel %vm2386, %v2370, 0.0
      %v2395 = vsel %vm2387, %v2368, 0.0
      %v2396 = vsel %vm2388, %v2366, 0.0
      %v2397 = vsel %vm2389, %v2364, 0.0
      %v2398 = vsel %vm2390, %v2362, 0.0
      %v2399 = vsel %vm2391, %v2360, 0.0
      %v2400 = vsel %vm2384, %v2375, 0.0
      %v2401 = vsel %vm2385, %v2373, 0.0
      %v2402 = vsel %vm2386, %v2371, 0.0
      %v2403 = vsel %vm2387, %v2369, 0.0
      %v2404 = vsel %vm2388, %v2367, 0.0
      %v2405 = vsel %vm2389, %v2365, 0.0
      %v2406 = vsel %vm2390, %v2363, 0.0
      %v2407 = vsel %vm2391, %v2361, 0.0
      %2408 = vrot.lane.b32.xlu0 %v2014, 96
      %v2409 = vpop.permute.xlu0 %2408
      %2410 = vrot.lane.b32.xlu0 %v2020, 96
      %v2411 = vpop.permute.xlu0 %2410
      %2412 = vrot.lane.b32.xlu0 %v2016, 96
      %v2413 = vpop.permute.xlu0 %2412
      %2414 = vrot.lane.b32.xlu0 %v2022, 96
      %v2415 = vpop.permute.xlu0 %2414
      %2416 = vrot.lane.b32.xlu0 %v2115, 96
      %v2417 = vpop.permute.xlu0 %2416
      %2418 = vrot.lane.b32.xlu0 %v2121, 96
      %v2419 = vpop.permute.xlu0 %2418
      %2420 = vrot.lane.b32.xlu0 %v2117, 96
      %v2421 = vpop.permute.xlu0 %2420
      %2422 = vrot.lane.b32.xlu0 %v2123, 96
      %v2423 = vpop.permute.xlu0 %2422
      %2424 = vrot.lane.b32.xlu0 %v2216, 96
      %v2425 = vpop.permute.xlu0 %2424
      %2426 = vrot.lane.b32.xlu0 %v2222, 96
      %v2427 = vpop.permute.xlu0 %2426
      %2428 = vrot.lane.b32.xlu0 %v2218, 96
      %v2429 = vpop.permute.xlu0 %2428
      %2430 = vrot.lane.b32.xlu0 %v2224, 96
      %v2431 = vpop.permute.xlu0 %2430
      %2432 = vrot.lane.b32.xlu0 %v2317, 96
      %v2433 = vpop.permute.xlu0 %2432
      %2434 = vrot.lane.b32.xlu0 %v2323, 96
      %v2435 = vpop.permute.xlu0 %2434
      %2436 = vrot.lane.b32.xlu0 %v2319, 96
      %v2437 = vpop.permute.xlu0 %2436
      %2438 = vrot.lane.b32.xlu0 %v2325, 96
      %v2439 = vpop.permute.xlu0 %2438
      %vm2440 = vcmp.lt.s32.totalorder %v833, 96
      %v2441 = vsel %vm2440, %v2433, %v2437
      %v2442 = vsel %vm2440, %v2435, %v2439
      %v2443 = vsel %vm2440, %v2429, %v2433
      %v2444 = vsel %vm2440, %v2431, %v2435
      %v2445 = vsel %vm2440, %v2425, %v2429
      %v2446 = vsel %vm2440, %v2427, %v2431
      %v2447 = vsel %vm2440, %v2421, %v2425
      %v2448 = vsel %vm2440, %v2423, %v2427
      %v2449 = vsel %vm2440, %v2417, %v2421
      %v2450 = vsel %vm2440, %v2419, %v2423
      %v2451 = vsel %vm2440, %v2413, %v2417
      %v2452 = vsel %vm2440, %v2415, %v2419
      %v2453 = vsel %vm2440, %v2409, %v2413
      %v2454 = vsel %vm2440, %v2411, %v2415
      %v2455 = vsel %vm2440, %v2437, %v2409
      %v2456 = vsel %vm2440, %v2439, %v2411
      %v2457 = vsel %vm961, 1, 0
      %v2458 = vsel %vm962, 1, 0
      %v2459 = vsel %vm963, 1, 0
      %v2460 = vsel %vm964, 1, 0
      %v2461 = vsel %vm965, 1, 0
      %v2462 = vsel %vm966, 1, 0
      %v2463 = vsel %vm967, 1, 0
      %v2464 = vsel %vm968, 1, 0
      %vm2465 = vcmp.eq.s32.totalorder %v2457, 1
      %vm2466 = vcmp.eq.s32.totalorder %v2458, 1
      %vm2467 = vcmp.eq.s32.totalorder %v2459, 1
      %vm2468 = vcmp.eq.s32.totalorder %v2460, 1
      %vm2469 = vcmp.eq.s32.totalorder %v2461, 1
      %vm2470 = vcmp.eq.s32.totalorder %v2462, 1
      %vm2471 = vcmp.eq.s32.totalorder %v2463, 1
      %vm2472 = vcmp.eq.s32.totalorder %v2464, 1
      %v2473 = vsel %vm2465, %v2453, 0.0
      %v2474 = vsel %vm2466, %v2451, 0.0
      %v2475 = vsel %vm2467, %v2449, 0.0
      %v2476 = vsel %vm2468, %v2447, 0.0
      %v2477 = vsel %vm2469, %v2445, 0.0
      %v2478 = vsel %vm2470, %v2443, 0.0
      %v2479 = vsel %vm2471, %v2441, 0.0
      %v2480 = vsel %vm2472, %v2455, 0.0
      %v2481 = vsel %vm2465, %v2454, 0.0
      %v2482 = vsel %vm2466, %v2452, 0.0
      %v2483 = vsel %vm2467, %v2450, 0.0
      %v2484 = vsel %vm2468, %v2448, 0.0
      %v2485 = vsel %vm2469, %v2446, 0.0
      %v2486 = vsel %vm2470, %v2444, 0.0
      %v2487 = vsel %vm2471, %v2442, 0.0
      %v2488 = vsel %vm2472, %v2456, 0.0
      %v2489 = vadd.f32 %v2392, %v2002
      %v2490 = vadd.f32 %v2393, %v2004
      %v2491 = vadd.f32 %v2394, %v2103
      %v2492 = vadd.f32 %v2395, %v2105
      %v2493 = vadd.f32 %v2396, %v2204
      %v2494 = vadd.f32 %v2397, %v2206
      %v2495 = vadd.f32 %v2398, %v2305
      %v2496 = vadd.f32 %v2399, %v2307
      %v2497 = vadd.f32 %v2400, %v2008
      %v2498 = vadd.f32 %v2401, %v2010
      %v2499 = vadd.f32 %v2402, %v2109
      %v2500 = vadd.f32 %v2403, %v2111
      %v2501 = vadd.f32 %v2404, %v2210
      %v2502 = vadd.f32 %v2405, %v2212
      %v2503 = vadd.f32 %v2406, %v2311
      %v2504 = vadd.f32 %v2407, %v2313
      %v2505 = vadd.f32 %v2489, %v2473
      %v2506 = vadd.f32 %v2490, %v2474
      %v2507 = vadd.f32 %v2491, %v2475
      %v2508 = vadd.f32 %v2492, %v2476
      %v2509 = vadd.f32 %v2493, %v2477
      %v2510 = vadd.f32 %v2494, %v2478
      %v2511 = vadd.f32 %v2495, %v2479
      %v2512 = vadd.f32 %v2496, %v2480
      %v2513 = vadd.f32 %v2497, %v2481
      %v2514 = vadd.f32 %v2498, %v2482
      %v2515 = vadd.f32 %v2499, %v2483
      %v2516 = vadd.f32 %v2500, %v2484
      %v2517 = vadd.f32 %v2501, %v2485
      %v2518 = vadd.f32 %v2502, %v2486
      %v2519 = vadd.f32 %v2503, %v2487
      %v2520 = vadd.f32 %v2504, %v2488
      %v2521 = vld [vmem:[%s12] sm:$0xff]
      %v2522 = vld [vmem:[%s12 + $0x8] sm:$0xff]
      %2524 = vset.pattern.permute.xlu0 0
      %2525 = vperm.xlu0 %2524, %v2521
      %v2526 = vpop.permute.xlu0 %2525
      %2529 = vset.pattern.permute.xlu0 0
      %2530 = vperm.xlu0 %2529, %v2522
      %v2531 = vpop.permute.xlu0 %2530
      %v2533 = vadd.f32 %v2505, %v2526
      %v2534 = vadd.f32 %v2506, %v2526
      %v2535 = vadd.f32 %v2507, %v2526
      %v2536 = vadd.f32 %v2508, %v2526
      %v2537 = vadd.f32 %v2509, %v2526
      %v2538 = vadd.f32 %v2510, %v2526
      %v2539 = vadd.f32 %v2511, %v2526
      %v2540 = vadd.f32 %v2512, %v2526
      %v2541 = vadd.f32 %v2513, %v2531
      %v2542 = vadd.f32 %v2514, %v2531
      %v2543 = vadd.f32 %v2515, %v2531
      %v2544 = vadd.f32 %v2516, %v2531
      %v2545 = vadd.f32 %v2517, %v2531
      %v2546 = vadd.f32 %v2518, %v2531
      %v2547 = vadd.f32 %v2519, %v2531
      %v2548 = vadd.f32 %v2520, %v2531
      %v2549 = vadd.f32 %v1564, %v2533
      %v2550 = vadd.f32 %v1565, %v2534
      %v2551 = vadd.f32 %v1566, %v2535
      %v2552 = vadd.f32 %v1567, %v2536
      %v2553 = vadd.f32 %v1568, %v2537
      %v2554 = vadd.f32 %v1569, %v2538
      %v2555 = vadd.f32 %v1570, %v2539
      %v2556 = vadd.f32 %v1571, %v2540
      %v2557 = vadd.f32 %v1572, %v2541
      %v2558 = vadd.f32 %v1573, %v2542
      %v2559 = vadd.f32 %v1574, %v2543
      %v2560 = vadd.f32 %v1575, %v2544
      %v2561 = vadd.f32 %v1576, %v2545
      %v2562 = vadd.f32 %v1577, %v2546
      %v2563 = vadd.f32 %v1578, %v2547
      %v2564 = vadd.f32 %v1579, %v2548
      %2565 = vst [vmem:[#allocation2] sm:$0xff] %v2549
      %2566 = vst [vmem:[#allocation2 + $0x8] sm:$0xff] %v2550
      %2567 = vst [vmem:[#allocation2 + $0x10] sm:$0xff] %v2551
      %2568 = vst [vmem:[#allocation2 + $0x18] sm:$0xff] %v2552
      %2569 = vst [vmem:[#allocation2 + $0x20] sm:$0xff] %v2553
      %2570 = vst [vmem:[#allocation2 + $0x28] sm:$0xff] %v2554
      %2571 = vst [vmem:[#allocation2 + $0x30] sm:$0xff] %v2555
      %2572 = vst [vmem:[#allocation2 + $0x38] sm:$0xff] %v2556
      %2573 = vst [vmem:[#allocation2 + $0x40] sm:$0xff] %v2557
      %2574 = vst [vmem:[#allocation2 + $0x48] sm:$0xff] %v2558
      %2575 = vst [vmem:[#allocation2 + $0x50] sm:$0xff] %v2559
      %2576 = vst [vmem:[#allocation2 + $0x58] sm:$0xff] %v2560
      %2577 = vst [vmem:[#allocation2 + $0x60] sm:$0xff] %v2561
      %2578 = vst [vmem:[#allocation2 + $0x68] sm:$0xff] %v2562
      %2579 = vst [vmem:[#allocation2 + $0x70] sm:$0xff] %v2563
      %2580 = vst [vmem:[#allocation2 + $0x78] sm:$0xff] %v2564
      %v2581 = vld [vmem:[#allocation2] sm:$0xff]
      %v2582 = vld [vmem:[#allocation2 + $0x8] sm:$0xff]
      %v2583 = vld [vmem:[#allocation2 + $0x10] sm:$0xff]
      %v2584 = vld [vmem:[#allocation2 + $0x18] sm:$0xff]
      %v2585 = vld [vmem:[#allocation2 + $0x20] sm:$0xff]
      %v2586 = vld [vmem:[#allocation2 + $0x28] sm:$0xff]
      %v2587 = vld [vmem:[#allocation2 + $0x30] sm:$0xff]
      %v2588 = vld [vmem:[#allocation2 + $0x38] sm:$0xff]
      %v2589 = vld [vmem:[#allocation2 + $0x40] sm:$0xff]
      %v2590 = vld [vmem:[#allocation2 + $0x48] sm:$0xff]
      %v2591 = vld [vmem:[#allocation2 + $0x50] sm:$0xff]
      %v2592 = vld [vmem:[#allocation2 + $0x58] sm:$0xff]
      %v2593 = vld [vmem:[#allocation2 + $0x60] sm:$0xff]
      %v2594 = vld [vmem:[#allocation2 + $0x68] sm:$0xff]
      %v2595 = vld [vmem:[#allocation2 + $0x70] sm:$0xff]
      %v2596 = vld [vmem:[#allocation2 + $0x78] sm:$0xff]
      %v2597 = vld [vmem:[%s4] sm:$0xff]
      %v2598 = vld [vmem:[%s4 + $0x8] sm:$0xff]
      %vm2599 = vcmp.ge.f32.partialorder %v2581, 0.0
      %vm2600 = vcmp.ge.f32.partialorder %v2582, 0.0
      %vm2601 = vcmp.ge.f32.partialorder %v2583, 0.0
      %vm2602 = vcmp.ge.f32.partialorder %v2584, 0.0
      %vm2603 = vcmp.ge.f32.partialorder %v2585, 0.0
      %vm2604 = vcmp.ge.f32.partialorder %v2586, 0.0
      %vm2605 = vcmp.ge.f32.partialorder %v2587, 0.0
      %vm2606 = vcmp.ge.f32.partialorder %v2588, 0.0
      %vm2607 = vcmp.ge.f32.partialorder %v2589, 0.0
      %vm2608 = vcmp.ge.f32.partialorder %v2590, 0.0
      %vm2609 = vcmp.ge.f32.partialorder %v2591, 0.0
      %vm2610 = vcmp.ge.f32.partialorder %v2592, 0.0
      %vm2611 = vcmp.ge.f32.partialorder %v2593, 0.0
      %vm2612 = vcmp.ge.f32.partialorder %v2594, 0.0
      %vm2613 = vcmp.ge.f32.partialorder %v2595, 0.0
      %vm2614 = vcmp.ge.f32.partialorder %v2596, 0.0
      %2616 = vset.pattern.permute.xlu0 0
      %2617 = vperm.xlu0 %2616, %v2597
      %v2618 = vpop.permute.xlu0 %2617
      %2621 = vset.pattern.permute.xlu0 0
      %2622 = vperm.xlu0 %2621, %v2598
      %v2623 = vpop.permute.xlu0 %2622
      %v2625 = vmul.f32 %v2581, %v2618
      %v2626 = vmul.f32 %v2582, %v2618
      %v2627 = vmul.f32 %v2583, %v2618
      %v2628 = vmul.f32 %v2584, %v2618
      %v2629 = vmul.f32 %v2585, %v2618
      %v2630 = vmul.f32 %v2586, %v2618
      %v2631 = vmul.f32 %v2587, %v2618
      %v2632 = vmul.f32 %v2588, %v2618
      %v2633 = vmul.f32 %v2589, %v2623
      %v2634 = vmul.f32 %v2590, %v2623
      %v2635 = vmul.f32 %v2591, %v2623
      %v2636 = vmul.f32 %v2592, %v2623
      %v2637 = vmul.f32 %v2593, %v2623
      %v2638 = vmul.f32 %v2594, %v2623
      %v2639 = vmul.f32 %v2595, %v2623
      %v2640 = vmul.f32 %v2596, %v2623
      %v2641 = vsel %vm2599, %v2581, %v2625
      %v2642 = vsel %vm2600, %v2582, %v2626
      %v2643 = vsel %vm2601, %v2583, %v2627
      %v2644 = vsel %vm2602, %v2584, %v2628
      %v2645 = vsel %vm2603, %v2585, %v2629
      %v2646 = vsel %vm2604, %v2586, %v2630
      %v2647 = vsel %vm2605, %v2587, %v2631
      %v2648 = vsel %vm2606, %v2588, %v2632
      %v2649 = vsel %vm2607, %v2589, %v2633
      %v2650 = vsel %vm2608, %v2590, %v2634
      %v2651 = vsel %vm2609, %v2591, %v2635
      %v2652 = vsel %vm2610, %v2592, %v2636
      %v2653 = vsel %vm2611, %v2593, %v2637
      %v2654 = vsel %vm2612, %v2594, %v2638
      %v2655 = vsel %vm2613, %v2595, %v2639
      %v2656 = vsel %vm2614, %v2596, %v2640
      %2657 = vst [vmem:[#allocation3] sm:$0xff] %v2641
      %2658 = vst [vmem:[#allocation3 + $0x8] sm:$0xff] %v2642
      %2659 = vst [vmem:[#allocation3 + $0x10] sm:$0xff] %v2643
      %2660 = vst [vmem:[#allocation3 + $0x18] sm:$0xff] %v2644
      %2661 = vst [vmem:[#allocation3 + $0x20] sm:$0xff] %v2645
      %2662 = vst [vmem:[#allocation3 + $0x28] sm:$0xff] %v2646
      %2663 = vst [vmem:[#allocation3 + $0x30] sm:$0xff] %v2647
      %2664 = vst [vmem:[#allocation3 + $0x38] sm:$0xff] %v2648
      %2665 = vst [vmem:[#allocation3 + $0x40] sm:$0xff] %v2649
      %2666 = vst [vmem:[#allocation3 + $0x48] sm:$0xff] %v2650
      %2667 = vst [vmem:[#allocation3 + $0x50] sm:$0xff] %v2651
      %2668 = vst [vmem:[#allocation3 + $0x58] sm:$0xff] %v2652
      %2669 = vst [vmem:[#allocation3 + $0x60] sm:$0xff] %v2653
      %2670 = vst [vmem:[#allocation3 + $0x68] sm:$0xff] %v2654
      %2671 = vst [vmem:[#allocation3 + $0x70] sm:$0xff] %v2655
      %2672 = vst [vmem:[#allocation3 + $0x78] sm:$0xff] %v2656
      %v2673 = vld [vmem:[#allocation4] sm:$0xff]
      %v2674 = vld [vmem:[#allocation4 + $0x8] sm:$0xff]
      %v2675 = vld [vmem:[#allocation4 + $0x10] sm:$0xff]
      %v2676 = vld [vmem:[#allocation4 + $0x18] sm:$0xff]
      %v2677 = vld [vmem:[#allocation4 + $0x20] sm:$0xff]
      %v2678 = vld [vmem:[#allocation4 + $0x28] sm:$0xff]
      %v2679 = vld [vmem:[#allocation4 + $0x30] sm:$0xff]
      %v2680 = vld [vmem:[#allocation4 + $0x38] sm:$0xff]
      %v2681 = vld [vmem:[%s4 + $0x10] sm:$0xff]
      %vm2682 = vcmp.ge.f32.partialorder %v2673, 0.0
      %vm2683 = vcmp.ge.f32.partialorder %v2674, 0.0
      %vm2684 = vcmp.ge.f32.partialorder %v2675, 0.0
      %vm2685 = vcmp.ge.f32.partialorder %v2676, 0.0
      %vm2686 = vcmp.ge.f32.partialorder %v2677, 0.0
      %vm2687 = vcmp.ge.f32.partialorder %v2678, 0.0
      %vm2688 = vcmp.ge.f32.partialorder %v2679, 0.0
      %vm2689 = vcmp.ge.f32.partialorder %v2680, 0.0
      %2691 = vset.pattern.permute.xlu0 0
      %2692 = vperm.xlu0 %2691, %v2681
      %v2693 = vpop.permute.xlu0 %2692
      %v2695 = vmul.f32 %v2673, %v2693
      %v2696 = vmul.f32 %v2674, %v2693
      %v2697 = vmul.f32 %v2675, %v2693
      %v2698 = vmul.f32 %v2676, %v2693
      %v2699 = vmul.f32 %v2677, %v2693
      %v2700 = vmul.f32 %v2678, %v2693
      %v2701 = vmul.f32 %v2679, %v2693
      %v2702 = vmul.f32 %v2680, %v2693
      %v2703 = vsel %vm2682, %v2673, %v2695
      %v2704 = vsel %vm2683, %v2674, %v2696
      %v2705 = vsel %vm2684, %v2675, %v2697
      %v2706 = vsel %vm2685, %v2676, %v2698
      %v2707 = vsel %vm2686, %v2677, %v2699
      %v2708 = vsel %vm2687, %v2678, %v2700
      %v2709 = vsel %vm2688, %v2679, %v2701
      %v2710 = vsel %vm2689, %v2680, %v2702
      %2711 = vst [vmem:[#allocation3 + $0x80] sm:$0xff] %v2703
      %2712 = vst [vmem:[#allocation3 + $0x88] sm:$0xff] %v2704
      %2713 = vst [vmem:[#allocation3 + $0x90] sm:$0xff] %v2705
      %2714 = vst [vmem:[#allocation3 + $0x98] sm:$0xff] %v2706
      %2715 = vst [vmem:[#allocation3 + $0xa0] sm:$0xff] %v2707
      %2716 = vst [vmem:[#allocation3 + $0xa8] sm:$0xff] %v2708
      %2717 = vst [vmem:[#allocation3 + $0xb0] sm:$0xff] %v2709
      %2718 = vst [vmem:[#allocation3 + $0xb8] sm:$0xff] %v2710
      %v2719 = vld [vmem:[%s5] sm:$0xff]
      %v2720 = vld [vmem:[%s5 + $0x8] sm:$0xff]
      %v2721 = vld [vmem:[%s5 + $0x10] sm:$0xff]
      %v2722 = vld [vmem:[%s5 + $0x18] sm:$0xff]
      %v2723 = vld [vmem:[#allocation3] sm:$0xff]
      %v2724 = vld [vmem:[#allocation3 + $0x8] sm:$0xff]
      %v2725 = vld [vmem:[#allocation3 + $0x10] sm:$0xff]
      %v2726 = vld [vmem:[#allocation3 + $0x18] sm:$0xff]
      %v2727 = vld [vmem:[#allocation3 + $0x20] sm:$0xff]
      %v2728 = vld [vmem:[#allocation3 + $0x28] sm:$0xff]
      %v2729 = vld [vmem:[#allocation3 + $0x30] sm:$0xff]
      %v2730 = vld [vmem:[#allocation3 + $0x38] sm:$0xff]
      %v2731 = vld [vmem:[#allocation3 + $0x40] sm:$0xff]
      %v2732 = vld [vmem:[#allocation3 + $0x48] sm:$0xff]
      %v2733 = vld [vmem:[#allocation3 + $0x50] sm:$0xff]
      %v2734 = vld [vmem:[#allocation3 + $0x58] sm:$0xff]
      %v2735 = vld [vmem:[#allocation3 + $0x60] sm:$0xff]
      %v2736 = vld [vmem:[#allocation3 + $0x68] sm:$0xff]
      %v2737 = vld [vmem:[#allocation3 + $0x70] sm:$0xff]
      %v2738 = vld [vmem:[#allocation3 + $0x78] sm:$0xff]
      %v2739 = vld [vmem:[#allocation3 + $0x80] sm:$0xff]
      %v2740 = vld [vmem:[#allocation3 + $0x88] sm:$0xff]
      %v2741 = vld [vmem:[#allocation3 + $0x90] sm:$0xff]
      %v2742 = vld [vmem:[#allocation3 + $0x98] sm:$0xff]
      %v2743 = vld [vmem:[#allocation3 + $0xa0] sm:$0xff]
      %v2744 = vld [vmem:[#allocation3 + $0xa8] sm:$0xff]
      %v2745 = vld [vmem:[#allocation3 + $0xb0] sm:$0xff]
      %v2746 = vld [vmem:[#allocation3 + $0xb8] sm:$0xff]
      %v2747 = vld [vmem:[%s6] sm:$0xff]
      %v2748 = vld [vmem:[%s6 + $0x8] sm:$0xff]
      %v2749 = vld [vmem:[%s6 + $0x10] sm:$0xff]
      %v2750 = vld [vmem:[%s6 + $0x18] sm:$0xff]
      %2752 = vset.pattern.permute.xlu0 0
      %2753 = vperm.xlu0 %2752, %v2747
      %v2754 = vpop.permute.xlu0 %2753
      %2757 = vset.pattern.permute.xlu0 0
      %2758 = vperm.xlu0 %2757, %v2748
      %v2759 = vpop.permute.xlu0 %2758
      %2762 = vset.pattern.permute.xlu0 0
      %2763 = vperm.xlu0 %2762, %v2749
      %v2764 = vpop.permute.xlu0 %2763
      %2767 = vset.pattern.permute.xlu0 0
      %2768 = vperm.xlu0 %2767, %v2750
      %v2769 = vpop.permute.xlu0 %2768
      %vm2771 = vcmask 195584
      %v2773 = vsel %vm2771, %v2719, 0
      %v2776 = vsel %vm2771, %v2720, 0
      %v2779 = vsel %vm2771, %v2721, 0
      %v2782 = vsel %vm2771, %v2722, 0
      %2784 = vmatprep.subr.mxu0 %v2724
      %2785 = vmatpush1.msra.mxu0 %v2723
      %2786 = vmatprep.subr.mxu0 %v2732
      %2787 = vmatpush1.msra.mxu0 %v2731
      %2788 = vmatprep.subr.mxu0 %v2740
      %2789 = vmatpush1.msra.mxu0 %v2739
      %2790 = vmatprep.subr.mxu0 0.0
      %2791 = vmatpush1.msra.mxu0 0.0
      %2792 = vmatprep.subr.mxu0 0.0
      %2793 = vmatpush1.msra.mxu0 0.0
      %2794 = vmatprep.subr.mxu0 0.0
      %2795 = vmatpush1.msra.mxu0 0.0
      %2796 = vmatprep.subr.mxu0 0.0
      %2797 = vmatpush1.msra.mxu0 0.0
      %2798 = vmatprep.subr.mxu0 0.0
      %2799 = vmatpush1.msra.mxu0 0.0
      %2800 = vmatprep.subr.mxu0 0.0
      %2801 = vmatpush1.msra.mxu0 0.0
      %2802 = vmatprep.subr.mxu0 0.0
      %2803 = vmatpush1.msra.mxu0 0.0
      %2804 = vmatprep.subr.mxu0 0.0
      %2805 = vmatpush1.msra.mxu0 0.0
      %2806 = vmatprep.subr.mxu0 0.0
      %2807 = vmatpush1.msra.mxu0 0.0
      %2808 = vmatprep.subr.mxu0 0.0
      %2809 = vmatpush1.msra.mxu0 0.0
      %2810 = vmatprep.subr.mxu0 0.0
      %2811 = vmatpush1.msra.mxu0 0.0
      %2812 = vmatprep.subr.mxu0 0.0
      %2813 = vmatpush1.msra.mxu0 0.0
      %2814 = vmatprep.subr.mxu0 0.0
      %2815 = vmatpush1.msra.mxu0 0.0
      %2816 = vmatprep.subr.mxu0 0.0
      %2817 = vmatpush1.msra.mxu0 0.0
      %2818 = vmatprep.subr.mxu0 0.0
      %2819 = vmatpush1.msra.mxu0 0.0
      %2820 = vmatprep.subr.mxu0 0.0
      %2821 = vmatpush1.msra.mxu0 0.0
      %2822 = vmatprep.subr.mxu0 0.0
      %2823 = vmatpush1.msra.mxu0 0.0
      %2824 = vmatprep.subr.mxu0 0.0
      %2825 = vmatpush1.msra.mxu0 0.0
      %2826 = vmatprep.subr.mxu0 0.0
      %2827 = vmatpush1.msra.mxu0 0.0
      %2828 = vmatprep.subr.mxu0 0.0
      %2829 = vmatpush1.msra.mxu0 0.0
      %2830 = vmatprep.subr.mxu0 0.0
      %2831 = vmatpush1.msra.mxu0 0.0
      %2832 = vmatprep.subr.mxu0 0.0
      %2833 = vmatpush1.msra.mxu0 0.0
      %2834 = vmatprep.subr.mxu0 0.0
      %2835 = vmatpush1.msra.mxu0 0.0
      %2836 = vmatprep.subr.mxu0 0.0
      %2837 = vmatpush1.msra.mxu0 0.0
      %2838 = vmatprep.subr.mxu0 0.0
      %2839 = vmatpush1.msra.mxu0 0.0
      %2840 = vmatprep.subr.mxu0 0.0
      %2841 = vmatpush1.msra.mxu0 0.0
      %2842 = vmatprep.subr.mxu0 0.0
      %2843 = vmatpush1.msra.mxu0 0.0
      %2844 = vmatprep.subr.mxu0 0.0
      %2845 = vmatpush1.msra.mxu0 0.0
      %2846 = vmatprep.subr.mxu0 0.0
      %2847 = vmatpush1.msra.mxu0 0.0
      %2848 = vmatprep.mubr.f32.mxu0 0.0
      %2849 = vmatmul.mubr.f32.gmra.mrb[0].mxu0 %v2773
      %v2850 = vpop.f32.mrb[0].mxu0
      %v2851 = vadd.f32 %v2754, %v2850
      %v2852 = vpop.f32.mrb[0].mxu0
      %v2853 = vadd.f32 %v2754, %v2852
      %2854 = vmatprep.mubr.f32.mxu0 0.0
      %2855 = vmatmul.mubr.f32.gmra.mrb[0].mxu0 %v2776
      %v2856 = vpop.f32.mrb[0].mxu0
      %v2857 = vadd.f32 %v2759, %v2856
      %v2858 = vpop.f32.mrb[0].mxu0
      %v2859 = vadd.f32 %v2759, %v2858
      %2860 = vmatprep.mubr.f32.mxu0 0.0
      %2861 = vmatmul.mubr.f32.gmra.mrb[0].mxu0 %v2779
      %v2862 = vpop.f32.mrb[0].mxu0
      %v2863 = vadd.f32 %v2764, %v2862
      %v2864 = vpop.f32.mrb[0].mxu0
      %v2865 = vadd.f32 %v2764, %v2864
      %2866 = vmatprep.mubr.f32.mxu0 0.0
      %2867 = vmatmul.mubr.f32.gmra.mrb[0].mxu0 %v2782
      %v2868 = vpop.f32.mrb[0].mxu0
      %v2869 = vadd.f32 %v2769, %v2868
      %v2870 = vpop.f32.mrb[0].mxu0
      %v2871 = vadd.f32 %v2769, %v2870
      %2872 = vdwg.mxu0
      %2873 = vmatprep.subr.mxu0 %v2726
      %2874 = vmatpush1.msra.mxu0 %v2725
      %2875 = vmatprep.subr.mxu0 %v2734
      %2876 = vmatpush1.msra.mxu0 %v2733
      %2877 = vmatprep.subr.mxu0 %v2742
      %2878 = vmatpush1.msra.mxu0 %v2741
      %2879 = vmatprep.subr.mxu0 0.0
      %2880 = vmatpush1.msra.mxu0 0.0
      %2881 = vmatprep.subr.mxu0 0.0
      %2882 = vmatpush1.msra.mxu0 0.0
      %2883 = vmatprep.subr.mxu0 0.0
      %2884 = vmatpush1.msra.mxu0 0.0
      %2885 = vmatprep.subr.mxu0 0.0
      %2886 = vmatpush1.msra.mxu0 0.0
      %2887 = vmatprep.subr.mxu0 0.0
      %2888 = vmatpush1.msra.mxu0 0.0
      %2889 = vmatprep.subr.mxu0 0.0
      %2890 = vmatpush1.msra.mxu0 0.0
      %2891 = vmatprep.subr.mxu0 0.0
      %2892 = vmatpush1.msra.mxu0 0.0
      %2893 = vmatprep.subr.mxu0 0.0
      %2894 = vmatpush1.msra.mxu0 0.0
      %2895 = vmatprep.subr.mxu0 0.0
      %2896 = vmatpush1.msra.mxu0 0.0
      %2897 = vmatprep.subr.mxu0 0.0
      %2898 = vmatpush1.msra.mxu0 0.0
      %2899 = vmatprep.subr.mxu0 0.0
      %2900 = vmatpush1.msra.mxu0 0.0
      %2901 = vmatprep.subr.mxu0 0.0
      %2902 = vmatpush1.msra.mxu0 0.0
      %2903 = vmatprep.subr.mxu0 0.0
      %2904 = vmatpush1.msra.mxu0 0.0
      %2905 = vmatprep.subr.mxu0 0.0
      %2906 = vmatpush1.msra.mxu0 0.0
      %2907 = vmatprep.subr.mxu0 0.0
      %2908 = vmatpush1.msra.mxu0 0.0
      %2909 = vmatprep.subr.mxu0 0.0
      %2910 = vmatpush1.msra.mxu0 0.0
      %2911 = vmatprep.subr.mxu0 0.0
      %2912 = vmatpush1.msra.mxu0 0.0
      %2913 = vmatprep.subr.mxu0 0.0
      %2914 = vmatpush1.msra.mxu0 0.0
      %2915 = vmatprep.subr.mxu0 0.0
      %2916 = vmatpush1.msra.mxu0 0.0
      %2917 = vmatprep.subr.mxu0 0.0
      %2918 = vmatpush1.msra.mxu0 0.0
      %2919 = vmatprep.subr.mxu0 0.0
      %2920 = vmatpush1.msra.mxu0 0.0
      %2921 = vmatprep.subr.mxu0 0.0
      %2922 = vmatpush1.msra.mxu0 0.0
      %2923 = vmatprep.subr.mxu0 0.0
      %2924 = vmatpush1.msra.mxu0 0.0
      %2925 = vmatprep.subr.mxu0 0.0
      %2926 = vmatpush1.msra.mxu0 0.0
      %2927 = vmatprep.subr.mxu0 0.0
      %2928 = vmatpush1.msra.mxu0 0.0
      %2929 = vmatprep.subr.mxu0 0.0
      %2930 = vmatpush1.msra.mxu0 0.0
      %2931 = vmatprep.subr.mxu0 0.0
      %2932 = vmatpush1.msra.mxu0 0.0
      %2933 = vmatprep.subr.mxu0 0.0
      %2934 = vmatpush1.msra.mxu0 0.0
      %2935 = vmatprep.subr.mxu0 0.0
      %2936 = vmatpush1.msra.mxu0 0.0
      %2937 = vmatprep.mubr.f32.mxu0 0.0
      %2938 = vmatmul.mubr.f32.gmra.mrb[0].mxu0 %v2773
      %v2939 = vpop.f32.mrb[0].mxu0
      %v2940 = vadd.f32 %v2754, %v2939
      %v2941 = vpop.f32.mrb[0].mxu0
      %v2942 = vadd.f32 %v2754, %v2941
      %2943 = vmatprep.mubr.f32.mxu0 0.0
      %2944 = vmatmul.mubr.f32.gmra.mrb[0].mxu0 %v2776
      %v2945 = vpop.f32.mrb[0].mxu0
      %v2946 = vadd.f32 %v2759, %v2945
      %v2947 = vpop.f32.mrb[0].mxu0
      %v2948 = vadd.f32 %v2759, %v2947
      %2949 = vmatprep.mubr.f32.mxu0 0.0
      %2950 = vmatmul.mubr.f32.gmra.mrb[0].mxu0 %v2779
      %v2951 = vpop.f32.mrb[0].mxu0
      %v2952 = vadd.f32 %v2764, %v2951
      %v2953 = vpop.f32.mrb[0].mxu0
      %v2954 = vadd.f32 %v2764, %v2953
      %2955 = vmatprep.mubr.f32.mxu0 0.0
      %2956 = vmatmul.mubr.f32.gmra.mrb[0].mxu0 %v2782
      %v2957 = vpop.f32.mrb[0].mxu0
      %v2958 = vadd.f32 %v2769, %v2957
      %v2959 = vpop.f32.mrb[0].mxu0
      %v2960 = vadd.f32 %v2769, %v2959
      %2961 = vdwg.mxu0
      %2962 = vmatprep.subr.mxu0 %v2728
      %2963 = vmatpush1.msra.mxu0 %v2727
      %2964 = vmatprep.subr.mxu0 %v2736
      %2965 = vmatpush1.msra.mxu0 %v2735
      %2966 = vmatprep.subr.mxu0 %v2744
      %2967 = vmatpush1.msra.mxu0 %v2743
      %2968 = vmatprep.subr.mxu0 0.0
      %2969 = vmatpush1.msra.mxu0 0.0
      %2970 = vmatprep.subr.mxu0 0.0
      %2971 = vmatpush1.msra.mxu0 0.0
      %2972 = vmatprep.subr.mxu0 0.0
      %2973 = vmatpush1.msra.mxu0 0.0
      %2974 = vmatprep.subr.mxu0 0.0
      %2975 = vmatpush1.msra.mxu0 0.0
      %2976 = vmatprep.subr.mxu0 0.0
      %2977 = vmatpush1.msra.mxu0 0.0
      %2978 = vmatprep.subr.mxu0 0.0
      %2979 = vmatpush1.msra.mxu0 0.0
      %2980 = vmatprep.subr.mxu0 0.0
      %2981 = vmatpush1.msra.mxu0 0.0
      %2982 = vmatprep.subr.mxu0 0.0
      %2983 = vmatpush1.msra.mxu0 0.0
      %2984 = vmatprep.subr.mxu0 0.0
      %2985 = vmatpush1.msra.mxu0 0.0
      %2986 = vmatprep.subr.mxu0 0.0
      %2987 = vmatpush1.msra.mxu0 0.0
      %2988 = vmatprep.subr.mxu0 0.0
      %2989 = vmatpush1.msra.mxu0 0.0
      %2990 = vmatprep.subr.mxu0 0.0
      %2991 = vmatpush1.msra.mxu0 0.0
      %2992 = vmatprep.subr.mxu0 0.0
      %2993 = vmatpush1.msra.mxu0 0.0
      %2994 = vmatprep.subr.mxu0 0.0
      %2995 = vmatpush1.msra.mxu0 0.0
      %2996 = vmatprep.subr.mxu0 0.0
      %2997 = vmatpush1.msra.mxu0 0.0
      %2998 = vmatprep.subr.mxu0 0.0
      %2999 = vmatpush1.msra.mxu0 0.0
      %3000 = vmatprep.subr.mxu0 0.0
      %3001 = vmatpush1.msra.mxu0 0.0
      %3002 = vmatprep.subr.mxu0 0.0
      %3003 = vmatpush1.msra.mxu0 0.0
      %3004 = vmatprep.subr.mxu0 0.0
      %3005 = vmatpush1.msra.mxu0 0.0
      %3006 = vmatprep.subr.mxu0 0.0
      %3007 = vmatpush1.msra.mxu0 0.0
      %3008 = vmatprep.subr.mxu0 0.0
      %3009 = vmatpush1.msra.mxu0 0.0
      %3010 = vmatprep.subr.mxu0 0.0
      %3011 = vmatpush1.msra.mxu0 0.0
      %3012 = vmatprep.subr.mxu0 0.0
      %3013 = vmatpush1.msra.mxu0 0.0
      %3014 = vmatprep.subr.mxu0 0.0
      %3015 = vmatpush1.msra.mxu0 0.0
      %3016 = vmatprep.subr.mxu0 0.0
      %3017 = vmatpush1.msra.mxu0 0.0
      %3018 = vmatprep.subr.mxu0 0.0
      %3019 = vmatpush1.msra.mxu0 0.0
      %3020 = vmatprep.subr.mxu0 0.0
      %3021 = vmatpush1.msra.mxu0 0.0
      %3022 = vmatprep.subr.mxu0 0.0
      %3023 = vmatpush1.msra.mxu0 0.0
      %3024 = vmatprep.subr.mxu0 0.0
      %3025 = vmatpush1.msra.mxu0 0.0
      %3026 = vmatprep.mubr.f32.mxu0 0.0
      %3027 = vmatmul.mubr.f32.gmra.mrb[0].mxu0 %v2773
      %v3028 = vpop.f32.mrb[0].mxu0
      %v3029 = vadd.f32 %v2754, %v3028
      %v3030 = vpop.f32.mrb[0].mxu0
      %v3031 = vadd.f32 %v2754, %v3030
      %3032 = vmatprep.mubr.f32.mxu0 0.0
      %3033 = vmatmul.mubr.f32.gmra.mrb[0].mxu0 %v2776
      %v3034 = vpop.f32.mrb[0].mxu0
      %v3035 = vadd.f32 %v2759, %v3034
      %v3036 = vpop.f32.mrb[0].mxu0
      %v3037 = vadd.f32 %v2759, %v3036
      %3038 = vmatprep.mubr.f32.mxu0 0.0
      %3039 = vmatmul.mubr.f32.gmra.mrb[0].mxu0 %v2779
      %v3040 = vpop.f32.mrb[0].mxu0
      %v3041 = vadd.f32 %v2764, %v3040
      %v3042 = vpop.f32.mrb[0].mxu0
      %v3043 = vadd.f32 %v2764, %v3042
      %3044 = vmatprep.mubr.f32.mxu0 0.0
      %3045 = vmatmul.mubr.f32.gmra.mrb[0].mxu0 %v2782
      %v3046 = vpop.f32.mrb[0].mxu0
      %v3047 = vadd.f32 %v2769, %v3046
      %v3048 = vpop.f32.mrb[0].mxu0
      %v3049 = vadd.f32 %v2769, %v3048
      %3050 = vdwg.mxu0
      %3051 = vmatprep.subr.mxu0 %v2730
      %3052 = vmatpush1.msra.mxu0 %v2729
      %3053 = vmatprep.subr.mxu0 %v2738
      %3054 = vmatpush1.msra.mxu0 %v2737
      %3055 = vmatprep.subr.mxu0 %v2746
      %3056 = vmatpush1.msra.mxu0 %v2745
      %3057 = vmatprep.subr.mxu0 0.0
      %3058 = vmatpush1.msra.mxu0 0.0
      %3059 = vmatprep.subr.mxu0 0.0
      %3060 = vmatpush1.msra.mxu0 0.0
      %3061 = vmatprep.subr.mxu0 0.0
      %3062 = vmatpush1.msra.mxu0 0.0
      %3063 = vmatprep.subr.mxu0 0.0
      %3064 = vmatpush1.msra.mxu0 0.0
      %3065 = vmatprep.subr.mxu0 0.0
      %3066 = vmatpush1.msra.mxu0 0.0
      %3067 = vmatprep.subr.mxu0 0.0
      %3068 = vmatpush1.msra.mxu0 0.0
      %3069 = vmatprep.subr.mxu0 0.0
      %3070 = vmatpush1.msra.mxu0 0.0
      %3071 = vmatprep.subr.mxu0 0.0
      %3072 = vmatpush1.msra.mxu0 0.0
      %3073 = vmatprep.subr.mxu0 0.0
      %3074 = vmatpush1.msra.mxu0 0.0
      %3075 = vmatprep.subr.mxu0 0.0
      %3076 = vmatpush1.msra.mxu0 0.0
      %3077 = vmatprep.subr.mxu0 0.0
      %3078 = vmatpush1.msra.mxu0 0.0
      %3079 = vmatprep.subr.mxu0 0.0
      %3080 = vmatpush1.msra.mxu0 0.0
      %3081 = vmatprep.subr.mxu0 0.0
      %3082 = vmatpush1.msra.mxu0 0.0
      %3083 = vmatprep.subr.mxu0 0.0
      %3084 = vmatpush1.msra.mxu0 0.0
      %3085 = vmatprep.subr.mxu0 0.0
      %3086 = vmatpush1.msra.mxu0 0.0
      %3087 = vmatprep.subr.mxu0 0.0
      %3088 = vmatpush1.msra.mxu0 0.0
      %3089 = vmatprep.subr.mxu0 0.0
      %3090 = vmatpush1.msra.mxu0 0.0
      %3091 = vmatprep.subr.mxu0 0.0
      %3092 = vmatpush1.msra.mxu0 0.0
      %3093 = vmatprep.subr.mxu0 0.0
      %3094 = vmatpush1.msra.mxu0 0.0
      %3095 = vmatprep.subr.mxu0 0.0
      %3096 = vmatpush1.msra.mxu0 0.0
      %3097 = vmatprep.subr.mxu0 0.0
      %3098 = vmatpush1.msra.mxu0 0.0
      %3099 = vmatprep.subr.mxu0 0.0
      %3100 = vmatpush1.msra.mxu0 0.0
      %3101 = vmatprep.subr.mxu0 0.0
      %3102 = vmatpush1.msra.mxu0 0.0
      %3103 = vmatprep.subr.mxu0 0.0
      %3104 = vmatpush1.msra.mxu0 0.0
      %3105 = vmatprep.subr.mxu0 0.0
      %3106 = vmatpush1.msra.mxu0 0.0
      %3107 = vmatprep.subr.mxu0 0.0
      %3108 = vmatpush1.msra.mxu0 0.0
      %3109 = vmatprep.subr.mxu0 0.0
      %3110 = vmatpush1.msra.mxu0 0.0
      %3111 = vmatprep.subr.mxu0 0.0
      %3112 = vmatpush1.msra.mxu0 0.0
      %3113 = vmatprep.subr.mxu0 0.0
      %3114 = vmatpush1.msra.mxu0 0.0
      %3115 = vmatprep.mubr.f32.mxu0 0.0
      %3116 = vmatmul.mubr.f32.gmra.mrb[0].mxu0 %v2773
      %v3117 = vpop.f32.mrb[0].mxu0
      %v3118 = vadd.f32 %v2754, %v3117
      %v3119 = vpop.f32.mrb[0].mxu0
      %v3120 = vadd.f32 %v2754, %v3119
      %3121 = vmatprep.mubr.f32.mxu0 0.0
      %3122 = vmatmul.mubr.f32.gmra.mrb[0].mxu0 %v2776
      %v3123 = vpop.f32.mrb[0].mxu0
      %v3124 = vadd.f32 %v2759, %v3123
      %v3125 = vpop.f32.mrb[0].mxu0
      %v3126 = vadd.f32 %v2759, %v3125
      %3127 = vmatprep.mubr.f32.mxu0 0.0
      %3128 = vmatmul.mubr.f32.gmra.mrb[0].mxu0 %v2779
      %v3129 = vpop.f32.mrb[0].mxu0
      %v3130 = vadd.f32 %v2764, %v3129
      %v3131 = vpop.f32.mrb[0].mxu0
      %v3132 = vadd.f32 %v2764, %v3131
      %3133 = vmatprep.mubr.f32.mxu0 0.0
      %3134 = vmatmul.mubr.f32.gmra.mrb[0].mxu0 %v2782
      %v3135 = vpop.f32.mrb[0].mxu0
      %v3136 = vadd.f32 %v2769, %v3135
      %v3137 = vpop.f32.mrb[0].mxu0
      %v3138 = vadd.f32 %v2769, %v3137
      %3139 = vdwg.mxu0
      %3140 = vst [vmem:[#allocation4 + $0xc0] sm:$0xff] %v2863
      %3141 = vst [vmem:[#allocation4 + $0xc8] sm:$0xff] %v2865
      %3142 = vst [vmem:[#allocation4 + $0xd0] sm:$0xff] %v2952
      %3143 = vst [vmem:[#allocation4 + $0xd8] sm:$0xff] %v2954
      %3144 = vst [vmem:[#allocation4 + $0xe0] sm:$0xff] %v3041
      %3145 = vst [vmem:[#allocation4 + $0xe8] sm:$0xff] %v3043
      %3146 = vst [vmem:[#allocation4 + $0xf0] sm:$0xff] %v3130
      %3147 = vst [vmem:[#allocation4 + $0xf8] sm:$0xff] %v3132
      %3148 = vst [vmem:[#allocation4 + $0x100] sm:$0xff] %v2869
      %3149 = vst [vmem:[#allocation4 + $0x108] sm:$0xff] %v2871
      %3150 = vst [vmem:[#allocation4 + $0x110] sm:$0xff] %v2958
      %3151 = vst [vmem:[#allocation4 + $0x118] sm:$0xff] %v2960
      %3152 = vst [vmem:[#allocation4 + $0x120] sm:$0xff] %v3047
      %3153 = vst [vmem:[#allocation4 + $0x128] sm:$0xff] %v3049
      %3154 = vst [vmem:[#allocation4 + $0x130] sm:$0xff] %v3136
      %3155 = vst [vmem:[#allocation4 + $0x138] sm:$0xff] %v3138
      %v3156 = vld [vmem:[#allocation2] sm:$0xff]
      %v3157 = vld [vmem:[#allocation2 + $0x8] sm:$0xff]
      %v3158 = vld [vmem:[#allocation2 + $0x10] sm:$0xff]
      %v3159 = vld [vmem:[#allocation2 + $0x18] sm:$0xff]
      %v3160 = vld [vmem:[#allocation2 + $0x20] sm:$0xff]
      %v3161 = vld [vmem:[#allocation2 + $0x28] sm:$0xff]
      %v3162 = vld [vmem:[#allocation2 + $0x30] sm:$0xff]
      %v3163 = vld [vmem:[#allocation2 + $0x38] sm:$0xff]
      %v3164 = vld [vmem:[#allocation2 + $0x40] sm:$0xff]
      %v3165 = vld [vmem:[#allocation2 + $0x48] sm:$0xff]
      %v3166 = vld [vmem:[#allocation2 + $0x50] sm:$0xff]
      %v3167 = vld [vmem:[#allocation2 + $0x58] sm:$0xff]
      %v3168 = vld [vmem:[#allocation2 + $0x60] sm:$0xff]
      %v3169 = vld [vmem:[#allocation2 + $0x68] sm:$0xff]
      %v3170 = vld [vmem:[#allocation2 + $0x70] sm:$0xff]
      %v3171 = vld [vmem:[#allocation2 + $0x78] sm:$0xff]
      %v3172 = vld [vmem:[%s13] sm:$0xff]
      %v3173 = vld [vmem:[%s13 + $0x8] sm:$0xff]
      %vm3174 = vcmp.ge.f32.partialorder %v2851, 0.0
      %vm3175 = vcmp.ge.f32.partialorder %v2853, 0.0
      %vm3176 = vcmp.ge.f32.partialorder %v2940, 0.0
      %vm3177 = vcmp.ge.f32.partialorder %v2942, 0.0
      %vm3178 = vcmp.ge.f32.partialorder %v3029, 0.0
      %vm3179 = vcmp.ge.f32.partialorder %v3031, 0.0
      %vm3180 = vcmp.ge.f32.partialorder %v3118, 0.0
      %vm3181 = vcmp.ge.f32.partialorder %v3120, 0.0
      %vm3182 = vcmp.ge.f32.partialorder %v2857, 0.0
      %vm3183 = vcmp.ge.f32.partialorder %v2859, 0.0
      %vm3184 = vcmp.ge.f32.partialorder %v2946, 0.0
      %vm3185 = vcmp.ge.f32.partialorder %v2948, 0.0
      %vm3186 = vcmp.ge.f32.partialorder %v3035, 0.0
      %vm3187 = vcmp.ge.f32.partialorder %v3037, 0.0
      %vm3188 = vcmp.ge.f32.partialorder %v3124, 0.0
      %vm3189 = vcmp.ge.f32.partialorder %v3126, 0.0
      %3191 = vset.pattern.permute.xlu0 0
      %3192 = vperm.xlu0 %3191, %v3172
      %v3193 = vpop.permute.xlu0 %3192
      %3196 = vset.pattern.permute.xlu0 0
      %3197 = vperm.xlu0 %3196, %v3173
      %v3198 = vpop.permute.xlu0 %3197
      %v3200 = vmul.f32 %v2851, %v3193
      %v3201 = vmul.f32 %v2853, %v3193
      %v3202 = vmul.f32 %v2940, %v3193
      %v3203 = vmul.f32 %v2942, %v3193
      %v3204 = vmul.f32 %v3029, %v3193
      %v3205 = vmul.f32 %v3031, %v3193
      %v3206 = vmul.f32 %v3118, %v3193
      %v3207 = vmul.f32 %v3120, %v3193
      %v3208 = vmul.f32 %v2857, %v3198
      %v3209 = vmul.f32 %v2859, %v3198
      %v3210 = vmul.f32 %v2946, %v3198
      %v3211 = vmul.f32 %v2948, %v3198
      %v3212 = vmul.f32 %v3035, %v3198
      %v3213 = vmul.f32 %v3037, %v3198
      %v3214 = vmul.f32 %v3124, %v3198
      %v3215 = vmul.f32 %v3126, %v3198
      %v3216 = vsel %vm3174, %v2851, %v3200
      %v3217 = vsel %vm3175, %v2853, %v3201
      %v3218 = vsel %vm3176, %v2940, %v3202
      %v3219 = vsel %vm3177, %v2942, %v3203
      %v3220 = vsel %vm3178, %v3029, %v3204
      %v3221 = vsel %vm3179, %v3031, %v3205
      %v3222 = vsel %vm3180, %v3118, %v3206
      %v3223 = vsel %vm3181, %v3120, %v3207
      %v3224 = vsel %vm3182, %v2857, %v3208
      %v3225 = vsel %vm3183, %v2859, %v3209
      %v3226 = vsel %vm3184, %v2946, %v3210
      %v3227 = vsel %vm3185, %v2948, %v3211
      %v3228 = vsel %vm3186, %v3035, %v3212
      %v3229 = vsel %vm3187, %v3037, %v3213
      %v3230 = vsel %vm3188, %v3124, %v3214
      %v3231 = vsel %vm3189, %v3126, %v3215
      %3232 = vrot.lane.b32.xlu0 %v3216, 1
      %v3233 = vpop.permute.xlu0 %3232
      %3234 = vrot.lane.b32.xlu0 %v3224, 1
      %v3235 = vpop.permute.xlu0 %3234
      %3236 = vrot.lane.b32.xlu0 %v3217, 1
      %v3237 = vpop.permute.xlu0 %3236
      %3238 = vrot.lane.b32.xlu0 %v3225, 1
      %v3239 = vpop.permute.xlu0 %3238
      %3240 = vrot.lane.b32.xlu0 %v3218, 1
      %v3241 = vpop.permute.xlu0 %3240
      %3242 = vrot.lane.b32.xlu0 %v3226, 1
      %v3243 = vpop.permute.xlu0 %3242
      %3244 = vrot.lane.b32.xlu0 %v3219, 1
      %v3245 = vpop.permute.xlu0 %3244
      %3246 = vrot.lane.b32.xlu0 %v3227, 1
      %v3247 = vpop.permute.xlu0 %3246
      %3248 = vrot.lane.b32.xlu0 %v3220, 1
      %v3249 = vpop.permute.xlu0 %3248
      %3250 = vrot.lane.b32.xlu0 %v3228, 1
      %v3251 = vpop.permute.xlu0 %3250
      %3252 = vrot.lane.b32.xlu0 %v3221, 1
      %v3253 = vpop.permute.xlu0 %3252
      %3254 = vrot.lane.b32.xlu0 %v3229, 1
      %v3255 = vpop.permute.xlu0 %3254
      %3256 = vrot.lane.b32.xlu0 %v3222, 1
      %v3257 = vpop.permute.xlu0 %3256
      %3258 = vrot.lane.b32.xlu0 %v3230, 1
      %v3259 = vpop.permute.xlu0 %3258
      %3260 = vrot.lane.b32.xlu0 %v3223, 1
      %v3261 = vpop.permute.xlu0 %3260
      %3262 = vrot.lane.b32.xlu0 %v3231, 1
      %v3263 = vpop.permute.xlu0 %3262
      %v3264 = vsel %vm1672, %v3257, %v3261
      %v3265 = vsel %vm1672, %v3259, %v3263
      %v3266 = vsel %vm1672, %v3253, %v3257
      %v3267 = vsel %vm1672, %v3255, %v3259
      %v3268 = vsel %vm1672, %v3249, %v3253
      %v3269 = vsel %vm1672, %v3251, %v3255
      %v3270 = vsel %vm1672, %v3245, %v3249
      %v3271 = vsel %vm1672, %v3247, %v3251
      %v3272 = vsel %vm1672, %v3241, %v3245
      %v3273 = vsel %vm1672, %v3243, %v3247
      %v3274 = vsel %vm1672, %v3237, %v3241
      %v3275 = vsel %vm1672, %v3239, %v3243
      %v3276 = vsel %vm1672, %v3233, %v3237
      %v3277 = vsel %vm1672, %v3235, %v3239
      %v3278 = vsel %vm1672, %v3261, %v3233
      %v3279 = vsel %vm1672, %v3263, %v3235
      %v3280 = vsel %vm1697, %v3278, 0.0
      %v3281 = vsel %vm1698, %v3276, 0.0
      %v3282 = vsel %vm1699, %v3274, 0.0
      %v3283 = vsel %vm1700, %v3272, 0.0
      %v3284 = vsel %vm1701, %v3270, 0.0
      %v3285 = vsel %vm1702, %v3268, 0.0
      %v3286 = vsel %vm1703, %v3266, 0.0
      %v3287 = vsel %vm1704, %v3264, 0.0
      %v3288 = vsel %vm1697, %v3279, 0.0
      %v3289 = vsel %vm1698, %v3277, 0.0
      %v3290 = vsel %vm1699, %v3275, 0.0
      %v3291 = vsel %vm1700, %v3273, 0.0
      %v3292 = vsel %vm1701, %v3271, 0.0
      %v3293 = vsel %vm1702, %v3269, 0.0
      %v3294 = vsel %vm1703, %v3267, 0.0
      %v3295 = vsel %vm1704, %v3265, 0.0
      %3296 = vrot.lane.b32.xlu0 %v3216, 127
      %v3297 = vpop.permute.xlu0 %3296
      %3298 = vrot.lane.b32.xlu0 %v3224, 127
      %v3299 = vpop.permute.xlu0 %3298
      %3300 = vrot.lane.b32.xlu0 %v3217, 127
      %v3301 = vpop.permute.xlu0 %3300
      %3302 = vrot.lane.b32.xlu0 %v3225, 127
      %v3303 = vpop.permute.xlu0 %3302
      %3304 = vrot.lane.b32.xlu0 %v3218, 127
      %v3305 = vpop.permute.xlu0 %3304
      %3306 = vrot.lane.b32.xlu0 %v3226, 127
      %v3307 = vpop.permute.xlu0 %3306
      %3308 = vrot.lane.b32.xlu0 %v3219, 127
      %v3309 = vpop.permute.xlu0 %3308
      %3310 = vrot.lane.b32.xlu0 %v3227, 127
      %v3311 = vpop.permute.xlu0 %3310
      %3312 = vrot.lane.b32.xlu0 %v3220, 127
      %v3313 = vpop.permute.xlu0 %3312
      %3314 = vrot.lane.b32.xlu0 %v3228, 127
      %v3315 = vpop.permute.xlu0 %3314
      %3316 = vrot.lane.b32.xlu0 %v3221, 127
      %v3317 = vpop.permute.xlu0 %3316
      %3318 = vrot.lane.b32.xlu0 %v3229, 127
      %v3319 = vpop.permute.xlu0 %3318
      %3320 = vrot.lane.b32.xlu0 %v3222, 127
      %v3321 = vpop.permute.xlu0 %3320
      %3322 = vrot.lane.b32.xlu0 %v3230, 127
      %v3323 = vpop.permute.xlu0 %3322
      %3324 = vrot.lane.b32.xlu0 %v3223, 127
      %v3325 = vpop.permute.xlu0 %3324
      %3326 = vrot.lane.b32.xlu0 %v3231, 127
      %v3327 = vpop.permute.xlu0 %3326
      %v3328 = vsel %vm1753, %v3321, %v3325
      %v3329 = vsel %vm1753, %v3323, %v3327
      %v3330 = vsel %vm1753, %v3317, %v3321
      %v3331 = vsel %vm1753, %v3319, %v3323
      %v3332 = vsel %vm1753, %v3313, %v3317
      %v3333 = vsel %vm1753, %v3315, %v3319
      %v3334 = vsel %vm1753, %v3309, %v3313
      %v3335 = vsel %vm1753, %v3311, %v3315
      %v3336 = vsel %vm1753, %v3305, %v3309
      %v3337 = vsel %vm1753, %v3307, %v3311
      %v3338 = vsel %vm1753, %v3301, %v3305
      %v3339 = vsel %vm1753, %v3303, %v3307
      %v3340 = vsel %vm1753, %v3297, %v3301
      %v3341 = vsel %vm1753, %v3299, %v3303
      %v3342 = vsel %vm1753, %v3325, %v3297
      %v3343 = vsel %vm1753, %v3327, %v3299
      %v3344 = vsel %vm1778, %v3340, 0.0
      %v3345 = vsel %vm1779, %v3338, 0.0
      %v3346 = vsel %vm1780, %v3336, 0.0
      %v3347 = vsel %vm1781, %v3334, 0.0
      %v3348 = vsel %vm1782, %v3332, 0.0
      %v3349 = vsel %vm1783, %v3330, 0.0
      %v3350 = vsel %vm1784, %v3328, 0.0
      %v3351 = vsel %vm1785, %v3342, 0.0
      %v3352 = vsel %vm1778, %v3341, 0.0
      %v3353 = vsel %vm1779, %v3339, 0.0
      %v3354 = vsel %vm1780, %v3337, 0.0
      %v3355 = vsel %vm1781, %v3335, 0.0
      %v3356 = vsel %vm1782, %v3333, 0.0
      %v3357 = vsel %vm1783, %v3331, 0.0
      %v3358 = vsel %vm1784, %v3329, 0.0
      %v3359 = vsel %vm1785, %v3343, 0.0
      %3360 = vst [vmem:[#allocation5] sm:$0xff] %v3280
      %3361 = vst [vmem:[#allocation5 + $0x8] sm:$0xff] %v3281
      %3362 = vst [vmem:[#allocation5 + $0x10] sm:$0xff] %v3282
      %3363 = vst [vmem:[#allocation5 + $0x18] sm:$0xff] %v3283
      %3364 = vst [vmem:[#allocation5 + $0x20] sm:$0xff] %v3284
      %3365 = vst [vmem:[#allocation5 + $0x28] sm:$0xff] %v3285
      %3366 = vst [vmem:[#allocation5 + $0x30] sm:$0xff] %v3286
      %3367 = vst [vmem:[#allocation5 + $0x38] sm:$0xff] %v3287
      %3368 = vst [vmem:[#allocation5 + $0x40] sm:$0xff] %v3288
      %3369 = vst [vmem:[#allocation5 + $0x48] sm:$0xff] %v3289
      %3370 = vst [vmem:[#allocation5 + $0x50] sm:$0xff] %v3290
      %3371 = vst [vmem:[#allocation5 + $0x58] sm:$0xff] %v3291
      %3372 = vst [vmem:[#allocation5 + $0x60] sm:$0xff] %v3292
      %3373 = vst [vmem:[#allocation5 + $0x68] sm:$0xff] %v3293
      %3374 = vst [vmem:[#allocation5 + $0x70] sm:$0xff] %v3294
      %3375 = vst [vmem:[#allocation5 + $0x78] sm:$0xff] %v3295
      %3376 = vst [vmem:[#allocation5 + $0x80] sm:$0xff] %v3216
      %3377 = vst [vmem:[#allocation5 + $0x88] sm:$0xff] %v3217
      %3378 = vst [vmem:[#allocation5 + $0x90] sm:$0xff] %v3218
      %3379 = vst [vmem:[#allocation5 + $0x98] sm:$0xff] %v3219
      %3380 = vst [vmem:[#allocation5 + $0xa0] sm:$0xff] %v3220
      %3381 = vst [vmem:[#allocation5 + $0xa8] sm:$0xff] %v3221
      %3382 = vst [vmem:[#allocation5 + $0xb0] sm:$0xff] %v3222
      %3383 = vst [vmem:[#allocation5 + $0xb8] sm:$0xff] %v3223
      %3384 = vst [vmem:[#allocation5 + $0xc0] sm:$0xff] %v3224
      %3385 = vst [vmem:[#allocation5 + $0xc8] sm:$0xff] %v3225
      %3386 = vst [vmem:[#allocation5 + $0xd0] sm:$0xff] %v3226
      %3387 = vst [vmem:[#allocation5 + $0xd8] sm:$0xff] %v3227
      %3388 = vst [vmem:[#allocation5 + $0xe0] sm:$0xff] %v3228
      %3389 = vst [vmem:[#allocation5 + $0xe8] sm:$0xff] %v3229
      %3390 = vst [vmem:[#allocation5 + $0xf0] sm:$0xff] %v3230
      %3391 = vst [vmem:[#allocation5 + $0xf8] sm:$0xff] %v3231
      %3392 = vst [vmem:[#allocation5 + $0x100] sm:$0xff] %v3344
      %3393 = vst [vmem:[#allocation5 + $0x108] sm:$0xff] %v3345
      %3394 = vst [vmem:[#allocation5 + $0x110] sm:$0xff] %v3346
      %3395 = vst [vmem:[#allocation5 + $0x118] sm:$0xff] %v3347
      %3396 = vst [vmem:[#allocation5 + $0x120] sm:$0xff] %v3348
      %3397 = vst [vmem:[#allocation5 + $0x128] sm:$0xff] %v3349
      %3398 = vst [vmem:[#allocation5 + $0x130] sm:$0xff] %v3350
      %3399 = vst [vmem:[#allocation5 + $0x138] sm:$0xff] %v3351
      %3400 = vst [vmem:[#allocation5 + $0x140] sm:$0xff] %v3352
      %3401 = vst [vmem:[#allocation5 + $0x148] sm:$0xff] %v3353
      %3402 = vst [vmem:[#allocation5 + $0x150] sm:$0xff] %v3354
      %3403 = vst [vmem:[#allocation5 + $0x158] sm:$0xff] %v3355
      %3404 = vst [vmem:[#allocation5 + $0x160] sm:$0xff] %v3356
      %3405 = vst [vmem:[#allocation5 + $0x168] sm:$0xff] %v3357
      %3406 = vst [vmem:[#allocation5 + $0x170] sm:$0xff] %v3358
      %3407 = vst [vmem:[#allocation5 + $0x178] sm:$0xff] %v3359
      %v3408 = vld [vmem:[%s14] sm:$0xff]
      %v3409 = vld [vmem:[%s14 + $0x8] sm:$0xff]
      %v3410 = vld [vmem:[%s14 + $0x10] sm:$0xff]
      %v3411 = vld [vmem:[%s14 + $0x18] sm:$0xff]
      %v3412 = vld [vmem:[%s14 + $0x20] sm:$0xff]
      %v3413 = vld [vmem:[%s14 + $0x28] sm:$0xff]
      %v3414 = vld [vmem:[#allocation5] sm:$0xff]
      %v3415 = vld [vmem:[#allocation5 + $0x8] sm:$0xff]
      %v3416 = vld [vmem:[#allocation5 + $0x10] sm:$0xff]
      %v3417 = vld [vmem:[#allocation5 + $0x18] sm:$0xff]
      %v3418 = vld [vmem:[#allocation5 + $0x20] sm:$0xff]
      %v3419 = vld [vmem:[#allocation5 + $0x28] sm:$0xff]
      %v3420 = vld [vmem:[#allocation5 + $0x30] sm:$0xff]
      %v3421 = vld [vmem:[#allocation5 + $0x38] sm:$0xff]
      %v3422 = vld [vmem:[#allocation5 + $0x40] sm:$0xff]
      %v3423 = vld [vmem:[#allocation5 + $0x48] sm:$0xff]
      %v3424 = vld [vmem:[#allocation5 + $0x50] sm:$0xff]
      %v3425 = vld [vmem:[#allocation5 + $0x58] sm:$0xff]
      %v3426 = vld [vmem:[#allocation5 + $0x60] sm:$0xff]
      %v3427 = vld [vmem:[#allocation5 + $0x68] sm:$0xff]
      %v3428 = vld [vmem:[#allocation5 + $0x70] sm:$0xff]
      %v3429 = vld [vmem:[#allocation5 + $0x78] sm:$0xff]
      %v3430 = vld [vmem:[#allocation5 + $0x80] sm:$0xff]
      %v3431 = vld [vmem:[#allocation5 + $0x88] sm:$0xff]
      %v3432 = vld [vmem:[#allocation5 + $0x90] sm:$0xff]
      %v3433 = vld [vmem:[#allocation5 + $0x98] sm:$0xff]
      %v3434 = vld [vmem:[#allocation5 + $0xa0] sm:$0xff]
      %v3435 = vld [vmem:[#allocation5 + $0xa8] sm:$0xff]
      %v3436 = vld [vmem:[#allocation5 + $0xb0] sm:$0xff]
      %v3437 = vld [vmem:[#allocation5 + $0xb8] sm:$0xff]
      %v3438 = vld [vmem:[#allocation5 + $0xc0] sm:$0xff]
      %v3439 = vld [vmem:[#allocation5 + $0xc8] sm:$0xff]
      %v3440 = vld [vmem:[#allocation5 + $0xd0] sm:$0xff]
      %v3441 = vld [vmem:[#allocation5 + $0xd8] sm:$0xff]
      %v3442 = vld [vmem:[#allocation5 + $0xe0] sm:$0xff]
      %v3443 = vld [vmem:[#allocation5 + $0xe8] sm:$0xff]
      %v3444 = vld [vmem:[#allocation5 + $0xf0] sm:$0xff]
      %v3445 = vld [vmem:[#allocation5 + $0xf8] sm:$0xff]
      %v3446 = vld [vmem:[#allocation5 + $0x100] sm:$0xff]
      %v3447 = vld [vmem:[#allocation5 + $0x108] sm:$0xff]
      %v3448 = vld [vmem:[#allocation5 + $0x110] sm:$0xff]
      %v3449 = vld [vmem:[#allocation5 + $0x118] sm:$0xff]
      %v3450 = vld [vmem:[#allocation5 + $0x120] sm:$0xff]
      %v3451 = vld [vmem:[#allocation5 + $0x128] sm:$0xff]
      %v3452 = vld [vmem:[#allocation5 + $0x130] sm:$0xff]
      %v3453 = vld [vmem:[#allocation5 + $0x138] sm:$0xff]
      %v3454 = vld [vmem:[#allocation5 + $0x140] sm:$0xff]
      %v3455 = vld [vmem:[#allocation5 + $0x148] sm:$0xff]
      %v3456 = vld [vmem:[#allocation5 + $0x150] sm:$0xff]
      %v3457 = vld [vmem:[#allocation5 + $0x158] sm:$0xff]
      %v3458 = vld [vmem:[#allocation5 + $0x160] sm:$0xff]
      %v3459 = vld [vmem:[#allocation5 + $0x168] sm:$0xff]
      %v3460 = vld [vmem:[#allocation5 + $0x170] sm:$0xff]
      %v3461 = vld [vmem:[#allocation5 + $0x178] sm:$0xff]
      %v3463 = vsel %vm1904, %v3408, 0
      %v3466 = vsel %vm1904, %v3409, 0
      %v3469 = vsel %vm1904, %v3410, 0
      %v3472 = vsel %vm1904, %v3411, 0
      %v3475 = vsel %vm1904, %v3412, 0
      %v3478 = vsel %vm1904, %v3413, 0
      %3480 = vmatprep.subr.mxu0 %v3415
      %3481 = vmatpush1.msra.mxu0 %v3414
      %3482 = vmatprep.subr.mxu0 %v3423
      %3483 = vmatpush1.msra.mxu0 %v3422
      %3484 = vmatprep.subr.mxu0 %v3431
      %3485 = vmatpush1.msra.mxu0 %v3430
      %3486 = vmatprep.subr.mxu0 %v3439
      %3487 = vmatpush1.msra.mxu0 %v3438
      %3488 = vmatprep.subr.mxu0 %v3447
      %3489 = vmatpush1.msra.mxu0 %v3446
      %3490 = vmatprep.subr.mxu0 %v3455
      %3491 = vmatpush1.msra.mxu0 %v3454
      %3492 = vmatprep.subr.mxu0 0.0
      %3493 = vmatpush1.msra.mxu0 0.0
      %3494 = vmatprep.subr.mxu0 0.0
      %3495 = vmatpush1.msra.mxu0 0.0
      %3496 = vmatprep.subr.mxu0 0.0
      %3497 = vmatpush1.msra.mxu0 0.0
      %3498 = vmatprep.subr.mxu0 0.0
      %3499 = vmatpush1.msra.mxu0 0.0
      %3500 = vmatprep.subr.mxu0 0.0
      %3501 = vmatpush1.msra.mxu0 0.0
      %3502 = vmatprep.subr.mxu0 0.0
      %3503 = vmatpush1.msra.mxu0 0.0
      %3504 = vmatprep.subr.mxu0 0.0
      %3505 = vmatpush1.msra.mxu0 0.0
      %3506 = vmatprep.subr.mxu0 0.0
      %3507 = vmatpush1.msra.mxu0 0.0
      %3508 = vmatprep.subr.mxu0 0.0
      %3509 = vmatpush1.msra.mxu0 0.0
      %3510 = vmatprep.subr.mxu0 0.0
      %3511 = vmatpush1.msra.mxu0 0.0
      %3512 = vmatprep.subr.mxu0 0.0
      %3513 = vmatpush1.msra.mxu0 0.0
      %3514 = vmatprep.subr.mxu0 0.0
      %3515 = vmatpush1.msra.mxu0 0.0
      %3516 = vmatprep.subr.mxu0 0.0
      %3517 = vmatpush1.msra.mxu0 0.0
      %3518 = vmatprep.subr.mxu0 0.0
      %3519 = vmatpush1.msra.mxu0 0.0
      %3520 = vmatprep.subr.mxu0 0.0
      %3521 = vmatpush1.msra.mxu0 0.0
      %3522 = vmatprep.subr.mxu0 0.0
      %3523 = vmatpush1.msra.mxu0 0.0
      %3524 = vmatprep.subr.mxu0 0.0
      %3525 = vmatpush1.msra.mxu0 0.0
      %3526 = vmatprep.subr.mxu0 0.0
      %3527 = vmatpush1.msra.mxu0 0.0
      %3528 = vmatprep.subr.mxu0 0.0
      %3529 = vmatpush1.msra.mxu0 0.0
      %3530 = vmatprep.subr.mxu0 0.0
      %3531 = vmatpush1.msra.mxu0 0.0
      %3532 = vmatprep.subr.mxu0 0.0
      %3533 = vmatpush1.msra.mxu0 0.0
      %3534 = vmatprep.subr.mxu0 0.0
      %3535 = vmatpush1.msra.mxu0 0.0
      %3536 = vmatprep.subr.mxu0 0.0
      %3537 = vmatpush1.msra.mxu0 0.0
      %3538 = vmatprep.subr.mxu0 0.0
      %3539 = vmatpush1.msra.mxu0 0.0
      %3540 = vmatprep.subr.mxu0 0.0
      %3541 = vmatpush1.msra.mxu0 0.0
      %3542 = vmatprep.subr.mxu0 0.0
      %3543 = vmatpush1.msra.mxu0 0.0
      %3544 = vmatprep.mubr.f32.mxu0 0.0
      %3545 = vmatmul.mubr.f32.gmra.mrb[0].mxu0 %v3463
      %v3546 = vpop.f32.mrb[0].mxu0
      %v3547 = vadd.f32 0.0, %v3546
      %v3548 = vpop.f32.mrb[0].mxu0
      %v3549 = vadd.f32 0.0, %v3548
      %3550 = vmatprep.mubr.f32.mxu0 0.0
      %3551 = vmatmul.mubr.f32.gmra.mrb[0].mxu0 %v3466
      %v3552 = vpop.f32.mrb[0].mxu0
      %v3553 = vadd.f32 0.0, %v3552
      %v3554 = vpop.f32.mrb[0].mxu0
      %v3555 = vadd.f32 0.0, %v3554
      %3556 = vmatprep.mubr.f32.mxu0 0.0
      %3557 = vmatmul.mubr.f32.gmra.mrb[0].mxu0 %v3469
      %v3558 = vpop.f32.mrb[0].mxu0
      %v3559 = vadd.f32 0.0, %v3558
      %v3560 = vpop.f32.mrb[0].mxu0
      %v3561 = vadd.f32 0.0, %v3560
      %3562 = vmatprep.mubr.f32.mxu0 0.0
      %3563 = vmatmul.mubr.f32.gmra.mrb[0].mxu0 %v3472
      %v3564 = vpop.f32.mrb[0].mxu0
      %v3565 = vadd.f32 0.0, %v3564
      %v3566 = vpop.f32.mrb[0].mxu0
      %v3567 = vadd.f32 0.0, %v3566
      %3568 = vmatprep.mubr.f32.mxu0 0.0
      %3569 = vmatmul.mubr.f32.gmra.mrb[0].mxu0 %v3475
      %v3570 = vpop.f32.mrb[0].mxu0
      %v3571 = vadd.f32 0.0, %v3570
      %v3572 = vpop.f32.mrb[0].mxu0
      %v3573 = vadd.f32 0.0, %v3572
      %3574 = vmatprep.mubr.f32.mxu0 0.0
      %3575 = vmatmul.mubr.f32.gmra.mrb[0].mxu0 %v3478
      %v3576 = vpop.f32.mrb[0].mxu0
      %v3577 = vadd.f32 0.0, %v3576
      %v3578 = vpop.f32.mrb[0].mxu0
      %v3579 = vadd.f32 0.0, %v3578
      %3580 = vdwg.mxu0
      %3581 = vmatprep.subr.mxu0 %v3417
      %3582 = vmatpush1.msra.mxu0 %v3416
      %3583 = vmatprep.subr.mxu0 %v3425
      %3584 = vmatpush1.msra.mxu0 %v3424
      %3585 = vmatprep.subr.mxu0 %v3433
      %3586 = vmatpush1.msra.mxu0 %v3432
      %3587 = vmatprep.subr.mxu0 %v3441
      %3588 = vmatpush1.msra.mxu0 %v3440
      %3589 = vmatprep.subr.mxu0 %v3449
      %3590 = vmatpush1.msra.mxu0 %v3448
      %3591 = vmatprep.subr.mxu0 %v3457
      %3592 = vmatpush1.msra.mxu0 %v3456
      %3593 = vmatprep.subr.mxu0 0.0
      %3594 = vmatpush1.msra.mxu0 0.0
      %3595 = vmatprep.subr.mxu0 0.0
      %3596 = vmatpush1.msra.mxu0 0.0
      %3597 = vmatprep.subr.mxu0 0.0
      %3598 = vmatpush1.msra.mxu0 0.0
      %3599 = vmatprep.subr.mxu0 0.0
      %3600 = vmatpush1.msra.mxu0 0.0
      %3601 = vmatprep.subr.mxu0 0.0
      %3602 = vmatpush1.msra.mxu0 0.0
      %3603 = vmatprep.subr.mxu0 0.0
      %3604 = vmatpush1.msra.mxu0 0.0
      %3605 = vmatprep.subr.mxu0 0.0
      %3606 = vmatpush1.msra.mxu0 0.0
      %3607 = vmatprep.subr.mxu0 0.0
      %3608 = vmatpush1.msra.mxu0 0.0
      %3609 = vmatprep.subr.mxu0 0.0
      %3610 = vmatpush1.msra.mxu0 0.0
      %3611 = vmatprep.subr.mxu0 0.0
      %3612 = vmatpush1.msra.mxu0 0.0
      %3613 = vmatprep.subr.mxu0 0.0
      %3614 = vmatpush1.msra.mxu0 0.0
      %3615 = vmatprep.subr.mxu0 0.0
      %3616 = vmatpush1.msra.mxu0 0.0
      %3617 = vmatprep.subr.mxu0 0.0
      %3618 = vmatpush1.msra.mxu0 0.0
      %3619 = vmatprep.subr.mxu0 0.0
      %3620 = vmatpush1.msra.mxu0 0.0
      %3621 = vmatprep.subr.mxu0 0.0
      %3622 = vmatpush1.msra.mxu0 0.0
      %3623 = vmatprep.subr.mxu0 0.0
      %3624 = vmatpush1.msra.mxu0 0.0
      %3625 = vmatprep.subr.mxu0 0.0
      %3626 = vmatpush1.msra.mxu0 0.0
      %3627 = vmatprep.subr.mxu0 0.0
      %3628 = vmatpush1.msra.mxu0 0.0
      %3629 = vmatprep.subr.mxu0 0.0
      %3630 = vmatpush1.msra.mxu0 0.0
      %3631 = vmatprep.subr.mxu0 0.0
      %3632 = vmatpush1.msra.mxu0 0.0
      %3633 = vmatprep.subr.mxu0 0.0
      %3634 = vmatpush1.msra.mxu0 0.0
      %3635 = vmatprep.subr.mxu0 0.0
      %3636 = vmatpush1.msra.mxu0 0.0
      %3637 = vmatprep.subr.mxu0 0.0
      %3638 = vmatpush1.msra.mxu0 0.0
      %3639 = vmatprep.subr.mxu0 0.0
      %3640 = vmatpush1.msra.mxu0 0.0
      %3641 = vmatprep.subr.mxu0 0.0
      %3642 = vmatpush1.msra.mxu0 0.0
      %3643 = vmatprep.subr.mxu0 0.0
      %3644 = vmatpush1.msra.mxu0 0.0
      %3645 = vmatprep.mubr.f32.mxu0 0.0
      %3646 = vmatmul.mubr.f32.gmra.mrb[0].mxu0 %v3463
      %v3647 = vpop.f32.mrb[0].mxu0
      %v3648 = vadd.f32 0.0, %v3647
      %v3649 = vpop.f32.mrb[0].mxu0
      %v3650 = vadd.f32 0.0, %v3649
      %3651 = vmatprep.mubr.f32.mxu0 0.0
      %3652 = vmatmul.mubr.f32.gmra.mrb[0].mxu0 %v3466
      %v3653 = vpop.f32.mrb[0].mxu0
      %v3654 = vadd.f32 0.0, %v3653
      %v3655 = vpop.f32.mrb[0].mxu0
      %v3656 = vadd.f32 0.0, %v3655
      %3657 = vmatprep.mubr.f32.mxu0 0.0
      %3658 = vmatmul.mubr.f32.gmra.mrb[0].mxu0 %v3469
      %v3659 = vpop.f32.mrb[0].mxu0
      %v3660 = vadd.f32 0.0, %v3659
      %v3661 = vpop.f32.mrb[0].mxu0
      %v3662 = vadd.f32 0.0, %v3661
      %3663 = vmatprep.mubr.f32.mxu0 0.0
      %3664 = vmatmul.mubr.f32.gmra.mrb[0].mxu0 %v3472
      %v3665 = vpop.f32.mrb[0].mxu0
      %v3666 = vadd.f32 0.0, %v3665
      %v3667 = vpop.f32.mrb[0].mxu0
      %v3668 = vadd.f32 0.0, %v3667
      %3669 = vmatprep.mubr.f32.mxu0 0.0
      %3670 = vmatmul.mubr.f32.gmra.mrb[0].mxu0 %v3475
      %v3671 = vpop.f32.mrb[0].mxu0
      %v3672 = vadd.f32 0.0, %v3671
      %v3673 = vpop.f32.mrb[0].mxu0
      %v3674 = vadd.f32 0.0, %v3673
      %3675 = vmatprep.mubr.f32.mxu0 0.0
      %3676 = vmatmul.mubr.f32.gmra.mrb[0].mxu0 %v3478
      %v3677 = vpop.f32.mrb[0].mxu0
      %v3678 = vadd.f32 0.0, %v3677
      %v3679 = vpop.f32.mrb[0].mxu0
      %v3680 = vadd.f32 0.0, %v3679
      %3681 = vdwg.mxu0
      %3682 = vmatprep.subr.mxu0 %v3419
      %3683 = vmatpush1.msra.mxu0 %v3418
      %3684 = vmatprep.subr.mxu0 %v3427
      %3685 = vmatpush1.msra.mxu0 %v3426
      %3686 = vmatprep.subr.mxu0 %v3435
      %3687 = vmatpush1.msra.mxu0 %v3434
      %3688 = vmatprep.subr.mxu0 %v3443
      %3689 = vmatpush1.msra.mxu0 %v3442
      %3690 = vmatprep.subr.mxu0 %v3451
      %3691 = vmatpush1.msra.mxu0 %v3450
      %3692 = vmatprep.subr.mxu0 %v3459
      %3693 = vmatpush1.msra.mxu0 %v3458
      %3694 = vmatprep.subr.mxu0 0.0
      %3695 = vmatpush1.msra.mxu0 0.0
      %3696 = vmatprep.subr.mxu0 0.0
      %3697 = vmatpush1.msra.mxu0 0.0
      %3698 = vmatprep.subr.mxu0 0.0
      %3699 = vmatpush1.msra.mxu0 0.0
      %3700 = vmatprep.subr.mxu0 0.0
      %3701 = vmatpush1.msra.mxu0 0.0
      %3702 = vmatprep.subr.mxu0 0.0
      %3703 = vmatpush1.msra.mxu0 0.0
      %3704 = vmatprep.subr.mxu0 0.0
      %3705 = vmatpush1.msra.mxu0 0.0
      %3706 = vmatprep.subr.mxu0 0.0
      %3707 = vmatpush1.msra.mxu0 0.0
      %3708 = vmatprep.subr.mxu0 0.0
      %3709 = vmatpush1.msra.mxu0 0.0
      %3710 = vmatprep.subr.mxu0 0.0
      %3711 = vmatpush1.msra.mxu0 0.0
      %3712 = vmatprep.subr.mxu0 0.0
      %3713 = vmatpush1.msra.mxu0 0.0
      %3714 = vmatprep.subr.mxu0 0.0
      %3715 = vmatpush1.msra.mxu0 0.0
      %3716 = vmatprep.subr.mxu0 0.0
      %3717 = vmatpush1.msra.mxu0 0.0
      %3718 = vmatprep.subr.mxu0 0.0
      %3719 = vmatpush1.msra.mxu0 0.0
      %3720 = vmatprep.subr.mxu0 0.0
      %3721 = vmatpush1.msra.mxu0 0.0
      %3722 = vmatprep.subr.mxu0 0.0
      %3723 = vmatpush1.msra.mxu0 0.0
      %3724 = vmatprep.subr.mxu0 0.0
      %3725 = vmatpush1.msra.mxu0 0.0
      %3726 = vmatprep.subr.mxu0 0.0
      %3727 = vmatpush1.msra.mxu0 0.0
      %3728 = vmatprep.subr.mxu0 0.0
      %3729 = vmatpush1.msra.mxu0 0.0
      %3730 = vmatprep.subr.mxu0 0.0
      %3731 = vmatpush1.msra.mxu0 0.0
      %3732 = vmatprep.subr.mxu0 0.0
      %3733 = vmatpush1.msra.mxu0 0.0
      %3734 = vmatprep.subr.mxu0 0.0
      %3735 = vmatpush1.msra.mxu0 0.0
      %3736 = vmatprep.subr.mxu0 0.0
      %3737 = vmatpush1.msra.mxu0 0.0
      %3738 = vmatprep.subr.mxu0 0.0
      %3739 = vmatpush1.msra.mxu0 0.0
      %3740 = vmatprep.subr.mxu0 0.0
      %3741 = vmatpush1.msra.mxu0 0.0
      %3742 = vmatprep.subr.mxu0 0.0
      %3743 = vmatpush1.msra.mxu0 0.0
      %3744 = vmatprep.subr.mxu0 0.0
      %3745 = vmatpush1.msra.mxu0 0.0
      %3746 = vmatprep.mubr.f32.mxu0 0.0
      %3747 = vmatmul.mubr.f32.gmra.mrb[0].mxu0 %v3463
      %v3748 = vpop.f32.mrb[0].mxu0
      %v3749 = vadd.f32 0.0, %v3748
      %v3750 = vpop.f32.mrb[0].mxu0
      %v3751 = vadd.f32 0.0, %v3750
      %3752 = vmatprep.mubr.f32.mxu0 0.0
      %3753 = vmatmul.mubr.f32.gmra.mrb[0].mxu0 %v3466
      %v3754 = vpop.f32.mrb[0].mxu0
      %v3755 = vadd.f32 0.0, %v3754
      %v3756 = vpop.f32.mrb[0].mxu0
      %v3757 = vadd.f32 0.0, %v3756
      %3758 = vmatprep.mubr.f32.mxu0 0.0
      %3759 = vmatmul.mubr.f32.gmra.mrb[0].mxu0 %v3469
      %v3760 = vpop.f32.mrb[0].mxu0
      %v3761 = vadd.f32 0.0, %v3760
      %v3762 = vpop.f32.mrb[0].mxu0
      %v3763 = vadd.f32 0.0, %v3762
      %3764 = vmatprep.mubr.f32.mxu0 0.0
      %3765 = vmatmul.mubr.f32.gmra.mrb[0].mxu0 %v3472
      %v3766 = vpop.f32.mrb[0].mxu0
      %v3767 = vadd.f32 0.0, %v3766
      %v3768 = vpop.f32.mrb[0].mxu0
      %v3769 = vadd.f32 0.0, %v3768
      %3770 = vmatprep.mubr.f32.mxu0 0.0
      %3771 = vmatmul.mubr.f32.gmra.mrb[0].mxu0 %v3475
      %v3772 = vpop.f32.mrb[0].mxu0
      %v3773 = vadd.f32 0.0, %v3772
      %v3774 = vpop.f32.mrb[0].mxu0
      %v3775 = vadd.f32 0.0, %v3774
      %3776 = vmatprep.mubr.f32.mxu0 0.0
      %3777 = vmatmul.mubr.f32.gmra.mrb[0].mxu0 %v3478
      %v3778 = vpop.f32.mrb[0].mxu0
      %v3779 = vadd.f32 0.0, %v3778
      %v3780 = vpop.f32.mrb[0].mxu0
      %v3781 = vadd.f32 0.0, %v3780
      %3782 = vdwg.mxu0
      %3783 = vmatprep.subr.mxu0 %v3421
      %3784 = vmatpush1.msra.mxu0 %v3420
      %3785 = vmatprep.subr.mxu0 %v3429
      %3786 = vmatpush1.msra.mxu0 %v3428
      %3787 = vmatprep.subr.mxu0 %v3437
      %3788 = vmatpush1.msra.mxu0 %v3436
      %3789 = vmatprep.subr.mxu0 %v3445
      %3790 = vmatpush1.msra.mxu0 %v3444
      %3791 = vmatprep.subr.mxu0 %v3453
      %3792 = vmatpush1.msra.mxu0 %v3452
      %3793 = vmatprep.subr.mxu0 %v3461
      %3794 = vmatpush1.msra.mxu0 %v3460
      %3795 = vmatprep.subr.mxu0 0.0
      %3796 = vmatpush1.msra.mxu0 0.0
      %3797 = vmatprep.subr.mxu0 0.0
      %3798 = vmatpush1.msra.mxu0 0.0
      %3799 = vmatprep.subr.mxu0 0.0
      %3800 = vmatpush1.msra.mxu0 0.0
      %3801 = vmatprep.subr.mxu0 0.0
      %3802 = vmatpush1.msra.mxu0 0.0
      %3803 = vmatprep.subr.mxu0 0.0
      %3804 = vmatpush1.msra.mxu0 0.0
      %3805 = vmatprep.subr.mxu0 0.0
      %3806 = vmatpush1.msra.mxu0 0.0
      %3807 = vmatprep.subr.mxu0 0.0
      %3808 = vmatpush1.msra.mxu0 0.0
      %3809 = vmatprep.subr.mxu0 0.0
      %3810 = vmatpush1.msra.mxu0 0.0
      %3811 = vmatprep.subr.mxu0 0.0
      %3812 = vmatpush1.msra.mxu0 0.0
      %3813 = vmatprep.subr.mxu0 0.0
      %3814 = vmatpush1.msra.mxu0 0.0
      %3815 = vmatprep.subr.mxu0 0.0
      %3816 = vmatpush1.msra.mxu0 0.0
      %3817 = vmatprep.subr.mxu0 0.0
      %3818 = vmatpush1.msra.mxu0 0.0
      %3819 = vmatprep.subr.mxu0 0.0
      %3820 = vmatpush1.msra.mxu0 0.0
      %3821 = vmatprep.subr.mxu0 0.0
      %3822 = vmatpush1.msra.mxu0 0.0
      %3823 = vmatprep.subr.mxu0 0.0
      %3824 = vmatpush1.msra.mxu0 0.0
      %3825 = vmatprep.subr.mxu0 0.0
      %3826 = vmatpush1.msra.mxu0 0.0
      %3827 = vmatprep.subr.mxu0 0.0
      %3828 = vmatpush1.msra.mxu0 0.0
      %3829 = vmatprep.subr.mxu0 0.0
      %3830 = vmatpush1.msra.mxu0 0.0
      %3831 = vmatprep.subr.mxu0 0.0
      %3832 = vmatpush1.msra.mxu0 0.0
      %3833 = vmatprep.subr.mxu0 0.0
      %3834 = vmatpush1.msra.mxu0 0.0
      %3835 = vmatprep.subr.mxu0 0.0
      %3836 = vmatpush1.msra.mxu0 0.0
      %3837 = vmatprep.subr.mxu0 0.0
      %3838 = vmatpush1.msra.mxu0 0.0
      %3839 = vmatprep.subr.mxu0 0.0
      %3840 = vmatpush1.msra.mxu0 0.0
      %3841 = vmatprep.subr.mxu0 0.0
      %3842 = vmatpush1.msra.mxu0 0.0
      %3843 = vmatprep.subr.mxu0 0.0
      %3844 = vmatpush1.msra.mxu0 0.0
      %3845 = vmatprep.subr.mxu0 0.0
      %3846 = vmatpush1.msra.mxu0 0.0
      %3847 = vmatprep.mubr.f32.mxu0 0.0
      %3848 = vmatmul.mubr.f32.gmra.mrb[0].mxu0 %v3463
      %v3849 = vpop.f32.mrb[0].mxu0
      %v3850 = vadd.f32 0.0, %v3849
      %v3851 = vpop.f32.mrb[0].mxu0
      %v3852 = vadd.f32 0.0, %v3851
      %3853 = vmatprep.mubr.f32.mxu0 0.0
      %3854 = vmatmul.mubr.f32.gmra.mrb[0].mxu0 %v3466
      %v3855 = vpop.f32.mrb[0].mxu0
      %v3856 = vadd.f32 0.0, %v3855
      %v3857 = vpop.f32.mrb[0].mxu0
      %v3858 = vadd.f32 0.0, %v3857
      %3859 = vmatprep.mubr.f32.mxu0 0.0
      %3860 = vmatmul.mubr.f32.gmra.mrb[0].mxu0 %v3469
      %v3861 = vpop.f32.mrb[0].mxu0
      %v3862 = vadd.f32 0.0, %v3861
      %v3863 = vpop.f32.mrb[0].mxu0
      %v3864 = vadd.f32 0.0, %v3863
      %3865 = vmatprep.mubr.f32.mxu0 0.0
      %3866 = vmatmul.mubr.f32.gmra.mrb[0].mxu0 %v3472
      %v3867 = vpop.f32.mrb[0].mxu0
      %v3868 = vadd.f32 0.0, %v3867
      %v3869 = vpop.f32.mrb[0].mxu0
      %v3870 = vadd.f32 0.0, %v3869
      %3871 = vmatprep.mubr.f32.mxu0 0.0
      %3872 = vmatmul.mubr.f32.gmra.mrb[0].mxu0 %v3475
      %v3873 = vpop.f32.mrb[0].mxu0
      %v3874 = vadd.f32 0.0, %v3873
      %v3875 = vpop.f32.mrb[0].mxu0
      %v3876 = vadd.f32 0.0, %v3875
      %3877 = vmatprep.mubr.f32.mxu0 0.0
      %3878 = vmatmul.mubr.f32.gmra.mrb[0].mxu0 %v3478
      %v3879 = vpop.f32.mrb[0].mxu0
      %v3880 = vadd.f32 0.0, %v3879
      %v3881 = vpop.f32.mrb[0].mxu0
      %v3882 = vadd.f32 0.0, %v3881
      %3883 = vdwg.mxu0
      %3884 = vrot.lane.b32.xlu0 %v3547, 32
      %v3885 = vpop.permute.xlu0 %3884
      %3886 = vrot.lane.b32.xlu0 %v3553, 32
      %v3887 = vpop.permute.xlu0 %3886
      %3888 = vrot.lane.b32.xlu0 %v3549, 32
      %v3889 = vpop.permute.xlu0 %3888
      %3890 = vrot.lane.b32.xlu0 %v3555, 32
      %v3891 = vpop.permute.xlu0 %3890
      %3892 = vrot.lane.b32.xlu0 %v3648, 32
      %v3893 = vpop.permute.xlu0 %3892
      %3894 = vrot.lane.b32.xlu0 %v3654, 32
      %v3895 = vpop.permute.xlu0 %3894
      %3896 = vrot.lane.b32.xlu0 %v3650, 32
      %v3897 = vpop.permute.xlu0 %3896
      %3898 = vrot.lane.b32.xlu0 %v3656, 32
      %v3899 = vpop.permute.xlu0 %3898
      %3900 = vrot.lane.b32.xlu0 %v3749, 32
      %v3901 = vpop.permute.xlu0 %3900
      %3902 = vrot.lane.b32.xlu0 %v3755, 32
      %v3903 = vpop.permute.xlu0 %3902
      %3904 = vrot.lane.b32.xlu0 %v3751, 32
      %v3905 = vpop.permute.xlu0 %3904
      %3906 = vrot.lane.b32.xlu0 %v3757, 32
      %v3907 = vpop.permute.xlu0 %3906
      %3908 = vrot.lane.b32.xlu0 %v3850, 32
      %v3909 = vpop.permute.xlu0 %3908
      %3910 = vrot.lane.b32.xlu0 %v3856, 32
      %v3911 = vpop.permute.xlu0 %3910
      %3912 = vrot.lane.b32.xlu0 %v3852, 32
      %v3913 = vpop.permute.xlu0 %3912
      %3914 = vrot.lane.b32.xlu0 %v3858, 32
      %v3915 = vpop.permute.xlu0 %3914
      %v3916 = vsel %vm2359, %v3909, %v3913
      %v3917 = vsel %vm2359, %v3911, %v3915
      %v3918 = vsel %vm2359, %v3905, %v3909
      %v3919 = vsel %vm2359, %v3907, %v3911
      %v3920 = vsel %vm2359, %v3901, %v3905
      %v3921 = vsel %vm2359, %v3903, %v3907
      %v3922 = vsel %vm2359, %v3897, %v3901
      %v3923 = vsel %vm2359, %v3899, %v3903
      %v3924 = vsel %vm2359, %v3893, %v3897
      %v3925 = vsel %vm2359, %v3895, %v3899
      %v3926 = vsel %vm2359, %v3889, %v3893
      %v3927 = vsel %vm2359, %v3891, %v3895
      %v3928 = vsel %vm2359, %v3885, %v3889
      %v3929 = vsel %vm2359, %v3887, %v3891
      %v3930 = vsel %vm2359, %v3913, %v3885
      %v3931 = vsel %vm2359, %v3915, %v3887
      %v3932 = vsel %vm2384, %v3930, 0.0
      %v3933 = vsel %vm2385, %v3928, 0.0
      %v3934 = vsel %vm2386, %v3926, 0.0
      %v3935 = vsel %vm2387, %v3924, 0.0
      %v3936 = vsel %vm2388, %v3922, 0.0
      %v3937 = vsel %vm2389, %v3920, 0.0
      %v3938 = vsel %vm2390, %v3918, 0.0
      %v3939 = vsel %vm2391, %v3916, 0.0
      %v3940 = vsel %vm2384, %v3931, 0.0
      %v3941 = vsel %vm2385, %v3929, 0.0
      %v3942 = vsel %vm2386, %v3927, 0.0
      %v3943 = vsel %vm2387, %v3925, 0.0
      %v3944 = vsel %vm2388, %v3923, 0.0
      %v3945 = vsel %vm2389, %v3921, 0.0
      %v3946 = vsel %vm2390, %v3919, 0.0
      %v3947 = vsel %vm2391, %v3917, 0.0
      %3948 = vrot.lane.b32.xlu0 %v3571, 96
      %v3949 = vpop.permute.xlu0 %3948
      %3950 = vrot.lane.b32.xlu0 %v3577, 96
      %v3951 = vpop.permute.xlu0 %3950
      %3952 = vrot.lane.b32.xlu0 %v3573, 96
      %v3953 = vpop.permute.xlu0 %3952
      %3954 = vrot.lane.b32.xlu0 %v3579, 96
      %v3955 = vpop.permute.xlu0 %3954
      %3956 = vrot.lane.b32.xlu0 %v3672, 96
      %v3957 = vpop.permute.xlu0 %3956
      %3958 = vrot.lane.b32.xlu0 %v3678, 96
      %v3959 = vpop.permute.xlu0 %3958
      %3960 = vrot.lane.b32.xlu0 %v3674, 96
      %v3961 = vpop.permute.xlu0 %3960
      %3962 = vrot.lane.b32.xlu0 %v3680, 96
      %v3963 = vpop.permute.xlu0 %3962
      %3964 = vrot.lane.b32.xlu0 %v3773, 96
      %v3965 = vpop.permute.xlu0 %3964
      %3966 = vrot.lane.b32.xlu0 %v3779, 96
      %v3967 = vpop.permute.xlu0 %3966
      %3968 = vrot.lane.b32.xlu0 %v3775, 96
      %v3969 = vpop.permute.xlu0 %3968
      %3970 = vrot.lane.b32.xlu0 %v3781, 96
      %v3971 = vpop.permute.xlu0 %3970
      %3972 = vrot.lane.b32.xlu0 %v3874, 96
      %v3973 = vpop.permute.xlu0 %3972
      %3974 = vrot.lane.b32.xlu0 %v3880, 96
      %v3975 = vpop.permute.xlu0 %3974
      %3976 = vrot.lane.b32.xlu0 %v3876, 96
      %v3977 = vpop.permute.xlu0 %3976
      %3978 = vrot.lane.b32.xlu0 %v3882, 96
      %v3979 = vpop.permute.xlu0 %3978
      %v3980 = vsel %vm2440, %v3973, %v3977
      %v3981 = vsel %vm2440, %v3975, %v3979
      %v3982 = vsel %vm2440, %v3969, %v3973
      %v3983 = vsel %vm2440, %v3971, %v3975
      %v3984 = vsel %vm2440, %v3965, %v3969
      %v3985 = vsel %vm2440, %v3967, %v3971
      %v3986 = vsel %vm2440, %v3961, %v3965
      %v3987 = vsel %vm2440, %v3963, %v3967
      %v3988 = vsel %vm2440, %v3957, %v3961
      %v3989 = vsel %vm2440, %v3959, %v3963
      %v3990 = vsel %vm2440, %v3953, %v3957
      %v3991 = vsel %vm2440, %v3955, %v3959
      %v3992 = vsel %vm2440, %v3949, %v3953
      %v3993 = vsel %vm2440, %v3951, %v3955
      %v3994 = vsel %vm2440, %v3977, %v3949
      %v3995 = vsel %vm2440, %v3979, %v3951
      %v3996 = vsel %vm2465, %v3992, 0.0
      %v3997 = vsel %vm2466, %v3990, 0.0
      %v3998 = vsel %vm2467, %v3988, 0.0
      %v3999 = vsel %vm2468, %v3986, 0.0
      %v4000 = vsel %vm2469, %v3984, 0.0
      %v4001 = vsel %vm2470, %v3982, 0.0
      %v4002 = vsel %vm2471, %v3980, 0.0
      %v4003 = vsel %vm2472, %v3994, 0.0
      %v4004 = vsel %vm2465, %v3993, 0.0
      %v4005 = vsel %vm2466, %v3991, 0.0
      %v4006 = vsel %vm2467, %v3989, 0.0
      %v4007 = vsel %vm2468, %v3987, 0.0
      %v4008 = vsel %vm2469, %v3985, 0.0
      %v4009 = vsel %vm2470, %v3983, 0.0
      %v4010 = vsel %vm2471, %v3981, 0.0
      %v4011 = vsel %vm2472, %v3995, 0.0
      %v4012 = vadd.f32 %v3932, %v3559
      %v4013 = vadd.f32 %v3933, %v3561
      %v4014 = vadd.f32 %v3934, %v3660
      %v4015 = vadd.f32 %v3935, %v3662
      %v4016 = vadd.f32 %v3936, %v3761
      %v4017 = vadd.f32 %v3937, %v3763
      %v4018 = vadd.f32 %v3938, %v3862
      %v4019 = vadd.f32 %v3939, %v3864
      %v4020 = vadd.f32 %v3940, %v3565
      %v4021 = vadd.f32 %v3941, %v3567
      %v4022 = vadd.f32 %v3942, %v3666
      %v4023 = vadd.f32 %v3943, %v3668
      %v4024 = vadd.f32 %v3944, %v3767
      %v4025 = vadd.f32 %v3945, %v3769
      %v4026 = vadd.f32 %v3946, %v3868
      %v4027 = vadd.f32 %v3947, %v3870
      %v4028 = vadd.f32 %v4012, %v3996
      %v4029 = vadd.f32 %v4013, %v3997
      %v4030 = vadd.f32 %v4014, %v3998
      %v4031 = vadd.f32 %v4015, %v3999
      %v4032 = vadd.f32 %v4016, %v4000
      %v4033 = vadd.f32 %v4017, %v4001
      %v4034 = vadd.f32 %v4018, %v4002
      %v4035 = vadd.f32 %v4019, %v4003
      %v4036 = vadd.f32 %v4020, %v4004
      %v4037 = vadd.f32 %v4021, %v4005
      %v4038 = vadd.f32 %v4022, %v4006
      %v4039 = vadd.f32 %v4023, %v4007
      %v4040 = vadd.f32 %v4024, %v4008
      %v4041 = vadd.f32 %v4025, %v4009
      %v4042 = vadd.f32 %v4026, %v4010
      %v4043 = vadd.f32 %v4027, %v4011
      %v4044 = vld [vmem:[%s15] sm:$0xff]
      %v4045 = vld [vmem:[%s15 + $0x8] sm:$0xff]
      %4047 = vset.pattern.permute.xlu0 0
      %4048 = vperm.xlu0 %4047, %v4044
      %v4049 = vpop.permute.xlu0 %4048
      %4052 = vset.pattern.permute.xlu0 0
      %4053 = vperm.xlu0 %4052, %v4045
      %v4054 = vpop.permute.xlu0 %4053
      %v4056 = vadd.f32 %v4028, %v4049
      %v4057 = vadd.f32 %v4029, %v4049
      %v4058 = vadd.f32 %v4030, %v4049
      %v4059 = vadd.f32 %v4031, %v4049
      %v4060 = vadd.f32 %v4032, %v4049
      %v4061 = vadd.f32 %v4033, %v4049
      %v4062 = vadd.f32 %v4034, %v4049
      %v4063 = vadd.f32 %v4035, %v4049
      %v4064 = vadd.f32 %v4036, %v4054
      %v4065 = vadd.f32 %v4037, %v4054
      %v4066 = vadd.f32 %v4038, %v4054
      %v4067 = vadd.f32 %v4039, %v4054
      %v4068 = vadd.f32 %v4040, %v4054
      %v4069 = vadd.f32 %v4041, %v4054
      %v4070 = vadd.f32 %v4042, %v4054
      %v4071 = vadd.f32 %v4043, %v4054
      %v4072 = vadd.f32 %v3156, %v4056
      %v4073 = vadd.f32 %v3157, %v4057
      %v4074 = vadd.f32 %v3158, %v4058
      %v4075 = vadd.f32 %v3159, %v4059
      %v4076 = vadd.f32 %v3160, %v4060
      %v4077 = vadd.f32 %v3161, %v4061
      %v4078 = vadd.f32 %v3162, %v4062
      %v4079 = vadd.f32 %v3163, %v4063
      %v4080 = vadd.f32 %v3164, %v4064
      %v4081 = vadd.f32 %v3165, %v4065
      %v4082 = vadd.f32 %v3166, %v4066
      %v4083 = vadd.f32 %v3167, %v4067
      %v4084 = vadd.f32 %v3168, %v4068
      %v4085 = vadd.f32 %v3169, %v4069
      %v4086 = vadd.f32 %v3170, %v4070
      %v4087 = vadd.f32 %v3171, %v4071
      %4088 = vst [vmem:[#allocation2] sm:$0xff] %v4072
      %4089 = vst [vmem:[#allocation2 + $0x8] sm:$0xff] %v4073
      %4090 = vst [vmem:[#allocation2 + $0x10] sm:$0xff] %v4074
      %4091 = vst [vmem:[#allocation2 + $0x18] sm:$0xff] %v4075
      %4092 = vst [vmem:[#allocation2 + $0x20] sm:$0xff] %v4076
      %4093 = vst [vmem:[#allocation2 + $0x28] sm:$0xff] %v4077
      %4094 = vst [vmem:[#allocation2 + $0x30] sm:$0xff] %v4078
      %4095 = vst [vmem:[#allocation2 + $0x38] sm:$0xff] %v4079
      %4096 = vst [vmem:[#allocation2 + $0x40] sm:$0xff] %v4080
      %4097 = vst [vmem:[#allocation2 + $0x48] sm:$0xff] %v4081
      %4098 = vst [vmem:[#allocation2 + $0x50] sm:$0xff] %v4082
      %4099 = vst [vmem:[#allocation2 + $0x58] sm:$0xff] %v4083
      %4100 = vst [vmem:[#allocation2 + $0x60] sm:$0xff] %v4084
      %4101 = vst [vmem:[#allocation2 + $0x68] sm:$0xff] %v4085
      %4102 = vst [vmem:[#allocation2 + $0x70] sm:$0xff] %v4086
      %4103 = vst [vmem:[#allocation2 + $0x78] sm:$0xff] %v4087
      %v4104 = vld [vmem:[#allocation2] sm:$0xff]
      %v4105 = vld [vmem:[#allocation2 + $0x8] sm:$0xff]
      %v4106 = vld [vmem:[#allocation2 + $0x10] sm:$0xff]
      %v4107 = vld [vmem:[#allocation2 + $0x18] sm:$0xff]
      %v4108 = vld [vmem:[#allocation2 + $0x20] sm:$0xff]
      %v4109 = vld [vmem:[#allocation2 + $0x28] sm:$0xff]
      %v4110 = vld [vmem:[#allocation2 + $0x30] sm:$0xff]
      %v4111 = vld [vmem:[#allocation2 + $0x38] sm:$0xff]
      %v4112 = vld [vmem:[#allocation2 + $0x40] sm:$0xff]
      %v4113 = vld [vmem:[#allocation2 + $0x48] sm:$0xff]
      %v4114 = vld [vmem:[#allocation2 + $0x50] sm:$0xff]
      %v4115 = vld [vmem:[#allocation2 + $0x58] sm:$0xff]
      %v4116 = vld [vmem:[#allocation2 + $0x60] sm:$0xff]
      %v4117 = vld [vmem:[#allocation2 + $0x68] sm:$0xff]
      %v4118 = vld [vmem:[#allocation2 + $0x70] sm:$0xff]
      %v4119 = vld [vmem:[#allocation2 + $0x78] sm:$0xff]
      %v4120 = vld [vmem:[%s7] sm:$0xff]
      %v4121 = vld [vmem:[%s7 + $0x8] sm:$0xff]
      %vm4122 = vcmp.ge.f32.partialorder %v4104, 0.0
      %vm4123 = vcmp.ge.f32.partialorder %v4105, 0.0
      %vm4124 = vcmp.ge.f32.partialorder %v4106, 0.0
      %vm4125 = vcmp.ge.f32.partialorder %v4107, 0.0
      %vm4126 = vcmp.ge.f32.partialorder %v4108, 0.0
      %vm4127 = vcmp.ge.f32.partialorder %v4109, 0.0
      %vm4128 = vcmp.ge.f32.partialorder %v4110, 0.0
      %vm4129 = vcmp.ge.f32.partialorder %v4111, 0.0
      %vm4130 = vcmp.ge.f32.partialorder %v4112, 0.0
      %vm4131 = vcmp.ge.f32.partialorder %v4113, 0.0
      %vm4132 = vcmp.ge.f32.partialorder %v4114, 0.0
      %vm4133 = vcmp.ge.f32.partialorder %v4115, 0.0
      %vm4134 = vcmp.ge.f32.partialorder %v4116, 0.0
      %vm4135 = vcmp.ge.f32.partialorder %v4117, 0.0
      %vm4136 = vcmp.ge.f32.partialorder %v4118, 0.0
      %vm4137 = vcmp.ge.f32.partialorder %v4119, 0.0
      %4139 = vset.pattern.permute.xlu0 0
      %4140 = vperm.xlu0 %4139, %v4120
      %v4141 = vpop.permute.xlu0 %4140
      %4144 = vset.pattern.permute.xlu0 0
      %4145 = vperm.xlu0 %4144, %v4121
      %v4146 = vpop.permute.xlu0 %4145
      %v4148 = vmul.f32 %v4104, %v4141
      %v4149 = vmul.f32 %v4105, %v4141
      %v4150 = vmul.f32 %v4106, %v4141
      %v4151 = vmul.f32 %v4107, %v4141
      %v4152 = vmul.f32 %v4108, %v4141
      %v4153 = vmul.f32 %v4109, %v4141
      %v4154 = vmul.f32 %v4110, %v4141
      %v4155 = vmul.f32 %v4111, %v4141
      %v4156 = vmul.f32 %v4112, %v4146
      %v4157 = vmul.f32 %v4113, %v4146
      %v4158 = vmul.f32 %v4114, %v4146
      %v4159 = vmul.f32 %v4115, %v4146
      %v4160 = vmul.f32 %v4116, %v4146
      %v4161 = vmul.f32 %v4117, %v4146
      %v4162 = vmul.f32 %v4118, %v4146
      %v4163 = vmul.f32 %v4119, %v4146
      %v4164 = vsel %vm4122, %v4104, %v4148
      %v4165 = vsel %vm4123, %v4105, %v4149
      %v4166 = vsel %vm4124, %v4106, %v4150
      %v4167 = vsel %vm4125, %v4107, %v4151
      %v4168 = vsel %vm4126, %v4108, %v4152
      %v4169 = vsel %vm4127, %v4109, %v4153
      %v4170 = vsel %vm4128, %v4110, %v4154
      %v4171 = vsel %vm4129, %v4111, %v4155
      %v4172 = vsel %vm4130, %v4112, %v4156
      %v4173 = vsel %vm4131, %v4113, %v4157
      %v4174 = vsel %vm4132, %v4114, %v4158
      %v4175 = vsel %vm4133, %v4115, %v4159
      %v4176 = vsel %vm4134, %v4116, %v4160
      %v4177 = vsel %vm4135, %v4117, %v4161
      %v4178 = vsel %vm4136, %v4118, %v4162
      %v4179 = vsel %vm4137, %v4119, %v4163
      %4180 = vst [vmem:[#allocation3] sm:$0xff] %v4164
      %4181 = vst [vmem:[#allocation3 + $0x8] sm:$0xff] %v4165
      %4182 = vst [vmem:[#allocation3 + $0x10] sm:$0xff] %v4166
      %4183 = vst [vmem:[#allocation3 + $0x18] sm:$0xff] %v4167
      %4184 = vst [vmem:[#allocation3 + $0x20] sm:$0xff] %v4168
      %4185 = vst [vmem:[#allocation3 + $0x28] sm:$0xff] %v4169
      %4186 = vst [vmem:[#allocation3 + $0x30] sm:$0xff] %v4170
      %4187 = vst [vmem:[#allocation3 + $0x38] sm:$0xff] %v4171
      %4188 = vst [vmem:[#allocation3 + $0x40] sm:$0xff] %v4172
      %4189 = vst [vmem:[#allocation3 + $0x48] sm:$0xff] %v4173
      %4190 = vst [vmem:[#allocation3 + $0x50] sm:$0xff] %v4174
      %4191 = vst [vmem:[#allocation3 + $0x58] sm:$0xff] %v4175
      %4192 = vst [vmem:[#allocation3 + $0x60] sm:$0xff] %v4176
      %4193 = vst [vmem:[#allocation3 + $0x68] sm:$0xff] %v4177
      %4194 = vst [vmem:[#allocation3 + $0x70] sm:$0xff] %v4178
      %4195 = vst [vmem:[#allocation3 + $0x78] sm:$0xff] %v4179
      %v4196 = vld [vmem:[#allocation4 + $0x40] sm:$0xff]
      %v4197 = vld [vmem:[#allocation4 + $0x48] sm:$0xff]
      %v4198 = vld [vmem:[#allocation4 + $0x50] sm:$0xff]
      %v4199 = vld [vmem:[#allocation4 + $0x58] sm:$0xff]
      %v4200 = vld [vmem:[#allocation4 + $0x60] sm:$0xff]
      %v4201 = vld [vmem:[#allocation4 + $0x68] sm:$0xff]
      %v4202 = vld [vmem:[#allocation4 + $0x70] sm:$0xff]
      %v4203 = vld [vmem:[#allocation4 + $0x78] sm:$0xff]
      %v4204 = vld [vmem:[%s7 + $0x10] sm:$0xff]
      %vm4205 = vcmp.ge.f32.partialorder %v4196, 0.0
      %vm4206 = vcmp.ge.f32.partialorder %v4197, 0.0
      %vm4207 = vcmp.ge.f32.partialorder %v4198, 0.0
      %vm4208 = vcmp.ge.f32.partialorder %v4199, 0.0
      %vm4209 = vcmp.ge.f32.partialorder %v4200, 0.0
      %vm4210 = vcmp.ge.f32.partialorder %v4201, 0.0
      %vm4211 = vcmp.ge.f32.partialorder %v4202, 0.0
      %vm4212 = vcmp.ge.f32.partialorder %v4203, 0.0
      %4214 = vset.pattern.permute.xlu0 0
      %4215 = vperm.xlu0 %4214, %v4204
      %v4216 = vpop.permute.xlu0 %4215
      %v4218 = vmul.f32 %v4196, %v4216
      %v4219 = vmul.f32 %v4197, %v4216
      %v4220 = vmul.f32 %v4198, %v4216
      %v4221 = vmul.f32 %v4199, %v4216
      %v4222 = vmul.f32 %v4200, %v4216
      %v4223 = vmul.f32 %v4201, %v4216
      %v4224 = vmul.f32 %v4202, %v4216
      %v4225 = vmul.f32 %v4203, %v4216
      %v4226 = vsel %vm4205, %v4196, %v4218
      %v4227 = vsel %vm4206, %v4197, %v4219
      %v4228 = vsel %vm4207, %v4198, %v4220
      %v4229 = vsel %vm4208, %v4199, %v4221
      %v4230 = vsel %vm4209, %v4200, %v4222
      %v4231 = vsel %vm4210, %v4201, %v4223
      %v4232 = vsel %vm4211, %v4202, %v4224
      %v4233 = vsel %vm4212, %v4203, %v4225
      %4234 = vst [vmem:[#allocation3 + $0x80] sm:$0xff] %v4226
      %4235 = vst [vmem:[#allocation3 + $0x88] sm:$0xff] %v4227
      %4236 = vst [vmem:[#allocation3 + $0x90] sm:$0xff] %v4228
      %4237 = vst [vmem:[#allocation3 + $0x98] sm:$0xff] %v4229
      %4238 = vst [vmem:[#allocation3 + $0xa0] sm:$0xff] %v4230
      %4239 = vst [vmem:[#allocation3 + $0xa8] sm:$0xff] %v4231
      %4240 = vst [vmem:[#allocation3 + $0xb0] sm:$0xff] %v4232
      %4241 = vst [vmem:[#allocation3 + $0xb8] sm:$0xff] %v4233
      %v4242 = vld [vmem:[#allocation4 + $0xc0] sm:$0xff]
      %v4243 = vld [vmem:[#allocation4 + $0xc8] sm:$0xff]
      %v4244 = vld [vmem:[#allocation4 + $0xd0] sm:$0xff]
      %v4245 = vld [vmem:[#allocation4 + $0xd8] sm:$0xff]
      %v4246 = vld [vmem:[#allocation4 + $0xe0] sm:$0xff]
      %v4247 = vld [vmem:[#allocation4 + $0xe8] sm:$0xff]
      %v4248 = vld [vmem:[#allocation4 + $0xf0] sm:$0xff]
      %v4249 = vld [vmem:[#allocation4 + $0xf8] sm:$0xff]
      %v4250 = vld [vmem:[%s7 + $0x18] sm:$0xff]
      %vm4251 = vcmp.ge.f32.partialorder %v4242, 0.0
      %vm4252 = vcmp.ge.f32.partialorder %v4243, 0.0
      %vm4253 = vcmp.ge.f32.partialorder %v4244, 0.0
      %vm4254 = vcmp.ge.f32.partialorder %v4245, 0.0
      %vm4255 = vcmp.ge.f32.partialorder %v4246, 0.0
      %vm4256 = vcmp.ge.f32.partialorder %v4247, 0.0
      %vm4257 = vcmp.ge.f32.partialorder %v4248, 0.0
      %vm4258 = vcmp.ge.f32.partialorder %v4249, 0.0
      %4260 = vset.pattern.permute.xlu0 0
      %4261 = vperm.xlu0 %4260, %v4250
      %v4262 = vpop.permute.xlu0 %4261
      %v4264 = vmul.f32 %v4242, %v4262
      %v4265 = vmul.f32 %v4243, %v4262
      %v4266 = vmul.f32 %v4244, %v4262
      %v4267 = vmul.f32 %v4245, %v4262
      %v4268 = vmul.f32 %v4246, %v4262
      %v4269 = vmul.f32 %v4247, %v4262
      %v4270 = vmul.f32 %v4248, %v4262
      %v4271 = vmul.f32 %v4249, %v4262
      %v4272 = vsel %vm4251, %v4242, %v4264
      %v4273 = vsel %vm4252, %v4243, %v4265
      %v4274 = vsel %vm4253, %v4244, %v4266
      %v4275 = vsel %vm4254, %v4245, %v4267
      %v4276 = vsel %vm4255, %v4246, %v4268
      %v4277 = vsel %vm4256, %v4247, %v4269
      %v4278 = vsel %vm4257, %v4248, %v4270
      %v4279 = vsel %vm4258, %v4249, %v4271
      %4280 = vst [vmem:[#allocation3 + $0xc0] sm:$0xff] %v4272
      %4281 = vst [vmem:[#allocation3 + $0xc8] sm:$0xff] %v4273
      %4282 = vst [vmem:[#allocation3 + $0xd0] sm:$0xff] %v4274
      %4283 = vst [vmem:[#allocation3 + $0xd8] sm:$0xff] %v4275
      %4284 = vst [vmem:[#allocation3 + $0xe0] sm:$0xff] %v4276
      %4285 = vst [vmem:[#allocation3 + $0xe8] sm:$0xff] %v4277
      %4286 = vst [vmem:[#allocation3 + $0xf0] sm:$0xff] %v4278
      %4287 = vst [vmem:[#allocation3 + $0xf8] sm:$0xff] %v4279
      %v4288 = vld [vmem:[%s8] sm:$0xff]
      %v4289 = vld [vmem:[%s8 + $0x8] sm:$0xff]
      %v4290 = vld [vmem:[%s8 + $0x10] sm:$0xff]
      %v4291 = vld [vmem:[#allocation3] sm:$0xff]
      %v4292 = vld [vmem:[#allocation3 + $0x8] sm:$0xff]
      %v4293 = vld [vmem:[#allocation3 + $0x10] sm:$0xff]
      %v4294 = vld [vmem:[#allocation3 + $0x18] sm:$0xff]
      %v4295 = vld [vmem:[#allocation3 + $0x20] sm:$0xff]
      %v4296 = vld [vmem:[#allocation3 + $0x28] sm:$0xff]
      %v4297 = vld [vmem:[#allocation3 + $0x30] sm:$0xff]
      %v4298 = vld [vmem:[#allocation3 + $0x38] sm:$0xff]
      %v4299 = vld [vmem:[#allocation3 + $0x40] sm:$0xff]
      %v4300 = vld [vmem:[#allocation3 + $0x48] sm:$0xff]
      %v4301 = vld [vmem:[#allocation3 + $0x50] sm:$0xff]
      %v4302 = vld [vmem:[#allocation3 + $0x58] sm:$0xff]
      %v4303 = vld [vmem:[#allocation3 + $0x60] sm:$0xff]
      %v4304 = vld [vmem:[#allocation3 + $0x68] sm:$0xff]
      %v4305 = vld [vmem:[#allocation3 + $0x70] sm:$0xff]
      %v4306 = vld [vmem:[#allocation3 + $0x78] sm:$0xff]
      %v4307 = vld [vmem:[#allocation3 + $0x80] sm:$0xff]
      %v4308 = vld [vmem:[#allocation3 + $0x88] sm:$0xff]
      %v4309 = vld [vmem:[#allocation3 + $0x90] sm:$0xff]
      %v4310 = vld [vmem:[#allocation3 + $0x98] sm:$0xff]
      %v4311 = vld [vmem:[#allocation3 + $0xa0] sm:$0xff]
      %v4312 = vld [vmem:[#allocation3 + $0xa8] sm:$0xff]
      %v4313 = vld [vmem:[#allocation3 + $0xb0] sm:$0xff]
      %v4314 = vld [vmem:[#allocation3 + $0xb8] sm:$0xff]
      %v4315 = vld [vmem:[#allocation3 + $0xc0] sm:$0xff]
      %v4316 = vld [vmem:[#allocation3 + $0xc8] sm:$0xff]
      %v4317 = vld [vmem:[#allocation3 + $0xd0] sm:$0xff]
      %v4318 = vld [vmem:[#allocation3 + $0xd8] sm:$0xff]
      %v4319 = vld [vmem:[#allocation3 + $0xe0] sm:$0xff]
      %v4320 = vld [vmem:[#allocation3 + $0xe8] sm:$0xff]
      %v4321 = vld [vmem:[#allocation3 + $0xf0] sm:$0xff]
      %v4322 = vld [vmem:[#allocation3 + $0xf8] sm:$0xff]
      %v4323 = vld [vmem:[%s9] sm:$0xff]
      %v4324 = vld [vmem:[%s9 + $0x8] sm:$0xff]
      %v4325 = vld [vmem:[%s9 + $0x10] sm:$0xff]
      %4327 = vset.pattern.permute.xlu0 0
      %4328 = vperm.xlu0 %4327, %v4323
      %v4329 = vpop.permute.xlu0 %4328
      %4332 = vset.pattern.permute.xlu0 0
      %4333 = vperm.xlu0 %4332, %v4324
      %v4334 = vpop.permute.xlu0 %4333
      %4337 = vset.pattern.permute.xlu0 0
      %4338 = vperm.xlu0 %4337, %v4325
      %v4339 = vpop.permute.xlu0 %4338
      %vm4341 = vcmask 261120
      %v4343 = vsel %vm4341, %v4288, 0
      %v4346 = vsel %vm4341, %v4289, 0
      %v4349 = vsel %vm4341, %v4290, 0
      %4351 = vmatprep.subr.mxu0 %v4292
      %4352 = vmatpush1.msra.mxu0 %v4291
      %4353 = vmatprep.subr.mxu0 %v4300
      %4354 = vmatpush1.msra.mxu0 %v4299
      %4355 = vmatprep.subr.mxu0 %v4308
      %4356 = vmatpush1.msra.mxu0 %v4307
      %4357 = vmatprep.subr.mxu0 %v4316
      %4358 = vmatpush1.msra.mxu0 %v4315
      %4359 = vmatprep.subr.mxu0 0.0
      %4360 = vmatpush1.msra.mxu0 0.0
      %4361 = vmatprep.subr.mxu0 0.0
      %4362 = vmatpush1.msra.mxu0 0.0
      %4363 = vmatprep.subr.mxu0 0.0
      %4364 = vmatpush1.msra.mxu0 0.0
      %4365 = vmatprep.subr.mxu0 0.0
      %4366 = vmatpush1.msra.mxu0 0.0
      %4367 = vmatprep.subr.mxu0 0.0
      %4368 = vmatpush1.msra.mxu0 0.0
      %4369 = vmatprep.subr.mxu0 0.0
      %4370 = vmatpush1.msra.mxu0 0.0
      %4371 = vmatprep.subr.mxu0 0.0
      %4372 = vmatpush1.msra.mxu0 0.0
      %4373 = vmatprep.subr.mxu0 0.0
      %4374 = vmatpush1.msra.mxu0 0.0
      %4375 = vmatprep.subr.mxu0 0.0
      %4376 = vmatpush1.msra.mxu0 0.0
      %4377 = vmatprep.subr.mxu0 0.0
      %4378 = vmatpush1.msra.mxu0 0.0
      %4379 = vmatprep.subr.mxu0 0.0
      %4380 = vmatpush1.msra.mxu0 0.0
      %4381 = vmatprep.subr.mxu0 0.0
      %4382 = vmatpush1.msra.mxu0 0.0
      %4383 = vmatprep.subr.mxu0 0.0
      %4384 = vmatpush1.msra.mxu0 0.0
      %4385 = vmatprep.subr.mxu0 0.0
      %4386 = vmatpush1.msra.mxu0 0.0
      %4387 = vmatprep.subr.mxu0 0.0
      %4388 = vmatpush1.msra.mxu0 0.0
      %4389 = vmatprep.subr.mxu0 0.0
      %4390 = vmatpush1.msra.mxu0 0.0
      %4391 = vmatprep.subr.mxu0 0.0
      %4392 = vmatpush1.msra.mxu0 0.0
      %4393 = vmatprep.subr.mxu0 0.0
      %4394 = vmatpush1.msra.mxu0 0.0
      %4395 = vmatprep.subr.mxu0 0.0
      %4396 = vmatpush1.msra.mxu0 0.0
      %4397 = vmatprep.subr.mxu0 0.0
      %4398 = vmatpush1.msra.mxu0 0.0
      %4399 = vmatprep.subr.mxu0 0.0
      %4400 = vmatpush1.msra.mxu0 0.0
      %4401 = vmatprep.subr.mxu0 0.0
      %4402 = vmatpush1.msra.mxu0 0.0
      %4403 = vmatprep.subr.mxu0 0.0
      %4404 = vmatpush1.msra.mxu0 0.0
      %4405 = vmatprep.subr.mxu0 0.0
      %4406 = vmatpush1.msra.mxu0 0.0
      %4407 = vmatprep.subr.mxu0 0.0
      %4408 = vmatpush1.msra.mxu0 0.0
      %4409 = vmatprep.subr.mxu0 0.0
      %4410 = vmatpush1.msra.mxu0 0.0
      %4411 = vmatprep.subr.mxu0 0.0
      %4412 = vmatpush1.msra.mxu0 0.0
      %4413 = vmatprep.subr.mxu0 0.0
      %4414 = vmatpush1.msra.mxu0 0.0
      %4415 = vmatprep.mubr.f32.mxu0 0.0
      %4416 = vmatmul.mubr.f32.gmra.mrb[0].mxu0 %v4343
      %v4417 = vpop.f32.mrb[0].mxu0
      %v4418 = vadd.f32 %v4329, %v4417
      %v4419 = vpop.f32.mrb[0].mxu0
      %v4420 = vadd.f32 %v4329, %v4419
      %4421 = vmatprep.mubr.f32.mxu0 0.0
      %4422 = vmatmul.mubr.f32.gmra.mrb[0].mxu0 %v4346
      %v4423 = vpop.f32.mrb[0].mxu0
      %v4424 = vadd.f32 %v4334, %v4423
      %v4425 = vpop.f32.mrb[0].mxu0
      %v4426 = vadd.f32 %v4334, %v4425
      %4427 = vmatprep.mubr.f32.mxu0 0.0
      %4428 = vmatmul.mubr.f32.gmra.mrb[0].mxu0 %v4349
      %v4429 = vpop.f32.mrb[0].mxu0
      %v4430 = vadd.f32 %v4339, %v4429
      %v4431 = vpop.f32.mrb[0].mxu0
      %v4432 = vadd.f32 %v4339, %v4431
      %4433 = vdwg.mxu0
      %4434 = vmatprep.subr.mxu0 %v4294
      %4435 = vmatpush1.msra.mxu0 %v4293
      %4436 = vmatprep.subr.mxu0 %v4302
      %4437 = vmatpush1.msra.mxu0 %v4301
      %4438 = vmatprep.subr.mxu0 %v4310
      %4439 = vmatpush1.msra.mxu0 %v4309
      %4440 = vmatprep.subr.mxu0 %v4318
      %4441 = vmatpush1.msra.mxu0 %v4317
      %4442 = vmatprep.subr.mxu0 0.0
      %4443 = vmatpush1.msra.mxu0 0.0
      %4444 = vmatprep.subr.mxu0 0.0
      %4445 = vmatpush1.msra.mxu0 0.0
      %4446 = vmatprep.subr.mxu0 0.0
      %4447 = vmatpush1.msra.mxu0 0.0
      %4448 = vmatprep.subr.mxu0 0.0
      %4449 = vmatpush1.msra.mxu0 0.0
      %4450 = vmatprep.subr.mxu0 0.0
      %4451 = vmatpush1.msra.mxu0 0.0
      %4452 = vmatprep.subr.mxu0 0.0
      %4453 = vmatpush1.msra.mxu0 0.0
      %4454 = vmatprep.subr.mxu0 0.0
      %4455 = vmatpush1.msra.mxu0 0.0
      %4456 = vmatprep.subr.mxu0 0.0
      %4457 = vmatpush1.msra.mxu0 0.0
      %4458 = vmatprep.subr.mxu0 0.0
      %4459 = vmatpush1.msra.mxu0 0.0
      %4460 = vmatprep.subr.mxu0 0.0
      %4461 = vmatpush1.msra.mxu0 0.0
      %4462 = vmatprep.subr.mxu0 0.0
      %4463 = vmatpush1.msra.mxu0 0.0
      %4464 = vmatprep.subr.mxu0 0.0
      %4465 = vmatpush1.msra.mxu0 0.0
      %4466 = vmatprep.subr.mxu0 0.0
      %4467 = vmatpush1.msra.mxu0 0.0
      %4468 = vmatprep.subr.mxu0 0.0
      %4469 = vmatpush1.msra.mxu0 0.0
      %4470 = vmatprep.subr.mxu0 0.0
      %4471 = vmatpush1.msra.mxu0 0.0
      %4472 = vmatprep.subr.mxu0 0.0
      %4473 = vmatpush1.msra.mxu0 0.0
      %4474 = vmatprep.subr.mxu0 0.0
      %4475 = vmatpush1.msra.mxu0 0.0
      %4476 = vmatprep.subr.mxu0 0.0
      %4477 = vmatpush1.msra.mxu0 0.0
      %4478 = vmatprep.subr.mxu0 0.0
      %4479 = vmatpush1.msra.mxu0 0.0
      %4480 = vmatprep.subr.mxu0 0.0
      %4481 = vmatpush1.msra.mxu0 0.0
      %4482 = vmatprep.subr.mxu0 0.0
      %4483 = vmatpush1.msra.mxu0 0.0
      %4484 = vmatprep.subr.mxu0 0.0
      %4485 = vmatpush1.msra.mxu0 0.0
      %4486 = vmatprep.subr.mxu0 0.0
      %4487 = vmatpush1.msra.mxu0 0.0
      %4488 = vmatprep.subr.mxu0 0.0
      %4489 = vmatpush1.msra.mxu0 0.0
      %4490 = vmatprep.subr.mxu0 0.0
      %4491 = vmatpush1.msra.mxu0 0.0
      %4492 = vmatprep.subr.mxu0 0.0
      %4493 = vmatpush1.msra.mxu0 0.0
      %4494 = vmatprep.subr.mxu0 0.0
      %4495 = vmatpush1.msra.mxu0 0.0
      %4496 = vmatprep.subr.mxu0 0.0
      %4497 = vmatpush1.msra.mxu0 0.0
      %4498 = vmatprep.mubr.f32.mxu0 0.0
      %4499 = vmatmul.mubr.f32.gmra.mrb[0].mxu0 %v4343
      %v4500 = vpop.f32.mrb[0].mxu0
      %v4501 = vadd.f32 %v4329, %v4500
      %v4502 = vpop.f32.mrb[0].mxu0
      %v4503 = vadd.f32 %v4329, %v4502
      %4504 = vmatprep.mubr.f32.mxu0 0.0
      %4505 = vmatmul.mubr.f32.gmra.mrb[0].mxu0 %v4346
      %v4506 = vpop.f32.mrb[0].mxu0
      %v4507 = vadd.f32 %v4334, %v4506
      %v4508 = vpop.f32.mrb[0].mxu0
      %v4509 = vadd.f32 %v4334, %v4508
      %4510 = vmatprep.mubr.f32.mxu0 0.0
      %4511 = vmatmul.mubr.f32.gmra.mrb[0].mxu0 %v4349
      %v4512 = vpop.f32.mrb[0].mxu0
      %v4513 = vadd.f32 %v4339, %v4512
      %v4514 = vpop.f32.mrb[0].mxu0
      %v4515 = vadd.f32 %v4339, %v4514
      %4516 = vdwg.mxu0
      %4517 = vmatprep.subr.mxu0 %v4296
      %4518 = vmatpush1.msra.mxu0 %v4295
      %4519 = vmatprep.subr.mxu0 %v4304
      %4520 = vmatpush1.msra.mxu0 %v4303
      %4521 = vmatprep.subr.mxu0 %v4312
      %4522 = vmatpush1.msra.mxu0 %v4311
      %4523 = vmatprep.subr.mxu0 %v4320
      %4524 = vmatpush1.msra.mxu0 %v4319
      %4525 = vmatprep.subr.mxu0 0.0
      %4526 = vmatpush1.msra.mxu0 0.0
      %4527 = vmatprep.subr.mxu0 0.0
      %4528 = vmatpush1.msra.mxu0 0.0
      %4529 = vmatprep.subr.mxu0 0.0
      %4530 = vmatpush1.msra.mxu0 0.0
      %4531 = vmatprep.subr.mxu0 0.0
      %4532 = vmatpush1.msra.mxu0 0.0
      %4533 = vmatprep.subr.mxu0 0.0
      %4534 = vmatpush1.msra.mxu0 0.0
      %4535 = vmatprep.subr.mxu0 0.0
      %4536 = vmatpush1.msra.mxu0 0.0
      %4537 = vmatprep.subr.mxu0 0.0
      %4538 = vmatpush1.msra.mxu0 0.0
      %4539 = vmatprep.subr.mxu0 0.0
      %4540 = vmatpush1.msra.mxu0 0.0
      %4541 = vmatprep.subr.mxu0 0.0
      %4542 = vmatpush1.msra.mxu0 0.0
      %4543 = vmatprep.subr.mxu0 0.0
      %4544 = vmatpush1.msra.mxu0 0.0
      %4545 = vmatprep.subr.mxu0 0.0
      %4546 = vmatpush1.msra.mxu0 0.0
      %4547 = vmatprep.subr.mxu0 0.0
      %4548 = vmatpush1.msra.mxu0 0.0
      %4549 = vmatprep.subr.mxu0 0.0
      %4550 = vmatpush1.msra.mxu0 0.0
      %4551 = vmatprep.subr.mxu0 0.0
      %4552 = vmatpush1.msra.mxu0 0.0
      %4553 = vmatprep.subr.mxu0 0.0
      %4554 = vmatpush1.msra.mxu0 0.0
      %4555 = vmatprep.subr.mxu0 0.0
      %4556 = vmatpush1.msra.mxu0 0.0
      %4557 = vmatprep.subr.mxu0 0.0
      %4558 = vmatpush1.msra.mxu0 0.0
      %4559 = vmatprep.subr.mxu0 0.0
      %4560 = vmatpush1.msra.mxu0 0.0
      %4561 = vmatprep.subr.mxu0 0.0
      %4562 = vmatpush1.msra.mxu0 0.0
      %4563 = vmatprep.subr.mxu0 0.0
      %4564 = vmatpush1.msra.mxu0 0.0
      %4565 = vmatprep.subr.mxu0 0.0
      %4566 = vmatpush1.msra.mxu0 0.0
      %4567 = vmatprep.subr.mxu0 0.0
      %4568 = vmatpush1.msra.mxu0 0.0
      %4569 = vmatprep.subr.mxu0 0.0
      %4570 = vmatpush1.msra.mxu0 0.0
      %4571 = vmatprep.subr.mxu0 0.0
      %4572 = vmatpush1.msra.mxu0 0.0
      %4573 = vmatprep.subr.mxu0 0.0
      %4574 = vmatpush1.msra.mxu0 0.0
      %4575 = vmatprep.subr.mxu0 0.0
      %4576 = vmatpush1.msra.mxu0 0.0
      %4577 = vmatprep.subr.mxu0 0.0
      %4578 = vmatpush1.msra.mxu0 0.0
      %4579 = vmatprep.subr.mxu0 0.0
      %4580 = vmatpush1.msra.mxu0 0.0
      %4581 = vmatprep.mubr.f32.mxu0 0.0
      %4582 = vmatmul.mubr.f32.gmra.mrb[0].mxu0 %v4343
      %v4583 = vpop.f32.mrb[0].mxu0
      %v4584 = vadd.f32 %v4329, %v4583
      %v4585 = vpop.f32.mrb[0].mxu0
      %v4586 = vadd.f32 %v4329, %v4585
      %4587 = vmatprep.mubr.f32.mxu0 0.0
      %4588 = vmatmul.mubr.f32.gmra.mrb[0].mxu0 %v4346
      %v4589 = vpop.f32.mrb[0].mxu0
      %v4590 = vadd.f32 %v4334, %v4589
      %v4591 = vpop.f32.mrb[0].mxu0
      %v4592 = vadd.f32 %v4334, %v4591
      %4593 = vmatprep.mubr.f32.mxu0 0.0
      %4594 = vmatmul.mubr.f32.gmra.mrb[0].mxu0 %v4349
      %v4595 = vpop.f32.mrb[0].mxu0
      %v4596 = vadd.f32 %v4339, %v4595
      %v4597 = vpop.f32.mrb[0].mxu0
      %v4598 = vadd.f32 %v4339, %v4597
      %4599 = vdwg.mxu0
      %4600 = vmatprep.subr.mxu0 %v4298
      %4601 = vmatpush1.msra.mxu0 %v4297
      %4602 = vmatprep.subr.mxu0 %v4306
      %4603 = vmatpush1.msra.mxu0 %v4305
      %4604 = vmatprep.subr.mxu0 %v4314
      %4605 = vmatpush1.msra.mxu0 %v4313
      %4606 = vmatprep.subr.mxu0 %v4322
      %4607 = vmatpush1.msra.mxu0 %v4321
      %4608 = vmatprep.subr.mxu0 0.0
      %4609 = vmatpush1.msra.mxu0 0.0
      %4610 = vmatprep.subr.mxu0 0.0
      %4611 = vmatpush1.msra.mxu0 0.0
      %4612 = vmatprep.subr.mxu0 0.0
      %4613 = vmatpush1.msra.mxu0 0.0
      %4614 = vmatprep.subr.mxu0 0.0
      %4615 = vmatpush1.msra.mxu0 0.0
      %4616 = vmatprep.subr.mxu0 0.0
      %4617 = vmatpush1.msra.mxu0 0.0
      %4618 = vmatprep.subr.mxu0 0.0
      %4619 = vmatpush1.msra.mxu0 0.0
      %4620 = vmatprep.subr.mxu0 0.0
      %4621 = vmatpush1.msra.mxu0 0.0
      %4622 = vmatprep.subr.mxu0 0.0
      %4623 = vmatpush1.msra.mxu0 0.0
      %4624 = vmatprep.subr.mxu0 0.0
      %4625 = vmatpush1.msra.mxu0 0.0
      %4626 = vmatprep.subr.mxu0 0.0
      %4627 = vmatpush1.msra.mxu0 0.0
      %4628 = vmatprep.subr.mxu0 0.0
      %4629 = vmatpush1.msra.mxu0 0.0
      %4630 = vmatprep.subr.mxu0 0.0
      %4631 = vmatpush1.msra.mxu0 0.0
      %4632 = vmatprep.subr.mxu0 0.0
      %4633 = vmatpush1.msra.mxu0 0.0
      %4634 = vmatprep.subr.mxu0 0.0
      %4635 = vmatpush1.msra.mxu0 0.0
      %4636 = vmatprep.subr.mxu0 0.0
      %4637 = vmatpush1.msra.mxu0 0.0
      %4638 = vmatprep.subr.mxu0 0.0
      %4639 = vmatpush1.msra.mxu0 0.0
      %4640 = vmatprep.subr.mxu0 0.0
      %4641 = vmatpush1.msra.mxu0 0.0
      %4642 = vmatprep.subr.mxu0 0.0
      %4643 = vmatpush1.msra.mxu0 0.0
      %4644 = vmatprep.subr.mxu0 0.0
      %4645 = vmatpush1.msra.mxu0 0.0
      %4646 = vmatprep.subr.mxu0 0.0
      %4647 = vmatpush1.msra.mxu0 0.0
      %4648 = vmatprep.subr.mxu0 0.0
      %4649 = vmatpush1.msra.mxu0 0.0
      %4650 = vmatprep.subr.mxu0 0.0
      %4651 = vmatpush1.msra.mxu0 0.0
      %4652 = vmatprep.subr.mxu0 0.0
      %4653 = vmatpush1.msra.mxu0 0.0
      %4654 = vmatprep.subr.mxu0 0.0
      %4655 = vmatpush1.msra.mxu0 0.0
      %4656 = vmatprep.subr.mxu0 0.0
      %4657 = vmatpush1.msra.mxu0 0.0
      %4658 = vmatprep.subr.mxu0 0.0
      %4659 = vmatpush1.msra.mxu0 0.0
      %4660 = vmatprep.subr.mxu0 0.0
      %4661 = vmatpush1.msra.mxu0 0.0
      %4662 = vmatprep.subr.mxu0 0.0
      %4663 = vmatpush1.msra.mxu0 0.0
      %4664 = vmatprep.mubr.f32.mxu0 0.0
      %4665 = vmatmul.mubr.f32.gmra.mrb[0].mxu0 %v4343
      %v4666 = vpop.f32.mrb[0].mxu0
      %v4667 = vadd.f32 %v4329, %v4666
      %v4668 = vpop.f32.mrb[0].mxu0
      %v4669 = vadd.f32 %v4329, %v4668
      %4670 = vmatprep.mubr.f32.mxu0 0.0
      %4671 = vmatmul.mubr.f32.gmra.mrb[0].mxu0 %v4346
      %v4672 = vpop.f32.mrb[0].mxu0
      %v4673 = vadd.f32 %v4334, %v4672
      %v4674 = vpop.f32.mrb[0].mxu0
      %v4675 = vadd.f32 %v4334, %v4674
      %4676 = vmatprep.mubr.f32.mxu0 0.0
      %4677 = vmatmul.mubr.f32.gmra.mrb[0].mxu0 %v4349
      %v4678 = vpop.f32.mrb[0].mxu0
      %v4679 = vadd.f32 %v4339, %v4678
      %v4680 = vpop.f32.mrb[0].mxu0
      %v4681 = vadd.f32 %v4339, %v4680
      %4682 = vdwg.mxu0
      %4683 = vst [vmem:[#allocation4 + $0x140] sm:$0xff] %v4430
      %4684 = vst [vmem:[#allocation4 + $0x148] sm:$0xff] %v4432
      %4685 = vst [vmem:[#allocation4 + $0x150] sm:$0xff] %v4513
      %4686 = vst [vmem:[#allocation4 + $0x158] sm:$0xff] %v4515
      %4687 = vst [vmem:[#allocation4 + $0x160] sm:$0xff] %v4596
      %4688 = vst [vmem:[#allocation4 + $0x168] sm:$0xff] %v4598
      %4689 = vst [vmem:[#allocation4 + $0x170] sm:$0xff] %v4679
      %4690 = vst [vmem:[#allocation4 + $0x178] sm:$0xff] %v4681
      %v4691 = vld [vmem:[#allocation2] sm:$0xff]
      %v4692 = vld [vmem:[#allocation2 + $0x8] sm:$0xff]
      %v4693 = vld [vmem:[#allocation2 + $0x10] sm:$0xff]
      %v4694 = vld [vmem:[#allocation2 + $0x18] sm:$0xff]
      %v4695 = vld [vmem:[#allocation2 + $0x20] sm:$0xff]
      %v4696 = vld [vmem:[#allocation2 + $0x28] sm:$0xff]
      %v4697 = vld [vmem:[#allocation2 + $0x30] sm:$0xff]
      %v4698 = vld [vmem:[#allocation2 + $0x38] sm:$0xff]
      %v4699 = vld [vmem:[#allocation2 + $0x40] sm:$0xff]
      %v4700 = vld [vmem:[#allocation2 + $0x48] sm:$0xff]
      %v4701 = vld [vmem:[#allocation2 + $0x50] sm:$0xff]
      %v4702 = vld [vmem:[#allocation2 + $0x58] sm:$0xff]
      %v4703 = vld [vmem:[#allocation2 + $0x60] sm:$0xff]
      %v4704 = vld [vmem:[#allocation2 + $0x68] sm:$0xff]
      %v4705 = vld [vmem:[#allocation2 + $0x70] sm:$0xff]
      %v4706 = vld [vmem:[#allocation2 + $0x78] sm:$0xff]
      %v4707 = vld [vmem:[%s16] sm:$0xff]
      %v4708 = vld [vmem:[%s16 + $0x8] sm:$0xff]
      %vm4709 = vcmp.ge.f32.partialorder %v4418, 0.0
      %vm4710 = vcmp.ge.f32.partialorder %v4420, 0.0
      %vm4711 = vcmp.ge.f32.partialorder %v4501, 0.0
      %vm4712 = vcmp.ge.f32.partialorder %v4503, 0.0
      %vm4713 = vcmp.ge.f32.partialorder %v4584, 0.0
      %vm4714 = vcmp.ge.f32.partialorder %v4586, 0.0
      %vm4715 = vcmp.ge.f32.partialorder %v4667, 0.0
      %vm4716 = vcmp.ge.f32.partialorder %v4669, 0.0
      %vm4717 = vcmp.ge.f32.partialorder %v4424, 0.0
      %vm4718 = vcmp.ge.f32.partialorder %v4426, 0.0
      %vm4719 = vcmp.ge.f32.partialorder %v4507, 0.0
      %vm4720 = vcmp.ge.f32.partialorder %v4509, 0.0
      %vm4721 = vcmp.ge.f32.partialorder %v4590, 0.0
      %vm4722 = vcmp.ge.f32.partialorder %v4592, 0.0
      %vm4723 = vcmp.ge.f32.partialorder %v4673, 0.0
      %vm4724 = vcmp.ge.f32.partialorder %v4675, 0.0
      %4726 = vset.pattern.permute.xlu0 0
      %4727 = vperm.xlu0 %4726, %v4707
      %v4728 = vpop.permute.xlu0 %4727
      %4731 = vset.pattern.permute.xlu0 0
      %4732 = vperm.xlu0 %4731, %v4708
      %v4733 = vpop.permute.xlu0 %4732
      %v4735 = vmul.f32 %v4418, %v4728
      %v4736 = vmul.f32 %v4420, %v4728
      %v4737 = vmul.f32 %v4501, %v4728
      %v4738 = vmul.f32 %v4503, %v4728
      %v4739 = vmul.f32 %v4584, %v4728
      %v4740 = vmul.f32 %v4586, %v4728
      %v4741 = vmul.f32 %v4667, %v4728
      %v4742 = vmul.f32 %v4669, %v4728
      %v4743 = vmul.f32 %v4424, %v4733
      %v4744 = vmul.f32 %v4426, %v4733
      %v4745 = vmul.f32 %v4507, %v4733
      %v4746 = vmul.f32 %v4509, %v4733
      %v4747 = vmul.f32 %v4590, %v4733
      %v4748 = vmul.f32 %v4592, %v4733
      %v4749 = vmul.f32 %v4673, %v4733
      %v4750 = vmul.f32 %v4675, %v4733
      %v4751 = vsel %vm4709, %v4418, %v4735
      %v4752 = vsel %vm4710, %v4420, %v4736
      %v4753 = vsel %vm4711, %v4501, %v4737
      %v4754 = vsel %vm4712, %v4503, %v4738
      %v4755 = vsel %vm4713, %v4584, %v4739
      %v4756 = vsel %vm4714, %v4586, %v4740
      %v4757 = vsel %vm4715, %v4667, %v4741
      %v4758 = vsel %vm4716, %v4669, %v4742
      %v4759 = vsel %vm4717, %v4424, %v4743
      %v4760 = vsel %vm4718, %v4426, %v4744
      %v4761 = vsel %vm4719, %v4507, %v4745
      %v4762 = vsel %vm4720, %v4509, %v4746
      %v4763 = vsel %vm4721, %v4590, %v4747
      %v4764 = vsel %vm4722, %v4592, %v4748
      %v4765 = vsel %vm4723, %v4673, %v4749
      %v4766 = vsel %vm4724, %v4675, %v4750
      %4767 = vrot.lane.b32.xlu0 %v4751, 1
      %v4768 = vpop.permute.xlu0 %4767
      %4769 = vrot.lane.b32.xlu0 %v4759, 1
      %v4770 = vpop.permute.xlu0 %4769
      %4771 = vrot.lane.b32.xlu0 %v4752, 1
      %v4772 = vpop.permute.xlu0 %4771
      %4773 = vrot.lane.b32.xlu0 %v4760, 1
      %v4774 = vpop.permute.xlu0 %4773
      %4775 = vrot.lane.b32.xlu0 %v4753, 1
      %v4776 = vpop.permute.xlu0 %4775
      %4777 = vrot.lane.b32.xlu0 %v4761, 1
      %v4778 = vpop.permute.xlu0 %4777
      %4779 = vrot.lane.b32.xlu0 %v4754, 1
      %v4780 = vpop.permute.xlu0 %4779
      %4781 = vrot.lane.b32.xlu0 %v4762, 1
      %v4782 = vpop.permute.xlu0 %4781
      %4783 = vrot.lane.b32.xlu0 %v4755, 1
      %v4784 = vpop.permute.xlu0 %4783
      %4785 = vrot.lane.b32.xlu0 %v4763, 1
      %v4786 = vpop.permute.xlu0 %4785
      %4787 = vrot.lane.b32.xlu0 %v4756, 1
      %v4788 = vpop.permute.xlu0 %4787
      %4789 = vrot.lane.b32.xlu0 %v4764, 1
      %v4790 = vpop.permute.xlu0 %4789
      %4791 = vrot.lane.b32.xlu0 %v4757, 1
      %v4792 = vpop.permute.xlu0 %4791
      %4793 = vrot.lane.b32.xlu0 %v4765, 1
      %v4794 = vpop.permute.xlu0 %4793
      %4795 = vrot.lane.b32.xlu0 %v4758, 1
      %v4796 = vpop.permute.xlu0 %4795
      %4797 = vrot.lane.b32.xlu0 %v4766, 1
      %v4798 = vpop.permute.xlu0 %4797
      %v4799 = vsel %vm1672, %v4792, %v4796
      %v4800 = vsel %vm1672, %v4794, %v4798
      %v4801 = vsel %vm1672, %v4788, %v4792
      %v4802 = vsel %vm1672, %v4790, %v4794
      %v4803 = vsel %vm1672, %v4784, %v4788
      %v4804 = vsel %vm1672, %v4786, %v4790
      %v4805 = vsel %vm1672, %v4780, %v4784
      %v4806 = vsel %vm1672, %v4782, %v4786
      %v4807 = vsel %vm1672, %v4776, %v4780
      %v4808 = vsel %vm1672, %v4778, %v4782
      %v4809 = vsel %vm1672, %v4772, %v4776
      %v4810 = vsel %vm1672, %v4774, %v4778
      %v4811 = vsel %vm1672, %v4768, %v4772
      %v4812 = vsel %vm1672, %v4770, %v4774
      %v4813 = vsel %vm1672, %v4796, %v4768
      %v4814 = vsel %vm1672, %v4798, %v4770
      %v4815 = vsel %vm1697, %v4813, 0.0
      %v4816 = vsel %vm1698, %v4811, 0.0
      %v4817 = vsel %vm1699, %v4809, 0.0
      %v4818 = vsel %vm1700, %v4807, 0.0
      %v4819 = vsel %vm1701, %v4805, 0.0
      %v4820 = vsel %vm1702, %v4803, 0.0
      %v4821 = vsel %vm1703, %v4801, 0.0
      %v4822 = vsel %vm1704, %v4799, 0.0
      %v4823 = vsel %vm1697, %v4814, 0.0
      %v4824 = vsel %vm1698, %v4812, 0.0
      %v4825 = vsel %vm1699, %v4810, 0.0
      %v4826 = vsel %vm1700, %v4808, 0.0
      %v4827 = vsel %vm1701, %v4806, 0.0
      %v4828 = vsel %vm1702, %v4804, 0.0
      %v4829 = vsel %vm1703, %v4802, 0.0
      %v4830 = vsel %vm1704, %v4800, 0.0
      %4831 = vrot.lane.b32.xlu0 %v4751, 127
      %v4832 = vpop.permute.xlu0 %4831
      %4833 = vrot.lane.b32.xlu0 %v4759, 127
      %v4834 = vpop.permute.xlu0 %4833
      %4835 = vrot.lane.b32.xlu0 %v4752, 127
      %v4836 = vpop.permute.xlu0 %4835
      %4837 = vrot.lane.b32.xlu0 %v4760, 127
      %v4838 = vpop.permute.xlu0 %4837
      %4839 = vrot.lane.b32.xlu0 %v4753, 127
      %v4840 = vpop.permute.xlu0 %4839
      %4841 = vrot.lane.b32.xlu0 %v4761, 127
      %v4842 = vpop.permute.xlu0 %4841
      %4843 = vrot.lane.b32.xlu0 %v4754, 127
      %v4844 = vpop.permute.xlu0 %4843
      %4845 = vrot.lane.b32.xlu0 %v4762, 127
      %v4846 = vpop.permute.xlu0 %4845
      %4847 = vrot.lane.b32.xlu0 %v4755, 127
      %v4848 = vpop.permute.xlu0 %4847
      %4849 = vrot.lane.b32.xlu0 %v4763, 127
      %v4850 = vpop.permute.xlu0 %4849
      %4851 = vrot.lane.b32.xlu0 %v4756, 127
      %v4852 = vpop.permute.xlu0 %4851
      %4853 = vrot.lane.b32.xlu0 %v4764, 127
      %v4854 = vpop.permute.xlu0 %4853
      %4855 = vrot.lane.b32.xlu0 %v4757, 127
      %v4856 = vpop.permute.xlu0 %4855
      %4857 = vrot.lane.b32.xlu0 %v4765, 127
      %v4858 = vpop.permute.xlu0 %4857
      %4859 = vrot.lane.b32.xlu0 %v4758, 127
      %v4860 = vpop.permute.xlu0 %4859
      %4861 = vrot.lane.b32.xlu0 %v4766, 127
      %v4862 = vpop.permute.xlu0 %4861
      %v4863 = vsel %vm1753, %v4856, %v4860
      %v4864 = vsel %vm1753, %v4858, %v4862
      %v4865 = vsel %vm1753, %v4852, %v4856
      %v4866 = vsel %vm1753, %v4854, %v4858
      %v4867 = vsel %vm1753, %v4848, %v4852
      %v4868 = vsel %vm1753, %v4850, %v4854
      %v4869 = vsel %vm1753, %v4844, %v4848
      %v4870 = vsel %vm1753, %v4846, %v4850
      %v4871 = vsel %vm1753, %v4840, %v4844
      %v4872 = vsel %vm1753, %v4842, %v4846
      %v4873 = vsel %vm1753, %v4836, %v4840
      %v4874 = vsel %vm1753, %v4838, %v4842
      %v4875 = vsel %vm1753, %v4832, %v4836
      %v4876 = vsel %vm1753, %v4834, %v4838
      %v4877 = vsel %vm1753, %v4860, %v4832
      %v4878 = vsel %vm1753, %v4862, %v4834
      %v4879 = vsel %vm1778, %v4875, 0.0
      %v4880 = vsel %vm1779, %v4873, 0.0
      %v4881 = vsel %vm1780, %v4871, 0.0
      %v4882 = vsel %vm1781, %v4869, 0.0
      %v4883 = vsel %vm1782, %v4867, 0.0
      %v4884 = vsel %vm1783, %v4865, 0.0
      %v4885 = vsel %vm1784, %v4863, 0.0
      %v4886 = vsel %vm1785, %v4877, 0.0
      %v4887 = vsel %vm1778, %v4876, 0.0
      %v4888 = vsel %vm1779, %v4874, 0.0
      %v4889 = vsel %vm1780, %v4872, 0.0
      %v4890 = vsel %vm1781, %v4870, 0.0
      %v4891 = vsel %vm1782, %v4868, 0.0
      %v4892 = vsel %vm1783, %v4866, 0.0
      %v4893 = vsel %vm1784, %v4864, 0.0
      %v4894 = vsel %vm1785, %v4878, 0.0
      %4895 = vst [vmem:[#allocation5] sm:$0xff] %v4815
      %4896 = vst [vmem:[#allocation5 + $0x8] sm:$0xff] %v4816
      %4897 = vst [vmem:[#allocation5 + $0x10] sm:$0xff] %v4817
      %4898 = vst [vmem:[#allocation5 + $0x18] sm:$0xff] %v4818
      %4899 = vst [vmem:[#allocation5 + $0x20] sm:$0xff] %v4819
      %4900 = vst [vmem:[#allocation5 + $0x28] sm:$0xff] %v4820
      %4901 = vst [vmem:[#allocation5 + $0x30] sm:$0xff] %v4821
      %4902 = vst [vmem:[#allocation5 + $0x38] sm:$0xff] %v4822
      %4903 = vst [vmem:[#allocation5 + $0x40] sm:$0xff] %v4823
      %4904 = vst [vmem:[#allocation5 + $0x48] sm:$0xff] %v4824
      %4905 = vst [vmem:[#allocation5 + $0x50] sm:$0xff] %v4825
      %4906 = vst [vmem:[#allocation5 + $0x58] sm:$0xff] %v4826
      %4907 = vst [vmem:[#allocation5 + $0x60] sm:$0xff] %v4827
      %4908 = vst [vmem:[#allocation5 + $0x68] sm:$0xff] %v4828
      %4909 = vst [vmem:[#allocation5 + $0x70] sm:$0xff] %v4829
      %4910 = vst [vmem:[#allocation5 + $0x78] sm:$0xff] %v4830
      %4911 = vst [vmem:[#allocation5 + $0x80] sm:$0xff] %v4751
      %4912 = vst [vmem:[#allocation5 + $0x88] sm:$0xff] %v4752
      %4913 = vst [vmem:[#allocation5 + $0x90] sm:$0xff] %v4753
      %4914 = vst [vmem:[#allocation5 + $0x98] sm:$0xff] %v4754
      %4915 = vst [vmem:[#allocation5 + $0xa0] sm:$0xff] %v4755
      %4916 = vst [vmem:[#allocation5 + $0xa8] sm:$0xff] %v4756
      %4917 = vst [vmem:[#allocation5 + $0xb0] sm:$0xff] %v4757
      %4918 = vst [vmem:[#allocation5 + $0xb8] sm:$0xff] %v4758
      %4919 = vst [vmem:[#allocation5 + $0xc0] sm:$0xff] %v4759
      %4920 = vst [vmem:[#allocation5 + $0xc8] sm:$0xff] %v4760
      %4921 = vst [vmem:[#allocation5 + $0xd0] sm:$0xff] %v4761
      %4922 = vst [vmem:[#allocation5 + $0xd8] sm:$0xff] %v4762
      %4923 = vst [vmem:[#allocation5 + $0xe0] sm:$0xff] %v4763
      %4924 = vst [vmem:[#allocation5 + $0xe8] sm:$0xff] %v4764
      %4925 = vst [vmem:[#allocation5 + $0xf0] sm:$0xff] %v4765
      %4926 = vst [vmem:[#allocation5 + $0xf8] sm:$0xff] %v4766
      %4927 = vst [vmem:[#allocation5 + $0x100] sm:$0xff] %v4879
      %4928 = vst [vmem:[#allocation5 + $0x108] sm:$0xff] %v4880
      %4929 = vst [vmem:[#allocation5 + $0x110] sm:$0xff] %v4881
      %4930 = vst [vmem:[#allocation5 + $0x118] sm:$0xff] %v4882
      %4931 = vst [vmem:[#allocation5 + $0x120] sm:$0xff] %v4883
      %4932 = vst [vmem:[#allocation5 + $0x128] sm:$0xff] %v4884
      %4933 = vst [vmem:[#allocation5 + $0x130] sm:$0xff] %v4885
      %4934 = vst [vmem:[#allocation5 + $0x138] sm:$0xff] %v4886
      %4935 = vst [vmem:[#allocation5 + $0x140] sm:$0xff] %v4887
      %4936 = vst [vmem:[#allocation5 + $0x148] sm:$0xff] %v4888
      %4937 = vst [vmem:[#allocation5 + $0x150] sm:$0xff] %v4889
      %4938 = vst [vmem:[#allocation5 + $0x158] sm:$0xff] %v4890
      %4939 = vst [vmem:[#allocation5 + $0x160] sm:$0xff] %v4891
      %4940 = vst [vmem:[#allocation5 + $0x168] sm:$0xff] %v4892
      %4941 = vst [vmem:[#allocation5 + $0x170] sm:$0xff] %v4893
      %4942 = vst [vmem:[#allocation5 + $0x178] sm:$0xff] %v4894
      %v4943 = vld [vmem:[%s17] sm:$0xff]
      %v4944 = vld [vmem:[%s17 + $0x8] sm:$0xff]
      %v4945 = vld [vmem:[%s17 + $0x10] sm:$0xff]
      %v4946 = vld [vmem:[%s17 + $0x18] sm:$0xff]
      %v4947 = vld [vmem:[%s17 + $0x20] sm:$0xff]
      %v4948 = vld [vmem:[%s17 + $0x28] sm:$0xff]
      %v4949 = vld [vmem:[#allocation5] sm:$0xff]
      %v4950 = vld [vmem:[#allocation5 + $0x8] sm:$0xff]
      %v4951 = vld [vmem:[#allocation5 + $0x10] sm:$0xff]
      %v4952 = vld [vmem:[#allocation5 + $0x18] sm:$0xff]
      %v4953 = vld [vmem:[#allocation5 + $0x20] sm:$0xff]
      %v4954 = vld [vmem:[#allocation5 + $0x28] sm:$0xff]
      %v4955 = vld [vmem:[#allocation5 + $0x30] sm:$0xff]
      %v4956 = vld [vmem:[#allocation5 + $0x38] sm:$0xff]
      %v4957 = vld [vmem:[#allocation5 + $0x40] sm:$0xff]
      %v4958 = vld [vmem:[#allocation5 + $0x48] sm:$0xff]
      %v4959 = vld [vmem:[#allocation5 + $0x50] sm:$0xff]
      %v4960 = vld [vmem:[#allocation5 + $0x58] sm:$0xff]
      %v4961 = vld [vmem:[#allocation5 + $0x60] sm:$0xff]
      %v4962 = vld [vmem:[#allocation5 + $0x68] sm:$0xff]
      %v4963 = vld [vmem:[#allocation5 + $0x70] sm:$0xff]
      %v4964 = vld [vmem:[#allocation5 + $0x78] sm:$0xff]
      %v4965 = vld [vmem:[#allocation5 + $0x80] sm:$0xff]
      %v4966 = vld [vmem:[#allocation5 + $0x88] sm:$0xff]
      %v4967 = vld [vmem:[#allocation5 + $0x90] sm:$0xff]
      %v4968 = vld [vmem:[#allocation5 + $0x98] sm:$0xff]
      %v4969 = vld [vmem:[#allocation5 + $0xa0] sm:$0xff]
      %v4970 = vld [vmem:[#allocation5 + $0xa8] sm:$0xff]
      %v4971 = vld [vmem:[#allocation5 + $0xb0] sm:$0xff]
      %v4972 = vld [vmem:[#allocation5 + $0xb8] sm:$0xff]
      %v4973 = vld [vmem:[#allocation5 + $0xc0] sm:$0xff]
      %v4974 = vld [vmem:[#allocation5 + $0xc8] sm:$0xff]
      %v4975 = vld [vmem:[#allocation5 + $0xd0] sm:$0xff]
      %v4976 = vld [vmem:[#allocation5 + $0xd8] sm:$0xff]
      %v4977 = vld [vmem:[#allocation5 + $0xe0] sm:$0xff]
      %v4978 = vld [vmem:[#allocation5 + $0xe8] sm:$0xff]
      %v4979 = vld [vmem:[#allocation5 + $0xf0] sm:$0xff]
      %v4980 = vld [vmem:[#allocation5 + $0xf8] sm:$0xff]
      %v4981 = vld [vmem:[#allocation5 + $0x100] sm:$0xff]
      %v4982 = vld [vmem:[#allocation5 + $0x108] sm:$0xff]
      %v4983 = vld [vmem:[#allocation5 + $0x110] sm:$0xff]
      %v4984 = vld [vmem:[#allocation5 + $0x118] sm:$0xff]
      %v4985 = vld [vmem:[#allocation5 + $0x120] sm:$0xff]
      %v4986 = vld [vmem:[#allocation5 + $0x128] sm:$0xff]
      %v4987 = vld [vmem:[#allocation5 + $0x130] sm:$0xff]
      %v4988 = vld [vmem:[#allocation5 + $0x138] sm:$0xff]
      %v4989 = vld [vmem:[#allocation5 + $0x140] sm:$0xff]
      %v4990 = vld [vmem:[#allocation5 + $0x148] sm:$0xff]
      %v4991 = vld [vmem:[#allocation5 + $0x150] sm:$0xff]
      %v4992 = vld [vmem:[#allocation5 + $0x158] sm:$0xff]
      %v4993 = vld [vmem:[#allocation5 + $0x160] sm:$0xff]
      %v4994 = vld [vmem:[#allocation5 + $0x168] sm:$0xff]
      %v4995 = vld [vmem:[#allocation5 + $0x170] sm:$0xff]
      %v4996 = vld [vmem:[#allocation5 + $0x178] sm:$0xff]
      %v4998 = vsel %vm1904, %v4943, 0
      %v5001 = vsel %vm1904, %v4944, 0
      %v5004 = vsel %vm1904, %v4945, 0
      %v5007 = vsel %vm1904, %v4946, 0
      %v5010 = vsel %vm1904, %v4947, 0
      %v5013 = vsel %vm1904, %v4948, 0
      %5015 = vmatprep.subr.mxu0 %v4950
      %5016 = vmatpush1.msra.mxu0 %v4949
      %5017 = vmatprep.subr.mxu0 %v4958
      %5018 = vmatpush1.msra.mxu0 %v4957
      %5019 = vmatprep.subr.mxu0 %v4966
      %5020 = vmatpush1.msra.mxu0 %v4965
      %5021 = vmatprep.subr.mxu0 %v4974
      %5022 = vmatpush1.msra.mxu0 %v4973
      %5023 = vmatprep.subr.mxu0 %v4982
      %5024 = vmatpush1.msra.mxu0 %v4981
      %5025 = vmatprep.subr.mxu0 %v4990
      %5026 = vmatpush1.msra.mxu0 %v4989
      %5027 = vmatprep.subr.mxu0 0.0
      %5028 = vmatpush1.msra.mxu0 0.0
      %5029 = vmatprep.subr.mxu0 0.0
      %5030 = vmatpush1.msra.mxu0 0.0
      %5031 = vmatprep.subr.mxu0 0.0
      %5032 = vmatpush1.msra.mxu0 0.0
      %5033 = vmatprep.subr.mxu0 0.0
      %5034 = vmatpush1.msra.mxu0 0.0
      %5035 = vmatprep.subr.mxu0 0.0
      %5036 = vmatpush1.msra.mxu0 0.0
      %5037 = vmatprep.subr.mxu0 0.0
      %5038 = vmatpush1.msra.mxu0 0.0
      %5039 = vmatprep.subr.mxu0 0.0
      %5040 = vmatpush1.msra.mxu0 0.0
      %5041 = vmatprep.subr.mxu0 0.0
      %5042 = vmatpush1.msra.mxu0 0.0
      %5043 = vmatprep.subr.mxu0 0.0
      %5044 = vmatpush1.msra.mxu0 0.0
      %5045 = vmatprep.subr.mxu0 0.0
      %5046 = vmatpush1.msra.mxu0 0.0
      %5047 = vmatprep.subr.mxu0 0.0
      %5048 = vmatpush1.msra.mxu0 0.0
      %5049 = vmatprep.subr.mxu0 0.0
      %5050 = vmatpush1.msra.mxu0 0.0
      %5051 = vmatprep.subr.mxu0 0.0
      %5052 = vmatpush1.msra.mxu0 0.0
      %5053 = vmatprep.subr.mxu0 0.0
      %5054 = vmatpush1.msra.mxu0 0.0
      %5055 = vmatprep.subr.mxu0 0.0
      %5056 = vmatpush1.msra.mxu0 0.0
      %5057 = vmatprep.subr.mxu0 0.0
      %5058 = vmatpush1.msra.mxu0 0.0
      %5059 = vmatprep.subr.mxu0 0.0
      %5060 = vmatpush1.msra.mxu0 0.0
      %5061 = vmatprep.subr.mxu0 0.0
      %5062 = vmatpush1.msra.mxu0 0.0
      %5063 = vmatprep.subr.mxu0 0.0
      %5064 = vmatpush1.msra.mxu0 0.0
      %5065 = vmatprep.subr.mxu0 0.0
      %5066 = vmatpush1.msra.mxu0 0.0
      %5067 = vmatprep.subr.mxu0 0.0
      %5068 = vmatpush1.msra.mxu0 0.0
      %5069 = vmatprep.subr.mxu0 0.0
      %5070 = vmatpush1.msra.mxu0 0.0
      %5071 = vmatprep.subr.mxu0 0.0
      %5072 = vmatpush1.msra.mxu0 0.0
      %5073 = vmatprep.subr.mxu0 0.0
      %5074 = vmatpush1.msra.mxu0 0.0
      %5075 = vmatprep.subr.mxu0 0.0
      %5076 = vmatpush1.msra.mxu0 0.0
      %5077 = vmatprep.subr.mxu0 0.0
      %5078 = vmatpush1.msra.mxu0 0.0
      %5079 = vmatprep.mubr.f32.mxu0 0.0
      %5080 = vmatmul.mubr.f32.gmra.mrb[0].mxu0 %v4998
      %v5081 = vpop.f32.mrb[0].mxu0
      %v5082 = vadd.f32 0.0, %v5081
      %v5083 = vpop.f32.mrb[0].mxu0
      %v5084 = vadd.f32 0.0, %v5083
      %5085 = vmatprep.mubr.f32.mxu0 0.0
      %5086 = vmatmul.mubr.f32.gmra.mrb[0].mxu0 %v5001
      %v5087 = vpop.f32.mrb[0].mxu0
      %v5088 = vadd.f32 0.0, %v5087
      %v5089 = vpop.f32.mrb[0].mxu0
      %v5090 = vadd.f32 0.0, %v5089
      %5091 = vmatprep.mubr.f32.mxu0 0.0
      %5092 = vmatmul.mubr.f32.gmra.mrb[0].mxu0 %v5004
      %v5093 = vpop.f32.mrb[0].mxu0
      %v5094 = vadd.f32 0.0, %v5093
      %v5095 = vpop.f32.mrb[0].mxu0
      %v5096 = vadd.f32 0.0, %v5095
      %5097 = vmatprep.mubr.f32.mxu0 0.0
      %5098 = vmatmul.mubr.f32.gmra.mrb[0].mxu0 %v5007
      %v5099 = vpop.f32.mrb[0].mxu0
      %v5100 = vadd.f32 0.0, %v5099
      %v5101 = vpop.f32.mrb[0].mxu0
      %v5102 = vadd.f32 0.0, %v5101
      %5103 = vmatprep.mubr.f32.mxu0 0.0
      %5104 = vmatmul.mubr.f32.gmra.mrb[0].mxu0 %v5010
      %v5105 = vpop.f32.mrb[0].mxu0
      %v5106 = vadd.f32 0.0, %v5105
      %v5107 = vpop.f32.mrb[0].mxu0
      %v5108 = vadd.f32 0.0, %v5107
      %5109 = vmatprep.mubr.f32.mxu0 0.0
      %5110 = vmatmul.mubr.f32.gmra.mrb[0].mxu0 %v5013
      %v5111 = vpop.f32.mrb[0].mxu0
      %v5112 = vadd.f32 0.0, %v5111
      %v5113 = vpop.f32.mrb[0].mxu0
      %v5114 = vadd.f32 0.0, %v5113
      %5115 = vdwg.mxu0
      %5116 = vmatprep.subr.mxu0 %v4952
      %5117 = vmatpush1.msra.mxu0 %v4951
      %5118 = vmatprep.subr.mxu0 %v4960
      %5119 = vmatpush1.msra.mxu0 %v4959
      %5120 = vmatprep.subr.mxu0 %v4968
      %5121 = vmatpush1.msra.mxu0 %v4967
      %5122 = vmatprep.subr.mxu0 %v4976
      %5123 = vmatpush1.msra.mxu0 %v4975
      %5124 = vmatprep.subr.mxu0 %v4984
      %5125 = vmatpush1.msra.mxu0 %v4983
      %5126 = vmatprep.subr.mxu0 %v4992
      %5127 = vmatpush1.msra.mxu0 %v4991
      %5128 = vmatprep.subr.mxu0 0.0
      %5129 = vmatpush1.msra.mxu0 0.0
      %5130 = vmatprep.subr.mxu0 0.0
      %5131 = vmatpush1.msra.mxu0 0.0
      %5132 = vmatprep.subr.mxu0 0.0
      %5133 = vmatpush1.msra.mxu0 0.0
      %5134 = vmatprep.subr.mxu0 0.0
      %5135 = vmatpush1.msra.mxu0 0.0
      %5136 = vmatprep.subr.mxu0 0.0
      %5137 = vmatpush1.msra.mxu0 0.0
      %5138 = vmatprep.subr.mxu0 0.0
      %5139 = vmatpush1.msra.mxu0 0.0
      %5140 = vmatprep.subr.mxu0 0.0
      %5141 = vmatpush1.msra.mxu0 0.0
      %5142 = vmatprep.subr.mxu0 0.0
      %5143 = vmatpush1.msra.mxu0 0.0
      %5144 = vmatprep.subr.mxu0 0.0
      %5145 = vmatpush1.msra.mxu0 0.0
      %5146 = vmatprep.subr.mxu0 0.0
      %5147 = vmatpush1.msra.mxu0 0.0
      %5148 = vmatprep.subr.mxu0 0.0
      %5149 = vmatpush1.msra.mxu0 0.0
      %5150 = vmatprep.subr.mxu0 0.0
      %5151 = vmatpush1.msra.mxu0 0.0
      %5152 = vmatprep.subr.mxu0 0.0
      %5153 = vmatpush1.msra.mxu0 0.0
      %5154 = vmatprep.subr.mxu0 0.0
      %5155 = vmatpush1.msra.mxu0 0.0
      %5156 = vmatprep.subr.mxu0 0.0
      %5157 = vmatpush1.msra.mxu0 0.0
      %5158 = vmatprep.subr.mxu0 0.0
      %5159 = vmatpush1.msra.mxu0 0.0
      %5160 = vmatprep.subr.mxu0 0.0
      %5161 = vmatpush1.msra.mxu0 0.0
      %5162 = vmatprep.subr.mxu0 0.0
      %5163 = vmatpush1.msra.mxu0 0.0
      %5164 = vmatprep.subr.mxu0 0.0
      %5165 = vmatpush1.msra.mxu0 0.0
      %5166 = vmatprep.subr.mxu0 0.0
      %5167 = vmatpush1.msra.mxu0 0.0
      %5168 = vmatprep.subr.mxu0 0.0
      %5169 = vmatpush1.msra.mxu0 0.0
      %5170 = vmatprep.subr.mxu0 0.0
      %5171 = vmatpush1.msra.mxu0 0.0
      %5172 = vmatprep.subr.mxu0 0.0
      %5173 = vmatpush1.msra.mxu0 0.0
      %5174 = vmatprep.subr.mxu0 0.0
      %5175 = vmatpush1.msra.mxu0 0.0
      %5176 = vmatprep.subr.mxu0 0.0
      %5177 = vmatpush1.msra.mxu0 0.0
      %5178 = vmatprep.subr.mxu0 0.0
      %5179 = vmatpush1.msra.mxu0 0.0
      %5180 = vmatprep.mubr.f32.mxu0 0.0
      %5181 = vmatmul.mubr.f32.gmra.mrb[0].mxu0 %v4998
      %v5182 = vpop.f32.mrb[0].mxu0
      %v5183 = vadd.f32 0.0, %v5182
      %v5184 = vpop.f32.mrb[0].mxu0
      %v5185 = vadd.f32 0.0, %v5184
      %5186 = vmatprep.mubr.f32.mxu0 0.0
      %5187 = vmatmul.mubr.f32.gmra.mrb[0].mxu0 %v5001
      %v5188 = vpop.f32.mrb[0].mxu0
      %v5189 = vadd.f32 0.0, %v5188
      %v5190 = vpop.f32.mrb[0].mxu0
      %v5191 = vadd.f32 0.0, %v5190
      %5192 = vmatprep.mubr.f32.mxu0 0.0
      %5193 = vmatmul.mubr.f32.gmra.mrb[0].mxu0 %v5004
      %v5194 = vpop.f32.mrb[0].mxu0
      %v5195 = vadd.f32 0.0, %v5194
      %v5196 = vpop.f32.mrb[0].mxu0
      %v5197 = vadd.f32 0.0, %v5196
      %5198 = vmatprep.mubr.f32.mxu0 0.0
      %5199 = vmatmul.mubr.f32.gmra.mrb[0].mxu0 %v5007
      %v5200 = vpop.f32.mrb[0].mxu0
      %v5201 = vadd.f32 0.0, %v5200
      %v5202 = vpop.f32.mrb[0].mxu0
      %v5203 = vadd.f32 0.0, %v5202
      %5204 = vmatprep.mubr.f32.mxu0 0.0
      %5205 = vmatmul.mubr.f32.gmra.mrb[0].mxu0 %v5010
      %v5206 = vpop.f32.mrb[0].mxu0
      %v5207 = vadd.f32 0.0, %v5206
      %v5208 = vpop.f32.mrb[0].mxu0
      %v5209 = vadd.f32 0.0, %v5208
      %5210 = vmatprep.mubr.f32.mxu0 0.0
      %5211 = vmatmul.mubr.f32.gmra.mrb[0].mxu0 %v5013
      %v5212 = vpop.f32.mrb[0].mxu0
      %v5213 = vadd.f32 0.0, %v5212
      %v5214 = vpop.f32.mrb[0].mxu0
      %v5215 = vadd.f32 0.0, %v5214
      %5216 = vdwg.mxu0
      %5217 = vmatprep.subr.mxu0 %v4954
      %5218 = vmatpush1.msra.mxu0 %v4953
      %5219 = vmatprep.subr.mxu0 %v4962
      %5220 = vmatpush1.msra.mxu0 %v4961
      %5221 = vmatprep.subr.mxu0 %v4970
      %5222 = vmatpush1.msra.mxu0 %v4969
      %5223 = vmatprep.subr.mxu0 %v4978
      %5224 = vmatpush1.msra.mxu0 %v4977
      %5225 = vmatprep.subr.mxu0 %v4986
      %5226 = vmatpush1.msra.mxu0 %v4985
      %5227 = vmatprep.subr.mxu0 %v4994
      %5228 = vmatpush1.msra.mxu0 %v4993
      %5229 = vmatprep.subr.mxu0 0.0
      %5230 = vmatpush1.msra.mxu0 0.0
      %5231 = vmatprep.subr.mxu0 0.0
      %5232 = vmatpush1.msra.mxu0 0.0
      %5233 = vmatprep.subr.mxu0 0.0
      %5234 = vmatpush1.msra.mxu0 0.0
      %5235 = vmatprep.subr.mxu0 0.0
      %5236 = vmatpush1.msra.mxu0 0.0
      %5237 = vmatprep.subr.mxu0 0.0
      %5238 = vmatpush1.msra.mxu0 0.0
      %5239 = vmatprep.subr.mxu0 0.0
      %5240 = vmatpush1.msra.mxu0 0.0
      %5241 = vmatprep.subr.mxu0 0.0
      %5242 = vmatpush1.msra.mxu0 0.0
      %5243 = vmatprep.subr.mxu0 0.0
      %5244 = vmatpush1.msra.mxu0 0.0
      %5245 = vmatprep.subr.mxu0 0.0
      %5246 = vmatpush1.msra.mxu0 0.0
      %5247 = vmatprep.subr.mxu0 0.0
      %5248 = vmatpush1.msra.mxu0 0.0
      %5249 = vmatprep.subr.mxu0 0.0
      %5250 = vmatpush1.msra.mxu0 0.0
      %5251 = vmatprep.subr.mxu0 0.0
      %5252 = vmatpush1.msra.mxu0 0.0
      %5253 = vmatprep.subr.mxu0 0.0
      %5254 = vmatpush1.msra.mxu0 0.0
      %5255 = vmatprep.subr.mxu0 0.0
      %5256 = vmatpush1.msra.mxu0 0.0
      %5257 = vmatprep.subr.mxu0 0.0
      %5258 = vmatpush1.msra.mxu0 0.0
      %5259 = vmatprep.subr.mxu0 0.0
      %5260 = vmatpush1.msra.mxu0 0.0
      %5261 = vmatprep.subr.mxu0 0.0
      %5262 = vmatpush1.msra.mxu0 0.0
      %5263 = vmatprep.subr.mxu0 0.0
      %5264 = vmatpush1.msra.mxu0 0.0
      %5265 = vmatprep.subr.mxu0 0.0
      %5266 = vmatpush1.msra.mxu0 0.0
      %5267 = vmatprep.subr.mxu0 0.0
      %5268 = vmatpush1.msra.mxu0 0.0
      %5269 = vmatprep.subr.mxu0 0.0
      %5270 = vmatpush1.msra.mxu0 0.0
      %5271 = vmatprep.subr.mxu0 0.0
      %5272 = vmatpush1.msra.mxu0 0.0
      %5273 = vmatprep.subr.mxu0 0.0
      %5274 = vmatpush1.msra.mxu0 0.0
      %5275 = vmatprep.subr.mxu0 0.0
      %5276 = vmatpush1.msra.mxu0 0.0
      %5277 = vmatprep.subr.mxu0 0.0
      %5278 = vmatpush1.msra.mxu0 0.0
      %5279 = vmatprep.subr.mxu0 0.0
      %5280 = vmatpush1.msra.mxu0 0.0
      %5281 = vmatprep.mubr.f32.mxu0 0.0
      %5282 = vmatmul.mubr.f32.gmra.mrb[0].mxu0 %v4998
      %v5283 = vpop.f32.mrb[0].mxu0
      %v5284 = vadd.f32 0.0, %v5283
      %v5285 = vpop.f32.mrb[0].mxu0
      %v5286 = vadd.f32 0.0, %v5285
      %5287 = vmatprep.mubr.f32.mxu0 0.0
      %5288 = vmatmul.mubr.f32.gmra.mrb[0].mxu0 %v5001
      %v5289 = vpop.f32.mrb[0].mxu0
      %v5290 = vadd.f32 0.0, %v5289
      %v5291 = vpop.f32.mrb[0].mxu0
      %v5292 = vadd.f32 0.0, %v5291
      %5293 = vmatprep.mubr.f32.mxu0 0.0
      %5294 = vmatmul.mubr.f32.gmra.mrb[0].mxu0 %v5004
      %v5295 = vpop.f32.mrb[0].mxu0
      %v5296 = vadd.f32 0.0, %v5295
      %v5297 = vpop.f32.mrb[0].mxu0
      %v5298 = vadd.f32 0.0, %v5297
      %5299 = vmatprep.mubr.f32.mxu0 0.0
      %5300 = vmatmul.mubr.f32.gmra.mrb[0].mxu0 %v5007
      %v5301 = vpop.f32.mrb[0].mxu0
      %v5302 = vadd.f32 0.0, %v5301
      %v5303 = vpop.f32.mrb[0].mxu0
      %v5304 = vadd.f32 0.0, %v5303
      %5305 = vmatprep.mubr.f32.mxu0 0.0
      %5306 = vmatmul.mubr.f32.gmra.mrb[0].mxu0 %v5010
      %v5307 = vpop.f32.mrb[0].mxu0
      %v5308 = vadd.f32 0.0, %v5307
      %v5309 = vpop.f32.mrb[0].mxu0
      %v5310 = vadd.f32 0.0, %v5309
      %5311 = vmatprep.mubr.f32.mxu0 0.0
      %5312 = vmatmul.mubr.f32.gmra.mrb[0].mxu0 %v5013
      %v5313 = vpop.f32.mrb[0].mxu0
      %v5314 = vadd.f32 0.0, %v5313
      %v5315 = vpop.f32.mrb[0].mxu0
      %v5316 = vadd.f32 0.0, %v5315
      %5317 = vdwg.mxu0
      %5318 = vmatprep.subr.mxu0 %v4956
      %5319 = vmatpush1.msra.mxu0 %v4955
      %5320 = vmatprep.subr.mxu0 %v4964
      %5321 = vmatpush1.msra.mxu0 %v4963
      %5322 = vmatprep.subr.mxu0 %v4972
      %5323 = vmatpush1.msra.mxu0 %v4971
      %5324 = vmatprep.subr.mxu0 %v4980
      %5325 = vmatpush1.msra.mxu0 %v4979
      %5326 = vmatprep.subr.mxu0 %v4988
      %5327 = vmatpush1.msra.mxu0 %v4987
      %5328 = vmatprep.subr.mxu0 %v4996
      %5329 = vmatpush1.msra.mxu0 %v4995
      %5330 = vmatprep.subr.mxu0 0.0
      %5331 = vmatpush1.msra.mxu0 0.0
      %5332 = vmatprep.subr.mxu0 0.0
      %5333 = vmatpush1.msra.mxu0 0.0
      %5334 = vmatprep.subr.mxu0 0.0
      %5335 = vmatpush1.msra.mxu0 0.0
      %5336 = vmatprep.subr.mxu0 0.0
      %5337 = vmatpush1.msra.mxu0 0.0
      %5338 = vmatprep.subr.mxu0 0.0
      %5339 = vmatpush1.msra.mxu0 0.0
      %5340 = vmatprep.subr.mxu0 0.0
      %5341 = vmatpush1.msra.mxu0 0.0
      %5342 = vmatprep.subr.mxu0 0.0
      %5343 = vmatpush1.msra.mxu0 0.0
      %5344 = vmatprep.subr.mxu0 0.0
      %5345 = vmatpush1.msra.mxu0 0.0
      %5346 = vmatprep.subr.mxu0 0.0
      %5347 = vmatpush1.msra.mxu0 0.0
      %5348 = vmatprep.subr.mxu0 0.0
      %5349 = vmatpush1.msra.mxu0 0.0
      %5350 = vmatprep.subr.mxu0 0.0
      %5351 = vmatpush1.msra.mxu0 0.0
      %5352 = vmatprep.subr.mxu0 0.0
      %5353 = vmatpush1.msra.mxu0 0.0
      %5354 = vmatprep.subr.mxu0 0.0
      %5355 = vmatpush1.msra.mxu0 0.0
      %5356 = vmatprep.subr.mxu0 0.0
      %5357 = vmatpush1.msra.mxu0 0.0
      %5358 = vmatprep.subr.mxu0 0.0
      %5359 = vmatpush1.msra.mxu0 0.0
      %5360 = vmatprep.subr.mxu0 0.0
      %5361 = vmatpush1.msra.mxu0 0.0
      %5362 = vmatprep.subr.mxu0 0.0
      %5363 = vmatpush1.msra.mxu0 0.0
      %5364 = vmatprep.subr.mxu0 0.0
      %5365 = vmatpush1.msra.mxu0 0.0
      %5366 = vmatprep.subr.mxu0 0.0
      %5367 = vmatpush1.msra.mxu0 0.0
      %5368 = vmatprep.subr.mxu0 0.0
      %5369 = vmatpush1.msra.mxu0 0.0
      %5370 = vmatprep.subr.mxu0 0.0
      %5371 = vmatpush1.msra.mxu0 0.0
      %5372 = vmatprep.subr.mxu0 0.0
      %5373 = vmatpush1.msra.mxu0 0.0
      %5374 = vmatprep.subr.mxu0 0.0
      %5375 = vmatpush1.msra.mxu0 0.0
      %5376 = vmatprep.subr.mxu0 0.0
      %5377 = vmatpush1.msra.mxu0 0.0
      %5378 = vmatprep.subr.mxu0 0.0
      %5379 = vmatpush1.msra.mxu0 0.0
      %5380 = vmatprep.subr.mxu0 0.0
      %5381 = vmatpush1.msra.mxu0 0.0
      %5382 = vmatprep.mubr.f32.mxu0 0.0
      %5383 = vmatmul.mubr.f32.gmra.mrb[0].mxu0 %v4998
      %v5384 = vpop.f32.mrb[0].mxu0
      %v5385 = vadd.f32 0.0, %v5384
      %v5386 = vpop.f32.mrb[0].mxu0
      %v5387 = vadd.f32 0.0, %v5386
      %5388 = vmatprep.mubr.f32.mxu0 0.0
      %5389 = vmatmul.mubr.f32.gmra.mrb[0].mxu0 %v5001
      %v5390 = vpop.f32.mrb[0].mxu0
      %v5391 = vadd.f32 0.0, %v5390
      %v5392 = vpop.f32.mrb[0].mxu0
      %v5393 = vadd.f32 0.0, %v5392
      %5394 = vmatprep.mubr.f32.mxu0 0.0
      %5395 = vmatmul.mubr.f32.gmra.mrb[0].mxu0 %v5004
      %v5396 = vpop.f32.mrb[0].mxu0
      %v5397 = vadd.f32 0.0, %v5396
      %v5398 = vpop.f32.mrb[0].mxu0
      %v5399 = vadd.f32 0.0, %v5398
      %5400 = vmatprep.mubr.f32.mxu0 0.0
      %5401 = vmatmul.mubr.f32.gmra.mrb[0].mxu0 %v5007
      %v5402 = vpop.f32.mrb[0].mxu0
      %v5403 = vadd.f32 0.0, %v5402
      %v5404 = vpop.f32.mrb[0].mxu0
      %v5405 = vadd.f32 0.0, %v5404
      %5406 = vmatprep.mubr.f32.mxu0 0.0
      %5407 = vmatmul.mubr.f32.gmra.mrb[0].mxu0 %v5010
      %v5408 = vpop.f32.mrb[0].mxu0
      %v5409 = vadd.f32 0.0, %v5408
      %v5410 = vpop.f32.mrb[0].mxu0
      %v5411 = vadd.f32 0.0, %v5410
      %5412 = vmatprep.mubr.f32.mxu0 0.0
      %5413 = vmatmul.mubr.f32.gmra.mrb[0].mxu0 %v5013
      %v5414 = vpop.f32.mrb[0].mxu0
      %v5415 = vadd.f32 0.0, %v5414
      %v5416 = vpop.f32.mrb[0].mxu0
      %v5417 = vadd.f32 0.0, %v5416
      %5418 = vdwg.mxu0
      %5419 = vrot.lane.b32.xlu0 %v5082, 32
      %v5420 = vpop.permute.xlu0 %5419
      %5421 = vrot.lane.b32.xlu0 %v5088, 32
      %v5422 = vpop.permute.xlu0 %5421
      %5423 = vrot.lane.b32.xlu0 %v5084, 32
      %v5424 = vpop.permute.xlu0 %5423
      %5425 = vrot.lane.b32.xlu0 %v5090, 32
      %v5426 = vpop.permute.xlu0 %5425
      %5427 = vrot.lane.b32.xlu0 %v5183, 32
      %v5428 = vpop.permute.xlu0 %5427
      %5429 = vrot.lane.b32.xlu0 %v5189, 32
      %v5430 = vpop.permute.xlu0 %5429
      %5431 = vrot.lane.b32.xlu0 %v5185, 32
      %v5432 = vpop.permute.xlu0 %5431
      %5433 = vrot.lane.b32.xlu0 %v5191, 32
      %v5434 = vpop.permute.xlu0 %5433
      %5435 = vrot.lane.b32.xlu0 %v5284, 32
      %v5436 = vpop.permute.xlu0 %5435
      %5437 = vrot.lane.b32.xlu0 %v5290, 32
      %v5438 = vpop.permute.xlu0 %5437
      %5439 = vrot.lane.b32.xlu0 %v5286, 32
      %v5440 = vpop.permute.xlu0 %5439
      %5441 = vrot.lane.b32.xlu0 %v5292, 32
      %v5442 = vpop.permute.xlu0 %5441
      %5443 = vrot.lane.b32.xlu0 %v5385, 32
      %v5444 = vpop.permute.xlu0 %5443
      %5445 = vrot.lane.b32.xlu0 %v5391, 32
      %v5446 = vpop.permute.xlu0 %5445
      %5447 = vrot.lane.b32.xlu0 %v5387, 32
      %v5448 = vpop.permute.xlu0 %5447
      %5449 = vrot.lane.b32.xlu0 %v5393, 32
      %v5450 = vpop.permute.xlu0 %5449
      %v5451 = vsel %vm2359, %v5444, %v5448
      %v5452 = vsel %vm2359, %v5446, %v5450
      %v5453 = vsel %vm2359, %v5440, %v5444
      %v5454 = vsel %vm2359, %v5442, %v5446
      %v5455 = vsel %vm2359, %v5436, %v5440
      %v5456 = vsel %vm2359, %v5438, %v5442
      %v5457 = vsel %vm2359, %v5432, %v5436
      %v5458 = vsel %vm2359, %v5434, %v5438
      %v5459 = vsel %vm2359, %v5428, %v5432
      %v5460 = vsel %vm2359, %v5430, %v5434
      %v5461 = vsel %vm2359, %v5424, %v5428
      %v5462 = vsel %vm2359, %v5426, %v5430
      %v5463 = vsel %vm2359, %v5420, %v5424
      %v5464 = vsel %vm2359, %v5422, %v5426
      %v5465 = vsel %vm2359, %v5448, %v5420
      %v5466 = vsel %vm2359, %v5450, %v5422
      %v5467 = vsel %vm2384, %v5465, 0.0
      %v5468 = vsel %vm2385, %v5463, 0.0
      %v5469 = vsel %vm2386, %v5461, 0.0
      %v5470 = vsel %vm2387, %v5459, 0.0
      %v5471 = vsel %vm2388, %v5457, 0.0
      %v5472 = vsel %vm2389, %v5455, 0.0
      %v5473 = vsel %vm2390, %v5453, 0.0
      %v5474 = vsel %vm2391, %v5451, 0.0
      %v5475 = vsel %vm2384, %v5466, 0.0
      %v5476 = vsel %vm2385, %v5464, 0.0
      %v5477 = vsel %vm2386, %v5462, 0.0
      %v5478 = vsel %vm2387, %v5460, 0.0
      %v5479 = vsel %vm2388, %v5458, 0.0
      %v5480 = vsel %vm2389, %v5456, 0.0
      %v5481 = vsel %vm2390, %v5454, 0.0
      %v5482 = vsel %vm2391, %v5452, 0.0
      %5483 = vrot.lane.b32.xlu0 %v5106, 96
      %v5484 = vpop.permute.xlu0 %5483
      %5485 = vrot.lane.b32.xlu0 %v5112, 96
      %v5486 = vpop.permute.xlu0 %5485
      %5487 = vrot.lane.b32.xlu0 %v5108, 96
      %v5488 = vpop.permute.xlu0 %5487
      %5489 = vrot.lane.b32.xlu0 %v5114, 96
      %v5490 = vpop.permute.xlu0 %5489
      %5491 = vrot.lane.b32.xlu0 %v5207, 96
      %v5492 = vpop.permute.xlu0 %5491
      %5493 = vrot.lane.b32.xlu0 %v5213, 96
      %v5494 = vpop.permute.xlu0 %5493
      %5495 = vrot.lane.b32.xlu0 %v5209, 96
      %v5496 = vpop.permute.xlu0 %5495
      %5497 = vrot.lane.b32.xlu0 %v5215, 96
      %v5498 = vpop.permute.xlu0 %5497
      %5499 = vrot.lane.b32.xlu0 %v5308, 96
      %v5500 = vpop.permute.xlu0 %5499
      %5501 = vrot.lane.b32.xlu0 %v5314, 96
      %v5502 = vpop.permute.xlu0 %5501
      %5503 = vrot.lane.b32.xlu0 %v5310, 96
      %v5504 = vpop.permute.xlu0 %5503
      %5505 = vrot.lane.b32.xlu0 %v5316, 96
      %v5506 = vpop.permute.xlu0 %5505
      %5507 = vrot.lane.b32.xlu0 %v5409, 96
      %v5508 = vpop.permute.xlu0 %5507
      %5509 = vrot.lane.b32.xlu0 %v5415, 96
      %v5510 = vpop.permute.xlu0 %5509
      %5511 = vrot.lane.b32.xlu0 %v5411, 96
      %v5512 = vpop.permute.xlu0 %5511
      %5513 = vrot.lane.b32.xlu0 %v5417, 96
      %v5514 = vpop.permute.xlu0 %5513
      %v5515 = vsel %vm2440, %v5508, %v5512
      %v5516 = vsel %vm2440, %v5510, %v5514
      %v5517 = vsel %vm2440, %v5504, %v5508
      %v5518 = vsel %vm2440, %v5506, %v5510
      %v5519 = vsel %vm2440, %v5500, %v5504
      %v5520 = vsel %vm2440, %v5502, %v5506
      %v5521 = vsel %vm2440, %v5496, %v5500
      %v5522 = vsel %vm2440, %v5498, %v5502
      %v5523 = vsel %vm2440, %v5492, %v5496
      %v5524 = vsel %vm2440, %v5494, %v5498
      %v5525 = vsel %vm2440, %v5488, %v5492
      %v5526 = vsel %vm2440, %v5490, %v5494
      %v5527 = vsel %vm2440, %v5484, %v5488
      %v5528 = vsel %vm2440, %v5486, %v5490
      %v5529 = vsel %vm2440, %v5512, %v5484
      %v5530 = vsel %vm2440, %v5514, %v5486
      %v5531 = vsel %vm2465, %v5527, 0.0
      %v5532 = vsel %vm2466, %v5525, 0.0
      %v5533 = vsel %vm2467, %v5523, 0.0
      %v5534 = vsel %vm2468, %v5521, 0.0
      %v5535 = vsel %vm2469, %v5519, 0.0
      %v5536 = vsel %vm2470, %v5517, 0.0
      %v5537 = vsel %vm2471, %v5515, 0.0
      %v5538 = vsel %vm2472, %v5529, 0.0
      %v5539 = vsel %vm2465, %v5528, 0.0
      %v5540 = vsel %vm2466, %v5526, 0.0
      %v5541 = vsel %vm2467, %v5524, 0.0
      %v5542 = vsel %vm2468, %v5522, 0.0
      %v5543 = vsel %vm2469, %v5520, 0.0
      %v5544 = vsel %vm2470, %v5518, 0.0
      %v5545 = vsel %vm2471, %v5516, 0.0
      %v5546 = vsel %vm2472, %v5530, 0.0
      %v5547 = vadd.f32 %v5467, %v5094
      %v5548 = vadd.f32 %v5468, %v5096
      %v5549 = vadd.f32 %v5469, %v5195
      %v5550 = vadd.f32 %v5470, %v5197
      %v5551 = vadd.f32 %v5471, %v5296
      %v5552 = vadd.f32 %v5472, %v5298
      %v5553 = vadd.f32 %v5473, %v5397
      %v5554 = vadd.f32 %v5474, %v5399
      %v5555 = vadd.f32 %v5475, %v5100
      %v5556 = vadd.f32 %v5476, %v5102
      %v5557 = vadd.f32 %v5477, %v5201
      %v5558 = vadd.f32 %v5478, %v5203
      %v5559 = vadd.f32 %v5479, %v5302
      %v5560 = vadd.f32 %v5480, %v5304
      %v5561 = vadd.f32 %v5481, %v5403
      %v5562 = vadd.f32 %v5482, %v5405
      %v5563 = vadd.f32 %v5547, %v5531
      %v5564 = vadd.f32 %v5548, %v5532
      %v5565 = vadd.f32 %v5549, %v5533
      %v5566 = vadd.f32 %v5550, %v5534
      %v5567 = vadd.f32 %v5551, %v5535
      %v5568 = vadd.f32 %v5552, %v5536
      %v5569 = vadd.f32 %v5553, %v5537
      %v5570 = vadd.f32 %v5554, %v5538
      %v5571 = vadd.f32 %v5555, %v5539
      %v5572 = vadd.f32 %v5556, %v5540
      %v5573 = vadd.f32 %v5557, %v5541
      %v5574 = vadd.f32 %v5558, %v5542
      %v5575 = vadd.f32 %v5559, %v5543
      %v5576 = vadd.f32 %v5560, %v5544
      %v5577 = vadd.f32 %v5561, %v5545
      %v5578 = vadd.f32 %v5562, %v5546
      %v5579 = vld [vmem:[%s18] sm:$0xff]
      %v5580 = vld [vmem:[%s18 + $0x8] sm:$0xff]
      %5582 = vset.pattern.permute.xlu0 0
      %5583 = vperm.xlu0 %5582, %v5579
      %v5584 = vpop.permute.xlu0 %5583
      %5587 = vset.pattern.permute.xlu0 0
      %5588 = vperm.xlu0 %5587, %v5580
      %v5589 = vpop.permute.xlu0 %5588
      %v5591 = vadd.f32 %v5563, %v5584
      %v5592 = vadd.f32 %v5564, %v5584
      %v5593 = vadd.f32 %v5565, %v5584
      %v5594 = vadd.f32 %v5566, %v5584
      %v5595 = vadd.f32 %v5567, %v5584
      %v5596 = vadd.f32 %v5568, %v5584
      %v5597 = vadd.f32 %v5569, %v5584
      %v5598 = vadd.f32 %v5570, %v5584
      %v5599 = vadd.f32 %v5571, %v5589
      %v5600 = vadd.f32 %v5572, %v5589
      %v5601 = vadd.f32 %v5573, %v5589
      %v5602 = vadd.f32 %v5574, %v5589
      %v5603 = vadd.f32 %v5575, %v5589
      %v5604 = vadd.f32 %v5576, %v5589
      %v5605 = vadd.f32 %v5577, %v5589
      %v5606 = vadd.f32 %v5578, %v5589
      %v5607 = vadd.f32 %v4691, %v5591
      %v5608 = vadd.f32 %v4692, %v5592
      %v5609 = vadd.f32 %v4693, %v5593
      %v5610 = vadd.f32 %v4694, %v5594
      %v5611 = vadd.f32 %v4695, %v5595
      %v5612 = vadd.f32 %v4696, %v5596
      %v5613 = vadd.f32 %v4697, %v5597
      %v5614 = vadd.f32 %v4698, %v5598
      %v5615 = vadd.f32 %v4699, %v5599
      %v5616 = vadd.f32 %v4700, %v5600
      %v5617 = vadd.f32 %v4701, %v5601
      %v5618 = vadd.f32 %v4702, %v5602
      %v5619 = vadd.f32 %v4703, %v5603
      %v5620 = vadd.f32 %v4704, %v5604
      %v5621 = vadd.f32 %v4705, %v5605
      %v5622 = vadd.f32 %v4706, %v5606
      %5623 = vst [vmem:[#allocation2] sm:$0xff] %v5607
      %5624 = vst [vmem:[#allocation2 + $0x8] sm:$0xff] %v5608
      %5625 = vst [vmem:[#allocation2 + $0x10] sm:$0xff] %v5609
      %5626 = vst [vmem:[#allocation2 + $0x18] sm:$0xff] %v5610
      %5627 = vst [vmem:[#allocation2 + $0x20] sm:$0xff] %v5611
      %5628 = vst [vmem:[#allocation2 + $0x28] sm:$0xff] %v5612
      %5629 = vst [vmem:[#allocation2 + $0x30] sm:$0xff] %v5613
      %5630 = vst [vmem:[#allocation2 + $0x38] sm:$0xff] %v5614
      %5631 = vst [vmem:[#allocation2 + $0x40] sm:$0xff] %v5615
      %5632 = vst [vmem:[#allocation2 + $0x48] sm:$0xff] %v5616
      %5633 = vst [vmem:[#allocation2 + $0x50] sm:$0xff] %v5617
      %5634 = vst [vmem:[#allocation2 + $0x58] sm:$0xff] %v5618
      %5635 = vst [vmem:[#allocation2 + $0x60] sm:$0xff] %v5619
      %5636 = vst [vmem:[#allocation2 + $0x68] sm:$0xff] %v5620
      %5637 = vst [vmem:[#allocation2 + $0x70] sm:$0xff] %v5621
      %5638 = vst [vmem:[#allocation2 + $0x78] sm:$0xff] %v5622
      %v5639 = vld [vmem:[#allocation2] sm:$0xff]
      %v5640 = vld [vmem:[#allocation2 + $0x8] sm:$0xff]
      %v5641 = vld [vmem:[#allocation2 + $0x10] sm:$0xff]
      %v5642 = vld [vmem:[#allocation2 + $0x18] sm:$0xff]
      %v5643 = vld [vmem:[#allocation2 + $0x20] sm:$0xff]
      %v5644 = vld [vmem:[#allocation2 + $0x28] sm:$0xff]
      %v5645 = vld [vmem:[#allocation2 + $0x30] sm:$0xff]
      %v5646 = vld [vmem:[#allocation2 + $0x38] sm:$0xff]
      %v5647 = vld [vmem:[#allocation2 + $0x40] sm:$0xff]
      %v5648 = vld [vmem:[#allocation2 + $0x48] sm:$0xff]
      %v5649 = vld [vmem:[#allocation2 + $0x50] sm:$0xff]
      %v5650 = vld [vmem:[#allocation2 + $0x58] sm:$0xff]
      %v5651 = vld [vmem:[#allocation2 + $0x60] sm:$0xff]
      %v5652 = vld [vmem:[#allocation2 + $0x68] sm:$0xff]
      %v5653 = vld [vmem:[#allocation2 + $0x70] sm:$0xff]
      %v5654 = vld [vmem:[#allocation2 + $0x78] sm:$0xff]
      %v5655 = vld [vmem:[%s19] sm:$0xff]
      %v5656 = vld [vmem:[%s19 + $0x8] sm:$0xff]
      %vm5657 = vcmp.ge.f32.partialorder %v5639, 0.0
      %vm5658 = vcmp.ge.f32.partialorder %v5640, 0.0
      %vm5659 = vcmp.ge.f32.partialorder %v5641, 0.0
      %vm5660 = vcmp.ge.f32.partialorder %v5642, 0.0
      %vm5661 = vcmp.ge.f32.partialorder %v5643, 0.0
      %vm5662 = vcmp.ge.f32.partialorder %v5644, 0.0
      %vm5663 = vcmp.ge.f32.partialorder %v5645, 0.0
      %vm5664 = vcmp.ge.f32.partialorder %v5646, 0.0
      %vm5665 = vcmp.ge.f32.partialorder %v5647, 0.0
      %vm5666 = vcmp.ge.f32.partialorder %v5648, 0.0
      %vm5667 = vcmp.ge.f32.partialorder %v5649, 0.0
      %vm5668 = vcmp.ge.f32.partialorder %v5650, 0.0
      %vm5669 = vcmp.ge.f32.partialorder %v5651, 0.0
      %vm5670 = vcmp.ge.f32.partialorder %v5652, 0.0
      %vm5671 = vcmp.ge.f32.partialorder %v5653, 0.0
      %vm5672 = vcmp.ge.f32.partialorder %v5654, 0.0
      %5674 = vset.pattern.permute.xlu0 0
      %5675 = vperm.xlu0 %5674, %v5655
      %v5676 = vpop.permute.xlu0 %5675
      %5679 = vset.pattern.permute.xlu0 0
      %5680 = vperm.xlu0 %5679, %v5656
      %v5681 = vpop.permute.xlu0 %5680
      %v5683 = vmul.f32 %v5639, %v5676
      %v5684 = vmul.f32 %v5640, %v5676
      %v5685 = vmul.f32 %v5641, %v5676
      %v5686 = vmul.f32 %v5642, %v5676
      %v5687 = vmul.f32 %v5643, %v5676
      %v5688 = vmul.f32 %v5644, %v5676
      %v5689 = vmul.f32 %v5645, %v5676
      %v5690 = vmul.f32 %v5646, %v5676
      %v5691 = vmul.f32 %v5647, %v5681
      %v5692 = vmul.f32 %v5648, %v5681
      %v5693 = vmul.f32 %v5649, %v5681
      %v5694 = vmul.f32 %v5650, %v5681
      %v5695 = vmul.f32 %v5651, %v5681
      %v5696 = vmul.f32 %v5652, %v5681
      %v5697 = vmul.f32 %v5653, %v5681
      %v5698 = vmul.f32 %v5654, %v5681
      %v5699 = vsel %vm5657, %v5639, %v5683
      %v5700 = vsel %vm5658, %v5640, %v5684
      %v5701 = vsel %vm5659, %v5641, %v5685
      %v5702 = vsel %vm5660, %v5642, %v5686
      %v5703 = vsel %vm5661, %v5643, %v5687
      %v5704 = vsel %vm5662, %v5644, %v5688
      %v5705 = vsel %vm5663, %v5645, %v5689
      %v5706 = vsel %vm5664, %v5646, %v5690
      %v5707 = vsel %vm5665, %v5647, %v5691
      %v5708 = vsel %vm5666, %v5648, %v5692
      %v5709 = vsel %vm5667, %v5649, %v5693
      %v5710 = vsel %vm5668, %v5650, %v5694
      %v5711 = vsel %vm5669, %v5651, %v5695
      %v5712 = vsel %vm5670, %v5652, %v5696
      %v5713 = vsel %vm5671, %v5653, %v5697
      %v5714 = vsel %vm5672, %v5654, %v5698
      %5715 = vst [vmem:[#allocation3] sm:$0xff] %v5699
      %5716 = vst [vmem:[#allocation3 + $0x8] sm:$0xff] %v5700
      %5717 = vst [vmem:[#allocation3 + $0x10] sm:$0xff] %v5701
      %5718 = vst [vmem:[#allocation3 + $0x18] sm:$0xff] %v5702
      %5719 = vst [vmem:[#allocation3 + $0x20] sm:$0xff] %v5703
      %5720 = vst [vmem:[#allocation3 + $0x28] sm:$0xff] %v5704
      %5721 = vst [vmem:[#allocation3 + $0x30] sm:$0xff] %v5705
      %5722 = vst [vmem:[#allocation3 + $0x38] sm:$0xff] %v5706
      %5723 = vst [vmem:[#allocation3 + $0x40] sm:$0xff] %v5707
      %5724 = vst [vmem:[#allocation3 + $0x48] sm:$0xff] %v5708
      %5725 = vst [vmem:[#allocation3 + $0x50] sm:$0xff] %v5709
      %5726 = vst [vmem:[#allocation3 + $0x58] sm:$0xff] %v5710
      %5727 = vst [vmem:[#allocation3 + $0x60] sm:$0xff] %v5711
      %5728 = vst [vmem:[#allocation3 + $0x68] sm:$0xff] %v5712
      %5729 = vst [vmem:[#allocation3 + $0x70] sm:$0xff] %v5713
      %5730 = vst [vmem:[#allocation3 + $0x78] sm:$0xff] %v5714
      %v5731 = vld [vmem:[#allocation4 + $0x80] sm:$0xff]
      %v5732 = vld [vmem:[#allocation4 + $0x88] sm:$0xff]
      %v5733 = vld [vmem:[#allocation4 + $0x90] sm:$0xff]
      %v5734 = vld [vmem:[#allocation4 + $0x98] sm:$0xff]
      %v5735 = vld [vmem:[#allocation4 + $0xa0] sm:$0xff]
      %v5736 = vld [vmem:[#allocation4 + $0xa8] sm:$0xff]
      %v5737 = vld [vmem:[#allocation4 + $0xb0] sm:$0xff]
      %v5738 = vld [vmem:[#allocation4 + $0xb8] sm:$0xff]
      %v5739 = vld [vmem:[%s19 + $0x10] sm:$0xff]
      %vm5740 = vcmp.ge.f32.partialorder %v5731, 0.0
      %vm5741 = vcmp.ge.f32.partialorder %v5732, 0.0
      %vm5742 = vcmp.ge.f32.partialorder %v5733, 0.0
      %vm5743 = vcmp.ge.f32.partialorder %v5734, 0.0
      %vm5744 = vcmp.ge.f32.partialorder %v5735, 0.0
      %vm5745 = vcmp.ge.f32.partialorder %v5736, 0.0
      %vm5746 = vcmp.ge.f32.partialorder %v5737, 0.0
      %vm5747 = vcmp.ge.f32.partialorder %v5738, 0.0
      %5749 = vset.pattern.permute.xlu0 0
      %5750 = vperm.xlu0 %5749, %v5739
      %v5751 = vpop.permute.xlu0 %5750
      %v5753 = vmul.f32 %v5731, %v5751
      %v5754 = vmul.f32 %v5732, %v5751
      %v5755 = vmul.f32 %v5733, %v5751
      %v5756 = vmul.f32 %v5734, %v5751
      %v5757 = vmul.f32 %v5735, %v5751
      %v5758 = vmul.f32 %v5736, %v5751
      %v5759 = vmul.f32 %v5737, %v5751
      %v5760 = vmul.f32 %v5738, %v5751
      %v5761 = vsel %vm5740, %v5731, %v5753
      %v5762 = vsel %vm5741, %v5732, %v5754
      %v5763 = vsel %vm5742, %v5733, %v5755
      %v5764 = vsel %vm5743, %v5734, %v5756
      %v5765 = vsel %vm5744, %v5735, %v5757
      %v5766 = vsel %vm5745, %v5736, %v5758
      %v5767 = vsel %vm5746, %v5737, %v5759
      %v5768 = vsel %vm5747, %v5738, %v5760
      %5769 = vst [vmem:[#allocation3 + $0x80] sm:$0xff] %v5761
      %5770 = vst [vmem:[#allocation3 + $0x88] sm:$0xff] %v5762
      %5771 = vst [vmem:[#allocation3 + $0x90] sm:$0xff] %v5763
      %5772 = vst [vmem:[#allocation3 + $0x98] sm:$0xff] %v5764
      %5773 = vst [vmem:[#allocation3 + $0xa0] sm:$0xff] %v5765
      %5774 = vst [vmem:[#allocation3 + $0xa8] sm:$0xff] %v5766
      %5775 = vst [vmem:[#allocation3 + $0xb0] sm:$0xff] %v5767
      %5776 = vst [vmem:[#allocation3 + $0xb8] sm:$0xff] %v5768
      %v5777 = vld [vmem:[#allocation4 + $0x100] sm:$0xff]
      %v5778 = vld [vmem:[#allocation4 + $0x108] sm:$0xff]
      %v5779 = vld [vmem:[#allocation4 + $0x110] sm:$0xff]
      %v5780 = vld [vmem:[#allocation4 + $0x118] sm:$0xff]
      %v5781 = vld [vmem:[#allocation4 + $0x120] sm:$0xff]
      %v5782 = vld [vmem:[#allocation4 + $0x128] sm:$0xff]
      %v5783 = vld [vmem:[#allocation4 + $0x130] sm:$0xff]
      %v5784 = vld [vmem:[#allocation4 + $0x138] sm:$0xff]
      %v5785 = vld [vmem:[%s19 + $0x18] sm:$0xff]
      %vm5786 = vcmp.ge.f32.partialorder %v5777, 0.0
      %vm5787 = vcmp.ge.f32.partialorder %v5778, 0.0
      %vm5788 = vcmp.ge.f32.partialorder %v5779, 0.0
      %vm5789 = vcmp.ge.f32.partialorder %v5780, 0.0
      %vm5790 = vcmp.ge.f32.partialorder %v5781, 0.0
      %vm5791 = vcmp.ge.f32.partialorder %v5782, 0.0
      %vm5792 = vcmp.ge.f32.partialorder %v5783, 0.0
      %vm5793 = vcmp.ge.f32.partialorder %v5784, 0.0
      %5795 = vset.pattern.permute.xlu0 0
      %5796 = vperm.xlu0 %5795, %v5785
      %v5797 = vpop.permute.xlu0 %5796
      %v5799 = vmul.f32 %v5777, %v5797
      %v5800 = vmul.f32 %v5778, %v5797
      %v5801 = vmul.f32 %v5779, %v5797
      %v5802 = vmul.f32 %v5780, %v5797
      %v5803 = vmul.f32 %v5781, %v5797
      %v5804 = vmul.f32 %v5782, %v5797
      %v5805 = vmul.f32 %v5783, %v5797
      %v5806 = vmul.f32 %v5784, %v5797
      %v5807 = vsel %vm5786, %v5777, %v5799
      %v5808 = vsel %vm5787, %v5778, %v5800
      %v5809 = vsel %vm5788, %v5779, %v5801
      %v5810 = vsel %vm5789, %v5780, %v5802
      %v5811 = vsel %vm5790, %v5781, %v5803
      %v5812 = vsel %vm5791, %v5782, %v5804
      %v5813 = vsel %vm5792, %v5783, %v5805
      %v5814 = vsel %vm5793, %v5784, %v5806
      %5815 = vst [vmem:[#allocation3 + $0xc0] sm:$0xff] %v5807
      %5816 = vst [vmem:[#allocation3 + $0xc8] sm:$0xff] %v5808
      %5817 = vst [vmem:[#allocation3 + $0xd0] sm:$0xff] %v5809
      %5818 = vst [vmem:[#allocation3 + $0xd8] sm:$0xff] %v5810
      %5819 = vst [vmem:[#allocation3 + $0xe0] sm:$0xff] %v5811
      %5820 = vst [vmem:[#allocation3 + $0xe8] sm:$0xff] %v5812
      %5821 = vst [vmem:[#allocation3 + $0xf0] sm:$0xff] %v5813
      %5822 = vst [vmem:[#allocation3 + $0xf8] sm:$0xff] %v5814
      %v5823 = vld [vmem:[#allocation4 + $0x140] sm:$0xff]
      %v5824 = vld [vmem:[#allocation4 + $0x148] sm:$0xff]
      %v5825 = vld [vmem:[#allocation4 + $0x150] sm:$0xff]
      %v5826 = vld [vmem:[#allocation4 + $0x158] sm:$0xff]
      %v5827 = vld [vmem:[#allocation4 + $0x160] sm:$0xff]
      %v5828 = vld [vmem:[#allocation4 + $0x168] sm:$0xff]
      %v5829 = vld [vmem:[#allocation4 + $0x170] sm:$0xff]
      %v5830 = vld [vmem:[#allocation4 + $0x178] sm:$0xff]
      %v5831 = vld [vmem:[%s19 + $0x20] sm:$0xff]
      %vm5832 = vcmp.ge.f32.partialorder %v5823, 0.0
      %vm5833 = vcmp.ge.f32.partialorder %v5824, 0.0
      %vm5834 = vcmp.ge.f32.partialorder %v5825, 0.0
      %vm5835 = vcmp.ge.f32.partialorder %v5826, 0.0
      %vm5836 = vcmp.ge.f32.partialorder %v5827, 0.0
      %vm5837 = vcmp.ge.f32.partialorder %v5828, 0.0
      %vm5838 = vcmp.ge.f32.partialorder %v5829, 0.0
      %vm5839 = vcmp.ge.f32.partialorder %v5830, 0.0
      %5841 = vset.pattern.permute.xlu0 0
      %5842 = vperm.xlu0 %5841, %v5831
      %v5843 = vpop.permute.xlu0 %5842
      %v5845 = vmul.f32 %v5823, %v5843
      %v5846 = vmul.f32 %v5824, %v5843
      %v5847 = vmul.f32 %v5825, %v5843
      %v5848 = vmul.f32 %v5826, %v5843
      %v5849 = vmul.f32 %v5827, %v5843
      %v5850 = vmul.f32 %v5828, %v5843
      %v5851 = vmul.f32 %v5829, %v5843
      %v5852 = vmul.f32 %v5830, %v5843
      %v5853 = vsel %vm5832, %v5823, %v5845
      %v5854 = vsel %vm5833, %v5824, %v5846
      %v5855 = vsel %vm5834, %v5825, %v5847
      %v5856 = vsel %vm5835, %v5826, %v5848
      %v5857 = vsel %vm5836, %v5827, %v5849
      %v5858 = vsel %vm5837, %v5828, %v5850
      %v5859 = vsel %vm5838, %v5829, %v5851
      %v5860 = vsel %vm5839, %v5830, %v5852
      %5861 = vst [vmem:[#allocation3 + $0x100] sm:$0xff] %v5853
      %5862 = vst [vmem:[#allocation3 + $0x108] sm:$0xff] %v5854
      %5863 = vst [vmem:[#allocation3 + $0x110] sm:$0xff] %v5855
      %5864 = vst [vmem:[#allocation3 + $0x118] sm:$0xff] %v5856
      %5865 = vst [vmem:[#allocation3 + $0x120] sm:$0xff] %v5857
      %5866 = vst [vmem:[#allocation3 + $0x128] sm:$0xff] %v5858
      %5867 = vst [vmem:[#allocation3 + $0x130] sm:$0xff] %v5859
      %5868 = vst [vmem:[#allocation3 + $0x138] sm:$0xff] %v5860
      %v5869 = vld [vmem:[%s20] sm:$0xff]
      %v5870 = vld [vmem:[%s20 + $0x8] sm:$0xff]
      %v5871 = vld [vmem:[#allocation3] sm:$0xff]
      %v5872 = vld [vmem:[#allocation3 + $0x8] sm:$0xff]
      %v5873 = vld [vmem:[#allocation3 + $0x10] sm:$0xff]
      %v5874 = vld [vmem:[#allocation3 + $0x18] sm:$0xff]
      %v5875 = vld [vmem:[#allocation3 + $0x20] sm:$0xff]
      %v5876 = vld [vmem:[#allocation3 + $0x28] sm:$0xff]
      %v5877 = vld [vmem:[#allocation3 + $0x30] sm:$0xff]
      %v5878 = vld [vmem:[#allocation3 + $0x38] sm:$0xff]
      %v5879 = vld [vmem:[#allocation3 + $0x40] sm:$0xff]
      %v5880 = vld [vmem:[#allocation3 + $0x48] sm:$0xff]
      %v5881 = vld [vmem:[#allocation3 + $0x50] sm:$0xff]
      %v5882 = vld [vmem:[#allocation3 + $0x58] sm:$0xff]
      %v5883 = vld [vmem:[#allocation3 + $0x60] sm:$0xff]
      %v5884 = vld [vmem:[#allocation3 + $0x68] sm:$0xff]
      %v5885 = vld [vmem:[#allocation3 + $0x70] sm:$0xff]
      %v5886 = vld [vmem:[#allocation3 + $0x78] sm:$0xff]
      %v5887 = vld [vmem:[#allocation3 + $0x80] sm:$0xff]
      %v5888 = vld [vmem:[#allocation3 + $0x88] sm:$0xff]
      %v5889 = vld [vmem:[#allocation3 + $0x90] sm:$0xff]
      %v5890 = vld [vmem:[#allocation3 + $0x98] sm:$0xff]
      %v5891 = vld [vmem:[#allocation3 + $0xa0] sm:$0xff]
      %v5892 = vld [vmem:[#allocation3 + $0xa8] sm:$0xff]
      %v5893 = vld [vmem:[#allocation3 + $0xb0] sm:$0xff]
      %v5894 = vld [vmem:[#allocation3 + $0xb8] sm:$0xff]
      %v5895 = vld [vmem:[#allocation3 + $0xc0] sm:$0xff]
      %v5896 = vld [vmem:[#allocation3 + $0xc8] sm:$0xff]
      %v5897 = vld [vmem:[#allocation3 + $0xd0] sm:$0xff]
      %v5898 = vld [vmem:[#allocation3 + $0xd8] sm:$0xff]
      %v5899 = vld [vmem:[#allocation3 + $0xe0] sm:$0xff]
      %v5900 = vld [vmem:[#allocation3 + $0xe8] sm:$0xff]
      %v5901 = vld [vmem:[#allocation3 + $0xf0] sm:$0xff]
      %v5902 = vld [vmem:[#allocation3 + $0xf8] sm:$0xff]
      %v5903 = vld [vmem:[#allocation3 + $0x100] sm:$0xff]
      %v5904 = vld [vmem:[#allocation3 + $0x108] sm:$0xff]
      %v5905 = vld [vmem:[#allocation3 + $0x110] sm:$0xff]
      %v5906 = vld [vmem:[#allocation3 + $0x118] sm:$0xff]
      %v5907 = vld [vmem:[#allocation3 + $0x120] sm:$0xff]
      %v5908 = vld [vmem:[#allocation3 + $0x128] sm:$0xff]
      %v5909 = vld [vmem:[#allocation3 + $0x130] sm:$0xff]
      %v5910 = vld [vmem:[#allocation3 + $0x138] sm:$0xff]
      %v5911 = vld [vmem:[%s21] sm:$0xff]
      %v5912 = vld [vmem:[%s21 + $0x8] sm:$0xff]
      %5914 = vset.pattern.permute.xlu0 0
      %5915 = vperm.xlu0 %5914, %v5911
      %v5916 = vpop.permute.xlu0 %5915
      %5919 = vset.pattern.permute.xlu0 0
      %5920 = vperm.xlu0 %5919, %v5912
      %v5921 = vpop.permute.xlu0 %5920
      %vm5923 = vcmask 326656
      %v5925 = vsel %vm5923, %v5869, 0
      %v5928 = vsel %vm5923, %v5870, 0
      %5930 = vmatprep.subr.mxu0 %v5872
      %5931 = vmatpush1.msra.mxu0 %v5871
      %5932 = vmatprep.subr.mxu0 %v5880
      %5933 = vmatpush1.msra.mxu0 %v5879
      %5934 = vmatprep.subr.mxu0 %v5888
      %5935 = vmatpush1.msra.mxu0 %v5887
      %5936 = vmatprep.subr.mxu0 %v5896
      %5937 = vmatpush1.msra.mxu0 %v5895
      %5938 = vmatprep.subr.mxu0 %v5904
      %5939 = vmatpush1.msra.mxu0 %v5903
      %5940 = vmatprep.subr.mxu0 0.0
      %5941 = vmatpush1.msra.mxu0 0.0
      %5942 = vmatprep.subr.mxu0 0.0
      %5943 = vmatpush1.msra.mxu0 0.0
      %5944 = vmatprep.subr.mxu0 0.0
      %5945 = vmatpush1.msra.mxu0 0.0
      %5946 = vmatprep.subr.mxu0 0.0
      %5947 = vmatpush1.msra.mxu0 0.0
      %5948 = vmatprep.subr.mxu0 0.0
      %5949 = vmatpush1.msra.mxu0 0.0
      %5950 = vmatprep.subr.mxu0 0.0
      %5951 = vmatpush1.msra.mxu0 0.0
      %5952 = vmatprep.subr.mxu0 0.0
      %5953 = vmatpush1.msra.mxu0 0.0
      %5954 = vmatprep.subr.mxu0 0.0
      %5955 = vmatpush1.msra.mxu0 0.0
      %5956 = vmatprep.subr.mxu0 0.0
      %5957 = vmatpush1.msra.mxu0 0.0
      %5958 = vmatprep.subr.mxu0 0.0
      %5959 = vmatpush1.msra.mxu0 0.0
      %5960 = vmatprep.subr.mxu0 0.0
      %5961 = vmatpush1.msra.mxu0 0.0
      %5962 = vmatprep.subr.mxu0 0.0
      %5963 = vmatpush1.msra.mxu0 0.0
      %5964 = vmatprep.subr.mxu0 0.0
      %5965 = vmatpush1.msra.mxu0 0.0
      %5966 = vmatprep.subr.mxu0 0.0
      %5967 = vmatpush1.msra.mxu0 0.0
      %5968 = vmatprep.subr.mxu0 0.0
      %5969 = vmatpush1.msra.mxu0 0.0
      %5970 = vmatprep.subr.mxu0 0.0
      %5971 = vmatpush1.msra.mxu0 0.0
      %5972 = vmatprep.subr.mxu0 0.0
      %5973 = vmatpush1.msra.mxu0 0.0
      %5974 = vmatprep.subr.mxu0 0.0
      %5975 = vmatpush1.msra.mxu0 0.0
      %5976 = vmatprep.subr.mxu0 0.0
      %5977 = vmatpush1.msra.mxu0 0.0
      %5978 = vmatprep.subr.mxu0 0.0
      %5979 = vmatpush1.msra.mxu0 0.0
      %5980 = vmatprep.subr.mxu0 0.0
      %5981 = vmatpush1.msra.mxu0 0.0
      %5982 = vmatprep.subr.mxu0 0.0
      %5983 = vmatpush1.msra.mxu0 0.0
      %5984 = vmatprep.subr.mxu0 0.0
      %5985 = vmatpush1.msra.mxu0 0.0
      %5986 = vmatprep.subr.mxu0 0.0
      %5987 = vmatpush1.msra.mxu0 0.0
      %5988 = vmatprep.subr.mxu0 0.0
      %5989 = vmatpush1.msra.mxu0 0.0
      %5990 = vmatprep.subr.mxu0 0.0
      %5991 = vmatpush1.msra.mxu0 0.0
      %5992 = vmatprep.subr.mxu0 0.0
      %5993 = vmatpush1.msra.mxu0 0.0
      %5994 = vmatprep.mubr.f32.mxu0 0.0
      %5995 = vmatmul.mubr.f32.gmra.mrb[0].mxu0 %v5925
      %v5996 = vpop.f32.mrb[0].mxu0
      %v5997 = vadd.f32 %v5916, %v5996
      %v5998 = vpop.f32.mrb[0].mxu0
      %v5999 = vadd.f32 %v5916, %v5998
      %6000 = vmatprep.mubr.f32.mxu0 0.0
      %6001 = vmatmul.mubr.f32.gmra.mrb[0].mxu0 %v5928
      %v6002 = vpop.f32.mrb[0].mxu0
      %v6003 = vadd.f32 %v5921, %v6002
      %v6004 = vpop.f32.mrb[0].mxu0
      %v6005 = vadd.f32 %v5921, %v6004
      %6006 = vdwg.mxu0
      %6007 = vmatprep.subr.mxu0 %v5874
      %6008 = vmatpush1.msra.mxu0 %v5873
      %6009 = vmatprep.subr.mxu0 %v5882
      %6010 = vmatpush1.msra.mxu0 %v5881
      %6011 = vmatprep.subr.mxu0 %v5890
      %6012 = vmatpush1.msra.mxu0 %v5889
      %6013 = vmatprep.subr.mxu0 %v5898
      %6014 = vmatpush1.msra.mxu0 %v5897
      %6015 = vmatprep.subr.mxu0 %v5906
      %6016 = vmatpush1.msra.mxu0 %v5905
      %6017 = vmatprep.subr.mxu0 0.0
      %6018 = vmatpush1.msra.mxu0 0.0
      %6019 = vmatprep.subr.mxu0 0.0
      %6020 = vmatpush1.msra.mxu0 0.0
      %6021 = vmatprep.subr.mxu0 0.0
      %6022 = vmatpush1.msra.mxu0 0.0
      %6023 = vmatprep.subr.mxu0 0.0
      %6024 = vmatpush1.msra.mxu0 0.0
      %6025 = vmatprep.subr.mxu0 0.0
      %6026 = vmatpush1.msra.mxu0 0.0
      %6027 = vmatprep.subr.mxu0 0.0
      %6028 = vmatpush1.msra.mxu0 0.0
      %6029 = vmatprep.subr.mxu0 0.0
      %6030 = vmatpush1.msra.mxu0 0.0
      %6031 = vmatprep.subr.mxu0 0.0
      %6032 = vmatpush1.msra.mxu0 0.0
      %6033 = vmatprep.subr.mxu0 0.0
      %6034 = vmatpush1.msra.mxu0 0.0
      %6035 = vmatprep.subr.mxu0 0.0
      %6036 = vmatpush1.msra.mxu0 0.0
      %6037 = vmatprep.subr.mxu0 0.0
      %6038 = vmatpush1.msra.mxu0 0.0
      %6039 = vmatprep.subr.mxu0 0.0
      %6040 = vmatpush1.msra.mxu0 0.0
      %6041 = vmatprep.subr.mxu0 0.0
      %6042 = vmatpush1.msra.mxu0 0.0
      %6043 = vmatprep.subr.mxu0 0.0
      %6044 = vmatpush1.msra.mxu0 0.0
      %6045 = vmatprep.subr.mxu0 0.0
      %6046 = vmatpush1.msra.mxu0 0.0
      %6047 = vmatprep.subr.mxu0 0.0
      %6048 = vmatpush1.msra.mxu0 0.0
      %6049 = vmatprep.subr.mxu0 0.0
      %6050 = vmatpush1.msra.mxu0 0.0
      %6051 = vmatprep.subr.mxu0 0.0
      %6052 = vmatpush1.msra.mxu0 0.0
      %6053 = vmatprep.subr.mxu0 0.0
      %6054 = vmatpush1.msra.mxu0 0.0
      %6055 = vmatprep.subr.mxu0 0.0
      %6056 = vmatpush1.msra.mxu0 0.0
      %6057 = vmatprep.subr.mxu0 0.0
      %6058 = vmatpush1.msra.mxu0 0.0
      %6059 = vmatprep.subr.mxu0 0.0
      %6060 = vmatpush1.msra.mxu0 0.0
      %6061 = vmatprep.subr.mxu0 0.0
      %6062 = vmatpush1.msra.mxu0 0.0
      %6063 = vmatprep.subr.mxu0 0.0
      %6064 = vmatpush1.msra.mxu0 0.0
      %6065 = vmatprep.subr.mxu0 0.0
      %6066 = vmatpush1.msra.mxu0 0.0
      %6067 = vmatprep.subr.mxu0 0.0
      %6068 = vmatpush1.msra.mxu0 0.0
      %6069 = vmatprep.subr.mxu0 0.0
      %6070 = vmatpush1.msra.mxu0 0.0
      %6071 = vmatprep.mubr.f32.mxu0 0.0
      %6072 = vmatmul.mubr.f32.gmra.mrb[0].mxu0 %v5925
      %v6073 = vpop.f32.mrb[0].mxu0
      %v6074 = vadd.f32 %v5916, %v6073
      %v6075 = vpop.f32.mrb[0].mxu0
      %v6076 = vadd.f32 %v5916, %v6075
      %6077 = vmatprep.mubr.f32.mxu0 0.0
      %6078 = vmatmul.mubr.f32.gmra.mrb[0].mxu0 %v5928
      %v6079 = vpop.f32.mrb[0].mxu0
      %v6080 = vadd.f32 %v5921, %v6079
      %v6081 = vpop.f32.mrb[0].mxu0
      %v6082 = vadd.f32 %v5921, %v6081
      %6083 = vdwg.mxu0
      %6084 = vmatprep.subr.mxu0 %v5876
      %6085 = vmatpush1.msra.mxu0 %v5875
      %6086 = vmatprep.subr.mxu0 %v5884
      %6087 = vmatpush1.msra.mxu0 %v5883
      %6088 = vmatprep.subr.mxu0 %v5892
      %6089 = vmatpush1.msra.mxu0 %v5891
      %6090 = vmatprep.subr.mxu0 %v5900
      %6091 = vmatpush1.msra.mxu0 %v5899
      %6092 = vmatprep.subr.mxu0 %v5908
      %6093 = vmatpush1.msra.mxu0 %v5907
      %6094 = vmatprep.subr.mxu0 0.0
      %6095 = vmatpush1.msra.mxu0 0.0
      %6096 = vmatprep.subr.mxu0 0.0
      %6097 = vmatpush1.msra.mxu0 0.0
      %6098 = vmatprep.subr.mxu0 0.0
      %6099 = vmatpush1.msra.mxu0 0.0
      %6100 = vmatprep.subr.mxu0 0.0
      %6101 = vmatpush1.msra.mxu0 0.0
      %6102 = vmatprep.subr.mxu0 0.0
      %6103 = vmatpush1.msra.mxu0 0.0
      %6104 = vmatprep.subr.mxu0 0.0
      %6105 = vmatpush1.msra.mxu0 0.0
      %6106 = vmatprep.subr.mxu0 0.0
      %6107 = vmatpush1.msra.mxu0 0.0
      %6108 = vmatprep.subr.mxu0 0.0
      %6109 = vmatpush1.msra.mxu0 0.0
      %6110 = vmatprep.subr.mxu0 0.0
      %6111 = vmatpush1.msra.mxu0 0.0
      %6112 = vmatprep.subr.mxu0 0.0
      %6113 = vmatpush1.msra.mxu0 0.0
      %6114 = vmatprep.subr.mxu0 0.0
      %6115 = vmatpush1.msra.mxu0 0.0
      %6116 = vmatprep.subr.mxu0 0.0
      %6117 = vmatpush1.msra.mxu0 0.0
      %6118 = vmatprep.subr.mxu0 0.0
      %6119 = vmatpush1.msra.mxu0 0.0
      %6120 = vmatprep.subr.mxu0 0.0
      %6121 = vmatpush1.msra.mxu0 0.0
      %6122 = vmatprep.subr.mxu0 0.0
      %6123 = vmatpush1.msra.mxu0 0.0
      %6124 = vmatprep.subr.mxu0 0.0
      %6125 = vmatpush1.msra.mxu0 0.0
      %6126 = vmatprep.subr.mxu0 0.0
      %6127 = vmatpush1.msra.mxu0 0.0
      %6128 = vmatprep.subr.mxu0 0.0
      %6129 = vmatpush1.msra.mxu0 0.0
      %6130 = vmatprep.subr.mxu0 0.0
      %6131 = vmatpush1.msra.mxu0 0.0
      %6132 = vmatprep.subr.mxu0 0.0
      %6133 = vmatpush1.msra.mxu0 0.0
      %6134 = vmatprep.subr.mxu0 0.0
      %6135 = vmatpush1.msra.mxu0 0.0
      %6136 = vmatprep.subr.mxu0 0.0
      %6137 = vmatpush1.msra.mxu0 0.0
      %6138 = vmatprep.subr.mxu0 0.0
      %6139 = vmatpush1.msra.mxu0 0.0
      %6140 = vmatprep.subr.mxu0 0.0
      %6141 = vmatpush1.msra.mxu0 0.0
      %6142 = vmatprep.subr.mxu0 0.0
      %6143 = vmatpush1.msra.mxu0 0.0
      %6144 = vmatprep.subr.mxu0 0.0
      %6145 = vmatpush1.msra.mxu0 0.0
      %6146 = vmatprep.subr.mxu0 0.0
      %6147 = vmatpush1.msra.mxu0 0.0
      %6148 = vmatprep.mubr.f32.mxu0 0.0
      %6149 = vmatmul.mubr.f32.gmra.mrb[0].mxu0 %v5925
      %v6150 = vpop.f32.mrb[0].mxu0
      %v6151 = vadd.f32 %v5916, %v6150
      %v6152 = vpop.f32.mrb[0].mxu0
      %v6153 = vadd.f32 %v5916, %v6152
      %6154 = vmatprep.mubr.f32.mxu0 0.0
      %6155 = vmatmul.mubr.f32.gmra.mrb[0].mxu0 %v5928
      %v6156 = vpop.f32.mrb[0].mxu0
      %v6157 = vadd.f32 %v5921, %v6156
      %v6158 = vpop.f32.mrb[0].mxu0
      %v6159 = vadd.f32 %v5921, %v6158
      %6160 = vdwg.mxu0
      %6161 = vmatprep.subr.mxu0 %v5878
      %6162 = vmatpush1.msra.mxu0 %v5877
      %6163 = vmatprep.subr.mxu0 %v5886
      %6164 = vmatpush1.msra.mxu0 %v5885
      %6165 = vmatprep.subr.mxu0 %v5894
      %6166 = vmatpush1.msra.mxu0 %v5893
      %6167 = vmatprep.subr.mxu0 %v5902
      %6168 = vmatpush1.msra.mxu0 %v5901
      %6169 = vmatprep.subr.mxu0 %v5910
      %6170 = vmatpush1.msra.mxu0 %v5909
      %6171 = vmatprep.subr.mxu0 0.0
      %6172 = vmatpush1.msra.mxu0 0.0
      %6173 = vmatprep.subr.mxu0 0.0
      %6174 = vmatpush1.msra.mxu0 0.0
      %6175 = vmatprep.subr.mxu0 0.0
      %6176 = vmatpush1.msra.mxu0 0.0
      %6177 = vmatprep.subr.mxu0 0.0
      %6178 = vmatpush1.msra.mxu0 0.0
      %6179 = vmatprep.subr.mxu0 0.0
      %6180 = vmatpush1.msra.mxu0 0.0
      %6181 = vmatprep.subr.mxu0 0.0
      %6182 = vmatpush1.msra.mxu0 0.0
      %6183 = vmatprep.subr.mxu0 0.0
      %6184 = vmatpush1.msra.mxu0 0.0
      %6185 = vmatprep.subr.mxu0 0.0
      %6186 = vmatpush1.msra.mxu0 0.0
      %6187 = vmatprep.subr.mxu0 0.0
      %6188 = vmatpush1.msra.mxu0 0.0
      %6189 = vmatprep.subr.mxu0 0.0
      %6190 = vmatpush1.msra.mxu0 0.0
      %6191 = vmatprep.subr.mxu0 0.0
      %6192 = vmatpush1.msra.mxu0 0.0
      %6193 = vmatprep.subr.mxu0 0.0
      %6194 = vmatpush1.msra.mxu0 0.0
      %6195 = vmatprep.subr.mxu0 0.0
      %6196 = vmatpush1.msra.mxu0 0.0
      %6197 = vmatprep.subr.mxu0 0.0
      %6198 = vmatpush1.msra.mxu0 0.0
      %6199 = vmatprep.subr.mxu0 0.0
      %6200 = vmatpush1.msra.mxu0 0.0
      %6201 = vmatprep.subr.mxu0 0.0
      %6202 = vmatpush1.msra.mxu0 0.0
      %6203 = vmatprep.subr.mxu0 0.0
      %6204 = vmatpush1.msra.mxu0 0.0
      %6205 = vmatprep.subr.mxu0 0.0
      %6206 = vmatpush1.msra.mxu0 0.0
      %6207 = vmatprep.subr.mxu0 0.0
      %6208 = vmatpush1.msra.mxu0 0.0
      %6209 = vmatprep.subr.mxu0 0.0
      %6210 = vmatpush1.msra.mxu0 0.0
      %6211 = vmatprep.subr.mxu0 0.0
      %6212 = vmatpush1.msra.mxu0 0.0
      %6213 = vmatprep.subr.mxu0 0.0
      %6214 = vmatpush1.msra.mxu0 0.0
      %6215 = vmatprep.subr.mxu0 0.0
      %6216 = vmatpush1.msra.mxu0 0.0
      %6217 = vmatprep.subr.mxu0 0.0
      %6218 = vmatpush1.msra.mxu0 0.0
      %6219 = vmatprep.subr.mxu0 0.0
      %6220 = vmatpush1.msra.mxu0 0.0
      %6221 = vmatprep.subr.mxu0 0.0
      %6222 = vmatpush1.msra.mxu0 0.0
      %6223 = vmatprep.subr.mxu0 0.0
      %6224 = vmatpush1.msra.mxu0 0.0
      %6225 = vmatprep.mubr.f32.mxu0 0.0
      %6226 = vmatmul.mubr.f32.gmra.mrb[0].mxu0 %v5925
      %v6227 = vpop.f32.mrb[0].mxu0
      %v6228 = vadd.f32 %v5916, %v6227
      %v6229 = vpop.f32.mrb[0].mxu0
      %v6230 = vadd.f32 %v5916, %v6229
      %6231 = vmatprep.mubr.f32.mxu0 0.0
      %6232 = vmatmul.mubr.f32.gmra.mrb[0].mxu0 %v5928
      %v6233 = vpop.f32.mrb[0].mxu0
      %v6234 = vadd.f32 %v5921, %v6233
      %v6235 = vpop.f32.mrb[0].mxu0
      %v6236 = vadd.f32 %v5921, %v6235
      %6237 = vdwg.mxu0
      %6238 = vst [vmem:[%s826] sm:$0xff] %v5997
      %6239 = vst [vmem:[%s826 + $0x8] sm:$0xff] %v5999
      %6240 = vst [vmem:[%s826 + $0x10] sm:$0xff] %v6074
      %6241 = vst [vmem:[%s826 + $0x18] sm:$0xff] %v6076
      %6242 = vst [vmem:[%s826 + $0x20] sm:$0xff] %v6151
      %6243 = vst [vmem:[%s826 + $0x28] sm:$0xff] %v6153
      %6244 = vst [vmem:[%s826 + $0x30] sm:$0xff] %v6228
      %6245 = vst [vmem:[%s826 + $0x38] sm:$0xff] %v6230
      %6246 = vst [vmem:[%s826 + $0x40] sm:$0xff] %v6003
      %6247 = vst [vmem:[%s826 + $0x48] sm:$0xff] %v6005
      %6248 = vst [vmem:[%s826 + $0x50] sm:$0xff] %v6080
      %6249 = vst [vmem:[%s826 + $0x58] sm:$0xff] %v6082
      %6250 = vst [vmem:[%s826 + $0x60] sm:$0xff] %v6157
      %6251 = vst [vmem:[%s826 + $0x68] sm:$0xff] %v6159
      %6252 = vst [vmem:[%s826 + $0x70] sm:$0xff] %v6234
      %6253 = vst [vmem:[%s826 + $0x78] sm:$0xff] %v6236
      %v6254 = vld [vmem:[%s22] sm:$0xf]
      %v6255 = vld [vmem:[%s23] sm:$0xf]
      %6257 = vset.pattern.permute.xlu0 0
      %6258 = vperm.xlu0 %6257, %v6255
      %v6259 = vpop.permute.xlu0 %6258
      %v6262 = vsel %vm1144, %v6254, 0
      %6264 = vmatprep.subr.mxu0 %v5999
      %6265 = vmatpush1.msra.mxu0 %v5997
      %6266 = vmatprep.subr.mxu0 %v6005
      %6267 = vmatpush1.msra.mxu0 %v6003
      %6268 = vmatprep.subr.mxu0 0.0
      %6269 = vmatpush1.msra.mxu0 0.0
      %6270 = vmatprep.subr.mxu0 0.0
      %6271 = vmatpush1.msra.mxu0 0.0
      %6272 = vmatprep.subr.mxu0 0.0
      %6273 = vmatpush1.msra.mxu0 0.0
      %6274 = vmatprep.subr.mxu0 0.0
      %6275 = vmatpush1.msra.mxu0 0.0
      %6276 = vmatprep.subr.mxu0 0.0
      %6277 = vmatpush1.msra.mxu0 0.0
      %6278 = vmatprep.subr.mxu0 0.0
      %6279 = vmatpush1.msra.mxu0 0.0
      %6280 = vmatprep.subr.mxu0 0.0
      %6281 = vmatpush1.msra.mxu0 0.0
      %6282 = vmatprep.subr.mxu0 0.0
      %6283 = vmatpush1.msra.mxu0 0.0
      %6284 = vmatprep.subr.mxu0 0.0
      %6285 = vmatpush1.msra.mxu0 0.0
      %6286 = vmatprep.subr.mxu0 0.0
      %6287 = vmatpush1.msra.mxu0 0.0
      %6288 = vmatprep.subr.mxu0 0.0
      %6289 = vmatpush1.msra.mxu0 0.0
      %6290 = vmatprep.subr.mxu0 0.0
      %6291 = vmatpush1.msra.mxu0 0.0
      %6292 = vmatprep.subr.mxu0 0.0
      %6293 = vmatpush1.msra.mxu0 0.0
      %6294 = vmatprep.subr.mxu0 0.0
      %6295 = vmatpush1.msra.mxu0 0.0
      %6296 = vmatprep.subr.mxu0 0.0
      %6297 = vmatpush1.msra.mxu0 0.0
      %6298 = vmatprep.subr.mxu0 0.0
      %6299 = vmatpush1.msra.mxu0 0.0
      %6300 = vmatprep.subr.mxu0 0.0
      %6301 = vmatpush1.msra.mxu0 0.0
      %6302 = vmatprep.subr.mxu0 0.0
      %6303 = vmatpush1.msra.mxu0 0.0
      %6304 = vmatprep.subr.mxu0 0.0
      %6305 = vmatpush1.msra.mxu0 0.0
      %6306 = vmatprep.subr.mxu0 0.0
      %6307 = vmatpush1.msra.mxu0 0.0
      %6308 = vmatprep.subr.mxu0 0.0
      %6309 = vmatpush1.msra.mxu0 0.0
      %6310 = vmatprep.subr.mxu0 0.0
      %6311 = vmatpush1.msra.mxu0 0.0
      %6312 = vmatprep.subr.mxu0 0.0
      %6313 = vmatpush1.msra.mxu0 0.0
      %6314 = vmatprep.subr.mxu0 0.0
      %6315 = vmatpush1.msra.mxu0 0.0
      %6316 = vmatprep.subr.mxu0 0.0
      %6317 = vmatpush1.msra.mxu0 0.0
      %6318 = vmatprep.subr.mxu0 0.0
      %6319 = vmatpush1.msra.mxu0 0.0
      %6320 = vmatprep.subr.mxu0 0.0
      %6321 = vmatpush1.msra.mxu0 0.0
      %6322 = vmatprep.subr.mxu0 0.0
      %6323 = vmatpush1.msra.mxu0 0.0
      %6324 = vmatprep.subr.mxu0 0.0
      %6325 = vmatpush1.msra.mxu0 0.0
      %6326 = vmatprep.subr.mxu0 0.0
      %6327 = vmatpush1.msra.mxu0 0.0
      %6328 = vmatprep.mubr.f32.mxu0 0.0
      %6329 = vmatmul.mubr.f32.gmra.mrb[0].mxu0 %v6262
      %v6330 = vpop.f32.mrb[0].mxu0
      %v6331 = vadd.f32 %v6259, %v6330
      %v6332 = vpop.f32.mrb[0].mxu0
      %v6333 = vadd.f32 %v6259, %v6332
      %6334 = vdwg.mxu0
      %6335 = vmatprep.subr.mxu0 %v6076
      %6336 = vmatpush1.msra.mxu0 %v6074
      %6337 = vmatprep.subr.mxu0 %v6082
      %6338 = vmatpush1.msra.mxu0 %v6080
      %6339 = vmatprep.subr.mxu0 0.0
      %6340 = vmatpush1.msra.mxu0 0.0
      %6341 = vmatprep.subr.mxu0 0.0
      %6342 = vmatpush1.msra.mxu0 0.0
      %6343 = vmatprep.subr.mxu0 0.0
      %6344 = vmatpush1.msra.mxu0 0.0
      %6345 = vmatprep.subr.mxu0 0.0
      %6346 = vmatpush1.msra.mxu0 0.0
      %6347 = vmatprep.subr.mxu0 0.0
      %6348 = vmatpush1.msra.mxu0 0.0
      %6349 = vmatprep.subr.mxu0 0.0
      %6350 = vmatpush1.msra.mxu0 0.0
      %6351 = vmatprep.subr.mxu0 0.0
      %6352 = vmatpush1.msra.mxu0 0.0
      %6353 = vmatprep.subr.mxu0 0.0
      %6354 = vmatpush1.msra.mxu0 0.0
      %6355 = vmatprep.subr.mxu0 0.0
      %6356 = vmatpush1.msra.mxu0 0.0
      %6357 = vmatprep.subr.mxu0 0.0
      %6358 = vmatpush1.msra.mxu0 0.0
      %6359 = vmatprep.subr.mxu0 0.0
      %6360 = vmatpush1.msra.mxu0 0.0
      %6361 = vmatprep.subr.mxu0 0.0
      %6362 = vmatpush1.msra.mxu0 0.0
      %6363 = vmatprep.subr.mxu0 0.0
      %6364 = vmatpush1.msra.mxu0 0.0
      %6365 = vmatprep.subr.mxu0 0.0
      %6366 = vmatpush1.msra.mxu0 0.0
      %6367 = vmatprep.subr.mxu0 0.0
      %6368 = vmatpush1.msra.mxu0 0.0
      %6369 = vmatprep.subr.mxu0 0.0
      %6370 = vmatpush1.msra.mxu0 0.0
      %6371 = vmatprep.subr.mxu0 0.0
      %6372 = vmatpush1.msra.mxu0 0.0
      %6373 = vmatprep.subr.mxu0 0.0
      %6374 = vmatpush1.msra.mxu0 0.0
      %6375 = vmatprep.subr.mxu0 0.0
      %6376 = vmatpush1.msra.mxu0 0.0
      %6377 = vmatprep.subr.mxu0 0.0
      %6378 = vmatpush1.msra.mxu0 0.0
      %6379 = vmatprep.subr.mxu0 0.0
      %6380 = vmatpush1.msra.mxu0 0.0
      %6381 = vmatprep.subr.mxu0 0.0
      %6382 = vmatpush1.msra.mxu0 0.0
      %6383 = vmatprep.subr.mxu0 0.0
      %6384 = vmatpush1.msra.mxu0 0.0
      %6385 = vmatprep.subr.mxu0 0.0
      %6386 = vmatpush1.msra.mxu0 0.0
      %6387 = vmatprep.subr.mxu0 0.0
      %6388 = vmatpush1.msra.mxu0 0.0
      %6389 = vmatprep.subr.mxu0 0.0
      %6390 = vmatpush1.msra.mxu0 0.0
      %6391 = vmatprep.subr.mxu0 0.0
      %6392 = vmatpush1.msra.mxu0 0.0
      %6393 = vmatprep.subr.mxu0 0.0
      %6394 = vmatpush1.msra.mxu0 0.0
      %6395 = vmatprep.subr.mxu0 0.0
      %6396 = vmatpush1.msra.mxu0 0.0
      %6397 = vmatprep.subr.mxu0 0.0
      %6398 = vmatpush1.msra.mxu0 0.0
      %6399 = vmatprep.mubr.f32.mxu0 0.0
      %6400 = vmatmul.mubr.f32.gmra.mrb[0].mxu0 %v6262
      %v6401 = vpop.f32.mrb[0].mxu0
      %v6402 = vadd.f32 %v6259, %v6401
      %v6403 = vpop.f32.mrb[0].mxu0
      %v6404 = vadd.f32 %v6259, %v6403
      %6405 = vdwg.mxu0
      %6406 = vmatprep.subr.mxu0 %v6153
      %6407 = vmatpush1.msra.mxu0 %v6151
      %6408 = vmatprep.subr.mxu0 %v6159
      %6409 = vmatpush1.msra.mxu0 %v6157
      %6410 = vmatprep.subr.mxu0 0.0
      %6411 = vmatpush1.msra.mxu0 0.0
      %6412 = vmatprep.subr.mxu0 0.0
      %6413 = vmatpush1.msra.mxu0 0.0
      %6414 = vmatprep.subr.mxu0 0.0
      %6415 = vmatpush1.msra.mxu0 0.0
      %6416 = vmatprep.subr.mxu0 0.0
      %6417 = vmatpush1.msra.mxu0 0.0
      %6418 = vmatprep.subr.mxu0 0.0
      %6419 = vmatpush1.msra.mxu0 0.0
      %6420 = vmatprep.subr.mxu0 0.0
      %6421 = vmatpush1.msra.mxu0 0.0
      %6422 = vmatprep.subr.mxu0 0.0
      %6423 = vmatpush1.msra.mxu0 0.0
      %6424 = vmatprep.subr.mxu0 0.0
      %6425 = vmatpush1.msra.mxu0 0.0
      %6426 = vmatprep.subr.mxu0 0.0
      %6427 = vmatpush1.msra.mxu0 0.0
      %6428 = vmatprep.subr.mxu0 0.0
      %6429 = vmatpush1.msra.mxu0 0.0
      %6430 = vmatprep.subr.mxu0 0.0
      %6431 = vmatpush1.msra.mxu0 0.0
      %6432 = vmatprep.subr.mxu0 0.0
      %6433 = vmatpush1.msra.mxu0 0.0
      %6434 = vmatprep.subr.mxu0 0.0
      %6435 = vmatpush1.msra.mxu0 0.0
      %6436 = vmatprep.subr.mxu0 0.0
      %6437 = vmatpush1.msra.mxu0 0.0
      %6438 = vmatprep.subr.mxu0 0.0
      %6439 = vmatpush1.msra.mxu0 0.0
      %6440 = vmatprep.subr.mxu0 0.0
      %6441 = vmatpush1.msra.mxu0 0.0
      %6442 = vmatprep.subr.mxu0 0.0
      %6443 = vmatpush1.msra.mxu0 0.0
      %6444 = vmatprep.subr.mxu0 0.0
      %6445 = vmatpush1.msra.mxu0 0.0
      %6446 = vmatprep.subr.mxu0 0.0
      %6447 = vmatpush1.msra.mxu0 0.0
      %6448 = vmatprep.subr.mxu0 0.0
      %6449 = vmatpush1.msra.mxu0 0.0
      %6450 = vmatprep.subr.mxu0 0.0
      %6451 = vmatpush1.msra.mxu0 0.0
      %6452 = vmatprep.subr.mxu0 0.0
      %6453 = vmatpush1.msra.mxu0 0.0
      %6454 = vmatprep.subr.mxu0 0.0
      %6455 = vmatpush1.msra.mxu0 0.0
      %6456 = vmatprep.subr.mxu0 0.0
      %6457 = vmatpush1.msra.mxu0 0.0
      %6458 = vmatprep.subr.mxu0 0.0
      %6459 = vmatpush1.msra.mxu0 0.0
      %6460 = vmatprep.subr.mxu0 0.0
      %6461 = vmatpush1.msra.mxu0 0.0
      %6462 = vmatprep.subr.mxu0 0.0
      %6463 = vmatpush1.msra.mxu0 0.0
      %6464 = vmatprep.subr.mxu0 0.0
      %6465 = vmatpush1.msra.mxu0 0.0
      %6466 = vmatprep.subr.mxu0 0.0
      %6467 = vmatpush1.msra.mxu0 0.0
      %6468 = vmatprep.subr.mxu0 0.0
      %6469 = vmatpush1.msra.mxu0 0.0
      %6470 = vmatprep.mubr.f32.mxu0 0.0
      %6471 = vmatmul.mubr.f32.gmra.mrb[0].mxu0 %v6262
      %v6472 = vpop.f32.mrb[0].mxu0
      %v6473 = vadd.f32 %v6259, %v6472
      %v6474 = vpop.f32.mrb[0].mxu0
      %v6475 = vadd.f32 %v6259, %v6474
      %6476 = vdwg.mxu0
      %6477 = vmatprep.subr.mxu0 %v6230
      %6478 = vmatpush1.msra.mxu0 %v6228
      %6479 = vmatprep.subr.mxu0 %v6236
      %6480 = vmatpush1.msra.mxu0 %v6234
      %6481 = vmatprep.subr.mxu0 0.0
      %6482 = vmatpush1.msra.mxu0 0.0
      %6483 = vmatprep.subr.mxu0 0.0
      %6484 = vmatpush1.msra.mxu0 0.0
      %6485 = vmatprep.subr.mxu0 0.0
      %6486 = vmatpush1.msra.mxu0 0.0
      %6487 = vmatprep.subr.mxu0 0.0
      %6488 = vmatpush1.msra.mxu0 0.0
      %6489 = vmatprep.subr.mxu0 0.0
      %6490 = vmatpush1.msra.mxu0 0.0
      %6491 = vmatprep.subr.mxu0 0.0
      %6492 = vmatpush1.msra.mxu0 0.0
      %6493 = vmatprep.subr.mxu0 0.0
      %6494 = vmatpush1.msra.mxu0 0.0
      %6495 = vmatprep.subr.mxu0 0.0
      %6496 = vmatpush1.msra.mxu0 0.0
      %6497 = vmatprep.subr.mxu0 0.0
      %6498 = vmatpush1.msra.mxu0 0.0
      %6499 = vmatprep.subr.mxu0 0.0
      %6500 = vmatpush1.msra.mxu0 0.0
      %6501 = vmatprep.subr.mxu0 0.0
      %6502 = vmatpush1.msra.mxu0 0.0
      %6503 = vmatprep.subr.mxu0 0.0
      %6504 = vmatpush1.msra.mxu0 0.0
      %6505 = vmatprep.subr.mxu0 0.0
      %6506 = vmatpush1.msra.mxu0 0.0
      %6507 = vmatprep.subr.mxu0 0.0
      %6508 = vmatpush1.msra.mxu0 0.0
      %6509 = vmatprep.subr.mxu0 0.0
      %6510 = vmatpush1.msra.mxu0 0.0
      %6511 = vmatprep.subr.mxu0 0.0
      %6512 = vmatpush1.msra.mxu0 0.0
      %6513 = vmatprep.subr.mxu0 0.0
      %6514 = vmatpush1.msra.mxu0 0.0
      %6515 = vmatprep.subr.mxu0 0.0
      %6516 = vmatpush1.msra.mxu0 0.0
      %6517 = vmatprep.subr.mxu0 0.0
      %6518 = vmatpush1.msra.mxu0 0.0
      %6519 = vmatprep.subr.mxu0 0.0
      %6520 = vmatpush1.msra.mxu0 0.0
      %6521 = vmatprep.subr.mxu0 0.0
      %6522 = vmatpush1.msra.mxu0 0.0
      %6523 = vmatprep.subr.mxu0 0.0
      %6524 = vmatpush1.msra.mxu0 0.0
      %6525 = vmatprep.subr.mxu0 0.0
      %6526 = vmatpush1.msra.mxu0 0.0
      %6527 = vmatprep.subr.mxu0 0.0
      %6528 = vmatpush1.msra.mxu0 0.0
      %6529 = vmatprep.subr.mxu0 0.0
      %6530 = vmatpush1.msra.mxu0 0.0
      %6531 = vmatprep.subr.mxu0 0.0
      %6532 = vmatpush1.msra.mxu0 0.0
      %6533 = vmatprep.subr.mxu0 0.0
      %6534 = vmatpush1.msra.mxu0 0.0
      %6535 = vmatprep.subr.mxu0 0.0
      %6536 = vmatpush1.msra.mxu0 0.0
      %6537 = vmatprep.subr.mxu0 0.0
      %6538 = vmatpush1.msra.mxu0 0.0
      %6539 = vmatprep.subr.mxu0 0.0
      %6540 = vmatpush1.msra.mxu0 0.0
      %6541 = vmatprep.mubr.f32.mxu0 0.0
      %6542 = vmatmul.mubr.f32.gmra.mrb[0].mxu0 %v6262
      %v6543 = vpop.f32.mrb[0].mxu0
      %v6544 = vadd.f32 %v6259, %v6543
      %v6545 = vpop.f32.mrb[0].mxu0
      %v6546 = vadd.f32 %v6259, %v6545
      %6547 = vdwg.mxu0
      %v6548 = vld [vmem:[%s24] sm:$0xf]
      %v6549 = vld [vmem:[%s25] sm:$0xf]
      %6551 = vset.pattern.permute.xlu0 0
      %6552 = vperm.xlu0 %6551, %v6549
      %v6553 = vpop.permute.xlu0 %6552
      %vm6555 = vcmask 31744
      %v6557 = vsel %vm6555, %v6548, 0
      %vm6559 = vcmask 1043456
      %v6561 = vsel %vm6559, %v6331, 0
      %v6564 = vsel %vm6559, %v6333, 0
      %v6567 = vsel %vm6559, %v6402, 0
      %v6570 = vsel %vm6559, %v6404, 0
      %v6573 = vsel %vm6559, %v6473, 0
      %v6576 = vsel %vm6559, %v6475, 0
      %v6579 = vsel %vm6559, %v6544, 0
      %v6582 = vsel %vm6559, %v6546, 0
      %6584 = vmatprep.subr.mxu0 %v6564
      %6585 = vmatpush1.msra.mxu0 %v6561
      %6586 = vmatprep.subr.mxu0 0.0
      %6587 = vmatpush1.msra.mxu0 0.0
      %6588 = vmatprep.subr.mxu0 0.0
      %6589 = vmatpush1.msra.mxu0 0.0
      %6590 = vmatprep.subr.mxu0 0.0
      %6591 = vmatpush1.msra.mxu0 0.0
      %6592 = vmatprep.subr.mxu0 0.0
      %6593 = vmatpush1.msra.mxu0 0.0
      %6594 = vmatprep.subr.mxu0 0.0
      %6595 = vmatpush1.msra.mxu0 0.0
      %6596 = vmatprep.subr.mxu0 0.0
      %6597 = vmatpush1.msra.mxu0 0.0
      %6598 = vmatprep.subr.mxu0 0.0
      %6599 = vmatpush1.msra.mxu0 0.0
      %6600 = vmatprep.subr.mxu0 0.0
      %6601 = vmatpush1.msra.mxu0 0.0
      %6602 = vmatprep.subr.mxu0 0.0
      %6603 = vmatpush1.msra.mxu0 0.0
      %6604 = vmatprep.subr.mxu0 0.0
      %6605 = vmatpush1.msra.mxu0 0.0
      %6606 = vmatprep.subr.mxu0 0.0
      %6607 = vmatpush1.msra.mxu0 0.0
      %6608 = vmatprep.subr.mxu0 0.0
      %6609 = vmatpush1.msra.mxu0 0.0
      %6610 = vmatprep.subr.mxu0 0.0
      %6611 = vmatpush1.msra.mxu0 0.0
      %6612 = vmatprep.subr.mxu0 0.0
      %6613 = vmatpush1.msra.mxu0 0.0
      %6614 = vmatprep.subr.mxu0 0.0
      %6615 = vmatpush1.msra.mxu0 0.0
      %6616 = vmatprep.subr.mxu0 0.0
      %6617 = vmatpush1.msra.mxu0 0.0
      %6618 = vmatprep.subr.mxu0 0.0
      %6619 = vmatpush1.msra.mxu0 0.0
      %6620 = vmatprep.subr.mxu0 0.0
      %6621 = vmatpush1.msra.mxu0 0.0
      %6622 = vmatprep.subr.mxu0 0.0
      %6623 = vmatpush1.msra.mxu0 0.0
      %6624 = vmatprep.subr.mxu0 0.0
      %6625 = vmatpush1.msra.mxu0 0.0
      %6626 = vmatprep.subr.mxu0 0.0
      %6627 = vmatpush1.msra.mxu0 0.0
      %6628 = vmatprep.subr.mxu0 0.0
      %6629 = vmatpush1.msra.mxu0 0.0
      %6630 = vmatprep.subr.mxu0 0.0
      %6631 = vmatpush1.msra.mxu0 0.0
      %6632 = vmatprep.subr.mxu0 0.0
      %6633 = vmatpush1.msra.mxu0 0.0
      %6634 = vmatprep.subr.mxu0 0.0
      %6635 = vmatpush1.msra.mxu0 0.0
      %6636 = vmatprep.subr.mxu0 0.0
      %6637 = vmatpush1.msra.mxu0 0.0
      %6638 = vmatprep.subr.mxu0 0.0
      %6639 = vmatpush1.msra.mxu0 0.0
      %6640 = vmatprep.subr.mxu0 0.0
      %6641 = vmatpush1.msra.mxu0 0.0
      %6642 = vmatprep.subr.mxu0 0.0
      %6643 = vmatpush1.msra.mxu0 0.0
      %6644 = vmatprep.subr.mxu0 0.0
      %6645 = vmatpush1.msra.mxu0 0.0
      %6646 = vmatprep.subr.mxu0 0.0
      %6647 = vmatpush1.msra.mxu0 0.0
      %6648 = vmatprep.mubr.f32.mxu0 0.0
      %6649 = vmatmul.mubr.f32.gmra.mrb[0].mxu0 %v6557
      %v6650 = vpop.f32.mrb[0].mxu0
      %v6651 = vadd.f32 %v6553, %v6650
      %v6652 = vpop.f32.mrb[0].mxu0
      %v6653 = vadd.f32 %v6553, %v6652
      %6654 = vdwg.mxu0
      %6655 = vmatprep.subr.mxu0 %v6570
      %6656 = vmatpush1.msra.mxu0 %v6567
      %6657 = vmatprep.subr.mxu0 0.0
      %6658 = vmatpush1.msra.mxu0 0.0
      %6659 = vmatprep.subr.mxu0 0.0
      %6660 = vmatpush1.msra.mxu0 0.0
      %6661 = vmatprep.subr.mxu0 0.0
      %6662 = vmatpush1.msra.mxu0 0.0
      %6663 = vmatprep.subr.mxu0 0.0
      %6664 = vmatpush1.msra.mxu0 0.0
      %6665 = vmatprep.subr.mxu0 0.0
      %6666 = vmatpush1.msra.mxu0 0.0
      %6667 = vmatprep.subr.mxu0 0.0
      %6668 = vmatpush1.msra.mxu0 0.0
      %6669 = vmatprep.subr.mxu0 0.0
      %6670 = vmatpush1.msra.mxu0 0.0
      %6671 = vmatprep.subr.mxu0 0.0
      %6672 = vmatpush1.msra.mxu0 0.0
      %6673 = vmatprep.subr.mxu0 0.0
      %6674 = vmatpush1.msra.mxu0 0.0
      %6675 = vmatprep.subr.mxu0 0.0
      %6676 = vmatpush1.msra.mxu0 0.0
      %6677 = vmatprep.subr.mxu0 0.0
      %6678 = vmatpush1.msra.mxu0 0.0
      %6679 = vmatprep.subr.mxu0 0.0
      %6680 = vmatpush1.msra.mxu0 0.0
      %6681 = vmatprep.subr.mxu0 0.0
      %6682 = vmatpush1.msra.mxu0 0.0
      %6683 = vmatprep.subr.mxu0 0.0
      %6684 = vmatpush1.msra.mxu0 0.0
      %6685 = vmatprep.subr.mxu0 0.0
      %6686 = vmatpush1.msra.mxu0 0.0
      %6687 = vmatprep.subr.mxu0 0.0
      %6688 = vmatpush1.msra.mxu0 0.0
      %6689 = vmatprep.subr.mxu0 0.0
      %6690 = vmatpush1.msra.mxu0 0.0
      %6691 = vmatprep.subr.mxu0 0.0
      %6692 = vmatpush1.msra.mxu0 0.0
      %6693 = vmatprep.subr.mxu0 0.0
      %6694 = vmatpush1.msra.mxu0 0.0
      %6695 = vmatprep.subr.mxu0 0.0
      %6696 = vmatpush1.msra.mxu0 0.0
      %6697 = vmatprep.subr.mxu0 0.0
      %6698 = vmatpush1.msra.mxu0 0.0
      %6699 = vmatprep.subr.mxu0 0.0
      %6700 = vmatpush1.msra.mxu0 0.0
      %6701 = vmatprep.subr.mxu0 0.0
      %6702 = vmatpush1.msra.mxu0 0.0
      %6703 = vmatprep.subr.mxu0 0.0
      %6704 = vmatpush1.msra.mxu0 0.0
      %6705 = vmatprep.subr.mxu0 0.0
      %6706 = vmatpush1.msra.mxu0 0.0
      %6707 = vmatprep.subr.mxu0 0.0
      %6708 = vmatpush1.msra.mxu0 0.0
      %6709 = vmatprep.subr.mxu0 0.0
      %6710 = vmatpush1.msra.mxu0 0.0
      %6711 = vmatprep.subr.mxu0 0.0
      %6712 = vmatpush1.msra.mxu0 0.0
      %6713 = vmatprep.subr.mxu0 0.0
      %6714 = vmatpush1.msra.mxu0 0.0
      %6715 = vmatprep.subr.mxu0 0.0
      %6716 = vmatpush1.msra.mxu0 0.0
      %6717 = vmatprep.subr.mxu0 0.0
      %6718 = vmatpush1.msra.mxu0 0.0
      %6719 = vmatprep.mubr.f32.mxu0 0.0
      %6720 = vmatmul.mubr.f32.gmra.mrb[0].mxu0 %v6557
      %v6721 = vpop.f32.mrb[0].mxu0
      %v6722 = vadd.f32 %v6553, %v6721
      %v6723 = vpop.f32.mrb[0].mxu0
      %v6724 = vadd.f32 %v6553, %v6723
      %6725 = vdwg.mxu0
      %6726 = vmatprep.subr.mxu0 %v6576
      %6727 = vmatpush1.msra.mxu0 %v6573
      %6728 = vmatprep.subr.mxu0 0.0
      %6729 = vmatpush1.msra.mxu0 0.0
      %6730 = vmatprep.subr.mxu0 0.0
      %6731 = vmatpush1.msra.mxu0 0.0
      %6732 = vmatprep.subr.mxu0 0.0
      %6733 = vmatpush1.msra.mxu0 0.0
      %6734 = vmatprep.subr.mxu0 0.0
      %6735 = vmatpush1.msra.mxu0 0.0
      %6736 = vmatprep.subr.mxu0 0.0
      %6737 = vmatpush1.msra.mxu0 0.0
      %6738 = vmatprep.subr.mxu0 0.0
      %6739 = vmatpush1.msra.mxu0 0.0
      %6740 = vmatprep.subr.mxu0 0.0
      %6741 = vmatpush1.msra.mxu0 0.0
      %6742 = vmatprep.subr.mxu0 0.0
      %6743 = vmatpush1.msra.mxu0 0.0
      %6744 = vmatprep.subr.mxu0 0.0
      %6745 = vmatpush1.msra.mxu0 0.0
      %6746 = vmatprep.subr.mxu0 0.0
      %6747 = vmatpush1.msra.mxu0 0.0
      %6748 = vmatprep.subr.mxu0 0.0
      %6749 = vmatpush1.msra.mxu0 0.0
      %6750 = vmatprep.subr.mxu0 0.0
      %6751 = vmatpush1.msra.mxu0 0.0
      %6752 = vmatprep.subr.mxu0 0.0
      %6753 = vmatpush1.msra.mxu0 0.0
      %6754 = vmatprep.subr.mxu0 0.0
      %6755 = vmatpush1.msra.mxu0 0.0
      %6756 = vmatprep.subr.mxu0 0.0
      %6757 = vmatpush1.msra.mxu0 0.0
      %6758 = vmatprep.subr.mxu0 0.0
      %6759 = vmatpush1.msra.mxu0 0.0
      %6760 = vmatprep.subr.mxu0 0.0
      %6761 = vmatpush1.msra.mxu0 0.0
      %6762 = vmatprep.subr.mxu0 0.0
      %6763 = vmatpush1.msra.mxu0 0.0
      %6764 = vmatprep.subr.mxu0 0.0
      %6765 = vmatpush1.msra.mxu0 0.0
      %6766 = vmatprep.subr.mxu0 0.0
      %6767 = vmatpush1.msra.mxu0 0.0
      %6768 = vmatprep.subr.mxu0 0.0
      %6769 = vmatpush1.msra.mxu0 0.0
      %6770 = vmatprep.subr.mxu0 0.0
      %6771 = vmatpush1.msra.mxu0 0.0
      %6772 = vmatprep.subr.mxu0 0.0
      %6773 = vmatpush1.msra.mxu0 0.0
      %6774 = vmatprep.subr.mxu0 0.0
      %6775 = vmatpush1.msra.mxu0 0.0
      %6776 = vmatprep.subr.mxu0 0.0
      %6777 = vmatpush1.msra.mxu0 0.0
      %6778 = vmatprep.subr.mxu0 0.0
      %6779 = vmatpush1.msra.mxu0 0.0
      %6780 = vmatprep.subr.mxu0 0.0
      %6781 = vmatpush1.msra.mxu0 0.0
      %6782 = vmatprep.subr.mxu0 0.0
      %6783 = vmatpush1.msra.mxu0 0.0
      %6784 = vmatprep.subr.mxu0 0.0
      %6785 = vmatpush1.msra.mxu0 0.0
      %6786 = vmatprep.subr.mxu0 0.0
      %6787 = vmatpush1.msra.mxu0 0.0
      %6788 = vmatprep.subr.mxu0 0.0
      %6789 = vmatpush1.msra.mxu0 0.0
      %6790 = vmatprep.mubr.f32.mxu0 0.0
      %6791 = vmatmul.mubr.f32.gmra.mrb[0].mxu0 %v6557
      %v6792 = vpop.f32.mrb[0].mxu0
      %v6793 = vadd.f32 %v6553, %v6792
      %v6794 = vpop.f32.mrb[0].mxu0
      %v6795 = vadd.f32 %v6553, %v6794
      %6796 = vdwg.mxu0
      %6797 = vmatprep.subr.mxu0 %v6582
      %6798 = vmatpush1.msra.mxu0 %v6579
      %6799 = vmatprep.subr.mxu0 0.0
      %6800 = vmatpush1.msra.mxu0 0.0
      %6801 = vmatprep.subr.mxu0 0.0
      %6802 = vmatpush1.msra.mxu0 0.0
      %6803 = vmatprep.subr.mxu0 0.0
      %6804 = vmatpush1.msra.mxu0 0.0
      %6805 = vmatprep.subr.mxu0 0.0
      %6806 = vmatpush1.msra.mxu0 0.0
      %6807 = vmatprep.subr.mxu0 0.0
      %6808 = vmatpush1.msra.mxu0 0.0
      %6809 = vmatprep.subr.mxu0 0.0
      %6810 = vmatpush1.msra.mxu0 0.0
      %6811 = vmatprep.subr.mxu0 0.0
      %6812 = vmatpush1.msra.mxu0 0.0
      %6813 = vmatprep.subr.mxu0 0.0
      %6814 = vmatpush1.msra.mxu0 0.0
      %6815 = vmatprep.subr.mxu0 0.0
      %6816 = vmatpush1.msra.mxu0 0.0
      %6817 = vmatprep.subr.mxu0 0.0
      %6818 = vmatpush1.msra.mxu0 0.0
      %6819 = vmatprep.subr.mxu0 0.0
      %6820 = vmatpush1.msra.mxu0 0.0
      %6821 = vmatprep.subr.mxu0 0.0
      %6822 = vmatpush1.msra.mxu0 0.0
      %6823 = vmatprep.subr.mxu0 0.0
      %6824 = vmatpush1.msra.mxu0 0.0
      %6825 = vmatprep.subr.mxu0 0.0
      %6826 = vmatpush1.msra.mxu0 0.0
      %6827 = vmatprep.subr.mxu0 0.0
      %6828 = vmatpush1.msra.mxu0 0.0
      %6829 = vmatprep.subr.mxu0 0.0
      %6830 = vmatpush1.msra.mxu0 0.0
      %6831 = vmatprep.subr.mxu0 0.0
      %6832 = vmatpush1.msra.mxu0 0.0
      %6833 = vmatprep.subr.mxu0 0.0
      %6834 = vmatpush1.msra.mxu0 0.0
      %6835 = vmatprep.subr.mxu0 0.0
      %6836 = vmatpush1.msra.mxu0 0.0
      %6837 = vmatprep.subr.mxu0 0.0
      %6838 = vmatpush1.msra.mxu0 0.0
      %6839 = vmatprep.subr.mxu0 0.0
      %6840 = vmatpush1.msra.mxu0 0.0
      %6841 = vmatprep.subr.mxu0 0.0
      %6842 = vmatpush1.msra.mxu0 0.0
      %6843 = vmatprep.subr.mxu0 0.0
      %6844 = vmatpush1.msra.mxu0 0.0
      %6845 = vmatprep.subr.mxu0 0.0
      %6846 = vmatpush1.msra.mxu0 0.0
      %6847 = vmatprep.subr.mxu0 0.0
      %6848 = vmatpush1.msra.mxu0 0.0
      %6849 = vmatprep.subr.mxu0 0.0
      %6850 = vmatpush1.msra.mxu0 0.0
      %6851 = vmatprep.subr.mxu0 0.0
      %6852 = vmatpush1.msra.mxu0 0.0
      %6853 = vmatprep.subr.mxu0 0.0
      %6854 = vmatpush1.msra.mxu0 0.0
      %6855 = vmatprep.subr.mxu0 0.0
      %6856 = vmatpush1.msra.mxu0 0.0
      %6857 = vmatprep.subr.mxu0 0.0
      %6858 = vmatpush1.msra.mxu0 0.0
      %6859 = vmatprep.subr.mxu0 0.0
      %6860 = vmatpush1.msra.mxu0 0.0
      %6861 = vmatprep.mubr.f32.mxu0 0.0
      %6862 = vmatmul.mubr.f32.gmra.mrb[0].mxu0 %v6557
      %v6863 = vpop.f32.mrb[0].mxu0
      %v6864 = vadd.f32 %v6553, %v6863
      %v6865 = vpop.f32.mrb[0].mxu0
      %v6866 = vadd.f32 %v6553, %v6865
      %6867 = vdwg.mxu0
      %6868 = vst [vmem:[%s831] sm:$0xf] %v6331
      %6869 = vst [vmem:[%s831 + $0x8] sm:$0xf] %v6333
      %6870 = vst [vmem:[%s831 + $0x10] sm:$0xf] %v6402
      %6871 = vst [vmem:[%s831 + $0x18] sm:$0xf] %v6404
      %6872 = vst [vmem:[%s831 + $0x20] sm:$0xf] %v6473
      %6873 = vst [vmem:[%s831 + $0x28] sm:$0xf] %v6475
      %6874 = vst [vmem:[%s831 + $0x30] sm:$0xf] %v6544
      %6875 = vst [vmem:[%s831 + $0x38] sm:$0xf] %v6546
      %v6884 = vrot.slane %v6651, 4
      %v6885 = vrot.slane %v6653, 4
      %v6886 = vrot.slane %v6722, 4
      %v6887 = vrot.slane %v6724, 4
      %v6888 = vrot.slane %v6793, 4
      %v6889 = vrot.slane %v6795, 4
      %v6890 = vrot.slane %v6864, 4
      %v6891 = vrot.slane %v6866, 4
      %6900 = vst [vmem:[%s831] sm:$0xf0] %v6884
      %6901 = vst [vmem:[%s831 + $0x8] sm:$0xf0] %v6885
      %6902 = vst [vmem:[%s831 + $0x10] sm:$0xf0] %v6886
      %6903 = vst [vmem:[%s831 + $0x18] sm:$0xf0] %v6887
      %6904 = vst [vmem:[%s831 + $0x20] sm:$0xf0] %v6888
      %6905 = vst [vmem:[%s831 + $0x28] sm:$0xf0] %v6889
      %6906 = vst [vmem:[%s831 + $0x30] sm:$0xf0] %v6890
      %6907 = vst [vmem:[%s831 + $0x38] sm:$0xf0] %v6891
      %p6908 = scmp.lt.s32.totalorder %s39, 1
      %s6909 = scalar_select %p6908, %s39, 1
      %s6910 = smul.addr %s6909, 16
      %s6911 = smul.addr %s6910, 8
      %s6912 = scalar_lea.vmem %s26, %s6911
      %p6913 = scmp.lt.s32.totalorder %s39, 1
      %s6914 = scalar_select %p6913, %s39, 1
      %s6915 = smul.addr %s6914, 8
      %s6916 = smul.addr %s6915, 8
      %s6917 = scalar_lea.vmem %s27, %s6916
      // Predicated region
      $region125: #{resdb_forward.2} parent=123 // pred_check
        %p6918 = pneg %p608
      $region126: #{resdb_forward.2} parent=123 // pred_check_branch
        %6920 = sbr.rel (%p6918) target = $region128
      $region127: #{resdb_forward.2} parent=123 // pred_region
        _
      $region128: #{resdb_forward.2} parent=123 // pred_fallthru
        _
      // Predicated region
      $region129: #{resdb_forward.2} parent=123 // pred_check
        %p6921 = pneg %p634
      $region130: #{resdb_forward.2} parent=123 // pred_check_branch
        %6923 = sbr.rel (%p6921) target = $region132
      $region131: #{resdb_forward.2} parent=123 // pred_region
        _
      $region132: #{resdb_forward.2} parent=123 // pred_fallthru
        _
    $region124: #{resdb_forward.2} parent=5 // pred_fallthru
      _
    %p6924 = scmp.le.s32.totalorder 2, %s34
    // Predicated region
    $region133: #{resdb_forward.2} parent=5 // pred_check
      %p6925 = pneg %p6924
    $region134: #{resdb_forward.2} parent=5 // pred_check_branch
      %6927 = sbr.rel (%p6925) target = $region136
    $region135: #{resdb_forward.2} parent=5 // pred_region
      %s6928 = ssub.s32 %s34, 2
      // Predicated region
      $region137: #{resdb_forward.2} parent=135 // pred_check
        %p6929 = pneg %p614
      $region138: #{resdb_forward.2} parent=135 // pred_check_branch
        %6931 = sbr.rel (%p6929) target = $region140
      $region139: #{resdb_forward.2} parent=135 // pred_region
        %p6932 = scmp.lt.s32.totalorder %s40, 1
        %s6933 = scalar_select %p6932, %s40, 1
        %s6934 = smul.addr %s6933, 16
        %s6935 = smul.addr %s6934, 8
        %s6936 = scalar_lea.vmem %s26, %s6935
      $region140: #{resdb_forward.2} parent=135 // pred_fallthru
        _
      // Predicated region
      $region141: #{resdb_forward.2} parent=135 // pred_check
        %p6937 = pneg %p640
      $region142: #{resdb_forward.2} parent=135 // pred_check_branch
        %6939 = sbr.rel (%p6937) target = $region144
      $region143: #{resdb_forward.2} parent=135 // pred_region
        %p6940 = scmp.lt.s32.totalorder %s40, 1
        %s6941 = scalar_select %p6940, %s40, 1
        %s6942 = smul.addr %s6941, 8
        %s6943 = smul.addr %s6942, 8
        %s6944 = scalar_lea.vmem %s27, %s6943
      $region144: #{resdb_forward.2} parent=135 // pred_fallthru
        _
    $region136: #{resdb_forward.2} parent=5 // pred_fallthru
      _
  $region6: #{resdb_forward.2} parent=0 // loop_footer
    %s38 = sadd.s32 1, %s34
  $region7: #{resdb_forward.2} parent=0 // loop_footer_branch
    %33 = sbr.rel target = $region3
  $region8: #{resdb_forward.2} parent=0 // loop_exit
    _

</llo_original>
